<compile_context>
chip_gen: v6e
topology: v6e:2x2x1
jax: 0.10.0
libtpu: 0.0.40
codegen_flags: <defaults>
</compile_context>

<pallas_src>
import functools

import jax
import jax.numpy as jnp
from jax import lax
from jax.experimental import pallas as pl
from jax.experimental.pallas import tpu as pltpu

_MIB = 1024 * 1024


def _vmem_limit_bytes():
    """Per-generation VMEM request: ~52 MiB on v7x (64 MiB/TC), ~104 MiB on v5e/v6e (128 MiB).
    Falls back to the v7x-safe value if hardware info is unavailable."""
    cap = 64 * _MIB
    try:
        cap = int(pltpu.get_tpu_info().vmem_capacity_bytes)
    except Exception:
        pass
    return (cap * 13) // 16


def _plan(K, N, C, H, W, B):
    """Choose the k-tile size so that ALL resident VMEM buffers fit the budget, plus the
    megacore K-split factor used when B == 1 (v7x second TensorCore)."""
    vmem_limit = _vmem_limit_bytes()
    budget = vmem_limit - 4 * _MIB
    # tk-independent residents: acc (C,N) f32 x2 + coil (C,N) bf16 x2 + sens bf16 (x2 bufs)
    # + rhs/out f32 (x2 bufs).
    fixed = 20 * C * N + 32 * N
    # per unit of tk: er/ei bf16 scratch + double-buffered phasor slices + md + init.
    per_tk = 4 * N + 16 * (H + W) + 16 * C + 8
    tk = (budget - fixed) // per_tk
    if tk >= 256:
        tk = (tk // 256) * 256        # 256-multiples feed the 256-wide MXU (v6e/v7x)
    else:
        tk = 128                      # minimum lane-aligned tile
    kcap = pl.cdiv(K, 128) * 128      # no point tiling beyond (padded) K
    tk = max(128, min(tk, kcap))

    n_tiles = pl.cdiv(K, tk)
    split = 2 if B == 1 else 1        # engage the 2nd TensorCore when batch alone can't
    steps_per_split = pl.cdiv(n_tiles, split)
    k_padded = split * steps_per_split * tk
    return tk, split, steps_per_split, k_padded, vmem_limit


def _dc_pallas(rhs_r, rhs_i, sens_r, sens_i, cx, sx, cy, sy, md, ikr, iki,
               *, tk, split, steps_per_split, H, W, vmem_limit):
    B, C, N = sens_r.shape

    def kmap(b, s, kt):                       # k-tiled, K as 2nd array axis
        return (b, s * steps_per_split + kt, 0)

    def kmap_last(b, s, kt):                  # k-tiled, K as last array axis
        return (b, 0, s * steps_per_split + kt)

    def bmap(b, s, kt):                       # resident per batch
        return (b, 0, 0)

    def omap(b, s, kt):                       # one partial output per (split, batch)
        return (s, b, 0, 0)

    def kernel(rhs_r_ref, rhs_i_ref, sens_r_ref, sens_i_ref,
               cx_ref, sx_ref, cy_ref, sy_ref,
               md_ref, ikr_ref, iki_ref,
               out_r_ref, out_i_ref,
               coil_r_s, coil_i_s, er_s, ei_s, acc_r_s, acc_i_s):
        kt = pl.program_id(2)

        # ---- per-(batch, split) init: coil images (hoisted out of the K loop) + accumulator ----
        @pl.when(kt == 0)
        def _():
            rr = rhs_r_ref[0]                                # (1, N) f32
            ri = rhs_i_ref[0]
            sr = sens_r_ref[0].astype(jnp.float32)           # (C, N)
            si = sens_i_ref[0].astype(jnp.float32)
            coil_r_s[...] = (rr * sr - ri * si).astype(jnp.bfloat16)
            coil_i_s[...] = (rr * si + ri * sr).astype(jnp.bfloat16)
            acc_r_s[...] = jnp.zeros_like(acc_r_s)
            acc_i_s[...] = jnp.zeros_like(acc_i_s)

        # ---- regenerate the E tile (tk, N) in VMEM from separable per-axis phasors ----
        #   E[k, x*W + y] = exp(-i (kx[k]*x + ky[k]*y))
        #   er =  cos(px)cos(py) - sin(px)sin(py)
        #   ei = -(sin(px)cos(py) + cos(px)sin(py))
        cxv = cx_ref[0]          # (tk, H) f32  cos(kx*x)
        sxv = sx_ref[0]          # (tk, H)      sin(kx*x)
        cyv = cy_ref[0]          # (tk, W)      cos(ky*y)
        syv = sy_ref[0]          # (tk, W)      sin(ky*y)
        # TODO(synk): for large H replace the unrolled Python loop with lax.fori_loop +
        #             pl.ds/pl.multiple_of stores (W is lane-aligned at realistic sizes).
        for x in range(H):
            cxx = cxv[:, x:x + 1]
            sxx = sxv[:, x:x + 1]
            er_s[:, x * W:(x + 1) * W] = (cxx * cyv - sxx * syv).astype(jnp.bfloat16)
            ei_s[:, x * W:(x + 1) * W] = (-(sxx * cyv + cxx * syv)).astype(jnp.bfloat16)
        er = er_s[...]           # (tk, N) bf16
        ei = ei_s[...]

        # ---- forward NUDFT (op): kspace (C, tk), plain 4-mult complex matmul ----
        nt = (((1,), (1,)), ((), ()))   # contract the pixel dim N, NT-style (no E transpose)
        cr = coil_r_s[...]
        ci = coil_i_s[...]
        ks_r = (lax.dot_general(cr, er, nt, preferred_element_type=jnp.float32)
                - lax.dot_general(ci, ei, nt, preferred_element_type=jnp.float32))
        ks_i = (lax.dot_general(cr, ei, nt, preferred_element_type=jnp.float32)
                + lax.dot_general(ci, er, nt, preferred_element_type=jnp.float32))

        # ---- data consistency: (kspace*mask - init_kspace)*dcomp, dcomp pre-folded on host ----
        mdv = md_ref[0]                  # (1, tk) = mask * dcomp
        w_r = (ks_r * mdv - ikr_ref[0]).astype(jnp.bfloat16)   # (C, tk)
        w_i = (ks_i * mdv - iki_ref[0]).astype(jnp.bfloat16)

        # ---- adjoint NUDFT (op_adj) with conj(E): accumulate per-coil images across k-tiles ----
        acc_r_s[...] += (jnp.dot(w_r, er, preferred_element_type=jnp.float32)
                         + jnp.dot(w_i, ei, preferred_element_type=jnp.float32))
        acc_i_s[...] += (jnp.dot(w_i, er, preferred_element_type=jnp.float32)
                         - jnp.dot(w_r, ei, preferred_element_type=jnp.float32))

        # ---- coil combine with conj(sens): only once per (batch, split), at the last k-tile ----
        @pl.when(kt == pl.num_programs(2) - 1)
        def _():
            sr = sens_r_ref[0].astype(jnp.float32)
            si = sens_i_ref[0].astype(jnp.float32)
            ca_r = acc_r_s[...]
            ca_i = acc_i_s[...]
            out_r_ref[0, 0] = jnp.sum(sr * ca_r + si * ca_i, axis=0, keepdims=True)
            out_i_ref[0, 0] = jnp.sum(sr * ca_i - si * ca_r, axis=0, keepdims=True)

    in_specs = [
        pl.BlockSpec((1, 1, N), bmap),        # rhs_r   (resident per batch)
        pl.BlockSpec((1, 1, N), bmap),        # rhs_i
        pl.BlockSpec((1, C, N), bmap),        # sens_r  (bf16, all coils at once)
        pl.BlockSpec((1, C, N), bmap),        # sens_i
        pl.BlockSpec((1, tk, H), kmap),       # cos(kx*x)
        pl.BlockSpec((1, tk, H), kmap),       # sin(kx*x)
        pl.BlockSpec((1, tk, W), kmap),       # cos(ky*y)
        pl.BlockSpec((1, tk, W), kmap),       # sin(ky*y)
        pl.BlockSpec((1, 1, tk), kmap_last),  # mask*dcomp
        pl.BlockSpec((1, C, tk), kmap_last),  # Re(init*dcomp)
        pl.BlockSpec((1, C, tk), kmap_last),  # Im(init*dcomp)
    ]
    out_specs = (pl.BlockSpec((1, 1, 1, N), omap),
                 pl.BlockSpec((1, 1, 1, N), omap))
    scratch = [
        pltpu.VMEM((C, N), jnp.bfloat16),     # coil_r (hoisted per batch)
        pltpu.VMEM((C, N), jnp.bfloat16),     # coil_i
        pltpu.VMEM((tk, N), jnp.bfloat16),    # er (regenerated per k-tile)
        pltpu.VMEM((tk, N), jnp.bfloat16),    # ei
        pltpu.VMEM((C, N), jnp.float32),      # adjoint accumulator (real)
        pltpu.VMEM((C, N), jnp.float32),      # adjoint accumulator (imag)
    ]

    return pl.pallas_call(
        kernel,
        out_shape=(jax.ShapeDtypeStruct((split, B, 1, N), jnp.float32),
                   jax.ShapeDtypeStruct((split, B, 1, N), jnp.float32)),
        grid_spec=pltpu.PrefetchScalarGridSpec(
            num_scalar_prefetch=0,
            grid=(B, split, steps_per_split),
            in_specs=in_specs,
            out_specs=out_specs,
            scratch_shapes=scratch),
        compiler_params=pltpu.CompilerParams(
            dimension_semantics=("parallel", "parallel", "arbitrary"),
            vmem_limit_bytes=vmem_limit),
    )(rhs_r, rhs_i, sens_r, sens_i, cx, sx, cy, sy, md, ikr, iki)


def build_axis_phasors(ktraj, H, W):
    """Separable phasors: cos/sin(kx*x) of shape (B,K,H) and cos/sin(ky*y) of shape (B,K,W)."""
    xs = jnp.arange(H, dtype=jnp.float32)
    ys = jnp.arange(W, dtype=jnp.float32)
    px = ktraj[:, 0][..., None] * xs     # (B, K, H)
    py = ktraj[:, 1][..., None] * ys     # (B, K, W)
    return jnp.cos(px), jnp.sin(px), jnp.cos(py), jnp.sin(py)


@functools.partial(jax.jit, static_argnames=("H", "W"))
def dc_wenqi_forward(rhs, sens_maps, ktraj, dcomp, mask, mu, init_kspace, *, H, W):
    """Pallas implementation of DC_wenqi.forward with SENSE-NUDFT op / op_adj.

    rhs:         complex64 (B, N)        flattened image
    sens_maps:   complex64 (B, C, N)
    ktraj:       float32   (B, 2, K)
    dcomp:       float32   (B, K)
    mask:        float32   (B, K)
    mu:          unused (kept for signature fidelity)
    init_kspace: complex64 (B, C, K)
    returns:     complex64 (B, N)
    """
    del mu  # unused in the original forward as well
    B, C, N = sens_maps.shape
    K = ktraj.shape[-1]

    tk, split, steps_per_split, k_padded, vmem_limit = _plan(K, N, C, H, W, B)

    # Small, separable per-axis phasors (the full (B,K,N) E matrix is never materialized).
    cx, sx, cy, sy = build_axis_phasors(ktraj, H, W)
    md = mask * dcomp                              # pre-fold density compensation
    ik = init_kspace * dcomp[:, None, :]

    pad = k_padded - K
    if pad:
        def padk(a, axis):
            widths = [(0, 0)] * a.ndim
            widths[axis] = (0, pad)
            return jnp.pad(a, widths)              # zero mask*dcomp / init => padded k contributes 0
        cx, sx, cy, sy = padk(cx, 1), padk(sx, 1), padk(cy, 1), padk(sy, 1)
        md = padk(md, 1)
        ik = padk(ik, 2)

    out_r, out_i = _dc_pallas(
        jnp.real(rhs).reshape(B, 1, N).astype(jnp.float32),
        jnp.imag(rhs).reshape(B, 1, N).astype(jnp.float32),
        jnp.real(sens_maps).astype(jnp.bfloat16),
        jnp.imag(sens_maps).astype(jnp.bfloat16),
        cx.astype(jnp.float32), sx.astype(jnp.float32),
        cy.astype(jnp.float32), sy.astype(jnp.float32),
        md.reshape(B, 1, k_padded).astype(jnp.float32),
        jnp.real(ik).astype(jnp.float32),
        jnp.imag(ik).astype(jnp.float32),
        tk=tk, split=split, steps_per_split=steps_per_split,
        H=H, W=W, vmem_limit=vmem_limit)

    out_r = jnp.sum(out_r, axis=0)     # sum megacore partial outputs (split axis)
    out_i = jnp.sum(out_i, axis=0)
    return (out_r + 1j * out_i).reshape(B, N)


# ----------------------------- dense reference (test only) -----------------------------
def _dense_encoding(ktraj, H, W):
    xs = jnp.arange(H, dtype=jnp.float32)
    ys = jnp.arange(W, dtype=jnp.float32)
    gx = jnp.repeat(xs, W)   # (N,)
    gy = jnp.tile(ys, H)     # (N,)
    phase = ktraj[:, 0][..., None] * gx + ktraj[:, 1][..., None] * gy  # (B, K, N)
    return jnp.cos(phase) - 1j * jnp.sin(phase)


def reference_forward(rhs, sens_maps, ktraj, dcomp, mask, init_kspace, H, W):
    E = _dense_encoding(ktraj, H, W)                              # (B, K, N)
    coil = rhs[:, None, :] * sens_maps                            # (B, C, N)
    kspace = jnp.einsum('bcn,bkn->bck', coil, E)                  # op
    masked = kspace * mask[:, None, :] - init_kspace
    weighted = masked * dcomp[:, None, :]
    coil_adj = jnp.einsum('bck,bkn->bcn', weighted, jnp.conj(E))  # op_adj
    return jnp.sum(jnp.conj(sens_maps) * coil_adj, axis=1)


if __name__ == "__main__":
    B, C, H, W, K = 2, 4, 16, 16, 128
    N = H * W

    key = jax.random.PRNGKey(0)
    ks = jax.random.split(key, 8)

    rhs = (jax.random.normal(ks[0], (B, N)) + 1j * jax.random.normal(ks[1], (B, N))).astype(jnp.complex64)
    sens = (jax.random.normal(ks[2], (B, C, N)) + 1j * jax.random.normal(ks[3], (B, C, N))).astype(jnp.complex64)
    sens = sens / jnp.sqrt(jnp.sum(jnp.abs(sens) ** 2, axis=1, keepdims=True))  # normalized coil maps
    ktraj = jax.random.uniform(ks[4], (B, 2, K), minval=-jnp.pi, maxval=jnp.pi).astype(jnp.float32)
    dcomp = jax.random.uniform(ks[5], (B, K), minval=0.1, maxval=1.0).astype(jnp.float32)
    mask = (jax.random.uniform(ks[6], (B, K)) > 0.5).astype(jnp.float32)
    init_k = (jax.random.normal(ks[7], (B, C, K)) + 1j * jax.random.normal(ks[0], (B, C, K))).astype(jnp.complex64)
    mu = jnp.float32(0.05)  # unused, signature fidelity only

    out = dc_wenqi_forward(rhs, sens, ktraj, dcomp, mask, mu, init_k, H=H, W=W)
    out = jax.block_until_ready(out)

    ref = reference_forward(rhs, sens, ktraj, dcomp, mask, init_k, H, W)
    rel_err = float(jnp.max(jnp.abs(out - ref)) / (jnp.max(jnp.abs(ref)) + 1e-8))
    assert rel_err < 5e-2, f"relative error too large: {rel_err}"

    print("KERNEL_OK")
</pallas_src>

<mosaic_0001>
module attributes {stable_mosaic.version = 11 : i64} {
  func.func @kernel(%arg0: i32, %arg1: i32, %arg2: i32, %arg3: memref<1x1x256xf32, #tpu.memory_space<vmem>>, %arg4: memref<1x1x256xf32, #tpu.memory_space<vmem>>, %arg5: memref<1x4x256xbf16, #tpu.memory_space<vmem>>, %arg6: memref<1x4x256xbf16, #tpu.memory_space<vmem>>, %arg7: memref<1x128x16xf32, #tpu.memory_space<vmem>>, %arg8: memref<1x128x16xf32, #tpu.memory_space<vmem>>, %arg9: memref<1x128x16xf32, #tpu.memory_space<vmem>>, %arg10: memref<1x128x16xf32, #tpu.memory_space<vmem>>, %arg11: memref<1x1x128xf32, #tpu.memory_space<vmem>>, %arg12: memref<1x4x128xf32, #tpu.memory_space<vmem>>, %arg13: memref<1x4x128xf32, #tpu.memory_space<vmem>>, %arg14: memref<1x1x1x256xf32, #tpu.memory_space<vmem>>, %arg15: memref<1x1x1x256xf32, #tpu.memory_space<vmem>>, %arg16: memref<4x256xbf16, #tpu.memory_space<vmem>>, %arg17: memref<4x256xbf16, #tpu.memory_space<vmem>>, %arg18: memref<128x256xbf16, #tpu.memory_space<vmem>>, %arg19: memref<128x256xbf16, #tpu.memory_space<vmem>>, %arg20: memref<4x256xf32, #tpu.memory_space<vmem>>, %arg21: memref<4x256xf32, #tpu.memory_space<vmem>>) attributes {dimension_semantics = [#tpu.dimension_semantics<parallel>, #tpu.dimension_semantics<parallel>, #tpu.dimension_semantics<arbitrary>], iteration_bounds = array<i64: 2, 1, 1>, scalar_prefetch = 0 : i64, scratch_operands = 6 : i64, tpu.core_type = #tpu.core_type<tc>, window_params = [{transform_indices = @transform_0, window_bounds = array<i64: 1, 1, 256>}, {transform_indices = @transform_1, window_bounds = array<i64: 1, 1, 256>}, {transform_indices = @transform_2, window_bounds = array<i64: 1, 4, 256>}, {transform_indices = @transform_3, window_bounds = array<i64: 1, 4, 256>}, {transform_indices = @transform_4, window_bounds = array<i64: 1, 128, 16>}, {transform_indices = @transform_5, window_bounds = array<i64: 1, 128, 16>}, {transform_indices = @transform_6, window_bounds = array<i64: 1, 128, 16>}, {transform_indices = @transform_7, window_bounds = array<i64: 1, 128, 16>}, {transform_indices = @transform_8, window_bounds = array<i64: 1, 1, 128>}, {transform_indices = @transform_9, window_bounds = array<i64: 1, 4, 128>}, {transform_indices = @transform_10, window_bounds = array<i64: 1, 4, 128>}, {transform_indices = @transform_11, window_bounds = array<i64: 1, 1, 1, 256>}, {transform_indices = @transform_12, window_bounds = array<i64: 1, 1, 1, 256>}]} {
    %c0_i32 = arith.constant 0 : i32
    %0 = arith.cmpi eq, %arg2, %c0_i32 : i32
    %1 = arith.extui %0 : i1 to i32
    %c0_i32_0 = arith.constant 0 : i32
    %2 = arith.cmpi ne, %1, %c0_i32_0 : i32
    scf.if %2 {
      %c0_111 = arith.constant 0 : index
      %c0_112 = arith.constant 0 : index
      %c0_113 = arith.constant 0 : index
      %338 = vector.load %arg3[%c0_111, %c0_112, %c0_113] : memref<1x1x256xf32, #tpu.memory_space<vmem>>, vector<1x1x256xf32>
      %339 = vector.shape_cast %338 : vector<1x1x256xf32> to vector<1x256xf32>
      %c0_114 = arith.constant 0 : index
      %c0_115 = arith.constant 0 : index
      %c0_116 = arith.constant 0 : index
      %340 = vector.load %arg4[%c0_114, %c0_115, %c0_116] : memref<1x1x256xf32, #tpu.memory_space<vmem>>, vector<1x1x256xf32>
      %341 = vector.shape_cast %340 : vector<1x1x256xf32> to vector<1x256xf32>
      %c0_117 = arith.constant 0 : index
      %c0_118 = arith.constant 0 : index
      %c0_119 = arith.constant 0 : index
      %342 = vector.load %arg5[%c0_117, %c0_118, %c0_119] : memref<1x4x256xbf16, #tpu.memory_space<vmem>>, vector<1x4x256xbf16>
      %343 = vector.shape_cast %342 : vector<1x4x256xbf16> to vector<4x256xbf16>
      %344 = arith.extf %343 : vector<4x256xbf16> to vector<4x256xf32>
      %c0_120 = arith.constant 0 : index
      %c0_121 = arith.constant 0 : index
      %c0_122 = arith.constant 0 : index
      %345 = vector.load %arg6[%c0_120, %c0_121, %c0_122] : memref<1x4x256xbf16, #tpu.memory_space<vmem>>, vector<1x4x256xbf16>
      %346 = vector.shape_cast %345 : vector<1x4x256xbf16> to vector<4x256xbf16>
      %347 = arith.extf %346 : vector<4x256xbf16> to vector<4x256xf32>
      %348 = vector.broadcast %339 : vector<1x256xf32> to vector<4x256xf32>
      %349 = arith.mulf %348, %344 : vector<4x256xf32>
      %350 = vector.broadcast %341 : vector<1x256xf32> to vector<4x256xf32>
      %351 = arith.mulf %350, %347 : vector<4x256xf32>
      %352 = arith.subf %349, %351 : vector<4x256xf32>
      %353 = arith.truncf %352 : vector<4x256xf32> to vector<4x256xbf16>
      %c0_123 = arith.constant 0 : index
      %c0_124 = arith.constant 0 : index
      %354 = vector.load %arg16[%c0_123, %c0_124] : memref<4x256xbf16, #tpu.memory_space<vmem>>, vector<4x256xbf16>
      tpu.vector_store %arg16[%c0_123, %c0_124], %353 {strides = array<i32>} : memref<4x256xbf16, #tpu.memory_space<vmem>>, vector<4x256xbf16>,
      %355 = vector.broadcast %339 : vector<1x256xf32> to vector<4x256xf32>
      %356 = arith.mulf %355, %347 : vector<4x256xf32>
      %357 = vector.broadcast %341 : vector<1x256xf32> to vector<4x256xf32>
      %358 = arith.mulf %357, %344 : vector<4x256xf32>
      %359 = arith.addf %356, %358 : vector<4x256xf32>
      %360 = arith.truncf %359 : vector<4x256xf32> to vector<4x256xbf16>
      %c0_125 = arith.constant 0 : index
      %c0_126 = arith.constant 0 : index
      %361 = vector.load %arg17[%c0_125, %c0_126] : memref<4x256xbf16, #tpu.memory_space<vmem>>, vector<4x256xbf16>
      tpu.vector_store %arg17[%c0_125, %c0_126], %360 {strides = array<i32>} : memref<4x256xbf16, #tpu.memory_space<vmem>>, vector<4x256xbf16>,
      %cst_127 = arith.constant 0.000000e+00 : f32
      %362 = vector.broadcast %cst_127 : f32 to vector<4x256xf32>
      %c0_128 = arith.constant 0 : index
      %c0_129 = arith.constant 0 : index
      %363 = vector.load %arg20[%c0_128, %c0_129] : memref<4x256xf32, #tpu.memory_space<vmem>>, vector<4x256xf32>
      tpu.vector_store %arg20[%c0_128, %c0_129], %362 {strides = array<i32>} : memref<4x256xf32, #tpu.memory_space<vmem>>, vector<4x256xf32>,
      %cst_130 = arith.constant 0.000000e+00 : f32
      %364 = vector.broadcast %cst_130 : f32 to vector<4x256xf32>
      %c0_131 = arith.constant 0 : index
      %c0_132 = arith.constant 0 : index
      %365 = vector.load %arg21[%c0_131, %c0_132] : memref<4x256xf32, #tpu.memory_space<vmem>>, vector<4x256xf32>
      tpu.vector_store %arg21[%c0_131, %c0_132], %364 {strides = array<i32>} : memref<4x256xf32, #tpu.memory_space<vmem>>, vector<4x256xf32>,
    } else {
    }
    %c0 = arith.constant 0 : index
    %c0_1 = arith.constant 0 : index
    %c0_2 = arith.constant 0 : index
    %3 = vector.load %arg7[%c0, %c0_1, %c0_2] : memref<1x128x16xf32, #tpu.memory_space<vmem>>, vector<1x128x16xf32>
    %4 = vector.shape_cast %3 : vector<1x128x16xf32> to vector<128x16xf32>
    %c0_3 = arith.constant 0 : index
    %c0_4 = arith.constant 0 : index
    %c0_5 = arith.constant 0 : index
    %5 = vector.load %arg8[%c0_3, %c0_4, %c0_5] : memref<1x128x16xf32, #tpu.memory_space<vmem>>, vector<1x128x16xf32>
    %6 = vector.shape_cast %5 : vector<1x128x16xf32> to vector<128x16xf32>
    %c0_6 = arith.constant 0 : index
    %c0_7 = arith.constant 0 : index
    %c0_8 = arith.constant 0 : index
    %7 = vector.load %arg9[%c0_6, %c0_7, %c0_8] : memref<1x128x16xf32, #tpu.memory_space<vmem>>, vector<1x128x16xf32>
    %8 = vector.shape_cast %7 : vector<1x128x16xf32> to vector<128x16xf32>
    %c0_9 = arith.constant 0 : index
    %c0_10 = arith.constant 0 : index
    %c0_11 = arith.constant 0 : index
    %9 = vector.load %arg10[%c0_9, %c0_10, %c0_11] : memref<1x128x16xf32, #tpu.memory_space<vmem>>, vector<1x128x16xf32>
    %10 = vector.shape_cast %9 : vector<1x128x16xf32> to vector<128x16xf32>
    %11 = vector.extract_strided_slice %4 {offsets = [0, 0], sizes = [128, 1], strides = [1, 1]} : vector<128x16xf32> to vector<128x1xf32>
    %12 = vector.extract_strided_slice %6 {offsets = [0, 0], sizes = [128, 1], strides = [1, 1]} : vector<128x16xf32> to vector<128x1xf32>
    %13 = vector.broadcast %11 : vector<128x1xf32> to vector<128x16xf32>
    %14 = arith.mulf %13, %8 : vector<128x16xf32>
    %15 = vector.broadcast %12 : vector<128x1xf32> to vector<128x16xf32>
    %16 = arith.mulf %15, %10 : vector<128x16xf32>
    %17 = arith.subf %14, %16 : vector<128x16xf32>
    %18 = arith.truncf %17 : vector<128x16xf32> to vector<128x16xbf16>
    %c0_12 = arith.constant 0 : index
    %c0_13 = arith.constant 0 : index
    %19 = vector.load %arg18[%c0_12, %c0_13] : memref<128x256xbf16, #tpu.memory_space<vmem>>, vector<128x16xbf16>
    tpu.vector_store %arg18[%c0_12, %c0_13], %18 {strides = array<i32>} : memref<128x256xbf16, #tpu.memory_space<vmem>>, vector<128x16xbf16>,
    %20 = vector.broadcast %12 : vector<128x1xf32> to vector<128x16xf32>
    %21 = arith.mulf %20, %8 : vector<128x16xf32>
    %22 = vector.broadcast %11 : vector<128x1xf32> to vector<128x16xf32>
    %23 = arith.mulf %22, %10 : vector<128x16xf32>
    %24 = arith.addf %21, %23 : vector<128x16xf32>
    %cst = arith.constant 0.000000e+00 : f32
    %25 = vector.broadcast %cst : f32 to vector<128x16xf32>
    %26 = arith.subf %25, %24 : vector<128x16xf32>
    %27 = arith.truncf %26 : vector<128x16xf32> to vector<128x16xbf16>
    %c0_14 = arith.constant 0 : index
    %c0_15 = arith.constant 0 : index
    %28 = vector.load %arg19[%c0_14, %c0_15] : memref<128x256xbf16, #tpu.memory_space<vmem>>, vector<128x16xbf16>
    tpu.vector_store %arg19[%c0_14, %c0_15], %27 {strides = array<i32>} : memref<128x256xbf16, #tpu.memory_space<vmem>>, vector<128x16xbf16>,
    %29 = vector.extract_strided_slice %4 {offsets = [0, 1], sizes = [128, 1], strides = [1, 1]} : vector<128x16xf32> to vector<128x1xf32>
    %30 = vector.extract_strided_slice %6 {offsets = [0, 1], sizes = [128, 1], strides = [1, 1]} : vector<128x16xf32> to vector<128x1xf32>
    %31 = vector.broadcast %29 : vector<128x1xf32> to vector<128x16xf32>
    %32 = arith.mulf %31, %8 : vector<128x16xf32>
    %33 = vector.broadcast %30 : vector<128x1xf32> to vector<128x16xf32>
    %34 = arith.mulf %33, %10 : vector<128x16xf32>
    %35 = arith.subf %32, %34 : vector<128x16xf32>
    %36 = arith.truncf %35 : vector<128x16xf32> to vector<128x16xbf16>
    %c0_16 = arith.constant 0 : index
    %c16 = arith.constant 16 : index
    %37 = vector.load %arg18[%c0_16, %c16] : memref<128x256xbf16, #tpu.memory_space<vmem>>, vector<128x16xbf16>
    tpu.vector_store %arg18[%c0_16, %c16], %36 {strides = array<i32>} : memref<128x256xbf16, #tpu.memory_space<vmem>>, vector<128x16xbf16>,
    %38 = vector.broadcast %30 : vector<128x1xf32> to vector<128x16xf32>
    %39 = arith.mulf %38, %8 : vector<128x16xf32>
    %40 = vector.broadcast %29 : vector<128x1xf32> to vector<128x16xf32>
    %41 = arith.mulf %40, %10 : vector<128x16xf32>
    %42 = arith.addf %39, %41 : vector<128x16xf32>
    %cst_17 = arith.constant 0.000000e+00 : f32
    %43 = vector.broadcast %cst_17 : f32 to vector<128x16xf32>
    %44 = arith.subf %43, %42 : vector<128x16xf32>
    %45 = arith.truncf %44 : vector<128x16xf32> to vector<128x16xbf16>
    %c0_18 = arith.constant 0 : index
    %c16_19 = arith.constant 16 : index
    %46 = vector.load %arg19[%c0_18, %c16_19] : memref<128x256xbf16, #tpu.memory_space<vmem>>, vector<128x16xbf16>
    tpu.vector_store %arg19[%c0_18, %c16_19], %45 {strides = array<i32>} : memref<128x256xbf16, #tpu.memory_space<vmem>>, vector<128x16xbf16>,
    %47 = vector.extract_strided_slice %4 {offsets = [0, 2], sizes = [128, 1], strides = [1, 1]} : vector<128x16xf32> to vector<128x1xf32>
    %48 = vector.extract_strided_slice %6 {offsets = [0, 2], sizes = [128, 1], strides = [1, 1]} : vector<128x16xf32> to vector<128x1xf32>
    %49 = vector.broadcast %47 : vector<128x1xf32> to vector<128x16xf32>
    %50 = arith.mulf %49, %8 : vector<128x16xf32>
    %51 = vector.broadcast %48 : vector<128x1xf32> to vector<128x16xf32>
    %52 = arith.mulf %51, %10 : vector<128x16xf32>
    %53 = arith.subf %50, %52 : vector<128x16xf32>
    %54 = arith.truncf %53 : vector<128x16xf32> to vector<128x16xbf16>
    %c0_20 = arith.constant 0 : index
    %c32 = arith.constant 32 : index
    %55 = vector.load %arg18[%c0_20, %c32] : memref<128x256xbf16, #tpu.memory_space<vmem>>, vector<128x16xbf16>
    tpu.vector_store %arg18[%c0_20, %c32], %54 {strides = array<i32>} : memref<128x256xbf16, #tpu.memory_space<vmem>>, vector<128x16xbf16>,
    %56 = vector.broadcast %48 : vector<128x1xf32> to vector<128x16xf32>
    %57 = arith.mulf %56, %8 : vector<128x16xf32>
    %58 = vector.broadcast %47 : vector<128x1xf32> to vector<128x16xf32>
    %59 = arith.mulf %58, %10 : vector<128x16xf32>
    %60 = arith.addf %57, %59 : vector<128x16xf32>
    %cst_21 = arith.constant 0.000000e+00 : f32
    %61 = vector.broadcast %cst_21 : f32 to vector<128x16xf32>
    %62 = arith.subf %61, %60 : vector<128x16xf32>
    %63 = arith.truncf %62 : vector<128x16xf32> to vector<128x16xbf16>
    %c0_22 = arith.constant 0 : index
    %c32_23 = arith.constant 32 : index
    %64 = vector.load %arg19[%c0_22, %c32_23] : memref<128x256xbf16, #tpu.memory_space<vmem>>, vector<128x16xbf16>
    tpu.vector_store %arg19[%c0_22, %c32_23], %63 {strides = array<i32>} : memref<128x256xbf16, #tpu.memory_space<vmem>>, vector<128x16xbf16>,
    %65 = vector.extract_strided_slice %4 {offsets = [0, 3], sizes = [128, 1], strides = [1, 1]} : vector<128x16xf32> to vector<128x1xf32>
    %66 = vector.extract_strided_slice %6 {offsets = [0, 3], sizes = [128, 1], strides = [1, 1]} : vector<128x16xf32> to vector<128x1xf32>
    %67 = vector.broadcast %65 : vector<128x1xf32> to vector<128x16xf32>
    %68 = arith.mulf %67, %8 : vector<128x16xf32>
    %69 = vector.broadcast %66 : vector<128x1xf32> to vector<128x16xf32>
    %70 = arith.mulf %69, %10 : vector<128x16xf32>
    %71 = arith.subf %68, %70 : vector<128x16xf32>
    %72 = arith.truncf %71 : vector<128x16xf32> to vector<128x16xbf16>
    %c0_24 = arith.constant 0 : index
    %c48 = arith.constant 48 : index
    %73 = vector.load %arg18[%c0_24, %c48] : memref<128x256xbf16, #tpu.memory_space<vmem>>, vector<128x16xbf16>
    tpu.vector_store %arg18[%c0_24, %c48], %72 {strides = array<i32>} : memref<128x256xbf16, #tpu.memory_space<vmem>>, vector<128x16xbf16>,
    %74 = vector.broadcast %66 : vector<128x1xf32> to vector<128x16xf32>
    %75 = arith.mulf %74, %8 : vector<128x16xf32>
    %76 = vector.broadcast %65 : vector<128x1xf32> to vector<128x16xf32>
    %77 = arith.mulf %76, %10 : vector<128x16xf32>
    %78 = arith.addf %75, %77 : vector<128x16xf32>
    %cst_25 = arith.constant 0.000000e+00 : f32
    %79 = vector.broadcast %cst_25 : f32 to vector<128x16xf32>
    %80 = arith.subf %79, %78 : vector<128x16xf32>
    %81 = arith.truncf %80 : vector<128x16xf32> to vector<128x16xbf16>
    %c0_26 = arith.constant 0 : index
    %c48_27 = arith.constant 48 : index
    %82 = vector.load %arg19[%c0_26, %c48_27] : memref<128x256xbf16, #tpu.memory_space<vmem>>, vector<128x16xbf16>
    tpu.vector_store %arg19[%c0_26, %c48_27], %81 {strides = array<i32>} : memref<128x256xbf16, #tpu.memory_space<vmem>>, vector<128x16xbf16>,
    %83 = vector.extract_strided_slice %4 {offsets = [0, 4], sizes = [128, 1], strides = [1, 1]} : vector<128x16xf32> to vector<128x1xf32>
    %84 = vector.extract_strided_slice %6 {offsets = [0, 4], sizes = [128, 1], strides = [1, 1]} : vector<128x16xf32> to vector<128x1xf32>
    %85 = vector.broadcast %83 : vector<128x1xf32> to vector<128x16xf32>
    %86 = arith.mulf %85, %8 : vector<128x16xf32>
    %87 = vector.broadcast %84 : vector<128x1xf32> to vector<128x16xf32>
    %88 = arith.mulf %87, %10 : vector<128x16xf32>
    %89 = arith.subf %86, %88 : vector<128x16xf32>
    %90 = arith.truncf %89 : vector<128x16xf32> to vector<128x16xbf16>
    %c0_28 = arith.constant 0 : index
    %c64 = arith.constant 64 : index
    %91 = vector.load %arg18[%c0_28, %c64] : memref<128x256xbf16, #tpu.memory_space<vmem>>, vector<128x16xbf16>
    tpu.vector_store %arg18[%c0_28, %c64], %90 {strides = array<i32>} : memref<128x256xbf16, #tpu.memory_space<vmem>>, vector<128x16xbf16>,
    %92 = vector.broadcast %84 : vector<128x1xf32> to vector<128x16xf32>
    %93 = arith.mulf %92, %8 : vector<128x16xf32>
    %94 = vector.broadcast %83 : vector<128x1xf32> to vector<128x16xf32>
    %95 = arith.mulf %94, %10 : vector<128x16xf32>
    %96 = arith.addf %93, %95 : vector<128x16xf32>
    %cst_29 = arith.constant 0.000000e+00 : f32
    %97 = vector.broadcast %cst_29 : f32 to vector<128x16xf32>
    %98 = arith.subf %97, %96 : vector<128x16xf32>
    %99 = arith.truncf %98 : vector<128x16xf32> to vector<128x16xbf16>
    %c0_30 = arith.constant 0 : index
    %c64_31 = arith.constant 64 : index
    %100 = vector.load %arg19[%c0_30, %c64_31] : memref<128x256xbf16, #tpu.memory_space<vmem>>, vector<128x16xbf16>
    tpu.vector_store %arg19[%c0_30, %c64_31], %99 {strides = array<i32>} : memref<128x256xbf16, #tpu.memory_space<vmem>>, vector<128x16xbf16>,
    %101 = vector.extract_strided_slice %4 {offsets = [0, 5], sizes = [128, 1], strides = [1, 1]} : vector<128x16xf32> to vector<128x1xf32>
    %102 = vector.extract_strided_slice %6 {offsets = [0, 5], sizes = [128, 1], strides = [1, 1]} : vector<128x16xf32> to vector<128x1xf32>
    %103 = vector.broadcast %101 : vector<128x1xf32> to vector<128x16xf32>
    %104 = arith.mulf %103, %8 : vector<128x16xf32>
    %105 = vector.broadcast %102 : vector<128x1xf32> to vector<128x16xf32>
    %106 = arith.mulf %105, %10 : vector<128x16xf32>
    %107 = arith.subf %104, %106 : vector<128x16xf32>
    %108 = arith.truncf %107 : vector<128x16xf32> to vector<128x16xbf16>
    %c0_32 = arith.constant 0 : index
    %c80 = arith.constant 80 : index
    %109 = vector.load %arg18[%c0_32, %c80] : memref<128x256xbf16, #tpu.memory_space<vmem>>, vector<128x16xbf16>
    tpu.vector_store %arg18[%c0_32, %c80], %108 {strides = array<i32>} : memref<128x256xbf16, #tpu.memory_space<vmem>>, vector<128x16xbf16>,
    %110 = vector.broadcast %102 : vector<128x1xf32> to vector<128x16xf32>
    %111 = arith.mulf %110, %8 : vector<128x16xf32>
    %112 = vector.broadcast %101 : vector<128x1xf32> to vector<128x16xf32>
    %113 = arith.mulf %112, %10 : vector<128x16xf32>
    %114 = arith.addf %111, %113 : vector<128x16xf32>
    %cst_33 = arith.constant 0.000000e+00 : f32
    %115 = vector.broadcast %cst_33 : f32 to vector<128x16xf32>
    %116 = arith.subf %115, %114 : vector<128x16xf32>
    %117 = arith.truncf %116 : vector<128x16xf32> to vector<128x16xbf16>
    %c0_34 = arith.constant 0 : index
    %c80_35 = arith.constant 80 : index
    %118 = vector.load %arg19[%c0_34, %c80_35] : memref<128x256xbf16, #tpu.memory_space<vmem>>, vector<128x16xbf16>
    tpu.vector_store %arg19[%c0_34, %c80_35], %117 {strides = array<i32>} : memref<128x256xbf16, #tpu.memory_space<vmem>>, vector<128x16xbf16>,
    %119 = vector.extract_strided_slice %4 {offsets = [0, 6], sizes = [128, 1], strides = [1, 1]} : vector<128x16xf32> to vector<128x1xf32>
    %120 = vector.extract_strided_slice %6 {offsets = [0, 6], sizes = [128, 1], strides = [1, 1]} : vector<128x16xf32> to vector<128x1xf32>
    %121 = vector.broadcast %119 : vector<128x1xf32> to vector<128x16xf32>
    %122 = arith.mulf %121, %8 : vector<128x16xf32>
    %123 = vector.broadcast %120 : vector<128x1xf32> to vector<128x16xf32>
    %124 = arith.mulf %123, %10 : vector<128x16xf32>
    %125 = arith.subf %122, %124 : vector<128x16xf32>
    %126 = arith.truncf %125 : vector<128x16xf32> to vector<128x16xbf16>
    %c0_36 = arith.constant 0 : index
    %c96 = arith.constant 96 : index
    %127 = vector.load %arg18[%c0_36, %c96] : memref<128x256xbf16, #tpu.memory_space<vmem>>, vector<128x16xbf16>
    tpu.vector_store %arg18[%c0_36, %c96], %126 {strides = array<i32>} : memref<128x256xbf16, #tpu.memory_space<vmem>>, vector<128x16xbf16>,
    %128 = vector.broadcast %120 : vector<128x1xf32> to vector<128x16xf32>
    %129 = arith.mulf %128, %8 : vector<128x16xf32>
    %130 = vector.broadcast %119 : vector<128x1xf32> to vector<128x16xf32>
    %131 = arith.mulf %130, %10 : vector<128x16xf32>
    %132 = arith.addf %129, %131 : vector<128x16xf32>
    %cst_37 = arith.constant 0.000000e+00 : f32
    %133 = vector.broadcast %cst_37 : f32 to vector<128x16xf32>
    %134 = arith.subf %133, %132 : vector<128x16xf32>
    %135 = arith.truncf %134 : vector<128x16xf32> to vector<128x16xbf16>
    %c0_38 = arith.constant 0 : index
    %c96_39 = arith.constant 96 : index
    %136 = vector.load %arg19[%c0_38, %c96_39] : memref<128x256xbf16, #tpu.memory_space<vmem>>, vector<128x16xbf16>
    tpu.vector_store %arg19[%c0_38, %c96_39], %135 {strides = array<i32>} : memref<128x256xbf16, #tpu.memory_space<vmem>>, vector<128x16xbf16>,
    %137 = vector.extract_strided_slice %4 {offsets = [0, 7], sizes = [128, 1], strides = [1, 1]} : vector<128x16xf32> to vector<128x1xf32>
    %138 = vector.extract_strided_slice %6 {offsets = [0, 7], sizes = [128, 1], strides = [1, 1]} : vector<128x16xf32> to vector<128x1xf32>
    %139 = vector.broadcast %137 : vector<128x1xf32> to vector<128x16xf32>
    %140 = arith.mulf %139, %8 : vector<128x16xf32>
    %141 = vector.broadcast %138 : vector<128x1xf32> to vector<128x16xf32>
    %142 = arith.mulf %141, %10 : vector<128x16xf32>
    %143 = arith.subf %140, %142 : vector<128x16xf32>
    %144 = arith.truncf %143 : vector<128x16xf32> to vector<128x16xbf16>
    %c0_40 = arith.constant 0 : index
    %c112 = arith.constant 112 : index
    %145 = vector.load %arg18[%c0_40, %c112] : memref<128x256xbf16, #tpu.memory_space<vmem>>, vector<128x16xbf16>
    tpu.vector_store %arg18[%c0_40, %c112], %144 {strides = array<i32>} : memref<128x256xbf16, #tpu.memory_space<vmem>>, vector<128x16xbf16>,
    %146 = vector.broadcast %138 : vector<128x1xf32> to vector<128x16xf32>
    %147 = arith.mulf %146, %8 : vector<128x16xf32>
    %148 = vector.broadcast %137 : vector<128x1xf32> to vector<128x16xf32>
    %149 = arith.mulf %148, %10 : vector<128x16xf32>
    %150 = arith.addf %147, %149 : vector<128x16xf32>
    %cst_41 = arith.constant 0.000000e+00 : f32
    %151 = vector.broadcast %cst_41 : f32 to vector<128x16xf32>
    %152 = arith.subf %151, %150 : vector<128x16xf32>
    %153 = arith.truncf %152 : vector<128x16xf32> to vector<128x16xbf16>
    %c0_42 = arith.constant 0 : index
    %c112_43 = arith.constant 112 : index
    %154 = vector.load %arg19[%c0_42, %c112_43] : memref<128x256xbf16, #tpu.memory_space<vmem>>, vector<128x16xbf16>
    tpu.vector_store %arg19[%c0_42, %c112_43], %153 {strides = array<i32>} : memref<128x256xbf16, #tpu.memory_space<vmem>>, vector<128x16xbf16>,
    %155 = vector.extract_strided_slice %4 {offsets = [0, 8], sizes = [128, 1], strides = [1, 1]} : vector<128x16xf32> to vector<128x1xf32>
    %156 = vector.extract_strided_slice %6 {offsets = [0, 8], sizes = [128, 1], strides = [1, 1]} : vector<128x16xf32> to vector<128x1xf32>
    %157 = vector.broadcast %155 : vector<128x1xf32> to vector<128x16xf32>
    %158 = arith.mulf %157, %8 : vector<128x16xf32>
    %159 = vector.broadcast %156 : vector<128x1xf32> to vector<128x16xf32>
    %160 = arith.mulf %159, %10 : vector<128x16xf32>
    %161 = arith.subf %158, %160 : vector<128x16xf32>
    %162 = arith.truncf %161 : vector<128x16xf32> to vector<128x16xbf16>
    %c0_44 = arith.constant 0 : index
    %c128 = arith.constant 128 : index
    %163 = vector.load %arg18[%c0_44, %c128] : memref<128x256xbf16, #tpu.memory_space<vmem>>, vector<128x16xbf16>
    tpu.vector_store %arg18[%c0_44, %c128], %162 {strides = array<i32>} : memref<128x256xbf16, #tpu.memory_space<vmem>>, vector<128x16xbf16>,
    %164 = vector.broadcast %156 : vector<128x1xf32> to vector<128x16xf32>
    %165 = arith.mulf %164, %8 : vector<128x16xf32>
    %166 = vector.broadcast %155 : vector<128x1xf32> to vector<128x16xf32>
    %167 = arith.mulf %166, %10 : vector<128x16xf32>
    %168 = arith.addf %165, %167 : vector<128x16xf32>
    %cst_45 = arith.constant 0.000000e+00 : f32
    %169 = vector.broadcast %cst_45 : f32 to vector<128x16xf32>
    %170 = arith.subf %169, %168 : vector<128x16xf32>
    %171 = arith.truncf %170 : vector<128x16xf32> to vector<128x16xbf16>
    %c0_46 = arith.constant 0 : index
    %c128_47 = arith.constant 128 : index
    %172 = vector.load %arg19[%c0_46, %c128_47] : memref<128x256xbf16, #tpu.memory_space<vmem>>, vector<128x16xbf16>
    tpu.vector_store %arg19[%c0_46, %c128_47], %171 {strides = array<i32>} : memref<128x256xbf16, #tpu.memory_space<vmem>>, vector<128x16xbf16>,
    %173 = vector.extract_strided_slice %4 {offsets = [0, 9], sizes = [128, 1], strides = [1, 1]} : vector<128x16xf32> to vector<128x1xf32>
    %174 = vector.extract_strided_slice %6 {offsets = [0, 9], sizes = [128, 1], strides = [1, 1]} : vector<128x16xf32> to vector<128x1xf32>
    %175 = vector.broadcast %173 : vector<128x1xf32> to vector<128x16xf32>
    %176 = arith.mulf %175, %8 : vector<128x16xf32>
    %177 = vector.broadcast %174 : vector<128x1xf32> to vector<128x16xf32>
    %178 = arith.mulf %177, %10 : vector<128x16xf32>
    %179 = arith.subf %176, %178 : vector<128x16xf32>
    %180 = arith.truncf %179 : vector<128x16xf32> to vector<128x16xbf16>
    %c0_48 = arith.constant 0 : index
    %c144 = arith.constant 144 : index
    %181 = vector.load %arg18[%c0_48, %c144] : memref<128x256xbf16, #tpu.memory_space<vmem>>, vector<128x16xbf16>
    tpu.vector_store %arg18[%c0_48, %c144], %180 {strides = array<i32>} : memref<128x256xbf16, #tpu.memory_space<vmem>>, vector<128x16xbf16>,
    %182 = vector.broadcast %174 : vector<128x1xf32> to vector<128x16xf32>
    %183 = arith.mulf %182, %8 : vector<128x16xf32>
    %184 = vector.broadcast %173 : vector<128x1xf32> to vector<128x16xf32>
    %185 = arith.mulf %184, %10 : vector<128x16xf32>
    %186 = arith.addf %183, %185 : vector<128x16xf32>
    %cst_49 = arith.constant 0.000000e+00 : f32
    %187 = vector.broadcast %cst_49 : f32 to vector<128x16xf32>
    %188 = arith.subf %187, %186 : vector<128x16xf32>
    %189 = arith.truncf %188 : vector<128x16xf32> to vector<128x16xbf16>
    %c0_50 = arith.constant 0 : index
    %c144_51 = arith.constant 144 : index
    %190 = vector.load %arg19[%c0_50, %c144_51] : memref<128x256xbf16, #tpu.memory_space<vmem>>, vector<128x16xbf16>
    tpu.vector_store %arg19[%c0_50, %c144_51], %189 {strides = array<i32>} : memref<128x256xbf16, #tpu.memory_space<vmem>>, vector<128x16xbf16>,
    %191 = vector.extract_strided_slice %4 {offsets = [0, 10], sizes = [128, 1], strides = [1, 1]} : vector<128x16xf32> to vector<128x1xf32>
    %192 = vector.extract_strided_slice %6 {offsets = [0, 10], sizes = [128, 1], strides = [1, 1]} : vector<128x16xf32> to vector<128x1xf32>
    %193 = vector.broadcast %191 : vector<128x1xf32> to vector<128x16xf32>
    %194 = arith.mulf %193, %8 : vector<128x16xf32>
    %195 = vector.broadcast %192 : vector<128x1xf32> to vector<128x16xf32>
    %196 = arith.mulf %195, %10 : vector<128x16xf32>
    %197 = arith.subf %194, %196 : vector<128x16xf32>
    %198 = arith.truncf %197 : vector<128x16xf32> to vector<128x16xbf16>
    %c0_52 = arith.constant 0 : index
    %c160 = arith.constant 160 : index
    %199 = vector.load %arg18[%c0_52, %c160] : memref<128x256xbf16, #tpu.memory_space<vmem>>, vector<128x16xbf16>
    tpu.vector_store %arg18[%c0_52, %c160], %198 {strides = array<i32>} : memref<128x256xbf16, #tpu.memory_space<vmem>>, vector<128x16xbf16>,
    %200 = vector.broadcast %192 : vector<128x1xf32> to vector<128x16xf32>
    %201 = arith.mulf %200, %8 : vector<128x16xf32>
    %202 = vector.broadcast %191 : vector<128x1xf32> to vector<128x16xf32>
    %203 = arith.mulf %202, %10 : vector<128x16xf32>
    %204 = arith.addf %201, %203 : vector<128x16xf32>
    %cst_53 = arith.constant 0.000000e+00 : f32
    %205 = vector.broadcast %cst_53 : f32 to vector<128x16xf32>
    %206 = arith.subf %205, %204 : vector<128x16xf32>
    %207 = arith.truncf %206 : vector<128x16xf32> to vector<128x16xbf16>
    %c0_54 = arith.constant 0 : index
    %c160_55 = arith.constant 160 : index
    %208 = vector.load %arg19[%c0_54, %c160_55] : memref<128x256xbf16, #tpu.memory_space<vmem>>, vector<128x16xbf16>
    tpu.vector_store %arg19[%c0_54, %c160_55], %207 {strides = array<i32>} : memref<128x256xbf16, #tpu.memory_space<vmem>>, vector<128x16xbf16>,
    %209 = vector.extract_strided_slice %4 {offsets = [0, 11], sizes = [128, 1], strides = [1, 1]} : vector<128x16xf32> to vector<128x1xf32>
    %210 = vector.extract_strided_slice %6 {offsets = [0, 11], sizes = [128, 1], strides = [1, 1]} : vector<128x16xf32> to vector<128x1xf32>
    %211 = vector.broadcast %209 : vector<128x1xf32> to vector<128x16xf32>
    %212 = arith.mulf %211, %8 : vector<128x16xf32>
    %213 = vector.broadcast %210 : vector<128x1xf32> to vector<128x16xf32>
    %214 = arith.mulf %213, %10 : vector<128x16xf32>
    %215 = arith.subf %212, %214 : vector<128x16xf32>
    %216 = arith.truncf %215 : vector<128x16xf32> to vector<128x16xbf16>
    %c0_56 = arith.constant 0 : index
    %c176 = arith.constant 176 : index
    %217 = vector.load %arg18[%c0_56, %c176] : memref<128x256xbf16, #tpu.memory_space<vmem>>, vector<128x16xbf16>
    tpu.vector_store %arg18[%c0_56, %c176], %216 {strides = array<i32>} : memref<128x256xbf16, #tpu.memory_space<vmem>>, vector<128x16xbf16>,
    %218 = vector.broadcast %210 : vector<128x1xf32> to vector<128x16xf32>
    %219 = arith.mulf %218, %8 : vector<128x16xf32>
    %220 = vector.broadcast %209 : vector<128x1xf32> to vector<128x16xf32>
    %221 = arith.mulf %220, %10 : vector<128x16xf32>
    %222 = arith.addf %219, %221 : vector<128x16xf32>
    %cst_57 = arith.constant 0.000000e+00 : f32
    %223 = vector.broadcast %cst_57 : f32 to vector<128x16xf32>
    %224 = arith.subf %223, %222 : vector<128x16xf32>
    %225 = arith.truncf %224 : vector<128x16xf32> to vector<128x16xbf16>
    %c0_58 = arith.constant 0 : index
    %c176_59 = arith.constant 176 : index
    %226 = vector.load %arg19[%c0_58, %c176_59] : memref<128x256xbf16, #tpu.memory_space<vmem>>, vector<128x16xbf16>
    tpu.vector_store %arg19[%c0_58, %c176_59], %225 {strides = array<i32>} : memref<128x256xbf16, #tpu.memory_space<vmem>>, vector<128x16xbf16>,
    %227 = vector.extract_strided_slice %4 {offsets = [0, 12], sizes = [128, 1], strides = [1, 1]} : vector<128x16xf32> to vector<128x1xf32>
    %228 = vector.extract_strided_slice %6 {offsets = [0, 12], sizes = [128, 1], strides = [1, 1]} : vector<128x16xf32> to vector<128x1xf32>
    %229 = vector.broadcast %227 : vector<128x1xf32> to vector<128x16xf32>
    %230 = arith.mulf %229, %8 : vector<128x16xf32>
    %231 = vector.broadcast %228 : vector<128x1xf32> to vector<128x16xf32>
    %232 = arith.mulf %231, %10 : vector<128x16xf32>
    %233 = arith.subf %230, %232 : vector<128x16xf32>
    %234 = arith.truncf %233 : vector<128x16xf32> to vector<128x16xbf16>
    %c0_60 = arith.constant 0 : index
    %c192 = arith.constant 192 : index
    %235 = vector.load %arg18[%c0_60, %c192] : memref<128x256xbf16, #tpu.memory_space<vmem>>, vector<128x16xbf16>
    tpu.vector_store %arg18[%c0_60, %c192], %234 {strides = array<i32>} : memref<128x256xbf16, #tpu.memory_space<vmem>>, vector<128x16xbf16>,
    %236 = vector.broadcast %228 : vector<128x1xf32> to vector<128x16xf32>
    %237 = arith.mulf %236, %8 : vector<128x16xf32>
    %238 = vector.broadcast %227 : vector<128x1xf32> to vector<128x16xf32>
    %239 = arith.mulf %238, %10 : vector<128x16xf32>
    %240 = arith.addf %237, %239 : vector<128x16xf32>
    %cst_61 = arith.constant 0.000000e+00 : f32
    %241 = vector.broadcast %cst_61 : f32 to vector<128x16xf32>
    %242 = arith.subf %241, %240 : vector<128x16xf32>
    %243 = arith.truncf %242 : vector<128x16xf32> to vector<128x16xbf16>
    %c0_62 = arith.constant 0 : index
    %c192_63 = arith.constant 192 : index
    %244 = vector.load %arg19[%c0_62, %c192_63] : memref<128x256xbf16, #tpu.memory_space<vmem>>, vector<128x16xbf16>
    tpu.vector_store %arg19[%c0_62, %c192_63], %243 {strides = array<i32>} : memref<128x256xbf16, #tpu.memory_space<vmem>>, vector<128x16xbf16>,
    %245 = vector.extract_strided_slice %4 {offsets = [0, 13], sizes = [128, 1], strides = [1, 1]} : vector<128x16xf32> to vector<128x1xf32>
    %246 = vector.extract_strided_slice %6 {offsets = [0, 13], sizes = [128, 1], strides = [1, 1]} : vector<128x16xf32> to vector<128x1xf32>
    %247 = vector.broadcast %245 : vector<128x1xf32> to vector<128x16xf32>
    %248 = arith.mulf %247, %8 : vector<128x16xf32>
    %249 = vector.broadcast %246 : vector<128x1xf32> to vector<128x16xf32>
    %250 = arith.mulf %249, %10 : vector<128x16xf32>
    %251 = arith.subf %248, %250 : vector<128x16xf32>
    %252 = arith.truncf %251 : vector<128x16xf32> to vector<128x16xbf16>
    %c0_64 = arith.constant 0 : index
    %c208 = arith.constant 208 : index
    %253 = vector.load %arg18[%c0_64, %c208] : memref<128x256xbf16, #tpu.memory_space<vmem>>, vector<128x16xbf16>
    tpu.vector_store %arg18[%c0_64, %c208], %252 {strides = array<i32>} : memref<128x256xbf16, #tpu.memory_space<vmem>>, vector<128x16xbf16>,
    %254 = vector.broadcast %246 : vector<128x1xf32> to vector<128x16xf32>
    %255 = arith.mulf %254, %8 : vector<128x16xf32>
    %256 = vector.broadcast %245 : vector<128x1xf32> to vector<128x16xf32>
    %257 = arith.mulf %256, %10 : vector<128x16xf32>
    %258 = arith.addf %255, %257 : vector<128x16xf32>
    %cst_65 = arith.constant 0.000000e+00 : f32
    %259 = vector.broadcast %cst_65 : f32 to vector<128x16xf32>
    %260 = arith.subf %259, %258 : vector<128x16xf32>
    %261 = arith.truncf %260 : vector<128x16xf32> to vector<128x16xbf16>
    %c0_66 = arith.constant 0 : index
    %c208_67 = arith.constant 208 : index
    %262 = vector.load %arg19[%c0_66, %c208_67] : memref<128x256xbf16, #tpu.memory_space<vmem>>, vector<128x16xbf16>
    tpu.vector_store %arg19[%c0_66, %c208_67], %261 {strides = array<i32>} : memref<128x256xbf16, #tpu.memory_space<vmem>>, vector<128x16xbf16>,
    %263 = vector.extract_strided_slice %4 {offsets = [0, 14], sizes = [128, 1], strides = [1, 1]} : vector<128x16xf32> to vector<128x1xf32>
    %264 = vector.extract_strided_slice %6 {offsets = [0, 14], sizes = [128, 1], strides = [1, 1]} : vector<128x16xf32> to vector<128x1xf32>
    %265 = vector.broadcast %263 : vector<128x1xf32> to vector<128x16xf32>
    %266 = arith.mulf %265, %8 : vector<128x16xf32>
    %267 = vector.broadcast %264 : vector<128x1xf32> to vector<128x16xf32>
    %268 = arith.mulf %267, %10 : vector<128x16xf32>
    %269 = arith.subf %266, %268 : vector<128x16xf32>
    %270 = arith.truncf %269 : vector<128x16xf32> to vector<128x16xbf16>
    %c0_68 = arith.constant 0 : index
    %c224 = arith.constant 224 : index
    %271 = vector.load %arg18[%c0_68, %c224] : memref<128x256xbf16, #tpu.memory_space<vmem>>, vector<128x16xbf16>
    tpu.vector_store %arg18[%c0_68, %c224], %270 {strides = array<i32>} : memref<128x256xbf16, #tpu.memory_space<vmem>>, vector<128x16xbf16>,
    %272 = vector.broadcast %264 : vector<128x1xf32> to vector<128x16xf32>
    %273 = arith.mulf %272, %8 : vector<128x16xf32>
    %274 = vector.broadcast %263 : vector<128x1xf32> to vector<128x16xf32>
    %275 = arith.mulf %274, %10 : vector<128x16xf32>
    %276 = arith.addf %273, %275 : vector<128x16xf32>
    %cst_69 = arith.constant 0.000000e+00 : f32
    %277 = vector.broadcast %cst_69 : f32 to vector<128x16xf32>
    %278 = arith.subf %277, %276 : vector<128x16xf32>
    %279 = arith.truncf %278 : vector<128x16xf32> to vector<128x16xbf16>
    %c0_70 = arith.constant 0 : index
    %c224_71 = arith.constant 224 : index
    %280 = vector.load %arg19[%c0_70, %c224_71] : memref<128x256xbf16, #tpu.memory_space<vmem>>, vector<128x16xbf16>
    tpu.vector_store %arg19[%c0_70, %c224_71], %279 {strides = array<i32>} : memref<128x256xbf16, #tpu.memory_space<vmem>>, vector<128x16xbf16>,
    %281 = vector.extract_strided_slice %4 {offsets = [0, 15], sizes = [128, 1], strides = [1, 1]} : vector<128x16xf32> to vector<128x1xf32>
    %282 = vector.extract_strided_slice %6 {offsets = [0, 15], sizes = [128, 1], strides = [1, 1]} : vector<128x16xf32> to vector<128x1xf32>
    %283 = vector.broadcast %281 : vector<128x1xf32> to vector<128x16xf32>
    %284 = arith.mulf %283, %8 : vector<128x16xf32>
    %285 = vector.broadcast %282 : vector<128x1xf32> to vector<128x16xf32>
    %286 = arith.mulf %285, %10 : vector<128x16xf32>
    %287 = arith.subf %284, %286 : vector<128x16xf32>
    %288 = arith.truncf %287 : vector<128x16xf32> to vector<128x16xbf16>
    %c0_72 = arith.constant 0 : index
    %c240 = arith.constant 240 : index
    %289 = vector.load %arg18[%c0_72, %c240] : memref<128x256xbf16, #tpu.memory_space<vmem>>, vector<128x16xbf16>
    tpu.vector_store %arg18[%c0_72, %c240], %288 {strides = array<i32>} : memref<128x256xbf16, #tpu.memory_space<vmem>>, vector<128x16xbf16>,
    %290 = vector.broadcast %282 : vector<128x1xf32> to vector<128x16xf32>
    %291 = arith.mulf %290, %8 : vector<128x16xf32>
    %292 = vector.broadcast %281 : vector<128x1xf32> to vector<128x16xf32>
    %293 = arith.mulf %292, %10 : vector<128x16xf32>
    %294 = arith.addf %291, %293 : vector<128x16xf32>
    %cst_73 = arith.constant 0.000000e+00 : f32
    %295 = vector.broadcast %cst_73 : f32 to vector<128x16xf32>
    %296 = arith.subf %295, %294 : vector<128x16xf32>
    %297 = arith.truncf %296 : vector<128x16xf32> to vector<128x16xbf16>
    %c0_74 = arith.constant 0 : index
    %c240_75 = arith.constant 240 : index
    %298 = vector.load %arg19[%c0_74, %c240_75] : memref<128x256xbf16, #tpu.memory_space<vmem>>, vector<128x16xbf16>
    tpu.vector_store %arg19[%c0_74, %c240_75], %297 {strides = array<i32>} : memref<128x256xbf16, #tpu.memory_space<vmem>>, vector<128x16xbf16>,
    %c0_76 = arith.constant 0 : index
    %c0_77 = arith.constant 0 : index
    %299 = vector.load %arg18[%c0_76, %c0_77] : memref<128x256xbf16, #tpu.memory_space<vmem>>, vector<128x256xbf16>
    %c0_78 = arith.constant 0 : index
    %c0_79 = arith.constant 0 : index
    %300 = vector.load %arg19[%c0_78, %c0_79] : memref<128x256xbf16, #tpu.memory_space<vmem>>, vector<128x256xbf16>
    %c0_80 = arith.constant 0 : index
    %c0_81 = arith.constant 0 : index
    %301 = vector.load %arg16[%c0_80, %c0_81] : memref<4x256xbf16, #tpu.memory_space<vmem>>, vector<4x256xbf16>
    %c0_82 = arith.constant 0 : index
    %c0_83 = arith.constant 0 : index
    %302 = vector.load %arg17[%c0_82, %c0_83] : memref<4x256xbf16, #tpu.memory_space<vmem>>, vector<4x256xbf16>
    %cst_84 = arith.constant dense<0.000000e+00> : vector<4x128xf32>
    %303 = tpu.matmul %301, %299, %cst_84 {dimension_numbers = #tpu.dot_dimension_numbers<[1], [1], [0], [0], [0, 0, 1, 0], [], []>} : vector<4x256xbf16>, vector<128x256xbf16>, vector<4x128xf32> -> vector<4x128xf32>
    %cst_85 = arith.constant dense<0.000000e+00> : vector<4x128xf32>
    %304 = tpu.matmul %302, %300, %cst_85 {dimension_numbers = #tpu.dot_dimension_numbers<[1], [1], [0], [0], [0, 0, 1, 0], [], []>} : vector<4x256xbf16>, vector<128x256xbf16>, vector<4x128xf32> -> vector<4x128xf32>
    %305 = arith.subf %303, %304 : vector<4x128xf32>
    %cst_86 = arith.constant dense<0.000000e+00> : vector<4x128xf32>
    %306 = tpu.matmul %301, %300, %cst_86 {dimension_numbers = #tpu.dot_dimension_numbers<[1], [1], [0], [0], [0, 0, 1, 0], [], []>} : vector<4x256xbf16>, vector<128x256xbf16>, vector<4x128xf32> -> vector<4x128xf32>
    %cst_87 = arith.constant dense<0.000000e+00> : vector<4x128xf32>
    %307 = tpu.matmul %302, %299, %cst_87 {dimension_numbers = #tpu.dot_dimension_numbers<[1], [1], [0], [0], [0, 0, 1, 0], [], []>} : vector<4x256xbf16>, vector<128x256xbf16>, vector<4x128xf32> -> vector<4x128xf32>
    %308 = arith.addf %306, %307 : vector<4x128xf32>
    %c0_88 = arith.constant 0 : index
    %c0_89 = arith.constant 0 : index
    %c0_90 = arith.constant 0 : index
    %309 = vector.load %arg11[%c0_88, %c0_89, %c0_90] : memref<1x1x128xf32, #tpu.memory_space<vmem>>, vector<1x1x128xf32>
    %310 = vector.shape_cast %309 : vector<1x1x128xf32> to vector<1x128xf32>
    %311 = vector.broadcast %310 : vector<1x128xf32> to vector<4x128xf32>
    %312 = arith.mulf %305, %311 : vector<4x128xf32>
    %c0_91 = arith.constant 0 : index
    %c0_92 = arith.constant 0 : index
    %c0_93 = arith.constant 0 : index
    %313 = vector.load %arg12[%c0_91, %c0_92, %c0_93] : memref<1x4x128xf32, #tpu.memory_space<vmem>>, vector<1x4x128xf32>
    %314 = vector.shape_cast %313 : vector<1x4x128xf32> to vector<4x128xf32>
    %315 = arith.subf %312, %314 : vector<4x128xf32>
    %316 = arith.truncf %315 : vector<4x128xf32> to vector<4x128xbf16>
    %317 = vector.broadcast %310 : vector<1x128xf32> to vector<4x128xf32>
    %318 = arith.mulf %308, %317 : vector<4x128xf32>
    %c0_94 = arith.constant 0 : index
    %c0_95 = arith.constant 0 : index
    %c0_96 = arith.constant 0 : index
    %319 = vector.load %arg13[%c0_94, %c0_95, %c0_96] : memref<1x4x128xf32, #tpu.memory_space<vmem>>, vector<1x4x128xf32>
    %320 = vector.shape_cast %319 : vector<1x4x128xf32> to vector<4x128xf32>
    %321 = arith.subf %318, %320 : vector<4x128xf32>
    %322 = arith.truncf %321 : vector<4x128xf32> to vector<4x128xbf16>
    %c0_97 = arith.constant 0 : index
    %c0_98 = arith.constant 0 : index
    %323 = vector.load %arg20[%c0_97, %c0_98] : memref<4x256xf32, #tpu.memory_space<vmem>>, vector<4x256xf32>
    %cst_99 = arith.constant dense<0.000000e+00> : vector<4x256xf32>
    %324 = tpu.matmul %316, %299, %cst_99 {dimension_numbers = #tpu.dot_dimension_numbers<[1], [0], [0], [1], [0, 0, 1, 1], [], []>} : vector<4x128xbf16>, vector<128x256xbf16>, vector<4x256xf32> -> vector<4x256xf32>
    %cst_100 = arith.constant dense<0.000000e+00> : vector<4x256xf32>
    %325 = tpu.matmul %322, %300, %cst_100 {dimension_numbers = #tpu.dot_dimension_numbers<[1], [0], [0], [1], [0, 0, 1, 1], [], []>} : vector<4x128xbf16>, vector<128x256xbf16>, vector<4x256xf32> -> vector<4x256xf32>
    %326 = arith.addf %324, %325 : vector<4x256xf32>
    %327 = arith.addf %323, %326 : vector<4x256xf32>
    %c0_101 = arith.constant 0 : index
    %c0_102 = arith.constant 0 : index
    %328 = vector.load %arg20[%c0_101, %c0_102] : memref<4x256xf32, #tpu.memory_space<vmem>>, vector<4x256xf32>
    tpu.vector_store %arg20[%c0_101, %c0_102], %327 {strides = array<i32>} : memref<4x256xf32, #tpu.memory_space<vmem>>, vector<4x256xf32>,
    %c0_103 = arith.constant 0 : index
    %c0_104 = arith.constant 0 : index
    %329 = vector.load %arg21[%c0_103, %c0_104] : memref<4x256xf32, #tpu.memory_space<vmem>>, vector<4x256xf32>
    %cst_105 = arith.constant dense<0.000000e+00> : vector<4x256xf32>
    %330 = tpu.matmul %322, %299, %cst_105 {dimension_numbers = #tpu.dot_dimension_numbers<[1], [0], [0], [1], [0, 0, 1, 1], [], []>} : vector<4x128xbf16>, vector<128x256xbf16>, vector<4x256xf32> -> vector<4x256xf32>
    %cst_106 = arith.constant dense<0.000000e+00> : vector<4x256xf32>
    %331 = tpu.matmul %316, %300, %cst_106 {dimension_numbers = #tpu.dot_dimension_numbers<[1], [0], [0], [1], [0, 0, 1, 1], [], []>} : vector<4x128xbf16>, vector<128x256xbf16>, vector<4x256xf32> -> vector<4x256xf32>
    %332 = arith.subf %330, %331 : vector<4x256xf32>
    %333 = arith.addf %329, %332 : vector<4x256xf32>
    %c0_107 = arith.constant 0 : index
    %c0_108 = arith.constant 0 : index
    %334 = vector.load %arg21[%c0_107, %c0_108] : memref<4x256xf32, #tpu.memory_space<vmem>>, vector<4x256xf32>
    tpu.vector_store %arg21[%c0_107, %c0_108], %333 {strides = array<i32>} : memref<4x256xf32, #tpu.memory_space<vmem>>, vector<4x256xf32>,
    %c0_i32_109 = arith.constant 0 : i32
    %335 = arith.cmpi eq, %arg2, %c0_i32_109 : i32
    %336 = arith.extui %335 : i1 to i32
    %c0_i32_110 = arith.constant 0 : i32
    %337 = arith.cmpi ne, %336, %c0_i32_110 : i32
    scf.if %337 {
      %c0_111 = arith.constant 0 : index
      %c0_112 = arith.constant 0 : index
      %c0_113 = arith.constant 0 : index
      %338 = vector.load %arg5[%c0_111, %c0_112, %c0_113] : memref<1x4x256xbf16, #tpu.memory_space<vmem>>, vector<1x4x256xbf16>
      %339 = vector.shape_cast %338 : vector<1x4x256xbf16> to vector<4x256xbf16>
      %340 = arith.extf %339 : vector<4x256xbf16> to vector<4x256xf32>
      %c0_114 = arith.constant 0 : index
      %c0_115 = arith.constant 0 : index
      %c0_116 = arith.constant 0 : index
      %341 = vector.load %arg6[%c0_114, %c0_115, %c0_116] : memref<1x4x256xbf16, #tpu.memory_space<vmem>>, vector<1x4x256xbf16>
      %342 = vector.shape_cast %341 : vector<1x4x256xbf16> to vector<4x256xbf16>
      %343 = arith.extf %342 : vector<4x256xbf16> to vector<4x256xf32>
      %c0_117 = arith.constant 0 : index
      %c0_118 = arith.constant 0 : index
      %344 = vector.load %arg20[%c0_117, %c0_118] : memref<4x256xf32, #tpu.memory_space<vmem>>, vector<4x256xf32>
      %c0_119 = arith.constant 0 : index
      %c0_120 = arith.constant 0 : index
      %345 = vector.load %arg21[%c0_119, %c0_120] : memref<4x256xf32, #tpu.memory_space<vmem>>, vector<4x256xf32>
      %346 = arith.mulf %340, %344 : vector<4x256xf32>
      %347 = arith.mulf %343, %345 : vector<4x256xf32>
      %348 = arith.addf %346, %347 : vector<4x256xf32>
      %cst_121 = arith.constant dense<0.000000e+00> : vector<256xf32>
      %349 = vector.multi_reduction <add>, %348, %cst_121 [0] : vector<4x256xf32> to vector<256xf32>
      %350 = vector.shape_cast %349 : vector<256xf32> to vector<1x256xf32>
      %c0_122 = arith.constant 0 : index
      %c0_123 = arith.constant 0 : index
      %c0_124 = arith.constant 0 : index
      %c0_125 = arith.constant 0 : index
      %351 = vector.load %arg14[%c0_122, %c0_123, %c0_124, %c0_125] : memref<1x1x1x256xf32, #tpu.memory_space<vmem>>, vector<1x1x1x256xf32>
      %352 = vector.shape_cast %351 : vector<1x1x1x256xf32> to vector<1x256xf32>
      %353 = vector.shape_cast %350 : vector<1x256xf32> to vector<1x1x1x256xf32>
      tpu.vector_store %arg14[%c0_122, %c0_123, %c0_124, %c0_125], %353 {strides = array<i32>} : memref<1x1x1x256xf32, #tpu.memory_space<vmem>>, vector<1x1x1x256xf32>,
      %354 = arith.mulf %340, %345 : vector<4x256xf32>
      %355 = arith.mulf %343, %344 : vector<4x256xf32>
      %356 = arith.subf %354, %355 : vector<4x256xf32>
      %cst_126 = arith.constant dense<0.000000e+00> : vector<256xf32>
      %357 = vector.multi_reduction <add>, %356, %cst_126 [0] : vector<4x256xf32> to vector<256xf32>
      %358 = vector.shape_cast %357 : vector<256xf32> to vector<1x256xf32>
      %c0_127 = arith.constant 0 : index
      %c0_128 = arith.constant 0 : index
      %c0_129 = arith.constant 0 : index
      %c0_130 = arith.constant 0 : index
      %359 = vector.load %arg15[%c0_127, %c0_128, %c0_129, %c0_130] : memref<1x1x1x256xf32, #tpu.memory_space<vmem>>, vector<1x1x1x256xf32>
      %360 = vector.shape_cast %359 : vector<1x1x1x256xf32> to vector<1x256xf32>
      %361 = vector.shape_cast %358 : vector<1x256xf32> to vector<1x1x1x256xf32>
      tpu.vector_store %arg15[%c0_127, %c0_128, %c0_129, %c0_130], %361 {strides = array<i32>} : memref<1x1x1x256xf32, #tpu.memory_space<vmem>>, vector<1x1x1x256xf32>,
    } else {
    }
    return
  }
  func.func @transform_0(%arg0: i32, %arg1: i32, %arg2: i32) -> (i32, i32, i32) {
    %c0_i32 = arith.constant 0 : i32
    %c0_i32_0 = arith.constant 0 : i32
    %c0_i32_1 = arith.constant 0 : i32
    return %arg0, %c0_i32, %c0_i32_0 : i32, i32, i32
  }
  func.func @transform_1(%arg0: i32, %arg1: i32, %arg2: i32) -> (i32, i32, i32) {
    %c0_i32 = arith.constant 0 : i32
    %c0_i32_0 = arith.constant 0 : i32
    %c0_i32_1 = arith.constant 0 : i32
    return %arg0, %c0_i32, %c0_i32_0 : i32, i32, i32
  }
  func.func @transform_2(%arg0: i32, %arg1: i32, %arg2: i32) -> (i32, i32, i32) {
    %c0_i32 = arith.constant 0 : i32
    %c0_i32_0 = arith.constant 0 : i32
    %c0_i32_1 = arith.constant 0 : i32
    return %arg0, %c0_i32, %c0_i32_0 : i32, i32, i32
  }
  func.func @transform_3(%arg0: i32, %arg1: i32, %arg2: i32) -> (i32, i32, i32) {
    %c0_i32 = arith.constant 0 : i32
    %c0_i32_0 = arith.constant 0 : i32
    %c0_i32_1 = arith.constant 0 : i32
    return %arg0, %c0_i32, %c0_i32_0 : i32, i32, i32
  }
  func.func @transform_4(%arg0: i32, %arg1: i32, %arg2: i32) -> (i32, i32, i32) {
    %c1_i32 = arith.constant 1 : i32
    %0 = arith.muli %arg1, %c1_i32 : i32
    %1 = arith.addi %0, %arg2 : i32
    %c0_i32 = arith.constant 0 : i32
    %c0_i32_0 = arith.constant 0 : i32
    return %arg0, %1, %c0_i32 : i32, i32, i32
  }
  func.func @transform_5(%arg0: i32, %arg1: i32, %arg2: i32) -> (i32, i32, i32) {
    %c1_i32 = arith.constant 1 : i32
    %0 = arith.muli %arg1, %c1_i32 : i32
    %1 = arith.addi %0, %arg2 : i32
    %c0_i32 = arith.constant 0 : i32
    %c0_i32_0 = arith.constant 0 : i32
    return %arg0, %1, %c0_i32 : i32, i32, i32
  }
  func.func @transform_6(%arg0: i32, %arg1: i32, %arg2: i32) -> (i32, i32, i32) {
    %c1_i32 = arith.constant 1 : i32
    %0 = arith.muli %arg1, %c1_i32 : i32
    %1 = arith.addi %0, %arg2 : i32
    %c0_i32 = arith.constant 0 : i32
    %c0_i32_0 = arith.constant 0 : i32
    return %arg0, %1, %c0_i32 : i32, i32, i32
  }
  func.func @transform_7(%arg0: i32, %arg1: i32, %arg2: i32) -> (i32, i32, i32) {
    %c1_i32 = arith.constant 1 : i32
    %0 = arith.muli %arg1, %c1_i32 : i32
    %1 = arith.addi %0, %arg2 : i32
    %c0_i32 = arith.constant 0 : i32
    %c0_i32_0 = arith.constant 0 : i32
    return %arg0, %1, %c0_i32 : i32, i32, i32
  }
  func.func @transform_8(%arg0: i32, %arg1: i32, %arg2: i32) -> (i32, i32, i32) {
    %c1_i32 = arith.constant 1 : i32
    %0 = arith.muli %arg1, %c1_i32 : i32
    %1 = arith.addi %0, %arg2 : i32
    %c0_i32 = arith.constant 0 : i32
    %c0_i32_0 = arith.constant 0 : i32
    return %arg0, %c0_i32, %1 : i32, i32, i32
  }
  func.func @transform_9(%arg0: i32, %arg1: i32, %arg2: i32) -> (i32, i32, i32) {
    %c1_i32 = arith.constant 1 : i32
    %0 = arith.muli %arg1, %c1_i32 : i32
    %1 = arith.addi %0, %arg2 : i32
    %c0_i32 = arith.constant 0 : i32
    %c0_i32_0 = arith.constant 0 : i32
    return %arg0, %c0_i32, %1 : i32, i32, i32
  }
  func.func @transform_10(%arg0: i32, %arg1: i32, %arg2: i32) -> (i32, i32, i32) {
    %c1_i32 = arith.constant 1 : i32
    %0 = arith.muli %arg1, %c1_i32 : i32
    %1 = arith.addi %0, %arg2 : i32
    %c0_i32 = arith.constant 0 : i32
    %c0_i32_0 = arith.constant 0 : i32
    return %arg0, %c0_i32, %1 : i32, i32, i32
  }
  func.func @transform_11(%arg0: i32, %arg1: i32, %arg2: i32) -> (i32, i32, i32, i32) {
    %c0_i32 = arith.constant 0 : i32
    %c0_i32_0 = arith.constant 0 : i32
    %c0_i32_1 = arith.constant 0 : i32
    return %arg1, %arg0, %c0_i32, %c0_i32_0 : i32, i32, i32, i32
  }
  func.func @transform_12(%arg0: i32, %arg1: i32, %arg2: i32) -> (i32, i32, i32, i32) {
    %c0_i32 = arith.constant 0 : i32
    %c0_i32_0 = arith.constant 0 : i32
    %c0_i32_1 = arith.constant 0 : i32
    return %arg1, %arg0, %c0_i32, %c0_i32_0 : i32, i32, i32, i32
  }
}

</mosaic_0001>

<llo_original>
// kernel: custom-call
$region0: #{custom-call}
  %s0 = inlined_call_operand.hbm [shape: c64[2,256], index: 0, kind: input, shape index: {}]
  %s1 = inlined_call_operand.vmem [shape: f32[2,256], index: 1, kind: output, shape index: {}]
  $region1: #{custom-call} parent=0
    #allocation0 [shape = 's32[1]{0}', space=sflag, size = 0x4, scoped, tag = 'scoped memory for custom-call']
    %2 = vsyncpa [#allocation0], 0
    %s3 = sshll.u32 %s1, 4
    %s4 = int_to_ptr.vmem [resolvable:$true] %s3
    %6 = dma.hbm_to_vmem [thread:$0]  %s0, 64, %s4, [#allocation0]
    %7 = dma.done [#allocation0], 64
    %8 = vsyncpa [#allocation0], 1

// kernel: custom-call.1
$region0: #{custom-call.1}
  %s0 = inlined_call_operand.hbm [shape: c64[2,256], index: 0, kind: input, shape index: {}]
  %s1 = inlined_call_operand.vmem [shape: f32[2,256], index: 1, kind: output, shape index: {}]
  %s2 = scalar_lea.hbm %s0, 64
  $region1: #{custom-call.1} parent=0
    #allocation0 [shape = 's32[1]{0}', space=sflag, size = 0x4, scoped, tag = 'scoped memory for custom-call.1']
    %3 = vsyncpa [#allocation0], 0
    %s4 = sshll.u32 %s1, 4
    %s5 = int_to_ptr.vmem [resolvable:$true] %s4
    %7 = dma.hbm_to_vmem [thread:$0]  %s2, 64, %s5, [#allocation0]
    %8 = dma.done [#allocation0], 64
    %9 = vsyncpa [#allocation0], 1

// kernel: mul.36
$region0: #{mul.36}
  #allocation2 [shape = 's32[1]{0}', space=sflag, size = 0x4, scoped, tag = 'scoped memory for mul.36']
  %s0 = inlined_call_operand.hbm [shape: f32[2,128], index: 0, kind: input, shape index: {}]
  %s1 = inlined_call_operand.vmem [shape: f32[2,128], index: 1, kind: input, shape index: {}]
  %s2 = inlined_call_operand.vmem [shape: f32[2,128], index: 2, kind: output, shape index: {}]
  $region1: #{mul.36} parent=0
    #allocation0 [shape = 'u8[1024]{0}', space=vmem, size = 0x400, scoped, tag = 'operand span for operand 0']
    #allocation1 [shape = 's32[1]{0}', space=sflag, size = 0x4, scoped, tag = 'scoped memory for mul.36']
    %3 = vsyncpa [#allocation1], 0
    %s5 = ssub.s32 32, 32
    %6 = vsyncadd [#allocation1], %s5
    %s8 = sshll.u32 [#allocation0], 4
    %s9 = int_to_ptr.vmem [resolvable:$true] %s8
    %11 = dma.hbm_to_vmem [thread:$0]  %s0, 32, %s9, [#allocation1]
    %12 = dma.done [#allocation1], 32
    %v13 = vld [vmem:[#allocation0] sm:$0x3]
    %v14 = vld [vmem:[%s1] sm:$0x3]
    %15 = xla_tuple %v13, %v14
    %16 = xla_tuple %15
    %v17 = vmul.f32 %v13, %v14
    %18 = xla_tuple %v17
    %19 = vst [vmem:[%s2] sm:$0x3] %v17
    %20 = vsyncpa [#allocation1], 1

// kernel: custom-call.5
$region0: #{custom-call.5}
  %s0 = inlined_call_operand.hbm [shape: c64[2,4,128], index: 0, kind: input, shape index: {}]
  %s1 = inlined_call_operand.vmem [shape: f32[2,4,128], index: 1, kind: output, shape index: {}]
  %s2 = scalar_lea.hbm %s0, 128
  $region1: #{custom-call.5} parent=0
    #allocation0 [shape = 's32[1]{0}', space=sflag, size = 0x4, scoped, tag = 'scoped memory for custom-call.5']
    %3 = vsyncpa [#allocation0], 0
    %s4 = sshll.u32 %s1, 4
    %s5 = int_to_ptr.vmem [resolvable:$true] %s4
    %7 = dma.hbm_to_vmem [thread:$0]  %s2, 128, %s5, [#allocation0]
    %8 = dma.done [#allocation0], 128
    %9 = vsyncpa [#allocation0], 1

// kernel: custom-call.4
$region0: #{custom-call.4}
  %s0 = inlined_call_operand.hbm [shape: c64[2,4,128], index: 0, kind: input, shape index: {}]
  %s1 = inlined_call_operand.vmem [shape: f32[2,4,128], index: 1, kind: output, shape index: {}]
  $region1: #{custom-call.4} parent=0
    #allocation0 [shape = 's32[1]{0}', space=sflag, size = 0x4, scoped, tag = 'scoped memory for custom-call.4']
    %2 = vsyncpa [#allocation0], 0
    %s3 = sshll.u32 %s1, 4
    %s4 = int_to_ptr.vmem [resolvable:$true] %s3
    %6 = dma.hbm_to_vmem [thread:$0]  %s0, 128, %s4, [#allocation0]
    %7 = dma.done [#allocation0], 128
    %8 = vsyncpa [#allocation0], 1

// kernel: custom-call.3
$region0: #{custom-call.3}
  %s0 = inlined_call_operand.hbm [shape: c64[2,4,256], index: 0, kind: input, shape index: {}]
  %s1 = inlined_call_operand.vmem [shape: f32[2,4,256], index: 1, kind: output, shape index: {}]
  %s2 = scalar_lea.hbm %s0, 256
  $region1: #{custom-call.3} parent=0
    #allocation0 [shape = 's32[1]{0}', space=sflag, size = 0x4, scoped, tag = 'scoped memory for custom-call.3']
    %3 = vsyncpa [#allocation0], 0
    %s4 = sshll.u32 %s1, 4
    %s5 = int_to_ptr.vmem [resolvable:$true] %s4
    %7 = dma.hbm_to_vmem [thread:$0]  %s2, 256, %s5, [#allocation0]
    %8 = dma.done [#allocation0], 256
    %9 = vsyncpa [#allocation0], 1

// kernel: custom-call.2
$region0: #{custom-call.2}
  %s0 = inlined_call_operand.hbm [shape: c64[2,4,256], index: 0, kind: input, shape index: {}]
  %s1 = inlined_call_operand.vmem [shape: f32[2,4,256], index: 1, kind: output, shape index: {}]
  $region1: #{custom-call.2} parent=0
    #allocation0 [shape = 's32[1]{0}', space=sflag, size = 0x4, scoped, tag = 'scoped memory for custom-call.2']
    %2 = vsyncpa [#allocation0], 0
    %s3 = sshll.u32 %s1, 4
    %s4 = int_to_ptr.vmem [resolvable:$true] %s3
    %6 = dma.hbm_to_vmem [thread:$0]  %s0, 256, %s4, [#allocation0]
    %7 = dma.done [#allocation0], 256
    %8 = vsyncpa [#allocation0], 1

// kernel: custom-call.6
$region0: #{custom-call.6}
  %s0 = inlined_call_operand.vmem [shape: f32[2,256], index: 0, kind: input, shape index: {}]
  %s1 = inlined_call_operand.vmem [shape: f32[2,256], index: 1, kind: input, shape index: {}]
  %s2 = inlined_call_operand.hbm [shape: c64[2,256], index: 2, kind: output, shape index: {}]
  %s3 = scalar_lea.hbm %s2, 64
  $region1: #{custom-call.6} parent=0
    #allocation0 [shape = 's32[1]{0}', space=sflag, size = 0x4, scoped, tag = 'scoped memory for custom-call.6']
    %4 = vsyncpa [#allocation0], 0
    %s5 = sshll.u32 %s0, 4
    %s6 = int_to_ptr.vmem [resolvable:$true] %s5
    %8 = dma.vmem_to_hbm [thread:$0]  %s6, 64, %s2, [#allocation0]
    %9 = dma.done [#allocation0], 64
    %10 = vsyncpa [#allocation0], 1
  $region2: #{custom-call.6} parent=0
    #allocation1 [shape = 's32[1]{0}', space=sflag, size = 0x4, scoped, tag = 'scoped memory for custom-call.6']
    %11 = vsyncpa [#allocation1], 0
    %s12 = sshll.u32 %s1, 4
    %s13 = int_to_ptr.vmem [resolvable:$true] %s12
    %15 = dma.vmem_to_hbm [thread:$0]  %s13, 64, %s3, [#allocation1]
    %16 = dma.done [#allocation1], 64
    %17 = vsyncpa [#allocation1], 1

// kernel: dc_wenqi_forward.1
$region0: #{dc_wenqi_forward.1}
  #allocation0 [shape = 'u32[]', space=smem, size = 0x4, offset = 0x4, fixed_abs, tag = 'smem constant byte address 0x4 - core index']
  #allocation1 [shape = 'u32[144,128]{1,0:T(1,128)}', space=vmem, size = 0x12000, scoped, tag = 'internal scratch']
  #allocation2 [shape = 'bf16[4,256]{1,0:T(4,128)(2,1)}', space=vmem, size = 0x800, scoped, tag = 'scratch operand']
  #allocation3 [shape = 'bf16[4,256]{1,0:T(4,128)(2,1)}', space=vmem, size = 0x800, scoped, tag = 'scratch operand']
  #allocation4 [shape = 'bf16[128,256]{1,0:T(8,128)(2,1)}', space=vmem, size = 0x10000, scoped, tag = 'scratch operand']
  #allocation5 [shape = 'bf16[128,256]{1,0:T(8,128)(2,1)}', space=vmem, size = 0x10000, scoped, tag = 'scratch operand']
  #allocation6 [shape = 'f32[4,256]{1,0:T(4,128)}', space=vmem, size = 0x1000, scoped, tag = 'scratch operand']
  #allocation7 [shape = 'f32[4,256]{1,0:T(4,128)}', space=vmem, size = 0x1000, scoped, tag = 'scratch operand']
  %s0 = inlined_call_operand.vmem [shape: f32[2,1,256], index: 0, kind: input, shape index: {}]
  %s1 = inlined_call_operand.vmem [shape: f32[2,1,256], index: 1, kind: input, shape index: {}]
  %s2 = inlined_call_operand.vmem [shape: bf16[2,4,256], index: 2, kind: input, shape index: {}]
  %s3 = inlined_call_operand.vmem [shape: bf16[2,4,256], index: 3, kind: input, shape index: {}]
  %s4 = inlined_call_operand.vmem [shape: f32[2,128,16], index: 4, kind: input, shape index: {}]
  %s5 = inlined_call_operand.vmem [shape: f32[2,128,16], index: 5, kind: input, shape index: {}]
  %s6 = inlined_call_operand.vmem [shape: f32[2,128,16], index: 6, kind: input, shape index: {}]
  %s7 = inlined_call_operand.vmem [shape: f32[2,128,16], index: 7, kind: input, shape index: {}]
  %s8 = inlined_call_operand.vmem [shape: f32[2,1,128], index: 8, kind: input, shape index: {}]
  %s9 = inlined_call_operand.vmem [shape: f32[2,4,128], index: 9, kind: input, shape index: {}]
  %s10 = inlined_call_operand.vmem [shape: f32[2,4,128], index: 10, kind: input, shape index: {}]
  %s11 = inlined_call_operand.vmem [shape: f32[1,2,1,256], index: 11, kind: output, shape index: {0}]
  %s12 = inlined_call_operand.vmem [shape: f32[1,2,1,256], index: 12, kind: output, shape index: {1}]
  %13 = xla_tuple %s11, %s12
  %s14 = sld [smem:[#allocation0]]
  $region93: #{dc_wenqi_forward.1} parent=0
    _
  %s16 = ssub.s32 1, %s14
  %s17 = scalar_select 0, %s16, %s14
  loop: start=0, step=1, limit=4
  $region2: #{dc_wenqi_forward.1} parent=0 // loop_pre_header
    _
  $region3: #{dc_wenqi_forward.1} parent=0 // loop_header
    %s19 = sphi 0, %s23
    %p20 = scmp.ge.s32.totalorder %s19, 4
    %s26 = sphi 0, %s45
    %s27 = sphi 0, %s41
    %s28 = sphi 0, %s37
    %s29 = sphi 0, %s26
    %s30 = sphi 0, %s27
    %s31 = sphi 0, %s28
    %s32 = sphi 0, %s29
    %s33 = sphi 0, %s30
    %s34 = sphi 0, %s31
    %s48 = sphi 0, %s50
    %s51 = sphi 0, %s48
    %s52 = sphi 0, %s51
    %s68 = sphi 0, %s52
    %s74 = sphi 0, %s76
    %s77 = sphi 0, %s74
    %s78 = sphi 0, %s77
    %s94 = sphi 0, %s78
    %s100 = sphi 0, %s102
    %s103 = sphi 0, %s100
    %s104 = sphi 0, %s103
    %s120 = sphi 0, %s104
    %s126 = sphi 0, %s128
    %s129 = sphi 0, %s126
    %s130 = sphi 0, %s129
    %s146 = sphi 0, %s130
    %s156 = sphi 0, %s158
    %s159 = sphi 0, %s156
    %s160 = sphi 0, %s159
    %s176 = sphi 0, %s160
    %s186 = sphi 0, %s188
    %s189 = sphi 0, %s186
    %s190 = sphi 0, %s189
    %s206 = sphi 0, %s190
    %s216 = sphi 0, %s218
    %s219 = sphi 0, %s216
    %s220 = sphi 0, %s219
    %s236 = sphi 0, %s220
    %s246 = sphi 0, %s248
    %s249 = sphi 0, %s246
    %s250 = sphi 0, %s249
    %s266 = sphi 0, %s250
    %s276 = sphi 0, %s278
    %s279 = sphi 0, %s276
    %s280 = sphi 0, %s279
    %s296 = sphi 0, %s280
    %s306 = sphi 0, %s308
    %s309 = sphi 0, %s306
    %s310 = sphi 0, %s309
    %s326 = sphi 0, %s310
    %s336 = sphi 0, %s338
    %s339 = sphi 0, %s336
    %s340 = sphi 0, %s339
    %s356 = sphi 0, %s340
    %s364 = sphi 0, %s366
    %s367 = sphi 0, %s364
    %s368 = sphi 0, %s367
    %s384 = sphi 0, %s368
    %s392 = sphi 0, %s394
    %s395 = sphi 0, %s392
    %s396 = sphi 0, %s395
    %s412 = sphi 0, %s396
  $region4: #{dc_wenqi_forward.1} parent=0 // loop_header_branch
    %22 = sbr.rel (%p20) target = $region8
  $region5: #{dc_wenqi_forward.1} parent=0 // loop_body
    %s24 = ssub.s32 %s19, 1
    %s25 = ssub.s32 %s19, 2
    %s35 = sadd.s32 1, %s28
    %p36 = scmp.ge.s32.totalorder %s35, 1
    %s37 = scalar_select %p36, 0, %s35
    %s38 = sadd.s32 1, %s27
    %s39 = scalar_select %p36, %s38, %s27
    %p40 = scmp.ge.s32.totalorder %s39, 1
    %s41 = scalar_select %p40, 0, %s39
    %s42 = sadd.s32 1, %s26
    %s43 = scalar_select %p40, %s42, %s26
    %p44 = scmp.ge.s32.totalorder %s43, 2
    %s45 = scalar_select %p44, 0, %s43
    %s46 = ssub.s32 %s26, %s45
    %p47 = scmp.eq.s32.totalorder %s46, 0
    %s49 = sadd.s32 %s48, 1
    %s50 = scalar_select %p47, %s48, %s49
    %p53 = pneg %p47
    %p54 = scmp.eq.s32.totalorder %s19, 1
    %p55 = por %p53, %p54
    %p56 = scmp.ne.s32.totalorder %s48, %s51
    %p57 = scmp.eq.s32.totalorder %s19, 0
    %p58 = por %p56, %p57
    %p59 = scmp.ne.s32.totalorder %s48, %s51
    %p60 = scmp.eq.s32.totalorder %s24, 1
    %p61 = por %p59, %p60
    %p62 = scmp.ne.s32.totalorder %s51, %s52
    %p63 = scmp.eq.s32.totalorder %s24, 0
    %p64 = por %p62, %p63
    %p65 = scmp.ne.s32.totalorder %s51, %s52
    %p66 = scmp.eq.s32.totalorder %s25, 1
    %p67 = por %p65, %p66
    %p69 = scmp.ne.s32.totalorder %s52, %s68
    %p70 = scmp.eq.s32.totalorder %s25, 0
    %p71 = por %p69, %p70
    %s72 = ssub.s32 %s26, %s45
    %p73 = scmp.eq.s32.totalorder %s72, 0
    %s75 = sadd.s32 %s74, 1
    %s76 = scalar_select %p73, %s74, %s75
    %p79 = pneg %p73
    %p80 = scmp.eq.s32.totalorder %s19, 1
    %p81 = por %p79, %p80
    %p82 = scmp.ne.s32.totalorder %s74, %s77
    %p83 = scmp.eq.s32.totalorder %s19, 0
    %p84 = por %p82, %p83
    %p85 = scmp.ne.s32.totalorder %s74, %s77
    %p86 = scmp.eq.s32.totalorder %s24, 1
    %p87 = por %p85, %p86
    %p88 = scmp.ne.s32.totalorder %s77, %s78
    %p89 = scmp.eq.s32.totalorder %s24, 0
    %p90 = por %p88, %p89
    %p91 = scmp.ne.s32.totalorder %s77, %s78
    %p92 = scmp.eq.s32.totalorder %s25, 1
    %p93 = por %p91, %p92
    %p95 = scmp.ne.s32.totalorder %s78, %s94
    %p96 = scmp.eq.s32.totalorder %s25, 0
    %p97 = por %p95, %p96
    %s98 = ssub.s32 %s26, %s45
    %p99 = scmp.eq.s32.totalorder %s98, 0
    %s101 = sadd.s32 %s100, 1
    %s102 = scalar_select %p99, %s100, %s101
    %p105 = pneg %p99
    %p106 = scmp.eq.s32.totalorder %s19, 1
    %p107 = por %p105, %p106
    %p108 = scmp.ne.s32.totalorder %s100, %s103
    %p109 = scmp.eq.s32.totalorder %s19, 0
    %p110 = por %p108, %p109
    %p111 = scmp.ne.s32.totalorder %s100, %s103
    %p112 = scmp.eq.s32.totalorder %s24, 1
    %p113 = por %p111, %p112
    %p114 = scmp.ne.s32.totalorder %s103, %s104
    %p115 = scmp.eq.s32.totalorder %s24, 0
    %p116 = por %p114, %p115
    %p117 = scmp.ne.s32.totalorder %s103, %s104
    %p118 = scmp.eq.s32.totalorder %s25, 1
    %p119 = por %p117, %p118
    %p121 = scmp.ne.s32.totalorder %s104, %s120
    %p122 = scmp.eq.s32.totalorder %s25, 0
    %p123 = por %p121, %p122
    %s124 = ssub.s32 %s26, %s45
    %p125 = scmp.eq.s32.totalorder %s124, 0
    %s127 = sadd.s32 %s126, 1
    %s128 = scalar_select %p125, %s126, %s127
    %p131 = pneg %p125
    %p132 = scmp.eq.s32.totalorder %s19, 1
    %p133 = por %p131, %p132
    %p134 = scmp.ne.s32.totalorder %s126, %s129
    %p135 = scmp.eq.s32.totalorder %s19, 0
    %p136 = por %p134, %p135
    %p137 = scmp.ne.s32.totalorder %s126, %s129
    %p138 = scmp.eq.s32.totalorder %s24, 1
    %p139 = por %p137, %p138
    %p140 = scmp.ne.s32.totalorder %s129, %s130
    %p141 = scmp.eq.s32.totalorder %s24, 0
    %p142 = por %p140, %p141
    %p143 = scmp.ne.s32.totalorder %s129, %s130
    %p144 = scmp.eq.s32.totalorder %s25, 1
    %p145 = por %p143, %p144
    %p147 = scmp.ne.s32.totalorder %s130, %s146
    %p148 = scmp.eq.s32.totalorder %s25, 0
    %p149 = por %p147, %p148
    %s150 = sadd.s32 %s27, %s28
    %s151 = sadd.s32 %s41, %s37
    %s152 = ssub.s32 %s26, %s45
    %s153 = ssub.s32 %s150, %s151
    %s154 = sor.u32 %s152, %s153
    %p155 = scmp.eq.s32.totalorder %s154, 0
    %s157 = sadd.s32 %s156, 1
    %s158 = scalar_select %p155, %s156, %s157
    %p161 = pneg %p155
    %p162 = scmp.eq.s32.totalorder %s19, 1
    %p163 = por %p161, %p162
    %p164 = scmp.ne.s32.totalorder %s156, %s159
    %p165 = scmp.eq.s32.totalorder %s19, 0
    %p166 = por %p164, %p165
    %p167 = scmp.ne.s32.totalorder %s156, %s159
    %p168 = scmp.eq.s32.totalorder %s24, 1
    %p169 = por %p167, %p168
    %p170 = scmp.ne.s32.totalorder %s159, %s160
    %p171 = scmp.eq.s32.totalorder %s24, 0
    %p172 = por %p170, %p171
    %p173 = scmp.ne.s32.totalorder %s159, %s160
    %p174 = scmp.eq.s32.totalorder %s25, 1
    %p175 = por %p173, %p174
    %p177 = scmp.ne.s32.totalorder %s160, %s176
    %p178 = scmp.eq.s32.totalorder %s25, 0
    %p179 = por %p177, %p178
    %s180 = sadd.s32 %s27, %s28
    %s181 = sadd.s32 %s41, %s37
    %s182 = ssub.s32 %s26, %s45
    %s183 = ssub.s32 %s180, %s181
    %s184 = sor.u32 %s182, %s183
    %p185 = scmp.eq.s32.totalorder %s184, 0
    %s187 = sadd.s32 %s186, 1
    %s188 = scalar_select %p185, %s186, %s187
    %p191 = pneg %p185
    %p192 = scmp.eq.s32.totalorder %s19, 1
    %p193 = por %p191, %p192
    %p194 = scmp.ne.s32.totalorder %s186, %s189
    %p195 = scmp.eq.s32.totalorder %s19, 0
    %p196 = por %p194, %p195
    %p197 = scmp.ne.s32.totalorder %s186, %s189
    %p198 = scmp.eq.s32.totalorder %s24, 1
    %p199 = por %p197, %p198
    %p200 = scmp.ne.s32.totalorder %s189, %s190
    %p201 = scmp.eq.s32.totalorder %s24, 0
    %p202 = por %p200, %p201
    %p203 = scmp.ne.s32.totalorder %s189, %s190
    %p204 = scmp.eq.s32.totalorder %s25, 1
    %p205 = por %p203, %p204
    %p207 = scmp.ne.s32.totalorder %s190, %s206
    %p208 = scmp.eq.s32.totalorder %s25, 0
    %p209 = por %p207, %p208
    %s210 = sadd.s32 %s27, %s28
    %s211 = sadd.s32 %s41, %s37
    %s212 = ssub.s32 %s26, %s45
    %s213 = ssub.s32 %s210, %s211
    %s214 = sor.u32 %s212, %s213
    %p215 = scmp.eq.s32.totalorder %s214, 0
    %s217 = sadd.s32 %s216, 1
    %s218 = scalar_select %p215, %s216, %s217
    %p221 = pneg %p215
    %p222 = scmp.eq.s32.totalorder %s19, 1
    %p223 = por %p221, %p222
    %p224 = scmp.ne.s32.totalorder %s216, %s219
    %p225 = scmp.eq.s32.totalorder %s19, 0
    %p226 = por %p224, %p225
    %p227 = scmp.ne.s32.totalorder %s216, %s219
    %p228 = scmp.eq.s32.totalorder %s24, 1
    %p229 = por %p227, %p228
    %p230 = scmp.ne.s32.totalorder %s219, %s220
    %p231 = scmp.eq.s32.totalorder %s24, 0
    %p232 = por %p230, %p231
    %p233 = scmp.ne.s32.totalorder %s219, %s220
    %p234 = scmp.eq.s32.totalorder %s25, 1
    %p235 = por %p233, %p234
    %p237 = scmp.ne.s32.totalorder %s220, %s236
    %p238 = scmp.eq.s32.totalorder %s25, 0
    %p239 = por %p237, %p238
    %s240 = sadd.s32 %s27, %s28
    %s241 = sadd.s32 %s41, %s37
    %s242 = ssub.s32 %s26, %s45
    %s243 = ssub.s32 %s240, %s241
    %s244 = sor.u32 %s242, %s243
    %p245 = scmp.eq.s32.totalorder %s244, 0
    %s247 = sadd.s32 %s246, 1
    %s248 = scalar_select %p245, %s246, %s247
    %p251 = pneg %p245
    %p252 = scmp.eq.s32.totalorder %s19, 1
    %p253 = por %p251, %p252
    %p254 = scmp.ne.s32.totalorder %s246, %s249
    %p255 = scmp.eq.s32.totalorder %s19, 0
    %p256 = por %p254, %p255
    %p257 = scmp.ne.s32.totalorder %s246, %s249
    %p258 = scmp.eq.s32.totalorder %s24, 1
    %p259 = por %p257, %p258
    %p260 = scmp.ne.s32.totalorder %s249, %s250
    %p261 = scmp.eq.s32.totalorder %s24, 0
    %p262 = por %p260, %p261
    %p263 = scmp.ne.s32.totalorder %s249, %s250
    %p264 = scmp.eq.s32.totalorder %s25, 1
    %p265 = por %p263, %p264
    %p267 = scmp.ne.s32.totalorder %s250, %s266
    %p268 = scmp.eq.s32.totalorder %s25, 0
    %p269 = por %p267, %p268
    %s270 = sadd.s32 %s27, %s28
    %s271 = sadd.s32 %s41, %s37
    %s272 = ssub.s32 %s26, %s45
    %s273 = ssub.s32 %s270, %s271
    %s274 = sor.u32 %s272, %s273
    %p275 = scmp.eq.s32.totalorder %s274, 0
    %s277 = sadd.s32 %s276, 1
    %s278 = scalar_select %p275, %s276, %s277
    %p281 = pneg %p275
    %p282 = scmp.eq.s32.totalorder %s19, 1
    %p283 = por %p281, %p282
    %p284 = scmp.ne.s32.totalorder %s276, %s279
    %p285 = scmp.eq.s32.totalorder %s19, 0
    %p286 = por %p284, %p285
    %p287 = scmp.ne.s32.totalorder %s276, %s279
    %p288 = scmp.eq.s32.totalorder %s24, 1
    %p289 = por %p287, %p288
    %p290 = scmp.ne.s32.totalorder %s279, %s280
    %p291 = scmp.eq.s32.totalorder %s24, 0
    %p292 = por %p290, %p291
    %p293 = scmp.ne.s32.totalorder %s279, %s280
    %p294 = scmp.eq.s32.totalorder %s25, 1
    %p295 = por %p293, %p294
    %p297 = scmp.ne.s32.totalorder %s280, %s296
    %p298 = scmp.eq.s32.totalorder %s25, 0
    %p299 = por %p297, %p298
    %s300 = sadd.s32 %s27, %s28
    %s301 = sadd.s32 %s41, %s37
    %s302 = ssub.s32 %s26, %s45
    %s303 = ssub.s32 %s300, %s301
    %s304 = sor.u32 %s302, %s303
    %p305 = scmp.eq.s32.totalorder %s304, 0
    %s307 = sadd.s32 %s306, 1
    %s308 = scalar_select %p305, %s306, %s307
    %p311 = pneg %p305
    %p312 = scmp.eq.s32.totalorder %s19, 1
    %p313 = por %p311, %p312
    %p314 = scmp.ne.s32.totalorder %s306, %s309
    %p315 = scmp.eq.s32.totalorder %s19, 0
    %p316 = por %p314, %p315
    %p317 = scmp.ne.s32.totalorder %s306, %s309
    %p318 = scmp.eq.s32.totalorder %s24, 1
    %p319 = por %p317, %p318
    %p320 = scmp.ne.s32.totalorder %s309, %s310
    %p321 = scmp.eq.s32.totalorder %s24, 0
    %p322 = por %p320, %p321
    %p323 = scmp.ne.s32.totalorder %s309, %s310
    %p324 = scmp.eq.s32.totalorder %s25, 1
    %p325 = por %p323, %p324
    %p327 = scmp.ne.s32.totalorder %s310, %s326
    %p328 = scmp.eq.s32.totalorder %s25, 0
    %p329 = por %p327, %p328
    %s330 = sadd.s32 %s27, %s28
    %s331 = sadd.s32 %s41, %s37
    %s332 = ssub.s32 %s26, %s45
    %s333 = ssub.s32 %s330, %s331
    %s334 = sor.u32 %s332, %s333
    %p335 = scmp.eq.s32.totalorder %s334, 0
    %s337 = sadd.s32 %s336, 1
    %s338 = scalar_select %p335, %s336, %s337
    %p341 = pneg %p335
    %p342 = scmp.eq.s32.totalorder %s19, 1
    %p343 = por %p341, %p342
    %p344 = scmp.ne.s32.totalorder %s336, %s339
    %p345 = scmp.eq.s32.totalorder %s19, 0
    %p346 = por %p344, %p345
    %p347 = scmp.ne.s32.totalorder %s336, %s339
    %p348 = scmp.eq.s32.totalorder %s24, 1
    %p349 = por %p347, %p348
    %p350 = scmp.ne.s32.totalorder %s339, %s340
    %p351 = scmp.eq.s32.totalorder %s24, 0
    %p352 = por %p350, %p351
    %p353 = scmp.ne.s32.totalorder %s339, %s340
    %p354 = scmp.eq.s32.totalorder %s25, 1
    %p355 = por %p353, %p354
    %p357 = scmp.ne.s32.totalorder %s340, %s356
    %p358 = scmp.eq.s32.totalorder %s25, 0
    %p359 = por %p357, %p358
    %s360 = ssub.s32 %s27, %s41
    %s361 = ssub.s32 %s26, %s45
    %s362 = sor.u32 %s360, %s361
    %p363 = scmp.eq.s32.totalorder %s362, 0
    %s365 = sadd.s32 %s364, 1
    %s366 = scalar_select %p363, %s364, %s365
    %p369 = pneg %p363
    %p370 = scmp.eq.s32.totalorder %s19, 1
    %p371 = por %p369, %p370
    %p372 = scmp.ne.s32.totalorder %s364, %s367
    %p373 = scmp.eq.s32.totalorder %s19, 0
    %p374 = por %p372, %p373
    %p375 = scmp.ne.s32.totalorder %s364, %s367
    %p376 = scmp.eq.s32.totalorder %s24, 1
    %p377 = por %p375, %p376
    %p378 = scmp.ne.s32.totalorder %s367, %s368
    %p379 = scmp.eq.s32.totalorder %s24, 0
    %p380 = por %p378, %p379
    %p381 = scmp.ne.s32.totalorder %s367, %s368
    %p382 = scmp.eq.s32.totalorder %s25, 1
    %p383 = por %p381, %p382
    %p385 = scmp.ne.s32.totalorder %s368, %s384
    %p386 = scmp.eq.s32.totalorder %s25, 0
    %p387 = por %p385, %p386
    %s388 = ssub.s32 %s27, %s41
    %s389 = ssub.s32 %s26, %s45
    %s390 = sor.u32 %s388, %s389
    %p391 = scmp.eq.s32.totalorder %s390, 0
    %s393 = sadd.s32 %s392, 1
    %s394 = scalar_select %p391, %s392, %s393
    %p397 = pneg %p391
    %p398 = scmp.eq.s32.totalorder %s19, 1
    %p399 = por %p397, %p398
    %p400 = scmp.ne.s32.totalorder %s392, %s395
    %p401 = scmp.eq.s32.totalorder %s19, 0
    %p402 = por %p400, %p401
    %p403 = scmp.ne.s32.totalorder %s392, %s395
    %p404 = scmp.eq.s32.totalorder %s24, 1
    %p405 = por %p403, %p404
    %p406 = scmp.ne.s32.totalorder %s395, %s396
    %p407 = scmp.eq.s32.totalorder %s24, 0
    %p408 = por %p406, %p407
    %p409 = scmp.ne.s32.totalorder %s395, %s396
    %p410 = scmp.eq.s32.totalorder %s25, 1
    %p411 = por %p409, %p410
    %p413 = scmp.ne.s32.totalorder %s396, %s412
    %p414 = scmp.eq.s32.totalorder %s25, 0
    %p415 = por %p413, %p414
    %p416 = scmp.le.s32.totalorder 1, %s19
    %p417 = scmp.lt.s32.totalorder %s19, 3
    %p418 = pnand %p416, %p417
    %p419 = pneg %p418
    // Predicated region
    $region9: #{dc_wenqi_forward.1} parent=5 // pred_check
      _
    $region10: #{dc_wenqi_forward.1} parent=5 // pred_check_branch
      %421 = sbr.rel (%p418) target = $region12
    $region11: #{dc_wenqi_forward.1} parent=5 // pred_region
      %s422 = ssub.s32 %s19, 1
    $region12: #{dc_wenqi_forward.1} parent=5 // pred_fallthru
      _
    %p423 = scmp.lt.s32.totalorder %s19, 2
    // Predicated region
    $region13: #{dc_wenqi_forward.1} parent=5 // pred_check
      %p424 = pneg %p423
    $region14: #{dc_wenqi_forward.1} parent=5 // pred_check_branch
      %426 = sbr.rel (%p424) target = $region16
    $region15: #{dc_wenqi_forward.1} parent=5 // pred_region
      // Predicated region
      $region17: #{dc_wenqi_forward.1} parent=15 // pred_check
        %p427 = pneg %p58
      $region18: #{dc_wenqi_forward.1} parent=15 // pred_check_branch
        %429 = sbr.rel (%p427) target = $region20
      $region19: #{dc_wenqi_forward.1} parent=15 // pred_region
        %p430 = scmp.lt.s32.totalorder %s26, 1
        %s431 = scalar_select %p430, %s26, 1
        %s432 = smul.addr %s431, 2
        %s433 = scalar_lea.vmem %s0, %s432
      $region20: #{dc_wenqi_forward.1} parent=15 // pred_fallthru
        _
      // Predicated region
      $region21: #{dc_wenqi_forward.1} parent=15 // pred_check
        %p434 = pneg %p84
      $region22: #{dc_wenqi_forward.1} parent=15 // pred_check_branch
        %436 = sbr.rel (%p434) target = $region24
      $region23: #{dc_wenqi_forward.1} parent=15 // pred_region
        %p437 = scmp.lt.s32.totalorder %s26, 1
        %s438 = scalar_select %p437, %s26, 1
        %s439 = smul.addr %s438, 2
        %s440 = scalar_lea.vmem %s1, %s439
      $region24: #{dc_wenqi_forward.1} parent=15 // pred_fallthru
        _
      // Predicated region
      $region25: #{dc_wenqi_forward.1} parent=15 // pred_check
        %p441 = pneg %p110
      $region26: #{dc_wenqi_forward.1} parent=15 // pred_check_branch
        %443 = sbr.rel (%p441) target = $region28
      $region27: #{dc_wenqi_forward.1} parent=15 // pred_region
        %p444 = scmp.lt.s32.totalorder %s26, 1
        %s445 = scalar_select %p444, %s26, 1
        %s446 = smul.addr %s445, 2
        %s447 = smul.addr %s446, 2
        %s448 = scalar_lea.vmem %s2, %s447
      $region28: #{dc_wenqi_forward.1} parent=15 // pred_fallthru
        _
      // Predicated region
      $region29: #{dc_wenqi_forward.1} parent=15 // pred_check
        %p449 = pneg %p136
      $region30: #{dc_wenqi_forward.1} parent=15 // pred_check_branch
        %451 = sbr.rel (%p449) target = $region32
      $region31: #{dc_wenqi_forward.1} parent=15 // pred_region
        %p452 = scmp.lt.s32.totalorder %s26, 1
        %s453 = scalar_select %p452, %s26, 1
        %s454 = smul.addr %s453, 2
        %s455 = smul.addr %s454, 2
        %s456 = scalar_lea.vmem %s3, %s455
      $region32: #{dc_wenqi_forward.1} parent=15 // pred_fallthru
        _
      // Predicated region
      $region33: #{dc_wenqi_forward.1} parent=15 // pred_check
        %p457 = pneg %p166
      $region34: #{dc_wenqi_forward.1} parent=15 // pred_check_branch
        %459 = sbr.rel (%p457) target = $region36
      $region35: #{dc_wenqi_forward.1} parent=15 // pred_region
        %s460 = sadd.s32 %s27, %s28
        %s461 = smul.u32 16, %s460
        %p462 = scmp.lt.s32.totalorder %s26, 1
        %s463 = scalar_select %p462, %s26, 1
        %p464 = scmp.lt.s32.totalorder %s461, 15
        %s465 = scalar_select %p464, %s461, 15
        %s466 = smul.addr %s463, 16
        %s467 = sadd.s32 %s465, %s466
        %s468 = smul.addr %s467, 8
        %s469 = scalar_lea.vmem %s4, %s468
        %s470 = sadd.s32 %s27, %s28
        %s471 = smul.u32 16, %s470
      $region36: #{dc_wenqi_forward.1} parent=15 // pred_fallthru
        _
      // Predicated region
      $region37: #{dc_wenqi_forward.1} parent=15 // pred_check
        %p472 = pneg %p196
      $region38: #{dc_wenqi_forward.1} parent=15 // pred_check_branch
        %474 = sbr.rel (%p472) target = $region40
      $region39: #{dc_wenqi_forward.1} parent=15 // pred_region
        %s475 = sadd.s32 %s27, %s28
        %s476 = smul.u32 16, %s475
        %p477 = scmp.lt.s32.totalorder %s26, 1
        %s478 = scalar_select %p477, %s26, 1
        %p479 = scmp.lt.s32.totalorder %s476, 15
        %s480 = scalar_select %p479, %s476, 15
        %s481 = smul.addr %s478, 16
        %s482 = sadd.s32 %s480, %s481
        %s483 = smul.addr %s482, 8
        %s484 = scalar_lea.vmem %s5, %s483
        %s485 = sadd.s32 %s27, %s28
        %s486 = smul.u32 16, %s485
      $region40: #{dc_wenqi_forward.1} parent=15 // pred_fallthru
        _
      // Predicated region
      $region41: #{dc_wenqi_forward.1} parent=15 // pred_check
        %p487 = pneg %p226
      $region42: #{dc_wenqi_forward.1} parent=15 // pred_check_branch
        %489 = sbr.rel (%p487) target = $region44
      $region43: #{dc_wenqi_forward.1} parent=15 // pred_region
        %s490 = sadd.s32 %s27, %s28
        %s491 = smul.u32 16, %s490
        %p492 = scmp.lt.s32.totalorder %s26, 1
        %s493 = scalar_select %p492, %s26, 1
        %p494 = scmp.lt.s32.totalorder %s491, 15
        %s495 = scalar_select %p494, %s491, 15
        %s496 = smul.addr %s493, 16
        %s497 = sadd.s32 %s495, %s496
        %s498 = smul.addr %s497, 8
        %s499 = scalar_lea.vmem %s6, %s498
        %s500 = sadd.s32 %s27, %s28
        %s501 = smul.u32 16, %s500
      $region44: #{dc_wenqi_forward.1} parent=15 // pred_fallthru
        _
      // Predicated region
      $region45: #{dc_wenqi_forward.1} parent=15 // pred_check
        %p502 = pneg %p256
      $region46: #{dc_wenqi_forward.1} parent=15 // pred_check_branch
        %504 = sbr.rel (%p502) target = $region48
      $region47: #{dc_wenqi_forward.1} parent=15 // pred_region
        %s505 = sadd.s32 %s27, %s28
        %s506 = smul.u32 16, %s505
        %p507 = scmp.lt.s32.totalorder %s26, 1
        %s508 = scalar_select %p507, %s26, 1
        %p509 = scmp.lt.s32.totalorder %s506, 15
        %s510 = scalar_select %p509, %s506, 15
        %s511 = smul.addr %s508, 16
        %s512 = sadd.s32 %s510, %s511
        %s513 = smul.addr %s512, 8
        %s514 = scalar_lea.vmem %s7, %s513
        %s515 = sadd.s32 %s27, %s28
        %s516 = smul.u32 16, %s515
      $region48: #{dc_wenqi_forward.1} parent=15 // pred_fallthru
        _
      // Predicated region
      $region49: #{dc_wenqi_forward.1} parent=15 // pred_check
        %p517 = pneg %p286
      $region50: #{dc_wenqi_forward.1} parent=15 // pred_check_branch
        %519 = sbr.rel (%p517) target = $region52
      $region51: #{dc_wenqi_forward.1} parent=15 // pred_region
        %s520 = sadd.s32 %s27, %s28
        %p521 = scmp.lt.s32.totalorder %s26, 1
        %s522 = scalar_select %p521, %s26, 1
        %p523 = scmp.lt.s32.totalorder %s520, 0
        %s524 = scalar_select %p523, %s520, 0
        %s525 = sadd.s32 %s524, %s522
        %s526 = scalar_lea.vmem %s8, %s525
        %s527 = sadd.s32 %s27, %s28
      $region52: #{dc_wenqi_forward.1} parent=15 // pred_fallthru
        _
      // Predicated region
      $region53: #{dc_wenqi_forward.1} parent=15 // pred_check
        %p528 = pneg %p316
      $region54: #{dc_wenqi_forward.1} parent=15 // pred_check_branch
        %530 = sbr.rel (%p528) target = $region56
      $region55: #{dc_wenqi_forward.1} parent=15 // pred_region
        %s531 = sadd.s32 %s27, %s28
        %p532 = scmp.lt.s32.totalorder %s26, 1
        %s533 = scalar_select %p532, %s26, 1
        %p534 = scmp.lt.s32.totalorder %s531, 0
        %s535 = scalar_select %p534, %s531, 0
        %s536 = sadd.s32 %s535, %s533
        %s537 = smul.addr %s536, 4
        %s538 = scalar_lea.vmem %s9, %s537
        %s539 = sadd.s32 %s27, %s28
      $region56: #{dc_wenqi_forward.1} parent=15 // pred_fallthru
        _
      // Predicated region
      $region57: #{dc_wenqi_forward.1} parent=15 // pred_check
        %p540 = pneg %p346
      $region58: #{dc_wenqi_forward.1} parent=15 // pred_check_branch
        %542 = sbr.rel (%p540) target = $region60
      $region59: #{dc_wenqi_forward.1} parent=15 // pred_region
        %s543 = sadd.s32 %s27, %s28
        %p544 = scmp.lt.s32.totalorder %s26, 1
        %s545 = scalar_select %p544, %s26, 1
        %p546 = scmp.lt.s32.totalorder %s543, 0
        %s547 = scalar_select %p546, %s543, 0
        %s548 = sadd.s32 %s547, %s545
        %s549 = smul.addr %s548, 4
        %s550 = scalar_lea.vmem %s10, %s549
        %s551 = sadd.s32 %s27, %s28
      $region60: #{dc_wenqi_forward.1} parent=15 // pred_fallthru
        _
    $region16: #{dc_wenqi_forward.1} parent=5 // pred_fallthru
      _
    %p552 = scmp.le.s32.totalorder 1, %s19
    %p553 = scmp.lt.s32.totalorder %s19, 3
    %p554 = pnand %p552, %p553
    %p555 = pneg %p554
    // Predicated region
    $region61: #{dc_wenqi_forward.1} parent=5 // pred_check
      _
    $region62: #{dc_wenqi_forward.1} parent=5 // pred_check_branch
      %557 = sbr.rel (%p554) target = $region64
    $region63: #{dc_wenqi_forward.1} parent=5 // pred_region
      %s558 = ssub.s32 %s19, 1
      %p559 = scmp.lt.s32.totalorder %s29, 1
      %s560 = scalar_select %p559, %s29, 1
      %s561 = smul.addr %s560, 2
      %s562 = scalar_lea.vmem %s0, %s561
      %p563 = pneg %p64
      %p564 = pneg %p61
      %p565 = scmp.lt.s32.totalorder %s29, 1
      %s566 = scalar_select %p565, %s29, 1
      %s567 = smul.addr %s566, 2
      %s568 = scalar_lea.vmem %s1, %s567
      %p569 = pneg %p90
      %p570 = pneg %p87
      %p571 = scmp.lt.s32.totalorder %s29, 1
      %s572 = scalar_select %p571, %s29, 1
      %s573 = smul.addr %s572, 2
      %s574 = smul.addr %s573, 2
      %s575 = scalar_lea.vmem %s2, %s574
      %p576 = pneg %p116
      %p577 = pneg %p113
      %p578 = scmp.lt.s32.totalorder %s29, 1
      %s579 = scalar_select %p578, %s29, 1
      %s580 = smul.addr %s579, 2
      %s581 = smul.addr %s580, 2
      %s582 = scalar_lea.vmem %s3, %s581
      %p583 = pneg %p142
      %p584 = pneg %p139
      %s585 = sadd.s32 %s30, %s31
      %s586 = smul.u32 16, %s585
      %p587 = scmp.lt.s32.totalorder %s29, 1
      %s588 = scalar_select %p587, %s29, 1
      %p589 = scmp.lt.s32.totalorder %s586, 15
      %s590 = scalar_select %p589, %s586, 15
      %s591 = smul.addr %s588, 16
      %s592 = sadd.s32 %s590, %s591
      %s593 = smul.addr %s592, 8
      %s594 = scalar_lea.vmem %s4, %s593
      %p595 = pneg %p172
      %p596 = pneg %p169
      %s597 = sadd.s32 %s30, %s31
      %s598 = smul.u32 16, %s597
      %p599 = scmp.lt.s32.totalorder %s29, 1
      %s600 = scalar_select %p599, %s29, 1
      %p601 = scmp.lt.s32.totalorder %s598, 15
      %s602 = scalar_select %p601, %s598, 15
      %s603 = smul.addr %s600, 16
      %s604 = sadd.s32 %s602, %s603
      %s605 = smul.addr %s604, 8
      %s606 = scalar_lea.vmem %s5, %s605
      %p607 = pneg %p202
      %p608 = pneg %p199
      %s609 = sadd.s32 %s30, %s31
      %s610 = smul.u32 16, %s609
      %p611 = scmp.lt.s32.totalorder %s29, 1
      %s612 = scalar_select %p611, %s29, 1
      %p613 = scmp.lt.s32.totalorder %s610, 15
      %s614 = scalar_select %p613, %s610, 15
      %s615 = smul.addr %s612, 16
      %s616 = sadd.s32 %s614, %s615
      %s617 = smul.addr %s616, 8
      %s618 = scalar_lea.vmem %s6, %s617
      %p619 = pneg %p232
      %p620 = pneg %p229
      %s621 = sadd.s32 %s30, %s31
      %s622 = smul.u32 16, %s621
      %p623 = scmp.lt.s32.totalorder %s29, 1
      %s624 = scalar_select %p623, %s29, 1
      %p625 = scmp.lt.s32.totalorder %s622, 15
      %s626 = scalar_select %p625, %s622, 15
      %s627 = smul.addr %s624, 16
      %s628 = sadd.s32 %s626, %s627
      %s629 = smul.addr %s628, 8
      %s630 = scalar_lea.vmem %s7, %s629
      %p631 = pneg %p262
      %p632 = pneg %p259
      %s633 = sadd.s32 %s30, %s31
      %p634 = scmp.lt.s32.totalorder %s29, 1
      %s635 = scalar_select %p634, %s29, 1
      %p636 = scmp.lt.s32.totalorder %s633, 0
      %s637 = scalar_select %p636, %s633, 0
      %s638 = sadd.s32 %s637, %s635
      %s639 = scalar_lea.vmem %s8, %s638
      %p640 = pneg %p292
      %p641 = pneg %p289
      %s642 = sadd.s32 %s30, %s31
      %p643 = scmp.lt.s32.totalorder %s29, 1
      %s644 = scalar_select %p643, %s29, 1
      %p645 = scmp.lt.s32.totalorder %s642, 0
      %s646 = scalar_select %p645, %s642, 0
      %s647 = sadd.s32 %s646, %s644
      %s648 = smul.addr %s647, 4
      %s649 = scalar_lea.vmem %s9, %s648
      %p650 = pneg %p322
      %p651 = pneg %p319
      %s652 = sadd.s32 %s30, %s31
      %p653 = scmp.lt.s32.totalorder %s29, 1
      %s654 = scalar_select %p653, %s29, 1
      %p655 = scmp.lt.s32.totalorder %s652, 0
      %s656 = scalar_select %p655, %s652, 0
      %s657 = sadd.s32 %s656, %s654
      %s658 = smul.addr %s657, 4
      %s659 = scalar_lea.vmem %s10, %s658
      %p660 = pneg %p352
      %p661 = pneg %p349
      %p662 = pneg %p380
      %p663 = pneg %p377
      %p664 = scmp.lt.s32.totalorder %s30, 0
      %s665 = scalar_select %p664, %s30, 0
      %p666 = scmp.lt.s32.totalorder %s29, 1
      %s667 = scalar_select %p666, %s29, 1
      %s668 = smul.addr %s667, 2
      %s669 = smul.addr %s665, 4
      %s670 = sadd.s32 %s668, %s669
      %s671 = scalar_lea.vmem %s11, %s670
      %p672 = pneg %p408
      %p673 = pneg %p405
      %p674 = scmp.lt.s32.totalorder %s30, 0
      %s675 = scalar_select %p674, %s30, 0
      %p676 = scmp.lt.s32.totalorder %s29, 1
      %s677 = scalar_select %p676, %s29, 1
      %s678 = smul.addr %s677, 2
      %s679 = smul.addr %s675, 4
      %s680 = sadd.s32 %s678, %s679
      %s681 = scalar_lea.vmem %s12, %s680
      %p682 = scmp.lt.s32.totalorder %s29, 1
      %s683 = scalar_select %p682, %s29, 1
      %s684 = smul.addr %s683, 2
      %s685 = scalar_lea.vmem %s0, %s684
      %p686 = scmp.lt.s32.totalorder %s29, 1
      %s687 = scalar_select %p686, %s29, 1
      %s688 = smul.addr %s687, 2
      %s689 = scalar_lea.vmem %s1, %s688
      %p690 = scmp.lt.s32.totalorder %s29, 1
      %s691 = scalar_select %p690, %s29, 1
      %s692 = smul.addr %s691, 2
      %s693 = smul.addr %s692, 2
      %s694 = scalar_lea.vmem %s2, %s693
      %p695 = scmp.lt.s32.totalorder %s29, 1
      %s696 = scalar_select %p695, %s29, 1
      %s697 = smul.addr %s696, 2
      %s698 = smul.addr %s697, 2
      %s699 = scalar_lea.vmem %s3, %s698
      %s700 = sadd.s32 %s30, %s31
      %s701 = smul.u32 16, %s700
      %p702 = scmp.lt.s32.totalorder %s29, 1
      %s703 = scalar_select %p702, %s29, 1
      %p704 = scmp.lt.s32.totalorder %s701, 15
      %s705 = scalar_select %p704, %s701, 15
      %s706 = smul.addr %s703, 16
      %s707 = sadd.s32 %s705, %s706
      %s708 = smul.addr %s707, 8
      %s709 = scalar_lea.vmem %s4, %s708
      %s710 = sadd.s32 %s30, %s31
      %s711 = smul.u32 16, %s710
      %s712 = sadd.s32 %s30, %s31
      %s713 = smul.u32 16, %s712
      %p714 = scmp.lt.s32.totalorder %s29, 1
      %s715 = scalar_select %p714, %s29, 1
      %p716 = scmp.lt.s32.totalorder %s713, 15
      %s717 = scalar_select %p716, %s713, 15
      %s718 = smul.addr %s715, 16
      %s719 = sadd.s32 %s717, %s718
      %s720 = smul.addr %s719, 8
      %s721 = scalar_lea.vmem %s5, %s720
      %s722 = sadd.s32 %s30, %s31
      %s723 = smul.u32 16, %s722
      %s724 = sadd.s32 %s30, %s31
      %s725 = smul.u32 16, %s724
      %p726 = scmp.lt.s32.totalorder %s29, 1
      %s727 = scalar_select %p726, %s29, 1
      %p728 = scmp.lt.s32.totalorder %s725, 15
      %s729 = scalar_select %p728, %s725, 15
      %s730 = smul.addr %s727, 16
      %s731 = sadd.s32 %s729, %s730
      %s732 = smul.addr %s731, 8
      %s733 = scalar_lea.vmem %s6, %s732
      %s734 = sadd.s32 %s30, %s31
      %s735 = smul.u32 16, %s734
      %s736 = sadd.s32 %s30, %s31
      %s737 = smul.u32 16, %s736
      %p738 = scmp.lt.s32.totalorder %s29, 1
      %s739 = scalar_select %p738, %s29, 1
      %p740 = scmp.lt.s32.totalorder %s737, 15
      %s741 = scalar_select %p740, %s737, 15
      %s742 = smul.addr %s739, 16
      %s743 = sadd.s32 %s741, %s742
      %s744 = smul.addr %s743, 8
      %s745 = scalar_lea.vmem %s7, %s744
      %s746 = sadd.s32 %s30, %s31
      %s747 = smul.u32 16, %s746
      %s748 = sadd.s32 %s30, %s31
      %p749 = scmp.lt.s32.totalorder %s29, 1
      %s750 = scalar_select %p749, %s29, 1
      %p751 = scmp.lt.s32.totalorder %s748, 0
      %s752 = scalar_select %p751, %s748, 0
      %s753 = sadd.s32 %s752, %s750
      %s754 = scalar_lea.vmem %s8, %s753
      %s755 = sadd.s32 %s30, %s31
      %s756 = sadd.s32 %s30, %s31
      %p757 = scmp.lt.s32.totalorder %s29, 1
      %s758 = scalar_select %p757, %s29, 1
      %p759 = scmp.lt.s32.totalorder %s756, 0
      %s760 = scalar_select %p759, %s756, 0
      %s761 = sadd.s32 %s760, %s758
      %s762 = smul.addr %s761, 4
      %s763 = scalar_lea.vmem %s9, %s762
      %s764 = sadd.s32 %s30, %s31
      %s765 = sadd.s32 %s30, %s31
      %p766 = scmp.lt.s32.totalorder %s29, 1
      %s767 = scalar_select %p766, %s29, 1
      %p768 = scmp.lt.s32.totalorder %s765, 0
      %s769 = scalar_select %p768, %s765, 0
      %s770 = sadd.s32 %s769, %s767
      %s771 = smul.addr %s770, 4
      %s772 = scalar_lea.vmem %s10, %s771
      %s773 = sadd.s32 %s30, %s31
      %p774 = scmp.lt.s32.totalorder %s30, 0
      %s775 = scalar_select %p774, %s30, 0
      %p776 = scmp.lt.s32.totalorder %s29, 1
      %s777 = scalar_select %p776, %s29, 1
      %s778 = smul.addr %s777, 2
      %s779 = smul.addr %s775, 4
      %s780 = sadd.s32 %s778, %s779
      %s781 = scalar_lea.vmem %s11, %s780
      %p782 = scmp.lt.s32.totalorder %s30, 0
      %s783 = scalar_select %p782, %s30, 0
      %p784 = scmp.lt.s32.totalorder %s29, 1
      %s785 = scalar_select %p784, %s29, 1
      %s786 = smul.addr %s785, 2
      %s787 = smul.addr %s783, 4
      %s788 = sadd.s32 %s786, %s787
      %s789 = scalar_lea.vmem %s12, %s788
      %p791 = scmp.eq.s32.totalorder %s31, 0
      // Predicated region
      $region65: #{dc_wenqi_forward.1} parent=63 // pred_check
        %p792 = pneg %p791
      $region66: #{dc_wenqi_forward.1} parent=63 // pred_check_branch
        %794 = sbr.rel (%p792) target = $region68
      $region67: #{dc_wenqi_forward.1} parent=63 // pred_region
        %v795 = vld [vmem:[%s685] sm:$0x3]
        %v796 = vld [vmem:[%s689] sm:$0x3]
        %v797 = vld [vmem:[%s694] sm:$0xf]
        %v798 = vunpack.c.l.bf16 %v797
        %v799 = vld [vmem:[%s699] sm:$0xf]
        %v800 = vunpack.c.l.bf16 %v799
        %v802 = vlaneseq
        %v803 = vshrl.u32 %v802, 7
        %v804 = vsub.s32 0, %v803
        %v805 = vrot.slane %v795, %v804
        %v806 = vlaneseq
        %v807 = vshrl.u32 %v806, 7
        %v808 = vsub.s32 1, %v807
        %v809 = vrot.slane %v795, %v808
        %v813 = vcombine.high %v798, %v798
        %v815 = vmul.f32 %v805, %v798
        %v816 = vmul.f32 %v809, %v813
        %v818 = vlaneseq
        %v819 = vshrl.u32 %v818, 7
        %v820 = vsub.s32 0, %v819
        %v821 = vrot.slane %v796, %v820
        %v822 = vlaneseq
        %v823 = vshrl.u32 %v822, 7
        %v824 = vsub.s32 1, %v823
        %v825 = vrot.slane %v796, %v824
        %v829 = vcombine.high %v800, %v800
        %v831 = vmul.f32 %v821, %v800
        %v832 = vmul.f32 %v825, %v829
        %v833 = vsub.f32 %v815, %v831
        %v834 = vsub.f32 %v816, %v832
        %v835 = vpack.c.bf16 %v833, %v833
        %v836 = vpack.c.bf16 %v834, %v834
        %v839 = vcombine.low %v835, %v836
        %v841 = vunpack.c.l.s4 1983009808
        %v842 = vunpack.c.0.s8 %v841
        %v843 = vlaneseq
        %v844 = vshrl.u32 %v843, 7
        %v845 = vsub.s32 %v842, %v844
        %v846 = vrot.slane %v839, %v845
        %848 = vst [vmem:[#allocation2] sm:$0xf] %v846
        %v849 = vmul.f32 %v805, %v800
        %v850 = vmul.f32 %v809, %v829
        %v851 = vmul.f32 %v821, %v798
        %v852 = vmul.f32 %v825, %v813
        %v853 = vadd.f32 %v849, %v851
        %v854 = vadd.f32 %v850, %v852
        %v855 = vpack.c.bf16 %v853, %v853
        %v856 = vpack.c.bf16 %v854, %v854
        %v859 = vcombine.low %v855, %v856
        %v861 = vunpack.c.l.s4 1983009808
        %v862 = vunpack.c.0.s8 %v861
        %v863 = vlaneseq
        %v864 = vshrl.u32 %v863, 7
        %v865 = vsub.s32 %v862, %v864
        %v866 = vrot.slane %v859, %v865
        %868 = vst [vmem:[#allocation3] sm:$0xf] %v866
        %869 = vst [vmem:[#allocation6] sm:$0xff] 0.0
        %870 = vst [vmem:[#allocation7] sm:$0xff] 0.0
      $region68: #{dc_wenqi_forward.1} parent=63 // pred_fallthru
        _
      %v871 = vld [vmem:[%s709] sm:$0xff]
      %v872 = vld [vmem:[%s709 + $0x8] sm:$0xff]
      %v873 = vld [vmem:[%s709 + $0x10] sm:$0xff]
      %v874 = vld [vmem:[%s709 + $0x18] sm:$0xff]
      %v875 = vld [vmem:[%s709 + $0x20] sm:$0xff]
      %v876 = vld [vmem:[%s709 + $0x28] sm:$0xff]
      %v877 = vld [vmem:[%s709 + $0x30] sm:$0xff]
      %v878 = vld [vmem:[%s709 + $0x38] sm:$0xff]
      %v879 = vld [vmem:[%s709 + $0x40] sm:$0xff]
      %v880 = vld [vmem:[%s709 + $0x48] sm:$0xff]
      %v881 = vld [vmem:[%s709 + $0x50] sm:$0xff]
      %v882 = vld [vmem:[%s709 + $0x58] sm:$0xff]
      %v883 = vld [vmem:[%s709 + $0x60] sm:$0xff]
      %v884 = vld [vmem:[%s709 + $0x68] sm:$0xff]
      %v885 = vld [vmem:[%s709 + $0x70] sm:$0xff]
      %v886 = vld [vmem:[%s709 + $0x78] sm:$0xff]
      %v887 = vld [vmem:[%s721] sm:$0xff]
      %v888 = vld [vmem:[%s721 + $0x8] sm:$0xff]
      %v889 = vld [vmem:[%s721 + $0x10] sm:$0xff]
      %v890 = vld [vmem:[%s721 + $0x18] sm:$0xff]
      %v891 = vld [vmem:[%s721 + $0x20] sm:$0xff]
      %v892 = vld [vmem:[%s721 + $0x28] sm:$0xff]
      %v893 = vld [vmem:[%s721 + $0x30] sm:$0xff]
      %v894 = vld [vmem:[%s721 + $0x38] sm:$0xff]
      %v895 = vld [vmem:[%s721 + $0x40] sm:$0xff]
      %v896 = vld [vmem:[%s721 + $0x48] sm:$0xff]
      %v897 = vld [vmem:[%s721 + $0x50] sm:$0xff]
      %v898 = vld [vmem:[%s721 + $0x58] sm:$0xff]
      %v899 = vld [vmem:[%s721 + $0x60] sm:$0xff]
      %v900 = vld [vmem:[%s721 + $0x68] sm:$0xff]
      %v901 = vld [vmem:[%s721 + $0x70] sm:$0xff]
      %v902 = vld [vmem:[%s721 + $0x78] sm:$0xff]
      %v903 = vld [vmem:[%s733] sm:$0xff]
      %v904 = vld [vmem:[%s733 + $0x8] sm:$0xff]
      %v905 = vld [vmem:[%s733 + $0x10] sm:$0xff]
      %v906 = vld [vmem:[%s733 + $0x18] sm:$0xff]
      %v907 = vld [vmem:[%s733 + $0x20] sm:$0xff]
      %v908 = vld [vmem:[%s733 + $0x28] sm:$0xff]
      %v909 = vld [vmem:[%s733 + $0x30] sm:$0xff]
      %v910 = vld [vmem:[%s733 + $0x38] sm:$0xff]
      %v911 = vld [vmem:[%s733 + $0x40] sm:$0xff]
      %v912 = vld [vmem:[%s733 + $0x48] sm:$0xff]
      %v913 = vld [vmem:[%s733 + $0x50] sm:$0xff]
      %v914 = vld [vmem:[%s733 + $0x58] sm:$0xff]
      %v915 = vld [vmem:[%s733 + $0x60] sm:$0xff]
      %v916 = vld [vmem:[%s733 + $0x68] sm:$0xff]
      %v917 = vld [vmem:[%s733 + $0x70] sm:$0xff]
      %v918 = vld [vmem:[%s733 + $0x78] sm:$0xff]
      %v919 = vld [vmem:[%s745] sm:$0xff]
      %v920 = vld [vmem:[%s745 + $0x8] sm:$0xff]
      %v921 = vld [vmem:[%s745 + $0x10] sm:$0xff]
      %v922 = vld [vmem:[%s745 + $0x18] sm:$0xff]
      %v923 = vld [vmem:[%s745 + $0x20] sm:$0xff]
      %v924 = vld [vmem:[%s745 + $0x28] sm:$0xff]
      %v925 = vld [vmem:[%s745 + $0x30] sm:$0xff]
      %v926 = vld [vmem:[%s745 + $0x38] sm:$0xff]
      %v927 = vld [vmem:[%s745 + $0x40] sm:$0xff]
      %v928 = vld [vmem:[%s745 + $0x48] sm:$0xff]
      %v929 = vld [vmem:[%s745 + $0x50] sm:$0xff]
      %v930 = vld [vmem:[%s745 + $0x58] sm:$0xff]
      %v931 = vld [vmem:[%s745 + $0x60] sm:$0xff]
      %v932 = vld [vmem:[%s745 + $0x68] sm:$0xff]
      %v933 = vld [vmem:[%s745 + $0x70] sm:$0xff]
      %v934 = vld [vmem:[%s745 + $0x78] sm:$0xff]
      %936 = vset.pattern.permute.xlu0 0
      %937 = vperm.xlu0 %936, %v871
      %v938 = vpop.permute.xlu0 %937
      %941 = vset.pattern.permute.xlu0 0
      %942 = vperm.xlu0 %941, %v872
      %v943 = vpop.permute.xlu0 %942
      %946 = vset.pattern.permute.xlu0 0
      %947 = vperm.xlu0 %946, %v873
      %v948 = vpop.permute.xlu0 %947
      %951 = vset.pattern.permute.xlu0 0
      %952 = vperm.xlu0 %951, %v874
      %v953 = vpop.permute.xlu0 %952
      %956 = vset.pattern.permute.xlu0 0
      %957 = vperm.xlu0 %956, %v875
      %v958 = vpop.permute.xlu0 %957
      %961 = vset.pattern.permute.xlu0 0
      %962 = vperm.xlu0 %961, %v876
      %v963 = vpop.permute.xlu0 %962
      %966 = vset.pattern.permute.xlu0 0
      %967 = vperm.xlu0 %966, %v877
      %v968 = vpop.permute.xlu0 %967
      %971 = vset.pattern.permute.xlu0 0
      %972 = vperm.xlu0 %971, %v878
      %v973 = vpop.permute.xlu0 %972
      %976 = vset.pattern.permute.xlu0 0
      %977 = vperm.xlu0 %976, %v879
      %v978 = vpop.permute.xlu0 %977
      %981 = vset.pattern.permute.xlu0 0
      %982 = vperm.xlu0 %981, %v880
      %v983 = vpop.permute.xlu0 %982
      %986 = vset.pattern.permute.xlu0 0
      %987 = vperm.xlu0 %986, %v881
      %v988 = vpop.permute.xlu0 %987
      %991 = vset.pattern.permute.xlu0 0
      %992 = vperm.xlu0 %991, %v882
      %v993 = vpop.permute.xlu0 %992
      %996 = vset.pattern.permute.xlu0 0
      %997 = vperm.xlu0 %996, %v883
      %v998 = vpop.permute.xlu0 %997
      %1001 = vset.pattern.permute.xlu0 0
      %1002 = vperm.xlu0 %1001, %v884
      %v1003 = vpop.permute.xlu0 %1002
      %1006 = vset.pattern.permute.xlu0 0
      %1007 = vperm.xlu0 %1006, %v885
      %v1008 = vpop.permute.xlu0 %1007
      %1011 = vset.pattern.permute.xlu0 0
      %1012 = vperm.xlu0 %1011, %v886
      %v1013 = vpop.permute.xlu0 %1012
      %v1015 = vmul.f32 %v938, %v903
      %v1016 = vmul.f32 %v943, %v904
      %v1017 = vmul.f32 %v948, %v905
      %v1018 = vmul.f32 %v953, %v906
      %v1019 = vmul.f32 %v958, %v907
      %v1020 = vmul.f32 %v963, %v908
      %v1021 = vmul.f32 %v968, %v909
      %v1022 = vmul.f32 %v973, %v910
      %v1023 = vmul.f32 %v978, %v911
      %v1024 = vmul.f32 %v983, %v912
      %v1025 = vmul.f32 %v988, %v913
      %v1026 = vmul.f32 %v993, %v914
      %v1027 = vmul.f32 %v998, %v915
      %v1028 = vmul.f32 %v1003, %v916
      %v1029 = vmul.f32 %v1008, %v917
      %v1030 = vmul.f32 %v1013, %v918
      %1032 = vset.pattern.permute.xlu0 0
      %1033 = vperm.xlu0 %1032, %v887
      %v1034 = vpop.permute.xlu0 %1033
      %1037 = vset.pattern.permute.xlu0 0
      %1038 = vperm.xlu0 %1037, %v888
      %v1039 = vpop.permute.xlu0 %1038
      %1042 = vset.pattern.permute.xlu0 0
      %1043 = vperm.xlu0 %1042, %v889
      %v1044 = vpop.permute.xlu0 %1043
      %1047 = vset.pattern.permute.xlu0 0
      %1048 = vperm.xlu0 %1047, %v890
      %v1049 = vpop.permute.xlu0 %1048
      %1052 = vset.pattern.permute.xlu0 0
      %1053 = vperm.xlu0 %1052, %v891
      %v1054 = vpop.permute.xlu0 %1053
      %1057 = vset.pattern.permute.xlu0 0
      %1058 = vperm.xlu0 %1057, %v892
      %v1059 = vpop.permute.xlu0 %1058
      %1062 = vset.pattern.permute.xlu0 0
      %1063 = vperm.xlu0 %1062, %v893
      %v1064 = vpop.permute.xlu0 %1063
      %1067 = vset.pattern.permute.xlu0 0
      %1068 = vperm.xlu0 %1067, %v894
      %v1069 = vpop.permute.xlu0 %1068
      %1072 = vset.pattern.permute.xlu0 0
      %1073 = vperm.xlu0 %1072, %v895
      %v1074 = vpop.permute.xlu0 %1073
      %1077 = vset.pattern.permute.xlu0 0
      %1078 = vperm.xlu0 %1077, %v896
      %v1079 = vpop.permute.xlu0 %1078
      %1082 = vset.pattern.permute.xlu0 0
      %1083 = vperm.xlu0 %1082, %v897
      %v1084 = vpop.permute.xlu0 %1083
      %1087 = vset.pattern.permute.xlu0 0
      %1088 = vperm.xlu0 %1087, %v898
      %v1089 = vpop.permute.xlu0 %1088
      %1092 = vset.pattern.permute.xlu0 0
      %1093 = vperm.xlu0 %1092, %v899
      %v1094 = vpop.permute.xlu0 %1093
      %1097 = vset.pattern.permute.xlu0 0
      %1098 = vperm.xlu0 %1097, %v900
      %v1099 = vpop.permute.xlu0 %1098
      %1102 = vset.pattern.permute.xlu0 0
      %1103 = vperm.xlu0 %1102, %v901
      %v1104 = vpop.permute.xlu0 %1103
      %1107 = vset.pattern.permute.xlu0 0
      %1108 = vperm.xlu0 %1107, %v902
      %v1109 = vpop.permute.xlu0 %1108
      %v1111 = vmul.f32 %v1034, %v919
      %v1112 = vmul.f32 %v1039, %v920
      %v1113 = vmul.f32 %v1044, %v921
      %v1114 = vmul.f32 %v1049, %v922
      %v1115 = vmul.f32 %v1054, %v923
      %v1116 = vmul.f32 %v1059, %v924
      %v1117 = vmul.f32 %v1064, %v925
      %v1118 = vmul.f32 %v1069, %v926
      %v1119 = vmul.f32 %v1074, %v927
      %v1120 = vmul.f32 %v1079, %v928
      %v1121 = vmul.f32 %v1084, %v929
      %v1122 = vmul.f32 %v1089, %v930
      %v1123 = vmul.f32 %v1094, %v931
      %v1124 = vmul.f32 %v1099, %v932
      %v1125 = vmul.f32 %v1104, %v933
      %v1126 = vmul.f32 %v1109, %v934
      %v1127 = vsub.f32 %v1015, %v1111
      %v1128 = vsub.f32 %v1016, %v1112
      %v1129 = vsub.f32 %v1017, %v1113
      %v1130 = vsub.f32 %v1018, %v1114
      %v1131 = vsub.f32 %v1019, %v1115
      %v1132 = vsub.f32 %v1020, %v1116
      %v1133 = vsub.f32 %v1021, %v1117
      %v1134 = vsub.f32 %v1022, %v1118
      %v1135 = vsub.f32 %v1023, %v1119
      %v1136 = vsub.f32 %v1024, %v1120
      %v1137 = vsub.f32 %v1025, %v1121
      %v1138 = vsub.f32 %v1026, %v1122
      %v1139 = vsub.f32 %v1027, %v1123
      %v1140 = vsub.f32 %v1028, %v1124
      %v1141 = vsub.f32 %v1029, %v1125
      %v1142 = vsub.f32 %v1030, %v1126
      %v1143 = vpack.c.bf16 %v1128, %v1127
      %v1144 = vpack.c.bf16 %v1130, %v1129
      %v1145 = vpack.c.bf16 %v1132, %v1131
      %v1146 = vpack.c.bf16 %v1134, %v1133
      %v1147 = vpack.c.bf16 %v1136, %v1135
      %v1148 = vpack.c.bf16 %v1138, %v1137
      %v1149 = vpack.c.bf16 %v1140, %v1139
      %v1150 = vpack.c.bf16 %v1142, %v1141
      %v1159 = vunpack.c.l.b16 %v1143
      %v1160 = vunpack.c.h.b16 %v1143
      %v1161 = vunpack.c.l.b16 %v1144
      %v1162 = vunpack.c.h.b16 %v1144
      %v1163 = vunpack.c.l.b16 %v1145
      %v1164 = vunpack.c.h.b16 %v1145
      %v1165 = vunpack.c.l.b16 %v1146
      %v1166 = vunpack.c.h.b16 %v1146
      %v1167 = vunpack.c.l.b16 %v1147
      %v1168 = vunpack.c.h.b16 %v1147
      %v1169 = vunpack.c.l.b16 %v1148
      %v1170 = vunpack.c.h.b16 %v1148
      %v1171 = vunpack.c.l.b16 %v1149
      %v1172 = vunpack.c.h.b16 %v1149
      %v1173 = vunpack.c.l.b16 %v1150
      %v1174 = vunpack.c.h.b16 %v1150
      %v1175 = vpack.c.b16 %v1159, %v1159
      %v1176 = vpack.c.b16 %v1160, %v1160
      %v1177 = vpack.c.b16 %v1161, %v1161
      %v1178 = vpack.c.b16 %v1162, %v1162
      %v1179 = vpack.c.b16 %v1163, %v1163
      %v1180 = vpack.c.b16 %v1164, %v1164
      %v1181 = vpack.c.b16 %v1165, %v1165
      %v1182 = vpack.c.b16 %v1166, %v1166
      %v1183 = vpack.c.b16 %v1167, %v1167
      %v1184 = vpack.c.b16 %v1168, %v1168
      %v1185 = vpack.c.b16 %v1169, %v1169
      %v1186 = vpack.c.b16 %v1170, %v1170
      %v1187 = vpack.c.b16 %v1171, %v1171
      %v1188 = vpack.c.b16 %v1172, %v1172
      %v1189 = vpack.c.b16 %v1173, %v1173
      %v1190 = vpack.c.b16 %v1174, %v1174
      %vm1207 = vcmask 125952
      %1208 = vst.msk [vmem:[#allocation4] sm:$0xf] %vm1207, %v1175
      %1209 = vst.msk [vmem:[#allocation4 + $0x8] sm:$0xf] %vm1207, %v1176
      %1210 = vst.msk [vmem:[#allocation4 + $0x10] sm:$0xf] %vm1207, %v1177
      %1211 = vst.msk [vmem:[#allocation4 + $0x18] sm:$0xf] %vm1207, %v1178
      %1212 = vst.msk [vmem:[#allocation4 + $0x20] sm:$0xf] %vm1207, %v1179
      %1213 = vst.msk [vmem:[#allocation4 + $0x28] sm:$0xf] %vm1207, %v1180
      %1214 = vst.msk [vmem:[#allocation4 + $0x30] sm:$0xf] %vm1207, %v1181
      %1215 = vst.msk [vmem:[#allocation4 + $0x38] sm:$0xf] %vm1207, %v1182
      %1216 = vst.msk [vmem:[#allocation4 + $0x40] sm:$0xf] %vm1207, %v1183
      %1217 = vst.msk [vmem:[#allocation4 + $0x48] sm:$0xf] %vm1207, %v1184
      %1218 = vst.msk [vmem:[#allocation4 + $0x50] sm:$0xf] %vm1207, %v1185
      %1219 = vst.msk [vmem:[#allocation4 + $0x58] sm:$0xf] %vm1207, %v1186
      %1220 = vst.msk [vmem:[#allocation4 + $0x60] sm:$0xf] %vm1207, %v1187
      %1221 = vst.msk [vmem:[#allocation4 + $0x68] sm:$0xf] %vm1207, %v1188
      %1222 = vst.msk [vmem:[#allocation4 + $0x70] sm:$0xf] %vm1207, %v1189
      %1223 = vst.msk [vmem:[#allocation4 + $0x78] sm:$0xf] %vm1207, %v1190
      %v1224 = vmul.f32 %v1034, %v903
      %v1225 = vmul.f32 %v1039, %v904
      %v1226 = vmul.f32 %v1044, %v905
      %v1227 = vmul.f32 %v1049, %v906
      %v1228 = vmul.f32 %v1054, %v907
      %v1229 = vmul.f32 %v1059, %v908
      %v1230 = vmul.f32 %v1064, %v909
      %v1231 = vmul.f32 %v1069, %v910
      %v1232 = vmul.f32 %v1074, %v911
      %v1233 = vmul.f32 %v1079, %v912
      %v1234 = vmul.f32 %v1084, %v913
      %v1235 = vmul.f32 %v1089, %v914
      %v1236 = vmul.f32 %v1094, %v915
      %v1237 = vmul.f32 %v1099, %v916
      %v1238 = vmul.f32 %v1104, %v917
      %v1239 = vmul.f32 %v1109, %v918
      %v1240 = vmul.f32 %v938, %v919
      %v1241 = vmul.f32 %v943, %v920
      %v1242 = vmul.f32 %v948, %v921
      %v1243 = vmul.f32 %v953, %v922
      %v1244 = vmul.f32 %v958, %v923
      %v1245 = vmul.f32 %v963, %v924
      %v1246 = vmul.f32 %v968, %v925
      %v1247 = vmul.f32 %v973, %v926
      %v1248 = vmul.f32 %v978, %v927
      %v1249 = vmul.f32 %v983, %v928
      %v1250 = vmul.f32 %v988, %v929
      %v1251 = vmul.f32 %v993, %v930
      %v1252 = vmul.f32 %v998, %v931
      %v1253 = vmul.f32 %v1003, %v932
      %v1254 = vmul.f32 %v1008, %v933
      %v1255 = vmul.f32 %v1013, %v934
      %v1256 = vadd.f32 %v1224, %v1240
      %v1257 = vadd.f32 %v1225, %v1241
      %v1258 = vadd.f32 %v1226, %v1242
      %v1259 = vadd.f32 %v1227, %v1243
      %v1260 = vadd.f32 %v1228, %v1244
      %v1261 = vadd.f32 %v1229, %v1245
      %v1262 = vadd.f32 %v1230, %v1246
      %v1263 = vadd.f32 %v1231, %v1247
      %v1264 = vadd.f32 %v1232, %v1248
      %v1265 = vadd.f32 %v1233, %v1249
      %v1266 = vadd.f32 %v1234, %v1250
      %v1267 = vadd.f32 %v1235, %v1251
      %v1268 = vadd.f32 %v1236, %v1252
      %v1269 = vadd.f32 %v1237, %v1253
      %v1270 = vadd.f32 %v1238, %v1254
      %v1271 = vadd.f32 %v1239, %v1255
      %v1272 = vsub.f32 0.0, %v1256
      %v1273 = vsub.f32 0.0, %v1257
      %v1274 = vsub.f32 0.0, %v1258
      %v1275 = vsub.f32 0.0, %v1259
      %v1276 = vsub.f32 0.0, %v1260
      %v1277 = vsub.f32 0.0, %v1261
      %v1278 = vsub.f32 0.0, %v1262
      %v1279 = vsub.f32 0.0, %v1263
      %v1280 = vsub.f32 0.0, %v1264
      %v1281 = vsub.f32 0.0, %v1265
      %v1282 = vsub.f32 0.0, %v1266
      %v1283 = vsub.f32 0.0, %v1267
      %v1284 = vsub.f32 0.0, %v1268
      %v1285 = vsub.f32 0.0, %v1269
      %v1286 = vsub.f32 0.0, %v1270
      %v1287 = vsub.f32 0.0, %v1271
      %v1288 = vpack.c.bf16 %v1273, %v1272
      %v1289 = vpack.c.bf16 %v1275, %v1274
      %v1290 = vpack.c.bf16 %v1277, %v1276
      %v1291 = vpack.c.bf16 %v1279, %v1278
      %v1292 = vpack.c.bf16 %v1281, %v1280
      %v1293 = vpack.c.bf16 %v1283, %v1282
      %v1294 = vpack.c.bf16 %v1285, %v1284
      %v1295 = vpack.c.bf16 %v1287, %v1286
      %v1304 = vunpack.c.l.b16 %v1288
      %v1305 = vunpack.c.h.b16 %v1288
      %v1306 = vunpack.c.l.b16 %v1289
      %v1307 = vunpack.c.h.b16 %v1289
      %v1308 = vunpack.c.l.b16 %v1290
      %v1309 = vunpack.c.h.b16 %v1290
      %v1310 = vunpack.c.l.b16 %v1291
      %v1311 = vunpack.c.h.b16 %v1291
      %v1312 = vunpack.c.l.b16 %v1292
      %v1313 = vunpack.c.h.b16 %v1292
      %v1314 = vunpack.c.l.b16 %v1293
      %v1315 = vunpack.c.h.b16 %v1293
      %v1316 = vunpack.c.l.b16 %v1294
      %v1317 = vunpack.c.h.b16 %v1294
      %v1318 = vunpack.c.l.b16 %v1295
      %v1319 = vunpack.c.h.b16 %v1295
      %v1320 = vpack.c.b16 %v1304, %v1304
      %v1321 = vpack.c.b16 %v1305, %v1305
      %v1322 = vpack.c.b16 %v1306, %v1306
      %v1323 = vpack.c.b16 %v1307, %v1307
      %v1324 = vpack.c.b16 %v1308, %v1308
      %v1325 = vpack.c.b16 %v1309, %v1309
      %v1326 = vpack.c.b16 %v1310, %v1310
      %v1327 = vpack.c.b16 %v1311, %v1311
      %v1328 = vpack.c.b16 %v1312, %v1312
      %v1329 = vpack.c.b16 %v1313, %v1313
      %v1330 = vpack.c.b16 %v1314, %v1314
      %v1331 = vpack.c.b16 %v1315, %v1315
      %v1332 = vpack.c.b16 %v1316, %v1316
      %v1333 = vpack.c.b16 %v1317, %v1317
      %v1334 = vpack.c.b16 %v1318, %v1318
      %v1335 = vpack.c.b16 %v1319, %v1319
      %1352 = vst.msk [vmem:[#allocation5] sm:$0xf] %vm1207, %v1320
      %1353 = vst.msk [vmem:[#allocation5 + $0x8] sm:$0xf] %vm1207, %v1321
      %1354 = vst.msk [vmem:[#allocation5 + $0x10] sm:$0xf] %vm1207, %v1322
      %1355 = vst.msk [vmem:[#allocation5 + $0x18] sm:$0xf] %vm1207, %v1323
      %1356 = vst.msk [vmem:[#allocation5 + $0x20] sm:$0xf] %vm1207, %v1324
      %1357 = vst.msk [vmem:[#allocation5 + $0x28] sm:$0xf] %vm1207, %v1325
      %1358 = vst.msk [vmem:[#allocation5 + $0x30] sm:$0xf] %vm1207, %v1326
      %1359 = vst.msk [vmem:[#allocation5 + $0x38] sm:$0xf] %vm1207, %v1327
      %1360 = vst.msk [vmem:[#allocation5 + $0x40] sm:$0xf] %vm1207, %v1328
      %1361 = vst.msk [vmem:[#allocation5 + $0x48] sm:$0xf] %vm1207, %v1329
      %1362 = vst.msk [vmem:[#allocation5 + $0x50] sm:$0xf] %vm1207, %v1330
      %1363 = vst.msk [vmem:[#allocation5 + $0x58] sm:$0xf] %vm1207, %v1331
      %1364 = vst.msk [vmem:[#allocation5 + $0x60] sm:$0xf] %vm1207, %v1332
      %1365 = vst.msk [vmem:[#allocation5 + $0x68] sm:$0xf] %vm1207, %v1333
      %1366 = vst.msk [vmem:[#allocation5 + $0x70] sm:$0xf] %vm1207, %v1334
      %1367 = vst.msk [vmem:[#allocation5 + $0x78] sm:$0xf] %vm1207, %v1335
      %1368 = vset.pattern.permute.xlu0 1
      %1369 = vperm.xlu0 %1368, %v871
      %v1370 = vpop.permute.xlu0 %1369
      %1372 = vset.pattern.permute.xlu0 1
      %1373 = vperm.xlu0 %1372, %v872
      %v1374 = vpop.permute.xlu0 %1373
      %1376 = vset.pattern.permute.xlu0 1
      %1377 = vperm.xlu0 %1376, %v873
      %v1378 = vpop.permute.xlu0 %1377
      %1380 = vset.pattern.permute.xlu0 1
      %1381 = vperm.xlu0 %1380, %v874
      %v1382 = vpop.permute.xlu0 %1381
      %1384 = vset.pattern.permute.xlu0 1
      %1385 = vperm.xlu0 %1384, %v875
      %v1386 = vpop.permute.xlu0 %1385
      %1388 = vset.pattern.permute.xlu0 1
      %1389 = vperm.xlu0 %1388, %v876
      %v1390 = vpop.permute.xlu0 %1389
      %1392 = vset.pattern.permute.xlu0 1
      %1393 = vperm.xlu0 %1392, %v877
      %v1394 = vpop.permute.xlu0 %1393
      %1396 = vset.pattern.permute.xlu0 1
      %1397 = vperm.xlu0 %1396, %v878
      %v1398 = vpop.permute.xlu0 %1397
      %1400 = vset.pattern.permute.xlu0 1
      %1401 = vperm.xlu0 %1400, %v879
      %v1402 = vpop.permute.xlu0 %1401
      %1404 = vset.pattern.permute.xlu0 1
      %1405 = vperm.xlu0 %1404, %v880
      %v1406 = vpop.permute.xlu0 %1405
      %1408 = vset.pattern.permute.xlu0 1
      %1409 = vperm.xlu0 %1408, %v881
      %v1410 = vpop.permute.xlu0 %1409
      %1412 = vset.pattern.permute.xlu0 1
      %1413 = vperm.xlu0 %1412, %v882
      %v1414 = vpop.permute.xlu0 %1413
      %1416 = vset.pattern.permute.xlu0 1
      %1417 = vperm.xlu0 %1416, %v883
      %v1418 = vpop.permute.xlu0 %1417
      %1420 = vset.pattern.permute.xlu0 1
      %1421 = vperm.xlu0 %1420, %v884
      %v1422 = vpop.permute.xlu0 %1421
      %1424 = vset.pattern.permute.xlu0 1
      %1425 = vperm.xlu0 %1424, %v885
      %v1426 = vpop.permute.xlu0 %1425
      %1428 = vset.pattern.permute.xlu0 1
      %1429 = vperm.xlu0 %1428, %v886
      %v1430 = vpop.permute.xlu0 %1429
      %v1432 = vmul.f32 %v1370, %v903
      %v1433 = vmul.f32 %v1374, %v904
      %v1434 = vmul.f32 %v1378, %v905
      %v1435 = vmul.f32 %v1382, %v906
      %v1436 = vmul.f32 %v1386, %v907
      %v1437 = vmul.f32 %v1390, %v908
      %v1438 = vmul.f32 %v1394, %v909
      %v1439 = vmul.f32 %v1398, %v910
      %v1440 = vmul.f32 %v1402, %v911
      %v1441 = vmul.f32 %v1406, %v912
      %v1442 = vmul.f32 %v1410, %v913
      %v1443 = vmul.f32 %v1414, %v914
      %v1444 = vmul.f32 %v1418, %v915
      %v1445 = vmul.f32 %v1422, %v916
      %v1446 = vmul.f32 %v1426, %v917
      %v1447 = vmul.f32 %v1430, %v918
      %1448 = vset.pattern.permute.xlu0 1
      %1449 = vperm.xlu0 %1448, %v887
      %v1450 = vpop.permute.xlu0 %1449
      %1452 = vset.pattern.permute.xlu0 1
      %1453 = vperm.xlu0 %1452, %v888
      %v1454 = vpop.permute.xlu0 %1453
      %1456 = vset.pattern.permute.xlu0 1
      %1457 = vperm.xlu0 %1456, %v889
      %v1458 = vpop.permute.xlu0 %1457
      %1460 = vset.pattern.permute.xlu0 1
      %1461 = vperm.xlu0 %1460, %v890
      %v1462 = vpop.permute.xlu0 %1461
      %1464 = vset.pattern.permute.xlu0 1
      %1465 = vperm.xlu0 %1464, %v891
      %v1466 = vpop.permute.xlu0 %1465
      %1468 = vset.pattern.permute.xlu0 1
      %1469 = vperm.xlu0 %1468, %v892
      %v1470 = vpop.permute.xlu0 %1469
      %1472 = vset.pattern.permute.xlu0 1
      %1473 = vperm.xlu0 %1472, %v893
      %v1474 = vpop.permute.xlu0 %1473
      %1476 = vset.pattern.permute.xlu0 1
      %1477 = vperm.xlu0 %1476, %v894
      %v1478 = vpop.permute.xlu0 %1477
      %1480 = vset.pattern.permute.xlu0 1
      %1481 = vperm.xlu0 %1480, %v895
      %v1482 = vpop.permute.xlu0 %1481
      %1484 = vset.pattern.permute.xlu0 1
      %1485 = vperm.xlu0 %1484, %v896
      %v1486 = vpop.permute.xlu0 %1485
      %1488 = vset.pattern.permute.xlu0 1
      %1489 = vperm.xlu0 %1488, %v897
      %v1490 = vpop.permute.xlu0 %1489
      %1492 = vset.pattern.permute.xlu0 1
      %1493 = vperm.xlu0 %1492, %v898
      %v1494 = vpop.permute.xlu0 %1493
      %1496 = vset.pattern.permute.xlu0 1
      %1497 = vperm.xlu0 %1496, %v899
      %v1498 = vpop.permute.xlu0 %1497
      %1500 = vset.pattern.permute.xlu0 1
      %1501 = vperm.xlu0 %1500, %v900
      %v1502 = vpop.permute.xlu0 %1501
      %1504 = vset.pattern.permute.xlu0 1
      %1505 = vperm.xlu0 %1504, %v901
      %v1506 = vpop.permute.xlu0 %1505
      %1508 = vset.pattern.permute.xlu0 1
      %1509 = vperm.xlu0 %1508, %v902
      %v1510 = vpop.permute.xlu0 %1509
      %v1512 = vmul.f32 %v1450, %v919
      %v1513 = vmul.f32 %v1454, %v920
      %v1514 = vmul.f32 %v1458, %v921
      %v1515 = vmul.f32 %v1462, %v922
      %v1516 = vmul.f32 %v1466, %v923
      %v1517 = vmul.f32 %v1470, %v924
      %v1518 = vmul.f32 %v1474, %v925
      %v1519 = vmul.f32 %v1478, %v926
      %v1520 = vmul.f32 %v1482, %v927
      %v1521 = vmul.f32 %v1486, %v928
      %v1522 = vmul.f32 %v1490, %v929
      %v1523 = vmul.f32 %v1494, %v930
      %v1524 = vmul.f32 %v1498, %v931
      %v1525 = vmul.f32 %v1502, %v932
      %v1526 = vmul.f32 %v1506, %v933
      %v1527 = vmul.f32 %v1510, %v934
      %v1528 = vsub.f32 %v1432, %v1512
      %v1529 = vsub.f32 %v1433, %v1513
      %v1530 = vsub.f32 %v1434, %v1514
      %v1531 = vsub.f32 %v1435, %v1515
      %v1532 = vsub.f32 %v1436, %v1516
      %v1533 = vsub.f32 %v1437, %v1517
      %v1534 = vsub.f32 %v1438, %v1518
      %v1535 = vsub.f32 %v1439, %v1519
      %v1536 = vsub.f32 %v1440, %v1520
      %v1537 = vsub.f32 %v1441, %v1521
      %v1538 = vsub.f32 %v1442, %v1522
      %v1539 = vsub.f32 %v1443, %v1523
      %v1540 = vsub.f32 %v1444, %v1524
      %v1541 = vsub.f32 %v1445, %v1525
      %v1542 = vsub.f32 %v1446, %v1526
      %v1543 = vsub.f32 %v1447, %v1527
      %v1544 = vpack.c.bf16 %v1529, %v1528
      %v1545 = vpack.c.bf16 %v1531, %v1530
      %v1546 = vpack.c.bf16 %v1533, %v1532
      %v1547 = vpack.c.bf16 %v1535, %v1534
      %v1548 = vpack.c.bf16 %v1537, %v1536
      %v1549 = vpack.c.bf16 %v1539, %v1538
      %v1550 = vpack.c.bf16 %v1541, %v1540
      %v1551 = vpack.c.bf16 %v1543, %v1542
      %v1560 = vunpack.c.l.b16 %v1544
      %v1561 = vunpack.c.h.b16 %v1544
      %v1562 = vunpack.c.l.b16 %v1545
      %v1563 = vunpack.c.h.b16 %v1545
      %v1564 = vunpack.c.l.b16 %v1546
      %v1565 = vunpack.c.h.b16 %v1546
      %v1566 = vunpack.c.l.b16 %v1547
      %v1567 = vunpack.c.h.b16 %v1547
      %v1568 = vunpack.c.l.b16 %v1548
      %v1569 = vunpack.c.h.b16 %v1548
      %v1570 = vunpack.c.l.b16 %v1549
      %v1571 = vunpack.c.h.b16 %v1549
      %v1572 = vunpack.c.l.b16 %v1550
      %v1573 = vunpack.c.h.b16 %v1550
      %v1574 = vunpack.c.l.b16 %v1551
      %v1575 = vunpack.c.h.b16 %v1551
      %v1576 = vpack.c.b16 %v1560, %v1560
      %v1577 = vpack.c.b16 %v1561, %v1561
      %v1578 = vpack.c.b16 %v1562, %v1562
      %v1579 = vpack.c.b16 %v1563, %v1563
      %v1580 = vpack.c.b16 %v1564, %v1564
      %v1581 = vpack.c.b16 %v1565, %v1565
      %v1582 = vpack.c.b16 %v1566, %v1566
      %v1583 = vpack.c.b16 %v1567, %v1567
      %v1584 = vpack.c.b16 %v1568, %v1568
      %v1585 = vpack.c.b16 %v1569, %v1569
      %v1586 = vpack.c.b16 %v1570, %v1570
      %v1587 = vpack.c.b16 %v1571, %v1571
      %v1588 = vpack.c.b16 %v1572, %v1572
      %v1589 = vpack.c.b16 %v1573, %v1573
      %v1590 = vpack.c.b16 %v1574, %v1574
      %v1591 = vpack.c.b16 %v1575, %v1575
      %1592 = vrot.lane.b32.xlu0 %v1576, 16
      %v1593 = vpop.permute.xlu0 %1592
      %1594 = vrot.lane.b32.xlu0 %v1577, 16
      %v1595 = vpop.permute.xlu0 %1594
      %1596 = vrot.lane.b32.xlu0 %v1578, 16
      %v1597 = vpop.permute.xlu0 %1596
      %1598 = vrot.lane.b32.xlu0 %v1579, 16
      %v1599 = vpop.permute.xlu0 %1598
      %1600 = vrot.lane.b32.xlu0 %v1580, 16
      %v1601 = vpop.permute.xlu0 %1600
      %1602 = vrot.lane.b32.xlu0 %v1581, 16
      %v1603 = vpop.permute.xlu0 %1602
      %1604 = vrot.lane.b32.xlu0 %v1582, 16
      %v1605 = vpop.permute.xlu0 %1604
      %1606 = vrot.lane.b32.xlu0 %v1583, 16
      %v1607 = vpop.permute.xlu0 %1606
      %1608 = vrot.lane.b32.xlu0 %v1584, 16
      %v1609 = vpop.permute.xlu0 %1608
      %1610 = vrot.lane.b32.xlu0 %v1585, 16
      %v1611 = vpop.permute.xlu0 %1610
      %1612 = vrot.lane.b32.xlu0 %v1586, 16
      %v1613 = vpop.permute.xlu0 %1612
      %1614 = vrot.lane.b32.xlu0 %v1587, 16
      %v1615 = vpop.permute.xlu0 %1614
      %1616 = vrot.lane.b32.xlu0 %v1588, 16
      %v1617 = vpop.permute.xlu0 %1616
      %1618 = vrot.lane.b32.xlu0 %v1589, 16
      %v1619 = vpop.permute.xlu0 %1618
      %1620 = vrot.lane.b32.xlu0 %v1590, 16
      %v1621 = vpop.permute.xlu0 %1620
      %1622 = vrot.lane.b32.xlu0 %v1591, 16
      %v1623 = vpop.permute.xlu0 %1622
      %vm1640 = vcmask 257152
      %1641 = vst.msk [vmem:[#allocation4] sm:$0xf] %vm1640, %v1593
      %1642 = vst.msk [vmem:[#allocation4 + $0x8] sm:$0xf] %vm1640, %v1595
      %1643 = vst.msk [vmem:[#allocation4 + $0x10] sm:$0xf] %vm1640, %v1597
      %1644 = vst.msk [vmem:[#allocation4 + $0x18] sm:$0xf] %vm1640, %v1599
      %1645 = vst.msk [vmem:[#allocation4 + $0x20] sm:$0xf] %vm1640, %v1601
      %1646 = vst.msk [vmem:[#allocation4 + $0x28] sm:$0xf] %vm1640, %v1603
      %1647 = vst.msk [vmem:[#allocation4 + $0x30] sm:$0xf] %vm1640, %v1605
      %1648 = vst.msk [vmem:[#allocation4 + $0x38] sm:$0xf] %vm1640, %v1607
      %1649 = vst.msk [vmem:[#allocation4 + $0x40] sm:$0xf] %vm1640, %v1609
      %1650 = vst.msk [vmem:[#allocation4 + $0x48] sm:$0xf] %vm1640, %v1611
      %1651 = vst.msk [vmem:[#allocation4 + $0x50] sm:$0xf] %vm1640, %v1613
      %1652 = vst.msk [vmem:[#allocation4 + $0x58] sm:$0xf] %vm1640, %v1615
      %1653 = vst.msk [vmem:[#allocation4 + $0x60] sm:$0xf] %vm1640, %v1617
      %1654 = vst.msk [vmem:[#allocation4 + $0x68] sm:$0xf] %vm1640, %v1619
      %1655 = vst.msk [vmem:[#allocation4 + $0x70] sm:$0xf] %vm1640, %v1621
      %1656 = vst.msk [vmem:[#allocation4 + $0x78] sm:$0xf] %vm1640, %v1623
      %v1657 = vmul.f32 %v1450, %v903
      %v1658 = vmul.f32 %v1454, %v904
      %v1659 = vmul.f32 %v1458, %v905
      %v1660 = vmul.f32 %v1462, %v906
      %v1661 = vmul.f32 %v1466, %v907
      %v1662 = vmul.f32 %v1470, %v908
      %v1663 = vmul.f32 %v1474, %v909
      %v1664 = vmul.f32 %v1478, %v910
      %v1665 = vmul.f32 %v1482, %v911
      %v1666 = vmul.f32 %v1486, %v912
      %v1667 = vmul.f32 %v1490, %v913
      %v1668 = vmul.f32 %v1494, %v914
      %v1669 = vmul.f32 %v1498, %v915
      %v1670 = vmul.f32 %v1502, %v916
      %v1671 = vmul.f32 %v1506, %v917
      %v1672 = vmul.f32 %v1510, %v918
      %v1673 = vmul.f32 %v1370, %v919
      %v1674 = vmul.f32 %v1374, %v920
      %v1675 = vmul.f32 %v1378, %v921
      %v1676 = vmul.f32 %v1382, %v922
      %v1677 = vmul.f32 %v1386, %v923
      %v1678 = vmul.f32 %v1390, %v924
      %v1679 = vmul.f32 %v1394, %v925
      %v1680 = vmul.f32 %v1398, %v926
      %v1681 = vmul.f32 %v1402, %v927
      %v1682 = vmul.f32 %v1406, %v928
      %v1683 = vmul.f32 %v1410, %v929
      %v1684 = vmul.f32 %v1414, %v930
      %v1685 = vmul.f32 %v1418, %v931
      %v1686 = vmul.f32 %v1422, %v932
      %v1687 = vmul.f32 %v1426, %v933
      %v1688 = vmul.f32 %v1430, %v934
      %v1689 = vadd.f32 %v1657, %v1673
      %v1690 = vadd.f32 %v1658, %v1674
      %v1691 = vadd.f32 %v1659, %v1675
      %v1692 = vadd.f32 %v1660, %v1676
      %v1693 = vadd.f32 %v1661, %v1677
      %v1694 = vadd.f32 %v1662, %v1678
      %v1695 = vadd.f32 %v1663, %v1679
      %v1696 = vadd.f32 %v1664, %v1680
      %v1697 = vadd.f32 %v1665, %v1681
      %v1698 = vadd.f32 %v1666, %v1682
      %v1699 = vadd.f32 %v1667, %v1683
      %v1700 = vadd.f32 %v1668, %v1684
      %v1701 = vadd.f32 %v1669, %v1685
      %v1702 = vadd.f32 %v1670, %v1686
      %v1703 = vadd.f32 %v1671, %v1687
      %v1704 = vadd.f32 %v1672, %v1688
      %v1705 = vsub.f32 0.0, %v1689
      %v1706 = vsub.f32 0.0, %v1690
      %v1707 = vsub.f32 0.0, %v1691
      %v1708 = vsub.f32 0.0, %v1692
      %v1709 = vsub.f32 0.0, %v1693
      %v1710 = vsub.f32 0.0, %v1694
      %v1711 = vsub.f32 0.0, %v1695
      %v1712 = vsub.f32 0.0, %v1696
      %v1713 = vsub.f32 0.0, %v1697
      %v1714 = vsub.f32 0.0, %v1698
      %v1715 = vsub.f32 0.0, %v1699
      %v1716 = vsub.f32 0.0, %v1700
      %v1717 = vsub.f32 0.0, %v1701
      %v1718 = vsub.f32 0.0, %v1702
      %v1719 = vsub.f32 0.0, %v1703
      %v1720 = vsub.f32 0.0, %v1704
      %v1721 = vpack.c.bf16 %v1706, %v1705
      %v1722 = vpack.c.bf16 %v1708, %v1707
      %v1723 = vpack.c.bf16 %v1710, %v1709
      %v1724 = vpack.c.bf16 %v1712, %v1711
      %v1725 = vpack.c.bf16 %v1714, %v1713
      %v1726 = vpack.c.bf16 %v1716, %v1715
      %v1727 = vpack.c.bf16 %v1718, %v1717
      %v1728 = vpack.c.bf16 %v1720, %v1719
      %v1737 = vunpack.c.l.b16 %v1721
      %v1738 = vunpack.c.h.b16 %v1721
      %v1739 = vunpack.c.l.b16 %v1722
      %v1740 = vunpack.c.h.b16 %v1722
      %v1741 = vunpack.c.l.b16 %v1723
      %v1742 = vunpack.c.h.b16 %v1723
      %v1743 = vunpack.c.l.b16 %v1724
      %v1744 = vunpack.c.h.b16 %v1724
      %v1745 = vunpack.c.l.b16 %v1725
      %v1746 = vunpack.c.h.b16 %v1725
      %v1747 = vunpack.c.l.b16 %v1726
      %v1748 = vunpack.c.h.b16 %v1726
      %v1749 = vunpack.c.l.b16 %v1727
      %v1750 = vunpack.c.h.b16 %v1727
      %v1751 = vunpack.c.l.b16 %v1728
      %v1752 = vunpack.c.h.b16 %v1728
      %v1753 = vpack.c.b16 %v1737, %v1737
      %v1754 = vpack.c.b16 %v1738, %v1738
      %v1755 = vpack.c.b16 %v1739, %v1739
      %v1756 = vpack.c.b16 %v1740, %v1740
      %v1757 = vpack.c.b16 %v1741, %v1741
      %v1758 = vpack.c.b16 %v1742, %v1742
      %v1759 = vpack.c.b16 %v1743, %v1743
      %v1760 = vpack.c.b16 %v1744, %v1744
      %v1761 = vpack.c.b16 %v1745, %v1745
      %v1762 = vpack.c.b16 %v1746, %v1746
      %v1763 = vpack.c.b16 %v1747, %v1747
      %v1764 = vpack.c.b16 %v1748, %v1748
      %v1765 = vpack.c.b16 %v1749, %v1749
      %v1766 = vpack.c.b16 %v1750, %v1750
      %v1767 = vpack.c.b16 %v1751, %v1751
      %v1768 = vpack.c.b16 %v1752, %v1752
      %1769 = vrot.lane.b32.xlu0 %v1753, 16
      %v1770 = vpop.permute.xlu0 %1769
      %1771 = vrot.lane.b32.xlu0 %v1754, 16
      %v1772 = vpop.permute.xlu0 %1771
      %1773 = vrot.lane.b32.xlu0 %v1755, 16
      %v1774 = vpop.permute.xlu0 %1773
      %1775 = vrot.lane.b32.xlu0 %v1756, 16
      %v1776 = vpop.permute.xlu0 %1775
      %1777 = vrot.lane.b32.xlu0 %v1757, 16
      %v1778 = vpop.permute.xlu0 %1777
      %1779 = vrot.lane.b32.xlu0 %v1758, 16
      %v1780 = vpop.permute.xlu0 %1779
      %1781 = vrot.lane.b32.xlu0 %v1759, 16
      %v1782 = vpop.permute.xlu0 %1781
      %1783 = vrot.lane.b32.xlu0 %v1760, 16
      %v1784 = vpop.permute.xlu0 %1783
      %1785 = vrot.lane.b32.xlu0 %v1761, 16
      %v1786 = vpop.permute.xlu0 %1785
      %1787 = vrot.lane.b32.xlu0 %v1762, 16
      %v1788 = vpop.permute.xlu0 %1787
      %1789 = vrot.lane.b32.xlu0 %v1763, 16
      %v1790 = vpop.permute.xlu0 %1789
      %1791 = vrot.lane.b32.xlu0 %v1764, 16
      %v1792 = vpop.permute.xlu0 %1791
      %1793 = vrot.lane.b32.xlu0 %v1765, 16
      %v1794 = vpop.permute.xlu0 %1793
      %1795 = vrot.lane.b32.xlu0 %v1766, 16
      %v1796 = vpop.permute.xlu0 %1795
      %1797 = vrot.lane.b32.xlu0 %v1767, 16
      %v1798 = vpop.permute.xlu0 %1797
      %1799 = vrot.lane.b32.xlu0 %v1768, 16
      %v1800 = vpop.permute.xlu0 %1799
      %1817 = vst.msk [vmem:[#allocation5] sm:$0xf] %vm1640, %v1770
      %1818 = vst.msk [vmem:[#allocation5 + $0x8] sm:$0xf] %vm1640, %v1772
      %1819 = vst.msk [vmem:[#allocation5 + $0x10] sm:$0xf] %vm1640, %v1774
      %1820 = vst.msk [vmem:[#allocation5 + $0x18] sm:$0xf] %vm1640, %v1776
      %1821 = vst.msk [vmem:[#allocation5 + $0x20] sm:$0xf] %vm1640, %v1778
      %1822 = vst.msk [vmem:[#allocation5 + $0x28] sm:$0xf] %vm1640, %v1780
      %1823 = vst.msk [vmem:[#allocation5 + $0x30] sm:$0xf] %vm1640, %v1782
      %1824 = vst.msk [vmem:[#allocation5 + $0x38] sm:$0xf] %vm1640, %v1784
      %1825 = vst.msk [vmem:[#allocation5 + $0x40] sm:$0xf] %vm1640, %v1786
      %1826 = vst.msk [vmem:[#allocation5 + $0x48] sm:$0xf] %vm1640, %v1788
      %1827 = vst.msk [vmem:[#allocation5 + $0x50] sm:$0xf] %vm1640, %v1790
      %1828 = vst.msk [vmem:[#allocation5 + $0x58] sm:$0xf] %vm1640, %v1792
      %1829 = vst.msk [vmem:[#allocation5 + $0x60] sm:$0xf] %vm1640, %v1794
      %1830 = vst.msk [vmem:[#allocation5 + $0x68] sm:$0xf] %vm1640, %v1796
      %1831 = vst.msk [vmem:[#allocation5 + $0x70] sm:$0xf] %vm1640, %v1798
      %1832 = vst.msk [vmem:[#allocation5 + $0x78] sm:$0xf] %vm1640, %v1800
      %1833 = vset.pattern.permute.xlu0 2
      %1834 = vperm.xlu0 %1833, %v871
      %v1835 = vpop.permute.xlu0 %1834
      %1837 = vset.pattern.permute.xlu0 2
      %1838 = vperm.xlu0 %1837, %v872
      %v1839 = vpop.permute.xlu0 %1838
      %1841 = vset.pattern.permute.xlu0 2
      %1842 = vperm.xlu0 %1841, %v873
      %v1843 = vpop.permute.xlu0 %1842
      %1845 = vset.pattern.permute.xlu0 2
      %1846 = vperm.xlu0 %1845, %v874
      %v1847 = vpop.permute.xlu0 %1846
      %1849 = vset.pattern.permute.xlu0 2
      %1850 = vperm.xlu0 %1849, %v875
      %v1851 = vpop.permute.xlu0 %1850
      %1853 = vset.pattern.permute.xlu0 2
      %1854 = vperm.xlu0 %1853, %v876
      %v1855 = vpop.permute.xlu0 %1854
      %1857 = vset.pattern.permute.xlu0 2
      %1858 = vperm.xlu0 %1857, %v877
      %v1859 = vpop.permute.xlu0 %1858
      %1861 = vset.pattern.permute.xlu0 2
      %1862 = vperm.xlu0 %1861, %v878
      %v1863 = vpop.permute.xlu0 %1862
      %1865 = vset.pattern.permute.xlu0 2
      %1866 = vperm.xlu0 %1865, %v879
      %v1867 = vpop.permute.xlu0 %1866
      %1869 = vset.pattern.permute.xlu0 2
      %1870 = vperm.xlu0 %1869, %v880
      %v1871 = vpop.permute.xlu0 %1870
      %1873 = vset.pattern.permute.xlu0 2
      %1874 = vperm.xlu0 %1873, %v881
      %v1875 = vpop.permute.xlu0 %1874
      %1877 = vset.pattern.permute.xlu0 2
      %1878 = vperm.xlu0 %1877, %v882
      %v1879 = vpop.permute.xlu0 %1878
      %1881 = vset.pattern.permute.xlu0 2
      %1882 = vperm.xlu0 %1881, %v883
      %v1883 = vpop.permute.xlu0 %1882
      %1885 = vset.pattern.permute.xlu0 2
      %1886 = vperm.xlu0 %1885, %v884
      %v1887 = vpop.permute.xlu0 %1886
      %1889 = vset.pattern.permute.xlu0 2
      %1890 = vperm.xlu0 %1889, %v885
      %v1891 = vpop.permute.xlu0 %1890
      %1893 = vset.pattern.permute.xlu0 2
      %1894 = vperm.xlu0 %1893, %v886
      %v1895 = vpop.permute.xlu0 %1894
      %v1897 = vmul.f32 %v1835, %v903
      %v1898 = vmul.f32 %v1839, %v904
      %v1899 = vmul.f32 %v1843, %v905
      %v1900 = vmul.f32 %v1847, %v906
      %v1901 = vmul.f32 %v1851, %v907
      %v1902 = vmul.f32 %v1855, %v908
      %v1903 = vmul.f32 %v1859, %v909
      %v1904 = vmul.f32 %v1863, %v910
      %v1905 = vmul.f32 %v1867, %v911
      %v1906 = vmul.f32 %v1871, %v912
      %v1907 = vmul.f32 %v1875, %v913
      %v1908 = vmul.f32 %v1879, %v914
      %v1909 = vmul.f32 %v1883, %v915
      %v1910 = vmul.f32 %v1887, %v916
      %v1911 = vmul.f32 %v1891, %v917
      %v1912 = vmul.f32 %v1895, %v918
      %1913 = vset.pattern.permute.xlu0 2
      %1914 = vperm.xlu0 %1913, %v887
      %v1915 = vpop.permute.xlu0 %1914
      %1917 = vset.pattern.permute.xlu0 2
      %1918 = vperm.xlu0 %1917, %v888
      %v1919 = vpop.permute.xlu0 %1918
      %1921 = vset.pattern.permute.xlu0 2
      %1922 = vperm.xlu0 %1921, %v889
      %v1923 = vpop.permute.xlu0 %1922
      %1925 = vset.pattern.permute.xlu0 2
      %1926 = vperm.xlu0 %1925, %v890
      %v1927 = vpop.permute.xlu0 %1926
      %1929 = vset.pattern.permute.xlu0 2
      %1930 = vperm.xlu0 %1929, %v891
      %v1931 = vpop.permute.xlu0 %1930
      %1933 = vset.pattern.permute.xlu0 2
      %1934 = vperm.xlu0 %1933, %v892
      %v1935 = vpop.permute.xlu0 %1934
      %1937 = vset.pattern.permute.xlu0 2
      %1938 = vperm.xlu0 %1937, %v893
      %v1939 = vpop.permute.xlu0 %1938
      %1941 = vset.pattern.permute.xlu0 2
      %1942 = vperm.xlu0 %1941, %v894
      %v1943 = vpop.permute.xlu0 %1942
      %1945 = vset.pattern.permute.xlu0 2
      %1946 = vperm.xlu0 %1945, %v895
      %v1947 = vpop.permute.xlu0 %1946
      %1949 = vset.pattern.permute.xlu0 2
      %1950 = vperm.xlu0 %1949, %v896
      %v1951 = vpop.permute.xlu0 %1950
      %1953 = vset.pattern.permute.xlu0 2
      %1954 = vperm.xlu0 %1953, %v897
      %v1955 = vpop.permute.xlu0 %1954
      %1957 = vset.pattern.permute.xlu0 2
      %1958 = vperm.xlu0 %1957, %v898
      %v1959 = vpop.permute.xlu0 %1958
      %1961 = vset.pattern.permute.xlu0 2
      %1962 = vperm.xlu0 %1961, %v899
      %v1963 = vpop.permute.xlu0 %1962
      %1965 = vset.pattern.permute.xlu0 2
      %1966 = vperm.xlu0 %1965, %v900
      %v1967 = vpop.permute.xlu0 %1966
      %1969 = vset.pattern.permute.xlu0 2
      %1970 = vperm.xlu0 %1969, %v901
      %v1971 = vpop.permute.xlu0 %1970
      %1973 = vset.pattern.permute.xlu0 2
      %1974 = vperm.xlu0 %1973, %v902
      %v1975 = vpop.permute.xlu0 %1974
      %v1977 = vmul.f32 %v1915, %v919
      %v1978 = vmul.f32 %v1919, %v920
      %v1979 = vmul.f32 %v1923, %v921
      %v1980 = vmul.f32 %v1927, %v922
      %v1981 = vmul.f32 %v1931, %v923
      %v1982 = vmul.f32 %v1935, %v924
      %v1983 = vmul.f32 %v1939, %v925
      %v1984 = vmul.f32 %v1943, %v926
      %v1985 = vmul.f32 %v1947, %v927
      %v1986 = vmul.f32 %v1951, %v928
      %v1987 = vmul.f32 %v1955, %v929
      %v1988 = vmul.f32 %v1959, %v930
      %v1989 = vmul.f32 %v1963, %v931
      %v1990 = vmul.f32 %v1967, %v932
      %v1991 = vmul.f32 %v1971, %v933
      %v1992 = vmul.f32 %v1975, %v934
      %v1993 = vsub.f32 %v1897, %v1977
      %v1994 = vsub.f32 %v1898, %v1978
      %v1995 = vsub.f32 %v1899, %v1979
      %v1996 = vsub.f32 %v1900, %v1980
      %v1997 = vsub.f32 %v1901, %v1981
      %v1998 = vsub.f32 %v1902, %v1982
      %v1999 = vsub.f32 %v1903, %v1983
      %v2000 = vsub.f32 %v1904, %v1984
      %v2001 = vsub.f32 %v1905, %v1985
      %v2002 = vsub.f32 %v1906, %v1986
      %v2003 = vsub.f32 %v1907, %v1987
      %v2004 = vsub.f32 %v1908, %v1988
      %v2005 = vsub.f32 %v1909, %v1989
      %v2006 = vsub.f32 %v1910, %v1990
      %v2007 = vsub.f32 %v1911, %v1991
      %v2008 = vsub.f32 %v1912, %v1992
      %v2009 = vpack.c.bf16 %v1994, %v1993
      %v2010 = vpack.c.bf16 %v1996, %v1995
      %v2011 = vpack.c.bf16 %v1998, %v1997
      %v2012 = vpack.c.bf16 %v2000, %v1999
      %v2013 = vpack.c.bf16 %v2002, %v2001
      %v2014 = vpack.c.bf16 %v2004, %v2003
      %v2015 = vpack.c.bf16 %v2006, %v2005
      %v2016 = vpack.c.bf16 %v2008, %v2007
      %v2025 = vunpack.c.l.b16 %v2009
      %v2026 = vunpack.c.h.b16 %v2009
      %v2027 = vunpack.c.l.b16 %v2010
      %v2028 = vunpack.c.h.b16 %v2010
      %v2029 = vunpack.c.l.b16 %v2011
      %v2030 = vunpack.c.h.b16 %v2011
      %v2031 = vunpack.c.l.b16 %v2012
      %v2032 = vunpack.c.h.b16 %v2012
      %v2033 = vunpack.c.l.b16 %v2013
      %v2034 = vunpack.c.h.b16 %v2013
      %v2035 = vunpack.c.l.b16 %v2014
      %v2036 = vunpack.c.h.b16 %v2014
      %v2037 = vunpack.c.l.b16 %v2015
      %v2038 = vunpack.c.h.b16 %v2015
      %v2039 = vunpack.c.l.b16 %v2016
      %v2040 = vunpack.c.h.b16 %v2016
      %v2041 = vpack.c.b16 %v2025, %v2025
      %v2042 = vpack.c.b16 %v2026, %v2026
      %v2043 = vpack.c.b16 %v2027, %v2027
      %v2044 = vpack.c.b16 %v2028, %v2028
      %v2045 = vpack.c.b16 %v2029, %v2029
      %v2046 = vpack.c.b16 %v2030, %v2030
      %v2047 = vpack.c.b16 %v2031, %v2031
      %v2048 = vpack.c.b16 %v2032, %v2032
      %v2049 = vpack.c.b16 %v2033, %v2033
      %v2050 = vpack.c.b16 %v2034, %v2034
      %v2051 = vpack.c.b16 %v2035, %v2035
      %v2052 = vpack.c.b16 %v2036, %v2036
      %v2053 = vpack.c.b16 %v2037, %v2037
      %v2054 = vpack.c.b16 %v2038, %v2038
      %v2055 = vpack.c.b16 %v2039, %v2039
      %v2056 = vpack.c.b16 %v2040, %v2040
      %2057 = vrot.lane.b32.xlu0 %v2041, 32
      %v2058 = vpop.permute.xlu0 %2057
      %2059 = vrot.lane.b32.xlu0 %v2042, 32
      %v2060 = vpop.permute.xlu0 %2059
      %2061 = vrot.lane.b32.xlu0 %v2043, 32
      %v2062 = vpop.permute.xlu0 %2061
      %2063 = vrot.lane.b32.xlu0 %v2044, 32
      %v2064 = vpop.permute.xlu0 %2063
      %2065 = vrot.lane.b32.xlu0 %v2045, 32
      %v2066 = vpop.permute.xlu0 %2065
      %2067 = vrot.lane.b32.xlu0 %v2046, 32
      %v2068 = vpop.permute.xlu0 %2067
      %2069 = vrot.lane.b32.xlu0 %v2047, 32
      %v2070 = vpop.permute.xlu0 %2069
      %2071 = vrot.lane.b32.xlu0 %v2048, 32
      %v2072 = vpop.permute.xlu0 %2071
      %2073 = vrot.lane.b32.xlu0 %v2049, 32
      %v2074 = vpop.permute.xlu0 %2073
      %2075 = vrot.lane.b32.xlu0 %v2050, 32
      %v2076 = vpop.permute.xlu0 %2075
      %2077 = vrot.lane.b32.xlu0 %v2051, 32
      %v2078 = vpop.permute.xlu0 %2077
      %2079 = vrot.lane.b32.xlu0 %v2052, 32
      %v2080 = vpop.permute.xlu0 %2079
      %2081 = vrot.lane.b32.xlu0 %v2053, 32
      %v2082 = vpop.permute.xlu0 %2081
      %2083 = vrot.lane.b32.xlu0 %v2054, 32
      %v2084 = vpop.permute.xlu0 %2083
      %2085 = vrot.lane.b32.xlu0 %v2055, 32
      %v2086 = vpop.permute.xlu0 %2085
      %2087 = vrot.lane.b32.xlu0 %v2056, 32
      %v2088 = vpop.permute.xlu0 %2087
      %vm2105 = vcmask 388352
      %2106 = vst.msk [vmem:[#allocation4] sm:$0xf] %vm2105, %v2058
      %2107 = vst.msk [vmem:[#allocation4 + $0x8] sm:$0xf] %vm2105, %v2060
      %2108 = vst.msk [vmem:[#allocation4 + $0x10] sm:$0xf] %vm2105, %v2062
      %2109 = vst.msk [vmem:[#allocation4 + $0x18] sm:$0xf] %vm2105, %v2064
      %2110 = vst.msk [vmem:[#allocation4 + $0x20] sm:$0xf] %vm2105, %v2066
      %2111 = vst.msk [vmem:[#allocation4 + $0x28] sm:$0xf] %vm2105, %v2068
      %2112 = vst.msk [vmem:[#allocation4 + $0x30] sm:$0xf] %vm2105, %v2070
      %2113 = vst.msk [vmem:[#allocation4 + $0x38] sm:$0xf] %vm2105, %v2072
      %2114 = vst.msk [vmem:[#allocation4 + $0x40] sm:$0xf] %vm2105, %v2074
      %2115 = vst.msk [vmem:[#allocation4 + $0x48] sm:$0xf] %vm2105, %v2076
      %2116 = vst.msk [vmem:[#allocation4 + $0x50] sm:$0xf] %vm2105, %v2078
      %2117 = vst.msk [vmem:[#allocation4 + $0x58] sm:$0xf] %vm2105, %v2080
      %2118 = vst.msk [vmem:[#allocation4 + $0x60] sm:$0xf] %vm2105, %v2082
      %2119 = vst.msk [vmem:[#allocation4 + $0x68] sm:$0xf] %vm2105, %v2084
      %2120 = vst.msk [vmem:[#allocation4 + $0x70] sm:$0xf] %vm2105, %v2086
      %2121 = vst.msk [vmem:[#allocation4 + $0x78] sm:$0xf] %vm2105, %v2088
      %v2122 = vmul.f32 %v1915, %v903
      %v2123 = vmul.f32 %v1919, %v904
      %v2124 = vmul.f32 %v1923, %v905
      %v2125 = vmul.f32 %v1927, %v906
      %v2126 = vmul.f32 %v1931, %v907
      %v2127 = vmul.f32 %v1935, %v908
      %v2128 = vmul.f32 %v1939, %v909
      %v2129 = vmul.f32 %v1943, %v910
      %v2130 = vmul.f32 %v1947, %v911
      %v2131 = vmul.f32 %v1951, %v912
      %v2132 = vmul.f32 %v1955, %v913
      %v2133 = vmul.f32 %v1959, %v914
      %v2134 = vmul.f32 %v1963, %v915
      %v2135 = vmul.f32 %v1967, %v916
      %v2136 = vmul.f32 %v1971, %v917
      %v2137 = vmul.f32 %v1975, %v918
      %v2138 = vmul.f32 %v1835, %v919
      %v2139 = vmul.f32 %v1839, %v920
      %v2140 = vmul.f32 %v1843, %v921
      %v2141 = vmul.f32 %v1847, %v922
      %v2142 = vmul.f32 %v1851, %v923
      %v2143 = vmul.f32 %v1855, %v924
      %v2144 = vmul.f32 %v1859, %v925
      %v2145 = vmul.f32 %v1863, %v926
      %v2146 = vmul.f32 %v1867, %v927
      %v2147 = vmul.f32 %v1871, %v928
      %v2148 = vmul.f32 %v1875, %v929
      %v2149 = vmul.f32 %v1879, %v930
      %v2150 = vmul.f32 %v1883, %v931
      %v2151 = vmul.f32 %v1887, %v932
      %v2152 = vmul.f32 %v1891, %v933
      %v2153 = vmul.f32 %v1895, %v934
      %v2154 = vadd.f32 %v2122, %v2138
      %v2155 = vadd.f32 %v2123, %v2139
      %v2156 = vadd.f32 %v2124, %v2140
      %v2157 = vadd.f32 %v2125, %v2141
      %v2158 = vadd.f32 %v2126, %v2142
      %v2159 = vadd.f32 %v2127, %v2143
      %v2160 = vadd.f32 %v2128, %v2144
      %v2161 = vadd.f32 %v2129, %v2145
      %v2162 = vadd.f32 %v2130, %v2146
      %v2163 = vadd.f32 %v2131, %v2147
      %v2164 = vadd.f32 %v2132, %v2148
      %v2165 = vadd.f32 %v2133, %v2149
      %v2166 = vadd.f32 %v2134, %v2150
      %v2167 = vadd.f32 %v2135, %v2151
      %v2168 = vadd.f32 %v2136, %v2152
      %v2169 = vadd.f32 %v2137, %v2153
      %v2170 = vsub.f32 0.0, %v2154
      %v2171 = vsub.f32 0.0, %v2155
      %v2172 = vsub.f32 0.0, %v2156
      %v2173 = vsub.f32 0.0, %v2157
      %v2174 = vsub.f32 0.0, %v2158
      %v2175 = vsub.f32 0.0, %v2159
      %v2176 = vsub.f32 0.0, %v2160
      %v2177 = vsub.f32 0.0, %v2161
      %v2178 = vsub.f32 0.0, %v2162
      %v2179 = vsub.f32 0.0, %v2163
      %v2180 = vsub.f32 0.0, %v2164
      %v2181 = vsub.f32 0.0, %v2165
      %v2182 = vsub.f32 0.0, %v2166
      %v2183 = vsub.f32 0.0, %v2167
      %v2184 = vsub.f32 0.0, %v2168
      %v2185 = vsub.f32 0.0, %v2169
      %v2186 = vpack.c.bf16 %v2171, %v2170
      %v2187 = vpack.c.bf16 %v2173, %v2172
      %v2188 = vpack.c.bf16 %v2175, %v2174
      %v2189 = vpack.c.bf16 %v2177, %v2176
      %v2190 = vpack.c.bf16 %v2179, %v2178
      %v2191 = vpack.c.bf16 %v2181, %v2180
      %v2192 = vpack.c.bf16 %v2183, %v2182
      %v2193 = vpack.c.bf16 %v2185, %v2184
      %v2202 = vunpack.c.l.b16 %v2186
      %v2203 = vunpack.c.h.b16 %v2186
      %v2204 = vunpack.c.l.b16 %v2187
      %v2205 = vunpack.c.h.b16 %v2187
      %v2206 = vunpack.c.l.b16 %v2188
      %v2207 = vunpack.c.h.b16 %v2188
      %v2208 = vunpack.c.l.b16 %v2189
      %v2209 = vunpack.c.h.b16 %v2189
      %v2210 = vunpack.c.l.b16 %v2190
      %v2211 = vunpack.c.h.b16 %v2190
      %v2212 = vunpack.c.l.b16 %v2191
      %v2213 = vunpack.c.h.b16 %v2191
      %v2214 = vunpack.c.l.b16 %v2192
      %v2215 = vunpack.c.h.b16 %v2192
      %v2216 = vunpack.c.l.b16 %v2193
      %v2217 = vunpack.c.h.b16 %v2193
      %v2218 = vpack.c.b16 %v2202, %v2202
      %v2219 = vpack.c.b16 %v2203, %v2203
      %v2220 = vpack.c.b16 %v2204, %v2204
      %v2221 = vpack.c.b16 %v2205, %v2205
      %v2222 = vpack.c.b16 %v2206, %v2206
      %v2223 = vpack.c.b16 %v2207, %v2207
      %v2224 = vpack.c.b16 %v2208, %v2208
      %v2225 = vpack.c.b16 %v2209, %v2209
      %v2226 = vpack.c.b16 %v2210, %v2210
      %v2227 = vpack.c.b16 %v2211, %v2211
      %v2228 = vpack.c.b16 %v2212, %v2212
      %v2229 = vpack.c.b16 %v2213, %v2213
      %v2230 = vpack.c.b16 %v2214, %v2214
      %v2231 = vpack.c.b16 %v2215, %v2215
      %v2232 = vpack.c.b16 %v2216, %v2216
      %v2233 = vpack.c.b16 %v2217, %v2217
      %2234 = vrot.lane.b32.xlu0 %v2218, 32
      %v2235 = vpop.permute.xlu0 %2234
      %2236 = vrot.lane.b32.xlu0 %v2219, 32
      %v2237 = vpop.permute.xlu0 %2236
      %2238 = vrot.lane.b32.xlu0 %v2220, 32
      %v2239 = vpop.permute.xlu0 %2238
      %2240 = vrot.lane.b32.xlu0 %v2221, 32
      %v2241 = vpop.permute.xlu0 %2240
      %2242 = vrot.lane.b32.xlu0 %v2222, 32
      %v2243 = vpop.permute.xlu0 %2242
      %2244 = vrot.lane.b32.xlu0 %v2223, 32
      %v2245 = vpop.permute.xlu0 %2244
      %2246 = vrot.lane.b32.xlu0 %v2224, 32
      %v2247 = vpop.permute.xlu0 %2246
      %2248 = vrot.lane.b32.xlu0 %v2225, 32
      %v2249 = vpop.permute.xlu0 %2248
      %2250 = vrot.lane.b32.xlu0 %v2226, 32
      %v2251 = vpop.permute.xlu0 %2250
      %2252 = vrot.lane.b32.xlu0 %v2227, 32
      %v2253 = vpop.permute.xlu0 %2252
      %2254 = vrot.lane.b32.xlu0 %v2228, 32
      %v2255 = vpop.permute.xlu0 %2254
      %2256 = vrot.lane.b32.xlu0 %v2229, 32
      %v2257 = vpop.permute.xlu0 %2256
      %2258 = vrot.lane.b32.xlu0 %v2230, 32
      %v2259 = vpop.permute.xlu0 %2258
      %2260 = vrot.lane.b32.xlu0 %v2231, 32
      %v2261 = vpop.permute.xlu0 %2260
      %2262 = vrot.lane.b32.xlu0 %v2232, 32
      %v2263 = vpop.permute.xlu0 %2262
      %2264 = vrot.lane.b32.xlu0 %v2233, 32
      %v2265 = vpop.permute.xlu0 %2264
      %2282 = vst.msk [vmem:[#allocation5] sm:$0xf] %vm2105, %v2235
      %2283 = vst.msk [vmem:[#allocation5 + $0x8] sm:$0xf] %vm2105, %v2237
      %2284 = vst.msk [vmem:[#allocation5 + $0x10] sm:$0xf] %vm2105, %v2239
      %2285 = vst.msk [vmem:[#allocation5 + $0x18] sm:$0xf] %vm2105, %v2241
      %2286 = vst.msk [vmem:[#allocation5 + $0x20] sm:$0xf] %vm2105, %v2243
      %2287 = vst.msk [vmem:[#allocation5 + $0x28] sm:$0xf] %vm2105, %v2245
      %2288 = vst.msk [vmem:[#allocation5 + $0x30] sm:$0xf] %vm2105, %v2247
      %2289 = vst.msk [vmem:[#allocation5 + $0x38] sm:$0xf] %vm2105, %v2249
      %2290 = vst.msk [vmem:[#allocation5 + $0x40] sm:$0xf] %vm2105, %v2251
      %2291 = vst.msk [vmem:[#allocation5 + $0x48] sm:$0xf] %vm2105, %v2253
      %2292 = vst.msk [vmem:[#allocation5 + $0x50] sm:$0xf] %vm2105, %v2255
      %2293 = vst.msk [vmem:[#allocation5 + $0x58] sm:$0xf] %vm2105, %v2257
      %2294 = vst.msk [vmem:[#allocation5 + $0x60] sm:$0xf] %vm2105, %v2259
      %2295 = vst.msk [vmem:[#allocation5 + $0x68] sm:$0xf] %vm2105, %v2261
      %2296 = vst.msk [vmem:[#allocation5 + $0x70] sm:$0xf] %vm2105, %v2263
      %2297 = vst.msk [vmem:[#allocation5 + $0x78] sm:$0xf] %vm2105, %v2265
      %2298 = vset.pattern.permute.xlu0 3
      %2299 = vperm.xlu0 %2298, %v871
      %v2300 = vpop.permute.xlu0 %2299
      %2302 = vset.pattern.permute.xlu0 3
      %2303 = vperm.xlu0 %2302, %v872
      %v2304 = vpop.permute.xlu0 %2303
      %2306 = vset.pattern.permute.xlu0 3
      %2307 = vperm.xlu0 %2306, %v873
      %v2308 = vpop.permute.xlu0 %2307
      %2310 = vset.pattern.permute.xlu0 3
      %2311 = vperm.xlu0 %2310, %v874
      %v2312 = vpop.permute.xlu0 %2311
      %2314 = vset.pattern.permute.xlu0 3
      %2315 = vperm.xlu0 %2314, %v875
      %v2316 = vpop.permute.xlu0 %2315
      %2318 = vset.pattern.permute.xlu0 3
      %2319 = vperm.xlu0 %2318, %v876
      %v2320 = vpop.permute.xlu0 %2319
      %2322 = vset.pattern.permute.xlu0 3
      %2323 = vperm.xlu0 %2322, %v877
      %v2324 = vpop.permute.xlu0 %2323
      %2326 = vset.pattern.permute.xlu0 3
      %2327 = vperm.xlu0 %2326, %v878
      %v2328 = vpop.permute.xlu0 %2327
      %2330 = vset.pattern.permute.xlu0 3
      %2331 = vperm.xlu0 %2330, %v879
      %v2332 = vpop.permute.xlu0 %2331
      %2334 = vset.pattern.permute.xlu0 3
      %2335 = vperm.xlu0 %2334, %v880
      %v2336 = vpop.permute.xlu0 %2335
      %2338 = vset.pattern.permute.xlu0 3
      %2339 = vperm.xlu0 %2338, %v881
      %v2340 = vpop.permute.xlu0 %2339
      %2342 = vset.pattern.permute.xlu0 3
      %2343 = vperm.xlu0 %2342, %v882
      %v2344 = vpop.permute.xlu0 %2343
      %2346 = vset.pattern.permute.xlu0 3
      %2347 = vperm.xlu0 %2346, %v883
      %v2348 = vpop.permute.xlu0 %2347
      %2350 = vset.pattern.permute.xlu0 3
      %2351 = vperm.xlu0 %2350, %v884
      %v2352 = vpop.permute.xlu0 %2351
      %2354 = vset.pattern.permute.xlu0 3
      %2355 = vperm.xlu0 %2354, %v885
      %v2356 = vpop.permute.xlu0 %2355
      %2358 = vset.pattern.permute.xlu0 3
      %2359 = vperm.xlu0 %2358, %v886
      %v2360 = vpop.permute.xlu0 %2359
      %v2362 = vmul.f32 %v2300, %v903
      %v2363 = vmul.f32 %v2304, %v904
      %v2364 = vmul.f32 %v2308, %v905
      %v2365 = vmul.f32 %v2312, %v906
      %v2366 = vmul.f32 %v2316, %v907
      %v2367 = vmul.f32 %v2320, %v908
      %v2368 = vmul.f32 %v2324, %v909
      %v2369 = vmul.f32 %v2328, %v910
      %v2370 = vmul.f32 %v2332, %v911
      %v2371 = vmul.f32 %v2336, %v912
      %v2372 = vmul.f32 %v2340, %v913
      %v2373 = vmul.f32 %v2344, %v914
      %v2374 = vmul.f32 %v2348, %v915
      %v2375 = vmul.f32 %v2352, %v916
      %v2376 = vmul.f32 %v2356, %v917
      %v2377 = vmul.f32 %v2360, %v918
      %2378 = vset.pattern.permute.xlu0 3
      %2379 = vperm.xlu0 %2378, %v887
      %v2380 = vpop.permute.xlu0 %2379
      %2382 = vset.pattern.permute.xlu0 3
      %2383 = vperm.xlu0 %2382, %v888
      %v2384 = vpop.permute.xlu0 %2383
      %2386 = vset.pattern.permute.xlu0 3
      %2387 = vperm.xlu0 %2386, %v889
      %v2388 = vpop.permute.xlu0 %2387
      %2390 = vset.pattern.permute.xlu0 3
      %2391 = vperm.xlu0 %2390, %v890
      %v2392 = vpop.permute.xlu0 %2391
      %2394 = vset.pattern.permute.xlu0 3
      %2395 = vperm.xlu0 %2394, %v891
      %v2396 = vpop.permute.xlu0 %2395
      %2398 = vset.pattern.permute.xlu0 3
      %2399 = vperm.xlu0 %2398, %v892
      %v2400 = vpop.permute.xlu0 %2399
      %2402 = vset.pattern.permute.xlu0 3
      %2403 = vperm.xlu0 %2402, %v893
      %v2404 = vpop.permute.xlu0 %2403
      %2406 = vset.pattern.permute.xlu0 3
      %2407 = vperm.xlu0 %2406, %v894
      %v2408 = vpop.permute.xlu0 %2407
      %2410 = vset.pattern.permute.xlu0 3
      %2411 = vperm.xlu0 %2410, %v895
      %v2412 = vpop.permute.xlu0 %2411
      %2414 = vset.pattern.permute.xlu0 3
      %2415 = vperm.xlu0 %2414, %v896
      %v2416 = vpop.permute.xlu0 %2415
      %2418 = vset.pattern.permute.xlu0 3
      %2419 = vperm.xlu0 %2418, %v897
      %v2420 = vpop.permute.xlu0 %2419
      %2422 = vset.pattern.permute.xlu0 3
      %2423 = vperm.xlu0 %2422, %v898
      %v2424 = vpop.permute.xlu0 %2423
      %2426 = vset.pattern.permute.xlu0 3
      %2427 = vperm.xlu0 %2426, %v899
      %v2428 = vpop.permute.xlu0 %2427
      %2430 = vset.pattern.permute.xlu0 3
      %2431 = vperm.xlu0 %2430, %v900
      %v2432 = vpop.permute.xlu0 %2431
      %2434 = vset.pattern.permute.xlu0 3
      %2435 = vperm.xlu0 %2434, %v901
      %v2436 = vpop.permute.xlu0 %2435
      %2438 = vset.pattern.permute.xlu0 3
      %2439 = vperm.xlu0 %2438, %v902
      %v2440 = vpop.permute.xlu0 %2439
      %v2442 = vmul.f32 %v2380, %v919
      %v2443 = vmul.f32 %v2384, %v920
      %v2444 = vmul.f32 %v2388, %v921
      %v2445 = vmul.f32 %v2392, %v922
      %v2446 = vmul.f32 %v2396, %v923
      %v2447 = vmul.f32 %v2400, %v924
      %v2448 = vmul.f32 %v2404, %v925
      %v2449 = vmul.f32 %v2408, %v926
      %v2450 = vmul.f32 %v2412, %v927
      %v2451 = vmul.f32 %v2416, %v928
      %v2452 = vmul.f32 %v2420, %v929
      %v2453 = vmul.f32 %v2424, %v930
      %v2454 = vmul.f32 %v2428, %v931
      %v2455 = vmul.f32 %v2432, %v932
      %v2456 = vmul.f32 %v2436, %v933
      %v2457 = vmul.f32 %v2440, %v934
      %v2458 = vsub.f32 %v2362, %v2442
      %v2459 = vsub.f32 %v2363, %v2443
      %v2460 = vsub.f32 %v2364, %v2444
      %v2461 = vsub.f32 %v2365, %v2445
      %v2462 = vsub.f32 %v2366, %v2446
      %v2463 = vsub.f32 %v2367, %v2447
      %v2464 = vsub.f32 %v2368, %v2448
      %v2465 = vsub.f32 %v2369, %v2449
      %v2466 = vsub.f32 %v2370, %v2450
      %v2467 = vsub.f32 %v2371, %v2451
      %v2468 = vsub.f32 %v2372, %v2452
      %v2469 = vsub.f32 %v2373, %v2453
      %v2470 = vsub.f32 %v2374, %v2454
      %v2471 = vsub.f32 %v2375, %v2455
      %v2472 = vsub.f32 %v2376, %v2456
      %v2473 = vsub.f32 %v2377, %v2457
      %v2474 = vpack.c.bf16 %v2459, %v2458
      %v2475 = vpack.c.bf16 %v2461, %v2460
      %v2476 = vpack.c.bf16 %v2463, %v2462
      %v2477 = vpack.c.bf16 %v2465, %v2464
      %v2478 = vpack.c.bf16 %v2467, %v2466
      %v2479 = vpack.c.bf16 %v2469, %v2468
      %v2480 = vpack.c.bf16 %v2471, %v2470
      %v2481 = vpack.c.bf16 %v2473, %v2472
      %v2490 = vunpack.c.l.b16 %v2474
      %v2491 = vunpack.c.h.b16 %v2474
      %v2492 = vunpack.c.l.b16 %v2475
      %v2493 = vunpack.c.h.b16 %v2475
      %v2494 = vunpack.c.l.b16 %v2476
      %v2495 = vunpack.c.h.b16 %v2476
      %v2496 = vunpack.c.l.b16 %v2477
      %v2497 = vunpack.c.h.b16 %v2477
      %v2498 = vunpack.c.l.b16 %v2478
      %v2499 = vunpack.c.h.b16 %v2478
      %v2500 = vunpack.c.l.b16 %v2479
      %v2501 = vunpack.c.h.b16 %v2479
      %v2502 = vunpack.c.l.b16 %v2480
      %v2503 = vunpack.c.h.b16 %v2480
      %v2504 = vunpack.c.l.b16 %v2481
      %v2505 = vunpack.c.h.b16 %v2481
      %v2506 = vpack.c.b16 %v2490, %v2490
      %v2507 = vpack.c.b16 %v2491, %v2491
      %v2508 = vpack.c.b16 %v2492, %v2492
      %v2509 = vpack.c.b16 %v2493, %v2493
      %v2510 = vpack.c.b16 %v2494, %v2494
      %v2511 = vpack.c.b16 %v2495, %v2495
      %v2512 = vpack.c.b16 %v2496, %v2496
      %v2513 = vpack.c.b16 %v2497, %v2497
      %v2514 = vpack.c.b16 %v2498, %v2498
      %v2515 = vpack.c.b16 %v2499, %v2499
      %v2516 = vpack.c.b16 %v2500, %v2500
      %v2517 = vpack.c.b16 %v2501, %v2501
      %v2518 = vpack.c.b16 %v2502, %v2502
      %v2519 = vpack.c.b16 %v2503, %v2503
      %v2520 = vpack.c.b16 %v2504, %v2504
      %v2521 = vpack.c.b16 %v2505, %v2505
      %2522 = vrot.lane.b32.xlu0 %v2506, 48
      %v2523 = vpop.permute.xlu0 %2522
      %2524 = vrot.lane.b32.xlu0 %v2507, 48
      %v2525 = vpop.permute.xlu0 %2524
      %2526 = vrot.lane.b32.xlu0 %v2508, 48
      %v2527 = vpop.permute.xlu0 %2526
      %2528 = vrot.lane.b32.xlu0 %v2509, 48
      %v2529 = vpop.permute.xlu0 %2528
      %2530 = vrot.lane.b32.xlu0 %v2510, 48
      %v2531 = vpop.permute.xlu0 %2530
      %2532 = vrot.lane.b32.xlu0 %v2511, 48
      %v2533 = vpop.permute.xlu0 %2532
      %2534 = vrot.lane.b32.xlu0 %v2512, 48
      %v2535 = vpop.permute.xlu0 %2534
      %2536 = vrot.lane.b32.xlu0 %v2513, 48
      %v2537 = vpop.permute.xlu0 %2536
      %2538 = vrot.lane.b32.xlu0 %v2514, 48
      %v2539 = vpop.permute.xlu0 %2538
      %2540 = vrot.lane.b32.xlu0 %v2515, 48
      %v2541 = vpop.permute.xlu0 %2540
      %2542 = vrot.lane.b32.xlu0 %v2516, 48
      %v2543 = vpop.permute.xlu0 %2542
      %2544 = vrot.lane.b32.xlu0 %v2517, 48
      %v2545 = vpop.permute.xlu0 %2544
      %2546 = vrot.lane.b32.xlu0 %v2518, 48
      %v2547 = vpop.permute.xlu0 %2546
      %2548 = vrot.lane.b32.xlu0 %v2519, 48
      %v2549 = vpop.permute.xlu0 %2548
      %2550 = vrot.lane.b32.xlu0 %v2520, 48
      %v2551 = vpop.permute.xlu0 %2550
      %2552 = vrot.lane.b32.xlu0 %v2521, 48
      %v2553 = vpop.permute.xlu0 %2552
      %vm2570 = vcmask 519552
      %2571 = vst.msk [vmem:[#allocation4] sm:$0xf] %vm2570, %v2523
      %2572 = vst.msk [vmem:[#allocation4 + $0x8] sm:$0xf] %vm2570, %v2525
      %2573 = vst.msk [vmem:[#allocation4 + $0x10] sm:$0xf] %vm2570, %v2527
      %2574 = vst.msk [vmem:[#allocation4 + $0x18] sm:$0xf] %vm2570, %v2529
      %2575 = vst.msk [vmem:[#allocation4 + $0x20] sm:$0xf] %vm2570, %v2531
      %2576 = vst.msk [vmem:[#allocation4 + $0x28] sm:$0xf] %vm2570, %v2533
      %2577 = vst.msk [vmem:[#allocation4 + $0x30] sm:$0xf] %vm2570, %v2535
      %2578 = vst.msk [vmem:[#allocation4 + $0x38] sm:$0xf] %vm2570, %v2537
      %2579 = vst.msk [vmem:[#allocation4 + $0x40] sm:$0xf] %vm2570, %v2539
      %2580 = vst.msk [vmem:[#allocation4 + $0x48] sm:$0xf] %vm2570, %v2541
      %2581 = vst.msk [vmem:[#allocation4 + $0x50] sm:$0xf] %vm2570, %v2543
      %2582 = vst.msk [vmem:[#allocation4 + $0x58] sm:$0xf] %vm2570, %v2545
      %2583 = vst.msk [vmem:[#allocation4 + $0x60] sm:$0xf] %vm2570, %v2547
      %2584 = vst.msk [vmem:[#allocation4 + $0x68] sm:$0xf] %vm2570, %v2549
      %2585 = vst.msk [vmem:[#allocation4 + $0x70] sm:$0xf] %vm2570, %v2551
      %2586 = vst.msk [vmem:[#allocation4 + $0x78] sm:$0xf] %vm2570, %v2553
      %v2587 = vmul.f32 %v2380, %v903
      %v2588 = vmul.f32 %v2384, %v904
      %v2589 = vmul.f32 %v2388, %v905
      %v2590 = vmul.f32 %v2392, %v906
      %v2591 = vmul.f32 %v2396, %v907
      %v2592 = vmul.f32 %v2400, %v908
      %v2593 = vmul.f32 %v2404, %v909
      %v2594 = vmul.f32 %v2408, %v910
      %v2595 = vmul.f32 %v2412, %v911
      %v2596 = vmul.f32 %v2416, %v912
      %v2597 = vmul.f32 %v2420, %v913
      %v2598 = vmul.f32 %v2424, %v914
      %v2599 = vmul.f32 %v2428, %v915
      %v2600 = vmul.f32 %v2432, %v916
      %v2601 = vmul.f32 %v2436, %v917
      %v2602 = vmul.f32 %v2440, %v918
      %v2603 = vmul.f32 %v2300, %v919
      %v2604 = vmul.f32 %v2304, %v920
      %v2605 = vmul.f32 %v2308, %v921
      %v2606 = vmul.f32 %v2312, %v922
      %v2607 = vmul.f32 %v2316, %v923
      %v2608 = vmul.f32 %v2320, %v924
      %v2609 = vmul.f32 %v2324, %v925
      %v2610 = vmul.f32 %v2328, %v926
      %v2611 = vmul.f32 %v2332, %v927
      %v2612 = vmul.f32 %v2336, %v928
      %v2613 = vmul.f32 %v2340, %v929
      %v2614 = vmul.f32 %v2344, %v930
      %v2615 = vmul.f32 %v2348, %v931
      %v2616 = vmul.f32 %v2352, %v932
      %v2617 = vmul.f32 %v2356, %v933
      %v2618 = vmul.f32 %v2360, %v934
      %v2619 = vadd.f32 %v2587, %v2603
      %v2620 = vadd.f32 %v2588, %v2604
      %v2621 = vadd.f32 %v2589, %v2605
      %v2622 = vadd.f32 %v2590, %v2606
      %v2623 = vadd.f32 %v2591, %v2607
      %v2624 = vadd.f32 %v2592, %v2608
      %v2625 = vadd.f32 %v2593, %v2609
      %v2626 = vadd.f32 %v2594, %v2610
      %v2627 = vadd.f32 %v2595, %v2611
      %v2628 = vadd.f32 %v2596, %v2612
      %v2629 = vadd.f32 %v2597, %v2613
      %v2630 = vadd.f32 %v2598, %v2614
      %v2631 = vadd.f32 %v2599, %v2615
      %v2632 = vadd.f32 %v2600, %v2616
      %v2633 = vadd.f32 %v2601, %v2617
      %v2634 = vadd.f32 %v2602, %v2618
      %v2635 = vsub.f32 0.0, %v2619
      %v2636 = vsub.f32 0.0, %v2620
      %v2637 = vsub.f32 0.0, %v2621
      %v2638 = vsub.f32 0.0, %v2622
      %v2639 = vsub.f32 0.0, %v2623
      %v2640 = vsub.f32 0.0, %v2624
      %v2641 = vsub.f32 0.0, %v2625
      %v2642 = vsub.f32 0.0, %v2626
      %v2643 = vsub.f32 0.0, %v2627
      %v2644 = vsub.f32 0.0, %v2628
      %v2645 = vsub.f32 0.0, %v2629
      %v2646 = vsub.f32 0.0, %v2630
      %v2647 = vsub.f32 0.0, %v2631
      %v2648 = vsub.f32 0.0, %v2632
      %v2649 = vsub.f32 0.0, %v2633
      %v2650 = vsub.f32 0.0, %v2634
      %v2651 = vpack.c.bf16 %v2636, %v2635
      %v2652 = vpack.c.bf16 %v2638, %v2637
      %v2653 = vpack.c.bf16 %v2640, %v2639
      %v2654 = vpack.c.bf16 %v2642, %v2641
      %v2655 = vpack.c.bf16 %v2644, %v2643
      %v2656 = vpack.c.bf16 %v2646, %v2645
      %v2657 = vpack.c.bf16 %v2648, %v2647
      %v2658 = vpack.c.bf16 %v2650, %v2649
      %v2667 = vunpack.c.l.b16 %v2651
      %v2668 = vunpack.c.h.b16 %v2651
      %v2669 = vunpack.c.l.b16 %v2652
      %v2670 = vunpack.c.h.b16 %v2652
      %v2671 = vunpack.c.l.b16 %v2653
      %v2672 = vunpack.c.h.b16 %v2653
      %v2673 = vunpack.c.l.b16 %v2654
      %v2674 = vunpack.c.h.b16 %v2654
      %v2675 = vunpack.c.l.b16 %v2655
      %v2676 = vunpack.c.h.b16 %v2655
      %v2677 = vunpack.c.l.b16 %v2656
      %v2678 = vunpack.c.h.b16 %v2656
      %v2679 = vunpack.c.l.b16 %v2657
      %v2680 = vunpack.c.h.b16 %v2657
      %v2681 = vunpack.c.l.b16 %v2658
      %v2682 = vunpack.c.h.b16 %v2658
      %v2683 = vpack.c.b16 %v2667, %v2667
      %v2684 = vpack.c.b16 %v2668, %v2668
      %v2685 = vpack.c.b16 %v2669, %v2669
      %v2686 = vpack.c.b16 %v2670, %v2670
      %v2687 = vpack.c.b16 %v2671, %v2671
      %v2688 = vpack.c.b16 %v2672, %v2672
      %v2689 = vpack.c.b16 %v2673, %v2673
      %v2690 = vpack.c.b16 %v2674, %v2674
      %v2691 = vpack.c.b16 %v2675, %v2675
      %v2692 = vpack.c.b16 %v2676, %v2676
      %v2693 = vpack.c.b16 %v2677, %v2677
      %v2694 = vpack.c.b16 %v2678, %v2678
      %v2695 = vpack.c.b16 %v2679, %v2679
      %v2696 = vpack.c.b16 %v2680, %v2680
      %v2697 = vpack.c.b16 %v2681, %v2681
      %v2698 = vpack.c.b16 %v2682, %v2682
      %2699 = vrot.lane.b32.xlu0 %v2683, 48
      %v2700 = vpop.permute.xlu0 %2699
      %2701 = vrot.lane.b32.xlu0 %v2684, 48
      %v2702 = vpop.permute.xlu0 %2701
      %2703 = vrot.lane.b32.xlu0 %v2685, 48
      %v2704 = vpop.permute.xlu0 %2703
      %2705 = vrot.lane.b32.xlu0 %v2686, 48
      %v2706 = vpop.permute.xlu0 %2705
      %2707 = vrot.lane.b32.xlu0 %v2687, 48
      %v2708 = vpop.permute.xlu0 %2707
      %2709 = vrot.lane.b32.xlu0 %v2688, 48
      %v2710 = vpop.permute.xlu0 %2709
      %2711 = vrot.lane.b32.xlu0 %v2689, 48
      %v2712 = vpop.permute.xlu0 %2711
      %2713 = vrot.lane.b32.xlu0 %v2690, 48
      %v2714 = vpop.permute.xlu0 %2713
      %2715 = vrot.lane.b32.xlu0 %v2691, 48
      %v2716 = vpop.permute.xlu0 %2715
      %2717 = vrot.lane.b32.xlu0 %v2692, 48
      %v2718 = vpop.permute.xlu0 %2717
      %2719 = vrot.lane.b32.xlu0 %v2693, 48
      %v2720 = vpop.permute.xlu0 %2719
      %2721 = vrot.lane.b32.xlu0 %v2694, 48
      %v2722 = vpop.permute.xlu0 %2721
      %2723 = vrot.lane.b32.xlu0 %v2695, 48
      %v2724 = vpop.permute.xlu0 %2723
      %2725 = vrot.lane.b32.xlu0 %v2696, 48
      %v2726 = vpop.permute.xlu0 %2725
      %2727 = vrot.lane.b32.xlu0 %v2697, 48
      %v2728 = vpop.permute.xlu0 %2727
      %2729 = vrot.lane.b32.xlu0 %v2698, 48
      %v2730 = vpop.permute.xlu0 %2729
      %2747 = vst.msk [vmem:[#allocation5] sm:$0xf] %vm2570, %v2700
      %2748 = vst.msk [vmem:[#allocation5 + $0x8] sm:$0xf] %vm2570, %v2702
      %2749 = vst.msk [vmem:[#allocation5 + $0x10] sm:$0xf] %vm2570, %v2704
      %2750 = vst.msk [vmem:[#allocation5 + $0x18] sm:$0xf] %vm2570, %v2706
      %2751 = vst.msk [vmem:[#allocation5 + $0x20] sm:$0xf] %vm2570, %v2708
      %2752 = vst.msk [vmem:[#allocation5 + $0x28] sm:$0xf] %vm2570, %v2710
      %2753 = vst.msk [vmem:[#allocation5 + $0x30] sm:$0xf] %vm2570, %v2712
      %2754 = vst.msk [vmem:[#allocation5 + $0x38] sm:$0xf] %vm2570, %v2714
      %2755 = vst.msk [vmem:[#allocation5 + $0x40] sm:$0xf] %vm2570, %v2716
      %2756 = vst.msk [vmem:[#allocation5 + $0x48] sm:$0xf] %vm2570, %v2718
      %2757 = vst.msk [vmem:[#allocation5 + $0x50] sm:$0xf] %vm2570, %v2720
      %2758 = vst.msk [vmem:[#allocation5 + $0x58] sm:$0xf] %vm2570, %v2722
      %2759 = vst.msk [vmem:[#allocation5 + $0x60] sm:$0xf] %vm2570, %v2724
      %2760 = vst.msk [vmem:[#allocation5 + $0x68] sm:$0xf] %vm2570, %v2726
      %2761 = vst.msk [vmem:[#allocation5 + $0x70] sm:$0xf] %vm2570, %v2728
      %2762 = vst.msk [vmem:[#allocation5 + $0x78] sm:$0xf] %vm2570, %v2730
      %2763 = vset.pattern.permute.xlu0 4
      %2764 = vperm.xlu0 %2763, %v871
      %v2765 = vpop.permute.xlu0 %2764
      %2767 = vset.pattern.permute.xlu0 4
      %2768 = vperm.xlu0 %2767, %v872
      %v2769 = vpop.permute.xlu0 %2768
      %2771 = vset.pattern.permute.xlu0 4
      %2772 = vperm.xlu0 %2771, %v873
      %v2773 = vpop.permute.xlu0 %2772
      %2775 = vset.pattern.permute.xlu0 4
      %2776 = vperm.xlu0 %2775, %v874
      %v2777 = vpop.permute.xlu0 %2776
      %2779 = vset.pattern.permute.xlu0 4
      %2780 = vperm.xlu0 %2779, %v875
      %v2781 = vpop.permute.xlu0 %2780
      %2783 = vset.pattern.permute.xlu0 4
      %2784 = vperm.xlu0 %2783, %v876
      %v2785 = vpop.permute.xlu0 %2784
      %2787 = vset.pattern.permute.xlu0 4
      %2788 = vperm.xlu0 %2787, %v877
      %v2789 = vpop.permute.xlu0 %2788
      %2791 = vset.pattern.permute.xlu0 4
      %2792 = vperm.xlu0 %2791, %v878
      %v2793 = vpop.permute.xlu0 %2792
      %2795 = vset.pattern.permute.xlu0 4
      %2796 = vperm.xlu0 %2795, %v879
      %v2797 = vpop.permute.xlu0 %2796
      %2799 = vset.pattern.permute.xlu0 4
      %2800 = vperm.xlu0 %2799, %v880
      %v2801 = vpop.permute.xlu0 %2800
      %2803 = vset.pattern.permute.xlu0 4
      %2804 = vperm.xlu0 %2803, %v881
      %v2805 = vpop.permute.xlu0 %2804
      %2807 = vset.pattern.permute.xlu0 4
      %2808 = vperm.xlu0 %2807, %v882
      %v2809 = vpop.permute.xlu0 %2808
      %2811 = vset.pattern.permute.xlu0 4
      %2812 = vperm.xlu0 %2811, %v883
      %v2813 = vpop.permute.xlu0 %2812
      %2815 = vset.pattern.permute.xlu0 4
      %2816 = vperm.xlu0 %2815, %v884
      %v2817 = vpop.permute.xlu0 %2816
      %2819 = vset.pattern.permute.xlu0 4
      %2820 = vperm.xlu0 %2819, %v885
      %v2821 = vpop.permute.xlu0 %2820
      %2823 = vset.pattern.permute.xlu0 4
      %2824 = vperm.xlu0 %2823, %v886
      %v2825 = vpop.permute.xlu0 %2824
      %v2827 = vmul.f32 %v2765, %v903
      %v2828 = vmul.f32 %v2769, %v904
      %v2829 = vmul.f32 %v2773, %v905
      %v2830 = vmul.f32 %v2777, %v906
      %v2831 = vmul.f32 %v2781, %v907
      %v2832 = vmul.f32 %v2785, %v908
      %v2833 = vmul.f32 %v2789, %v909
      %v2834 = vmul.f32 %v2793, %v910
      %v2835 = vmul.f32 %v2797, %v911
      %v2836 = vmul.f32 %v2801, %v912
      %v2837 = vmul.f32 %v2805, %v913
      %v2838 = vmul.f32 %v2809, %v914
      %v2839 = vmul.f32 %v2813, %v915
      %v2840 = vmul.f32 %v2817, %v916
      %v2841 = vmul.f32 %v2821, %v917
      %v2842 = vmul.f32 %v2825, %v918
      %2843 = vset.pattern.permute.xlu0 4
      %2844 = vperm.xlu0 %2843, %v887
      %v2845 = vpop.permute.xlu0 %2844
      %2847 = vset.pattern.permute.xlu0 4
      %2848 = vperm.xlu0 %2847, %v888
      %v2849 = vpop.permute.xlu0 %2848
      %2851 = vset.pattern.permute.xlu0 4
      %2852 = vperm.xlu0 %2851, %v889
      %v2853 = vpop.permute.xlu0 %2852
      %2855 = vset.pattern.permute.xlu0 4
      %2856 = vperm.xlu0 %2855, %v890
      %v2857 = vpop.permute.xlu0 %2856
      %2859 = vset.pattern.permute.xlu0 4
      %2860 = vperm.xlu0 %2859, %v891
      %v2861 = vpop.permute.xlu0 %2860
      %2863 = vset.pattern.permute.xlu0 4
      %2864 = vperm.xlu0 %2863, %v892
      %v2865 = vpop.permute.xlu0 %2864
      %2867 = vset.pattern.permute.xlu0 4
      %2868 = vperm.xlu0 %2867, %v893
      %v2869 = vpop.permute.xlu0 %2868
      %2871 = vset.pattern.permute.xlu0 4
      %2872 = vperm.xlu0 %2871, %v894
      %v2873 = vpop.permute.xlu0 %2872
      %2875 = vset.pattern.permute.xlu0 4
      %2876 = vperm.xlu0 %2875, %v895
      %v2877 = vpop.permute.xlu0 %2876
      %2879 = vset.pattern.permute.xlu0 4
      %2880 = vperm.xlu0 %2879, %v896
      %v2881 = vpop.permute.xlu0 %2880
      %2883 = vset.pattern.permute.xlu0 4
      %2884 = vperm.xlu0 %2883, %v897
      %v2885 = vpop.permute.xlu0 %2884
      %2887 = vset.pattern.permute.xlu0 4
      %2888 = vperm.xlu0 %2887, %v898
      %v2889 = vpop.permute.xlu0 %2888
      %2891 = vset.pattern.permute.xlu0 4
      %2892 = vperm.xlu0 %2891, %v899
      %v2893 = vpop.permute.xlu0 %2892
      %2895 = vset.pattern.permute.xlu0 4
      %2896 = vperm.xlu0 %2895, %v900
      %v2897 = vpop.permute.xlu0 %2896
      %2899 = vset.pattern.permute.xlu0 4
      %2900 = vperm.xlu0 %2899, %v901
      %v2901 = vpop.permute.xlu0 %2900
      %2903 = vset.pattern.permute.xlu0 4
      %2904 = vperm.xlu0 %2903, %v902
      %v2905 = vpop.permute.xlu0 %2904
      %v2907 = vmul.f32 %v2845, %v919
      %v2908 = vmul.f32 %v2849, %v920
      %v2909 = vmul.f32 %v2853, %v921
      %v2910 = vmul.f32 %v2857, %v922
      %v2911 = vmul.f32 %v2861, %v923
      %v2912 = vmul.f32 %v2865, %v924
      %v2913 = vmul.f32 %v2869, %v925
      %v2914 = vmul.f32 %v2873, %v926
      %v2915 = vmul.f32 %v2877, %v927
      %v2916 = vmul.f32 %v2881, %v928
      %v2917 = vmul.f32 %v2885, %v929
      %v2918 = vmul.f32 %v2889, %v930
      %v2919 = vmul.f32 %v2893, %v931
      %v2920 = vmul.f32 %v2897, %v932
      %v2921 = vmul.f32 %v2901, %v933
      %v2922 = vmul.f32 %v2905, %v934
      %v2923 = vsub.f32 %v2827, %v2907
      %v2924 = vsub.f32 %v2828, %v2908
      %v2925 = vsub.f32 %v2829, %v2909
      %v2926 = vsub.f32 %v2830, %v2910
      %v2927 = vsub.f32 %v2831, %v2911
      %v2928 = vsub.f32 %v2832, %v2912
      %v2929 = vsub.f32 %v2833, %v2913
      %v2930 = vsub.f32 %v2834, %v2914
      %v2931 = vsub.f32 %v2835, %v2915
      %v2932 = vsub.f32 %v2836, %v2916
      %v2933 = vsub.f32 %v2837, %v2917
      %v2934 = vsub.f32 %v2838, %v2918
      %v2935 = vsub.f32 %v2839, %v2919
      %v2936 = vsub.f32 %v2840, %v2920
      %v2937 = vsub.f32 %v2841, %v2921
      %v2938 = vsub.f32 %v2842, %v2922
      %v2939 = vpack.c.bf16 %v2924, %v2923
      %v2940 = vpack.c.bf16 %v2926, %v2925
      %v2941 = vpack.c.bf16 %v2928, %v2927
      %v2942 = vpack.c.bf16 %v2930, %v2929
      %v2943 = vpack.c.bf16 %v2932, %v2931
      %v2944 = vpack.c.bf16 %v2934, %v2933
      %v2945 = vpack.c.bf16 %v2936, %v2935
      %v2946 = vpack.c.bf16 %v2938, %v2937
      %v2955 = vunpack.c.l.b16 %v2939
      %v2956 = vunpack.c.h.b16 %v2939
      %v2957 = vunpack.c.l.b16 %v2940
      %v2958 = vunpack.c.h.b16 %v2940
      %v2959 = vunpack.c.l.b16 %v2941
      %v2960 = vunpack.c.h.b16 %v2941
      %v2961 = vunpack.c.l.b16 %v2942
      %v2962 = vunpack.c.h.b16 %v2942
      %v2963 = vunpack.c.l.b16 %v2943
      %v2964 = vunpack.c.h.b16 %v2943
      %v2965 = vunpack.c.l.b16 %v2944
      %v2966 = vunpack.c.h.b16 %v2944
      %v2967 = vunpack.c.l.b16 %v2945
      %v2968 = vunpack.c.h.b16 %v2945
      %v2969 = vunpack.c.l.b16 %v2946
      %v2970 = vunpack.c.h.b16 %v2946
      %v2971 = vpack.c.b16 %v2955, %v2955
      %v2972 = vpack.c.b16 %v2956, %v2956
      %v2973 = vpack.c.b16 %v2957, %v2957
      %v2974 = vpack.c.b16 %v2958, %v2958
      %v2975 = vpack.c.b16 %v2959, %v2959
      %v2976 = vpack.c.b16 %v2960, %v2960
      %v2977 = vpack.c.b16 %v2961, %v2961
      %v2978 = vpack.c.b16 %v2962, %v2962
      %v2979 = vpack.c.b16 %v2963, %v2963
      %v2980 = vpack.c.b16 %v2964, %v2964
      %v2981 = vpack.c.b16 %v2965, %v2965
      %v2982 = vpack.c.b16 %v2966, %v2966
      %v2983 = vpack.c.b16 %v2967, %v2967
      %v2984 = vpack.c.b16 %v2968, %v2968
      %v2985 = vpack.c.b16 %v2969, %v2969
      %v2986 = vpack.c.b16 %v2970, %v2970
      %2987 = vrot.lane.b32.xlu0 %v2971, 64
      %v2988 = vpop.permute.xlu0 %2987
      %2989 = vrot.lane.b32.xlu0 %v2972, 64
      %v2990 = vpop.permute.xlu0 %2989
      %2991 = vrot.lane.b32.xlu0 %v2973, 64
      %v2992 = vpop.permute.xlu0 %2991
      %2993 = vrot.lane.b32.xlu0 %v2974, 64
      %v2994 = vpop.permute.xlu0 %2993
      %2995 = vrot.lane.b32.xlu0 %v2975, 64
      %v2996 = vpop.permute.xlu0 %2995
      %2997 = vrot.lane.b32.xlu0 %v2976, 64
      %v2998 = vpop.permute.xlu0 %2997
      %2999 = vrot.lane.b32.xlu0 %v2977, 64
      %v3000 = vpop.permute.xlu0 %2999
      %3001 = vrot.lane.b32.xlu0 %v2978, 64
      %v3002 = vpop.permute.xlu0 %3001
      %3003 = vrot.lane.b32.xlu0 %v2979, 64
      %v3004 = vpop.permute.xlu0 %3003
      %3005 = vrot.lane.b32.xlu0 %v2980, 64
      %v3006 = vpop.permute.xlu0 %3005
      %3007 = vrot.lane.b32.xlu0 %v2981, 64
      %v3008 = vpop.permute.xlu0 %3007
      %3009 = vrot.lane.b32.xlu0 %v2982, 64
      %v3010 = vpop.permute.xlu0 %3009
      %3011 = vrot.lane.b32.xlu0 %v2983, 64
      %v3012 = vpop.permute.xlu0 %3011
      %3013 = vrot.lane.b32.xlu0 %v2984, 64
      %v3014 = vpop.permute.xlu0 %3013
      %3015 = vrot.lane.b32.xlu0 %v2985, 64
      %v3016 = vpop.permute.xlu0 %3015
      %3017 = vrot.lane.b32.xlu0 %v2986, 64
      %v3018 = vpop.permute.xlu0 %3017
      %vm3035 = vcmask 650752
      %3036 = vst.msk [vmem:[#allocation4] sm:$0xf] %vm3035, %v2988
      %3037 = vst.msk [vmem:[#allocation4 + $0x8] sm:$0xf] %vm3035, %v2990
      %3038 = vst.msk [vmem:[#allocation4 + $0x10] sm:$0xf] %vm3035, %v2992
      %3039 = vst.msk [vmem:[#allocation4 + $0x18] sm:$0xf] %vm3035, %v2994
      %3040 = vst.msk [vmem:[#allocation4 + $0x20] sm:$0xf] %vm3035, %v2996
      %3041 = vst.msk [vmem:[#allocation4 + $0x28] sm:$0xf] %vm3035, %v2998
      %3042 = vst.msk [vmem:[#allocation4 + $0x30] sm:$0xf] %vm3035, %v3000
      %3043 = vst.msk [vmem:[#allocation4 + $0x38] sm:$0xf] %vm3035, %v3002
      %3044 = vst.msk [vmem:[#allocation4 + $0x40] sm:$0xf] %vm3035, %v3004
      %3045 = vst.msk [vmem:[#allocation4 + $0x48] sm:$0xf] %vm3035, %v3006
      %3046 = vst.msk [vmem:[#allocation4 + $0x50] sm:$0xf] %vm3035, %v3008
      %3047 = vst.msk [vmem:[#allocation4 + $0x58] sm:$0xf] %vm3035, %v3010
      %3048 = vst.msk [vmem:[#allocation4 + $0x60] sm:$0xf] %vm3035, %v3012
      %3049 = vst.msk [vmem:[#allocation4 + $0x68] sm:$0xf] %vm3035, %v3014
      %3050 = vst.msk [vmem:[#allocation4 + $0x70] sm:$0xf] %vm3035, %v3016
      %3051 = vst.msk [vmem:[#allocation4 + $0x78] sm:$0xf] %vm3035, %v3018
      %v3052 = vmul.f32 %v2845, %v903
      %v3053 = vmul.f32 %v2849, %v904
      %v3054 = vmul.f32 %v2853, %v905
      %v3055 = vmul.f32 %v2857, %v906
      %v3056 = vmul.f32 %v2861, %v907
      %v3057 = vmul.f32 %v2865, %v908
      %v3058 = vmul.f32 %v2869, %v909
      %v3059 = vmul.f32 %v2873, %v910
      %v3060 = vmul.f32 %v2877, %v911
      %v3061 = vmul.f32 %v2881, %v912
      %v3062 = vmul.f32 %v2885, %v913
      %v3063 = vmul.f32 %v2889, %v914
      %v3064 = vmul.f32 %v2893, %v915
      %v3065 = vmul.f32 %v2897, %v916
      %v3066 = vmul.f32 %v2901, %v917
      %v3067 = vmul.f32 %v2905, %v918
      %v3068 = vmul.f32 %v2765, %v919
      %v3069 = vmul.f32 %v2769, %v920
      %v3070 = vmul.f32 %v2773, %v921
      %v3071 = vmul.f32 %v2777, %v922
      %v3072 = vmul.f32 %v2781, %v923
      %v3073 = vmul.f32 %v2785, %v924
      %v3074 = vmul.f32 %v2789, %v925
      %v3075 = vmul.f32 %v2793, %v926
      %v3076 = vmul.f32 %v2797, %v927
      %v3077 = vmul.f32 %v2801, %v928
      %v3078 = vmul.f32 %v2805, %v929
      %v3079 = vmul.f32 %v2809, %v930
      %v3080 = vmul.f32 %v2813, %v931
      %v3081 = vmul.f32 %v2817, %v932
      %v3082 = vmul.f32 %v2821, %v933
      %v3083 = vmul.f32 %v2825, %v934
      %v3084 = vadd.f32 %v3052, %v3068
      %v3085 = vadd.f32 %v3053, %v3069
      %v3086 = vadd.f32 %v3054, %v3070
      %v3087 = vadd.f32 %v3055, %v3071
      %v3088 = vadd.f32 %v3056, %v3072
      %v3089 = vadd.f32 %v3057, %v3073
      %v3090 = vadd.f32 %v3058, %v3074
      %v3091 = vadd.f32 %v3059, %v3075
      %v3092 = vadd.f32 %v3060, %v3076
      %v3093 = vadd.f32 %v3061, %v3077
      %v3094 = vadd.f32 %v3062, %v3078
      %v3095 = vadd.f32 %v3063, %v3079
      %v3096 = vadd.f32 %v3064, %v3080
      %v3097 = vadd.f32 %v3065, %v3081
      %v3098 = vadd.f32 %v3066, %v3082
      %v3099 = vadd.f32 %v3067, %v3083
      %v3100 = vsub.f32 0.0, %v3084
      %v3101 = vsub.f32 0.0, %v3085
      %v3102 = vsub.f32 0.0, %v3086
      %v3103 = vsub.f32 0.0, %v3087
      %v3104 = vsub.f32 0.0, %v3088
      %v3105 = vsub.f32 0.0, %v3089
      %v3106 = vsub.f32 0.0, %v3090
      %v3107 = vsub.f32 0.0, %v3091
      %v3108 = vsub.f32 0.0, %v3092
      %v3109 = vsub.f32 0.0, %v3093
      %v3110 = vsub.f32 0.0, %v3094
      %v3111 = vsub.f32 0.0, %v3095
      %v3112 = vsub.f32 0.0, %v3096
      %v3113 = vsub.f32 0.0, %v3097
      %v3114 = vsub.f32 0.0, %v3098
      %v3115 = vsub.f32 0.0, %v3099
      %v3116 = vpack.c.bf16 %v3101, %v3100
      %v3117 = vpack.c.bf16 %v3103, %v3102
      %v3118 = vpack.c.bf16 %v3105, %v3104
      %v3119 = vpack.c.bf16 %v3107, %v3106
      %v3120 = vpack.c.bf16 %v3109, %v3108
      %v3121 = vpack.c.bf16 %v3111, %v3110
      %v3122 = vpack.c.bf16 %v3113, %v3112
      %v3123 = vpack.c.bf16 %v3115, %v3114
      %v3132 = vunpack.c.l.b16 %v3116
      %v3133 = vunpack.c.h.b16 %v3116
      %v3134 = vunpack.c.l.b16 %v3117
      %v3135 = vunpack.c.h.b16 %v3117
      %v3136 = vunpack.c.l.b16 %v3118
      %v3137 = vunpack.c.h.b16 %v3118
      %v3138 = vunpack.c.l.b16 %v3119
      %v3139 = vunpack.c.h.b16 %v3119
      %v3140 = vunpack.c.l.b16 %v3120
      %v3141 = vunpack.c.h.b16 %v3120
      %v3142 = vunpack.c.l.b16 %v3121
      %v3143 = vunpack.c.h.b16 %v3121
      %v3144 = vunpack.c.l.b16 %v3122
      %v3145 = vunpack.c.h.b16 %v3122
      %v3146 = vunpack.c.l.b16 %v3123
      %v3147 = vunpack.c.h.b16 %v3123
      %v3148 = vpack.c.b16 %v3132, %v3132
      %v3149 = vpack.c.b16 %v3133, %v3133
      %v3150 = vpack.c.b16 %v3134, %v3134
      %v3151 = vpack.c.b16 %v3135, %v3135
      %v3152 = vpack.c.b16 %v3136, %v3136
      %v3153 = vpack.c.b16 %v3137, %v3137
      %v3154 = vpack.c.b16 %v3138, %v3138
      %v3155 = vpack.c.b16 %v3139, %v3139
      %v3156 = vpack.c.b16 %v3140, %v3140
      %v3157 = vpack.c.b16 %v3141, %v3141
      %v3158 = vpack.c.b16 %v3142, %v3142
      %v3159 = vpack.c.b16 %v3143, %v3143
      %v3160 = vpack.c.b16 %v3144, %v3144
      %v3161 = vpack.c.b16 %v3145, %v3145
      %v3162 = vpack.c.b16 %v3146, %v3146
      %v3163 = vpack.c.b16 %v3147, %v3147
      %3164 = vrot.lane.b32.xlu0 %v3148, 64
      %v3165 = vpop.permute.xlu0 %3164
      %3166 = vrot.lane.b32.xlu0 %v3149, 64
      %v3167 = vpop.permute.xlu0 %3166
      %3168 = vrot.lane.b32.xlu0 %v3150, 64
      %v3169 = vpop.permute.xlu0 %3168
      %3170 = vrot.lane.b32.xlu0 %v3151, 64
      %v3171 = vpop.permute.xlu0 %3170
      %3172 = vrot.lane.b32.xlu0 %v3152, 64
      %v3173 = vpop.permute.xlu0 %3172
      %3174 = vrot.lane.b32.xlu0 %v3153, 64
      %v3175 = vpop.permute.xlu0 %3174
      %3176 = vrot.lane.b32.xlu0 %v3154, 64
      %v3177 = vpop.permute.xlu0 %3176
      %3178 = vrot.lane.b32.xlu0 %v3155, 64
      %v3179 = vpop.permute.xlu0 %3178
      %3180 = vrot.lane.b32.xlu0 %v3156, 64
      %v3181 = vpop.permute.xlu0 %3180
      %3182 = vrot.lane.b32.xlu0 %v3157, 64
      %v3183 = vpop.permute.xlu0 %3182
      %3184 = vrot.lane.b32.xlu0 %v3158, 64
      %v3185 = vpop.permute.xlu0 %3184
      %3186 = vrot.lane.b32.xlu0 %v3159, 64
      %v3187 = vpop.permute.xlu0 %3186
      %3188 = vrot.lane.b32.xlu0 %v3160, 64
      %v3189 = vpop.permute.xlu0 %3188
      %3190 = vrot.lane.b32.xlu0 %v3161, 64
      %v3191 = vpop.permute.xlu0 %3190
      %3192 = vrot.lane.b32.xlu0 %v3162, 64
      %v3193 = vpop.permute.xlu0 %3192
      %3194 = vrot.lane.b32.xlu0 %v3163, 64
      %v3195 = vpop.permute.xlu0 %3194
      %3212 = vst.msk [vmem:[#allocation5] sm:$0xf] %vm3035, %v3165
      %3213 = vst.msk [vmem:[#allocation5 + $0x8] sm:$0xf] %vm3035, %v3167
      %3214 = vst.msk [vmem:[#allocation5 + $0x10] sm:$0xf] %vm3035, %v3169
      %3215 = vst.msk [vmem:[#allocation5 + $0x18] sm:$0xf] %vm3035, %v3171
      %3216 = vst.msk [vmem:[#allocation5 + $0x20] sm:$0xf] %vm3035, %v3173
      %3217 = vst.msk [vmem:[#allocation5 + $0x28] sm:$0xf] %vm3035, %v3175
      %3218 = vst.msk [vmem:[#allocation5 + $0x30] sm:$0xf] %vm3035, %v3177
      %3219 = vst.msk [vmem:[#allocation5 + $0x38] sm:$0xf] %vm3035, %v3179
      %3220 = vst.msk [vmem:[#allocation5 + $0x40] sm:$0xf] %vm3035, %v3181
      %3221 = vst.msk [vmem:[#allocation5 + $0x48] sm:$0xf] %vm3035, %v3183
      %3222 = vst.msk [vmem:[#allocation5 + $0x50] sm:$0xf] %vm3035, %v3185
      %3223 = vst.msk [vmem:[#allocation5 + $0x58] sm:$0xf] %vm3035, %v3187
      %3224 = vst.msk [vmem:[#allocation5 + $0x60] sm:$0xf] %vm3035, %v3189
      %3225 = vst.msk [vmem:[#allocation5 + $0x68] sm:$0xf] %vm3035, %v3191
      %3226 = vst.msk [vmem:[#allocation5 + $0x70] sm:$0xf] %vm3035, %v3193
      %3227 = vst.msk [vmem:[#allocation5 + $0x78] sm:$0xf] %vm3035, %v3195
      %3228 = vset.pattern.permute.xlu0 5
      %3229 = vperm.xlu0 %3228, %v871
      %v3230 = vpop.permute.xlu0 %3229
      %3232 = vset.pattern.permute.xlu0 5
      %3233 = vperm.xlu0 %3232, %v872
      %v3234 = vpop.permute.xlu0 %3233
      %3236 = vset.pattern.permute.xlu0 5
      %3237 = vperm.xlu0 %3236, %v873
      %v3238 = vpop.permute.xlu0 %3237
      %3240 = vset.pattern.permute.xlu0 5
      %3241 = vperm.xlu0 %3240, %v874
      %v3242 = vpop.permute.xlu0 %3241
      %3244 = vset.pattern.permute.xlu0 5
      %3245 = vperm.xlu0 %3244, %v875
      %v3246 = vpop.permute.xlu0 %3245
      %3248 = vset.pattern.permute.xlu0 5
      %3249 = vperm.xlu0 %3248, %v876
      %v3250 = vpop.permute.xlu0 %3249
      %3252 = vset.pattern.permute.xlu0 5
      %3253 = vperm.xlu0 %3252, %v877
      %v3254 = vpop.permute.xlu0 %3253
      %3256 = vset.pattern.permute.xlu0 5
      %3257 = vperm.xlu0 %3256, %v878
      %v3258 = vpop.permute.xlu0 %3257
      %3260 = vset.pattern.permute.xlu0 5
      %3261 = vperm.xlu0 %3260, %v879
      %v3262 = vpop.permute.xlu0 %3261
      %3264 = vset.pattern.permute.xlu0 5
      %3265 = vperm.xlu0 %3264, %v880
      %v3266 = vpop.permute.xlu0 %3265
      %3268 = vset.pattern.permute.xlu0 5
      %3269 = vperm.xlu0 %3268, %v881
      %v3270 = vpop.permute.xlu0 %3269
      %3272 = vset.pattern.permute.xlu0 5
      %3273 = vperm.xlu0 %3272, %v882
      %v3274 = vpop.permute.xlu0 %3273
      %3276 = vset.pattern.permute.xlu0 5
      %3277 = vperm.xlu0 %3276, %v883
      %v3278 = vpop.permute.xlu0 %3277
      %3280 = vset.pattern.permute.xlu0 5
      %3281 = vperm.xlu0 %3280, %v884
      %v3282 = vpop.permute.xlu0 %3281
      %3284 = vset.pattern.permute.xlu0 5
      %3285 = vperm.xlu0 %3284, %v885
      %v3286 = vpop.permute.xlu0 %3285
      %3288 = vset.pattern.permute.xlu0 5
      %3289 = vperm.xlu0 %3288, %v886
      %v3290 = vpop.permute.xlu0 %3289
      %v3292 = vmul.f32 %v3230, %v903
      %v3293 = vmul.f32 %v3234, %v904
      %v3294 = vmul.f32 %v3238, %v905
      %v3295 = vmul.f32 %v3242, %v906
      %v3296 = vmul.f32 %v3246, %v907
      %v3297 = vmul.f32 %v3250, %v908
      %v3298 = vmul.f32 %v3254, %v909
      %v3299 = vmul.f32 %v3258, %v910
      %v3300 = vmul.f32 %v3262, %v911
      %v3301 = vmul.f32 %v3266, %v912
      %v3302 = vmul.f32 %v3270, %v913
      %v3303 = vmul.f32 %v3274, %v914
      %v3304 = vmul.f32 %v3278, %v915
      %v3305 = vmul.f32 %v3282, %v916
      %v3306 = vmul.f32 %v3286, %v917
      %v3307 = vmul.f32 %v3290, %v918
      %3308 = vset.pattern.permute.xlu0 5
      %3309 = vperm.xlu0 %3308, %v887
      %v3310 = vpop.permute.xlu0 %3309
      %3312 = vset.pattern.permute.xlu0 5
      %3313 = vperm.xlu0 %3312, %v888
      %v3314 = vpop.permute.xlu0 %3313
      %3316 = vset.pattern.permute.xlu0 5
      %3317 = vperm.xlu0 %3316, %v889
      %v3318 = vpop.permute.xlu0 %3317
      %3320 = vset.pattern.permute.xlu0 5
      %3321 = vperm.xlu0 %3320, %v890
      %v3322 = vpop.permute.xlu0 %3321
      %3324 = vset.pattern.permute.xlu0 5
      %3325 = vperm.xlu0 %3324, %v891
      %v3326 = vpop.permute.xlu0 %3325
      %3328 = vset.pattern.permute.xlu0 5
      %3329 = vperm.xlu0 %3328, %v892
      %v3330 = vpop.permute.xlu0 %3329
      %3332 = vset.pattern.permute.xlu0 5
      %3333 = vperm.xlu0 %3332, %v893
      %v3334 = vpop.permute.xlu0 %3333
      %3336 = vset.pattern.permute.xlu0 5
      %3337 = vperm.xlu0 %3336, %v894
      %v3338 = vpop.permute.xlu0 %3337
      %3340 = vset.pattern.permute.xlu0 5
      %3341 = vperm.xlu0 %3340, %v895
      %v3342 = vpop.permute.xlu0 %3341
      %3344 = vset.pattern.permute.xlu0 5
      %3345 = vperm.xlu0 %3344, %v896
      %v3346 = vpop.permute.xlu0 %3345
      %3348 = vset.pattern.permute.xlu0 5
      %3349 = vperm.xlu0 %3348, %v897
      %v3350 = vpop.permute.xlu0 %3349
      %3352 = vset.pattern.permute.xlu0 5
      %3353 = vperm.xlu0 %3352, %v898
      %v3354 = vpop.permute.xlu0 %3353
      %3356 = vset.pattern.permute.xlu0 5
      %3357 = vperm.xlu0 %3356, %v899
      %v3358 = vpop.permute.xlu0 %3357
      %3360 = vset.pattern.permute.xlu0 5
      %3361 = vperm.xlu0 %3360, %v900
      %v3362 = vpop.permute.xlu0 %3361
      %3364 = vset.pattern.permute.xlu0 5
      %3365 = vperm.xlu0 %3364, %v901
      %v3366 = vpop.permute.xlu0 %3365
      %3368 = vset.pattern.permute.xlu0 5
      %3369 = vperm.xlu0 %3368, %v902
      %v3370 = vpop.permute.xlu0 %3369
      %v3372 = vmul.f32 %v3310, %v919
      %v3373 = vmul.f32 %v3314, %v920
      %v3374 = vmul.f32 %v3318, %v921
      %v3375 = vmul.f32 %v3322, %v922
      %v3376 = vmul.f32 %v3326, %v923
      %v3377 = vmul.f32 %v3330, %v924
      %v3378 = vmul.f32 %v3334, %v925
      %v3379 = vmul.f32 %v3338, %v926
      %v3380 = vmul.f32 %v3342, %v927
      %v3381 = vmul.f32 %v3346, %v928
      %v3382 = vmul.f32 %v3350, %v929
      %v3383 = vmul.f32 %v3354, %v930
      %v3384 = vmul.f32 %v3358, %v931
      %v3385 = vmul.f32 %v3362, %v932
      %v3386 = vmul.f32 %v3366, %v933
      %v3387 = vmul.f32 %v3370, %v934
      %v3388 = vsub.f32 %v3292, %v3372
      %v3389 = vsub.f32 %v3293, %v3373
      %v3390 = vsub.f32 %v3294, %v3374
      %v3391 = vsub.f32 %v3295, %v3375
      %v3392 = vsub.f32 %v3296, %v3376
      %v3393 = vsub.f32 %v3297, %v3377
      %v3394 = vsub.f32 %v3298, %v3378
      %v3395 = vsub.f32 %v3299, %v3379
      %v3396 = vsub.f32 %v3300, %v3380
      %v3397 = vsub.f32 %v3301, %v3381
      %v3398 = vsub.f32 %v3302, %v3382
      %v3399 = vsub.f32 %v3303, %v3383
      %v3400 = vsub.f32 %v3304, %v3384
      %v3401 = vsub.f32 %v3305, %v3385
      %v3402 = vsub.f32 %v3306, %v3386
      %v3403 = vsub.f32 %v3307, %v3387
      %v3404 = vpack.c.bf16 %v3389, %v3388
      %v3405 = vpack.c.bf16 %v3391, %v3390
      %v3406 = vpack.c.bf16 %v3393, %v3392
      %v3407 = vpack.c.bf16 %v3395, %v3394
      %v3408 = vpack.c.bf16 %v3397, %v3396
      %v3409 = vpack.c.bf16 %v3399, %v3398
      %v3410 = vpack.c.bf16 %v3401, %v3400
      %v3411 = vpack.c.bf16 %v3403, %v3402
      %v3420 = vunpack.c.l.b16 %v3404
      %v3421 = vunpack.c.h.b16 %v3404
      %v3422 = vunpack.c.l.b16 %v3405
      %v3423 = vunpack.c.h.b16 %v3405
      %v3424 = vunpack.c.l.b16 %v3406
      %v3425 = vunpack.c.h.b16 %v3406
      %v3426 = vunpack.c.l.b16 %v3407
      %v3427 = vunpack.c.h.b16 %v3407
      %v3428 = vunpack.c.l.b16 %v3408
      %v3429 = vunpack.c.h.b16 %v3408
      %v3430 = vunpack.c.l.b16 %v3409
      %v3431 = vunpack.c.h.b16 %v3409
      %v3432 = vunpack.c.l.b16 %v3410
      %v3433 = vunpack.c.h.b16 %v3410
      %v3434 = vunpack.c.l.b16 %v3411
      %v3435 = vunpack.c.h.b16 %v3411
      %v3436 = vpack.c.b16 %v3420, %v3420
      %v3437 = vpack.c.b16 %v3421, %v3421
      %v3438 = vpack.c.b16 %v3422, %v3422
      %v3439 = vpack.c.b16 %v3423, %v3423
      %v3440 = vpack.c.b16 %v3424, %v3424
      %v3441 = vpack.c.b16 %v3425, %v3425
      %v3442 = vpack.c.b16 %v3426, %v3426
      %v3443 = vpack.c.b16 %v3427, %v3427
      %v3444 = vpack.c.b16 %v3428, %v3428
      %v3445 = vpack.c.b16 %v3429, %v3429
      %v3446 = vpack.c.b16 %v3430, %v3430
      %v3447 = vpack.c.b16 %v3431, %v3431
      %v3448 = vpack.c.b16 %v3432, %v3432
      %v3449 = vpack.c.b16 %v3433, %v3433
      %v3450 = vpack.c.b16 %v3434, %v3434
      %v3451 = vpack.c.b16 %v3435, %v3435
      %3452 = vrot.lane.b32.xlu0 %v3436, 80
      %v3453 = vpop.permute.xlu0 %3452
      %3454 = vrot.lane.b32.xlu0 %v3437, 80
      %v3455 = vpop.permute.xlu0 %3454
      %3456 = vrot.lane.b32.xlu0 %v3438, 80
      %v3457 = vpop.permute.xlu0 %3456
      %3458 = vrot.lane.b32.xlu0 %v3439, 80
      %v3459 = vpop.permute.xlu0 %3458
      %3460 = vrot.lane.b32.xlu0 %v3440, 80
      %v3461 = vpop.permute.xlu0 %3460
      %3462 = vrot.lane.b32.xlu0 %v3441, 80
      %v3463 = vpop.permute.xlu0 %3462
      %3464 = vrot.lane.b32.xlu0 %v3442, 80
      %v3465 = vpop.permute.xlu0 %3464
      %3466 = vrot.lane.b32.xlu0 %v3443, 80
      %v3467 = vpop.permute.xlu0 %3466
      %3468 = vrot.lane.b32.xlu0 %v3444, 80
      %v3469 = vpop.permute.xlu0 %3468
      %3470 = vrot.lane.b32.xlu0 %v3445, 80
      %v3471 = vpop.permute.xlu0 %3470
      %3472 = vrot.lane.b32.xlu0 %v3446, 80
      %v3473 = vpop.permute.xlu0 %3472
      %3474 = vrot.lane.b32.xlu0 %v3447, 80
      %v3475 = vpop.permute.xlu0 %3474
      %3476 = vrot.lane.b32.xlu0 %v3448, 80
      %v3477 = vpop.permute.xlu0 %3476
      %3478 = vrot.lane.b32.xlu0 %v3449, 80
      %v3479 = vpop.permute.xlu0 %3478
      %3480 = vrot.lane.b32.xlu0 %v3450, 80
      %v3481 = vpop.permute.xlu0 %3480
      %3482 = vrot.lane.b32.xlu0 %v3451, 80
      %v3483 = vpop.permute.xlu0 %3482
      %vm3500 = vcmask 781952
      %3501 = vst.msk [vmem:[#allocation4] sm:$0xf] %vm3500, %v3453
      %3502 = vst.msk [vmem:[#allocation4 + $0x8] sm:$0xf] %vm3500, %v3455
      %3503 = vst.msk [vmem:[#allocation4 + $0x10] sm:$0xf] %vm3500, %v3457
      %3504 = vst.msk [vmem:[#allocation4 + $0x18] sm:$0xf] %vm3500, %v3459
      %3505 = vst.msk [vmem:[#allocation4 + $0x20] sm:$0xf] %vm3500, %v3461
      %3506 = vst.msk [vmem:[#allocation4 + $0x28] sm:$0xf] %vm3500, %v3463
      %3507 = vst.msk [vmem:[#allocation4 + $0x30] sm:$0xf] %vm3500, %v3465
      %3508 = vst.msk [vmem:[#allocation4 + $0x38] sm:$0xf] %vm3500, %v3467
      %3509 = vst.msk [vmem:[#allocation4 + $0x40] sm:$0xf] %vm3500, %v3469
      %3510 = vst.msk [vmem:[#allocation4 + $0x48] sm:$0xf] %vm3500, %v3471
      %3511 = vst.msk [vmem:[#allocation4 + $0x50] sm:$0xf] %vm3500, %v3473
      %3512 = vst.msk [vmem:[#allocation4 + $0x58] sm:$0xf] %vm3500, %v3475
      %3513 = vst.msk [vmem:[#allocation4 + $0x60] sm:$0xf] %vm3500, %v3477
      %3514 = vst.msk [vmem:[#allocation4 + $0x68] sm:$0xf] %vm3500, %v3479
      %3515 = vst.msk [vmem:[#allocation4 + $0x70] sm:$0xf] %vm3500, %v3481
      %3516 = vst.msk [vmem:[#allocation4 + $0x78] sm:$0xf] %vm3500, %v3483
      %v3517 = vmul.f32 %v3310, %v903
      %v3518 = vmul.f32 %v3314, %v904
      %v3519 = vmul.f32 %v3318, %v905
      %v3520 = vmul.f32 %v3322, %v906
      %v3521 = vmul.f32 %v3326, %v907
      %v3522 = vmul.f32 %v3330, %v908
      %v3523 = vmul.f32 %v3334, %v909
      %v3524 = vmul.f32 %v3338, %v910
      %v3525 = vmul.f32 %v3342, %v911
      %v3526 = vmul.f32 %v3346, %v912
      %v3527 = vmul.f32 %v3350, %v913
      %v3528 = vmul.f32 %v3354, %v914
      %v3529 = vmul.f32 %v3358, %v915
      %v3530 = vmul.f32 %v3362, %v916
      %v3531 = vmul.f32 %v3366, %v917
      %v3532 = vmul.f32 %v3370, %v918
      %v3533 = vmul.f32 %v3230, %v919
      %v3534 = vmul.f32 %v3234, %v920
      %v3535 = vmul.f32 %v3238, %v921
      %v3536 = vmul.f32 %v3242, %v922
      %v3537 = vmul.f32 %v3246, %v923
      %v3538 = vmul.f32 %v3250, %v924
      %v3539 = vmul.f32 %v3254, %v925
      %v3540 = vmul.f32 %v3258, %v926
      %v3541 = vmul.f32 %v3262, %v927
      %v3542 = vmul.f32 %v3266, %v928
      %v3543 = vmul.f32 %v3270, %v929
      %v3544 = vmul.f32 %v3274, %v930
      %v3545 = vmul.f32 %v3278, %v931
      %v3546 = vmul.f32 %v3282, %v932
      %v3547 = vmul.f32 %v3286, %v933
      %v3548 = vmul.f32 %v3290, %v934
      %v3549 = vadd.f32 %v3517, %v3533
      %v3550 = vadd.f32 %v3518, %v3534
      %v3551 = vadd.f32 %v3519, %v3535
      %v3552 = vadd.f32 %v3520, %v3536
      %v3553 = vadd.f32 %v3521, %v3537
      %v3554 = vadd.f32 %v3522, %v3538
      %v3555 = vadd.f32 %v3523, %v3539
      %v3556 = vadd.f32 %v3524, %v3540
      %v3557 = vadd.f32 %v3525, %v3541
      %v3558 = vadd.f32 %v3526, %v3542
      %v3559 = vadd.f32 %v3527, %v3543
      %v3560 = vadd.f32 %v3528, %v3544
      %v3561 = vadd.f32 %v3529, %v3545
      %v3562 = vadd.f32 %v3530, %v3546
      %v3563 = vadd.f32 %v3531, %v3547
      %v3564 = vadd.f32 %v3532, %v3548
      %v3565 = vsub.f32 0.0, %v3549
      %v3566 = vsub.f32 0.0, %v3550
      %v3567 = vsub.f32 0.0, %v3551
      %v3568 = vsub.f32 0.0, %v3552
      %v3569 = vsub.f32 0.0, %v3553
      %v3570 = vsub.f32 0.0, %v3554
      %v3571 = vsub.f32 0.0, %v3555
      %v3572 = vsub.f32 0.0, %v3556
      %v3573 = vsub.f32 0.0, %v3557
      %v3574 = vsub.f32 0.0, %v3558
      %v3575 = vsub.f32 0.0, %v3559
      %v3576 = vsub.f32 0.0, %v3560
      %v3577 = vsub.f32 0.0, %v3561
      %v3578 = vsub.f32 0.0, %v3562
      %v3579 = vsub.f32 0.0, %v3563
      %v3580 = vsub.f32 0.0, %v3564
      %v3581 = vpack.c.bf16 %v3566, %v3565
      %v3582 = vpack.c.bf16 %v3568, %v3567
      %v3583 = vpack.c.bf16 %v3570, %v3569
      %v3584 = vpack.c.bf16 %v3572, %v3571
      %v3585 = vpack.c.bf16 %v3574, %v3573
      %v3586 = vpack.c.bf16 %v3576, %v3575
      %v3587 = vpack.c.bf16 %v3578, %v3577
      %v3588 = vpack.c.bf16 %v3580, %v3579
      %v3597 = vunpack.c.l.b16 %v3581
      %v3598 = vunpack.c.h.b16 %v3581
      %v3599 = vunpack.c.l.b16 %v3582
      %v3600 = vunpack.c.h.b16 %v3582
      %v3601 = vunpack.c.l.b16 %v3583
      %v3602 = vunpack.c.h.b16 %v3583
      %v3603 = vunpack.c.l.b16 %v3584
      %v3604 = vunpack.c.h.b16 %v3584
      %v3605 = vunpack.c.l.b16 %v3585
      %v3606 = vunpack.c.h.b16 %v3585
      %v3607 = vunpack.c.l.b16 %v3586
      %v3608 = vunpack.c.h.b16 %v3586
      %v3609 = vunpack.c.l.b16 %v3587
      %v3610 = vunpack.c.h.b16 %v3587
      %v3611 = vunpack.c.l.b16 %v3588
      %v3612 = vunpack.c.h.b16 %v3588
      %v3613 = vpack.c.b16 %v3597, %v3597
      %v3614 = vpack.c.b16 %v3598, %v3598
      %v3615 = vpack.c.b16 %v3599, %v3599
      %v3616 = vpack.c.b16 %v3600, %v3600
      %v3617 = vpack.c.b16 %v3601, %v3601
      %v3618 = vpack.c.b16 %v3602, %v3602
      %v3619 = vpack.c.b16 %v3603, %v3603
      %v3620 = vpack.c.b16 %v3604, %v3604
      %v3621 = vpack.c.b16 %v3605, %v3605
      %v3622 = vpack.c.b16 %v3606, %v3606
      %v3623 = vpack.c.b16 %v3607, %v3607
      %v3624 = vpack.c.b16 %v3608, %v3608
      %v3625 = vpack.c.b16 %v3609, %v3609
      %v3626 = vpack.c.b16 %v3610, %v3610
      %v3627 = vpack.c.b16 %v3611, %v3611
      %v3628 = vpack.c.b16 %v3612, %v3612
      %3629 = vrot.lane.b32.xlu0 %v3613, 80
      %v3630 = vpop.permute.xlu0 %3629
      %3631 = vrot.lane.b32.xlu0 %v3614, 80
      %v3632 = vpop.permute.xlu0 %3631
      %3633 = vrot.lane.b32.xlu0 %v3615, 80
      %v3634 = vpop.permute.xlu0 %3633
      %3635 = vrot.lane.b32.xlu0 %v3616, 80
      %v3636 = vpop.permute.xlu0 %3635
      %3637 = vrot.lane.b32.xlu0 %v3617, 80
      %v3638 = vpop.permute.xlu0 %3637
      %3639 = vrot.lane.b32.xlu0 %v3618, 80
      %v3640 = vpop.permute.xlu0 %3639
      %3641 = vrot.lane.b32.xlu0 %v3619, 80
      %v3642 = vpop.permute.xlu0 %3641
      %3643 = vrot.lane.b32.xlu0 %v3620, 80
      %v3644 = vpop.permute.xlu0 %3643
      %3645 = vrot.lane.b32.xlu0 %v3621, 80
      %v3646 = vpop.permute.xlu0 %3645
      %3647 = vrot.lane.b32.xlu0 %v3622, 80
      %v3648 = vpop.permute.xlu0 %3647
      %3649 = vrot.lane.b32.xlu0 %v3623, 80
      %v3650 = vpop.permute.xlu0 %3649
      %3651 = vrot.lane.b32.xlu0 %v3624, 80
      %v3652 = vpop.permute.xlu0 %3651
      %3653 = vrot.lane.b32.xlu0 %v3625, 80
      %v3654 = vpop.permute.xlu0 %3653
      %3655 = vrot.lane.b32.xlu0 %v3626, 80
      %v3656 = vpop.permute.xlu0 %3655
      %3657 = vrot.lane.b32.xlu0 %v3627, 80
      %v3658 = vpop.permute.xlu0 %3657
      %3659 = vrot.lane.b32.xlu0 %v3628, 80
      %v3660 = vpop.permute.xlu0 %3659
      %3677 = vst.msk [vmem:[#allocation5] sm:$0xf] %vm3500, %v3630
      %3678 = vst.msk [vmem:[#allocation5 + $0x8] sm:$0xf] %vm3500, %v3632
      %3679 = vst.msk [vmem:[#allocation5 + $0x10] sm:$0xf] %vm3500, %v3634
      %3680 = vst.msk [vmem:[#allocation5 + $0x18] sm:$0xf] %vm3500, %v3636
      %3681 = vst.msk [vmem:[#allocation5 + $0x20] sm:$0xf] %vm3500, %v3638
      %3682 = vst.msk [vmem:[#allocation5 + $0x28] sm:$0xf] %vm3500, %v3640
      %3683 = vst.msk [vmem:[#allocation5 + $0x30] sm:$0xf] %vm3500, %v3642
      %3684 = vst.msk [vmem:[#allocation5 + $0x38] sm:$0xf] %vm3500, %v3644
      %3685 = vst.msk [vmem:[#allocation5 + $0x40] sm:$0xf] %vm3500, %v3646
      %3686 = vst.msk [vmem:[#allocation5 + $0x48] sm:$0xf] %vm3500, %v3648
      %3687 = vst.msk [vmem:[#allocation5 + $0x50] sm:$0xf] %vm3500, %v3650
      %3688 = vst.msk [vmem:[#allocation5 + $0x58] sm:$0xf] %vm3500, %v3652
      %3689 = vst.msk [vmem:[#allocation5 + $0x60] sm:$0xf] %vm3500, %v3654
      %3690 = vst.msk [vmem:[#allocation5 + $0x68] sm:$0xf] %vm3500, %v3656
      %3691 = vst.msk [vmem:[#allocation5 + $0x70] sm:$0xf] %vm3500, %v3658
      %3692 = vst.msk [vmem:[#allocation5 + $0x78] sm:$0xf] %vm3500, %v3660
      %3693 = vset.pattern.permute.xlu0 6
      %3694 = vperm.xlu0 %3693, %v871
      %v3695 = vpop.permute.xlu0 %3694
      %3697 = vset.pattern.permute.xlu0 6
      %3698 = vperm.xlu0 %3697, %v872
      %v3699 = vpop.permute.xlu0 %3698
      %3701 = vset.pattern.permute.xlu0 6
      %3702 = vperm.xlu0 %3701, %v873
      %v3703 = vpop.permute.xlu0 %3702
      %3705 = vset.pattern.permute.xlu0 6
      %3706 = vperm.xlu0 %3705, %v874
      %v3707 = vpop.permute.xlu0 %3706
      %3709 = vset.pattern.permute.xlu0 6
      %3710 = vperm.xlu0 %3709, %v875
      %v3711 = vpop.permute.xlu0 %3710
      %3713 = vset.pattern.permute.xlu0 6
      %3714 = vperm.xlu0 %3713, %v876
      %v3715 = vpop.permute.xlu0 %3714
      %3717 = vset.pattern.permute.xlu0 6
      %3718 = vperm.xlu0 %3717, %v877
      %v3719 = vpop.permute.xlu0 %3718
      %3721 = vset.pattern.permute.xlu0 6
      %3722 = vperm.xlu0 %3721, %v878
      %v3723 = vpop.permute.xlu0 %3722
      %3725 = vset.pattern.permute.xlu0 6
      %3726 = vperm.xlu0 %3725, %v879
      %v3727 = vpop.permute.xlu0 %3726
      %3729 = vset.pattern.permute.xlu0 6
      %3730 = vperm.xlu0 %3729, %v880
      %v3731 = vpop.permute.xlu0 %3730
      %3733 = vset.pattern.permute.xlu0 6
      %3734 = vperm.xlu0 %3733, %v881
      %v3735 = vpop.permute.xlu0 %3734
      %3737 = vset.pattern.permute.xlu0 6
      %3738 = vperm.xlu0 %3737, %v882
      %v3739 = vpop.permute.xlu0 %3738
      %3741 = vset.pattern.permute.xlu0 6
      %3742 = vperm.xlu0 %3741, %v883
      %v3743 = vpop.permute.xlu0 %3742
      %3745 = vset.pattern.permute.xlu0 6
      %3746 = vperm.xlu0 %3745, %v884
      %v3747 = vpop.permute.xlu0 %3746
      %3749 = vset.pattern.permute.xlu0 6
      %3750 = vperm.xlu0 %3749, %v885
      %v3751 = vpop.permute.xlu0 %3750
      %3753 = vset.pattern.permute.xlu0 6
      %3754 = vperm.xlu0 %3753, %v886
      %v3755 = vpop.permute.xlu0 %3754
      %v3757 = vmul.f32 %v3695, %v903
      %v3758 = vmul.f32 %v3699, %v904
      %v3759 = vmul.f32 %v3703, %v905
      %v3760 = vmul.f32 %v3707, %v906
      %v3761 = vmul.f32 %v3711, %v907
      %v3762 = vmul.f32 %v3715, %v908
      %v3763 = vmul.f32 %v3719, %v909
      %v3764 = vmul.f32 %v3723, %v910
      %v3765 = vmul.f32 %v3727, %v911
      %v3766 = vmul.f32 %v3731, %v912
      %v3767 = vmul.f32 %v3735, %v913
      %v3768 = vmul.f32 %v3739, %v914
      %v3769 = vmul.f32 %v3743, %v915
      %v3770 = vmul.f32 %v3747, %v916
      %v3771 = vmul.f32 %v3751, %v917
      %v3772 = vmul.f32 %v3755, %v918
      %3773 = vset.pattern.permute.xlu0 6
      %3774 = vperm.xlu0 %3773, %v887
      %v3775 = vpop.permute.xlu0 %3774
      %3777 = vset.pattern.permute.xlu0 6
      %3778 = vperm.xlu0 %3777, %v888
      %v3779 = vpop.permute.xlu0 %3778
      %3781 = vset.pattern.permute.xlu0 6
      %3782 = vperm.xlu0 %3781, %v889
      %v3783 = vpop.permute.xlu0 %3782
      %3785 = vset.pattern.permute.xlu0 6
      %3786 = vperm.xlu0 %3785, %v890
      %v3787 = vpop.permute.xlu0 %3786
      %3789 = vset.pattern.permute.xlu0 6
      %3790 = vperm.xlu0 %3789, %v891
      %v3791 = vpop.permute.xlu0 %3790
      %3793 = vset.pattern.permute.xlu0 6
      %3794 = vperm.xlu0 %3793, %v892
      %v3795 = vpop.permute.xlu0 %3794
      %3797 = vset.pattern.permute.xlu0 6
      %3798 = vperm.xlu0 %3797, %v893
      %v3799 = vpop.permute.xlu0 %3798
      %3801 = vset.pattern.permute.xlu0 6
      %3802 = vperm.xlu0 %3801, %v894
      %v3803 = vpop.permute.xlu0 %3802
      %3805 = vset.pattern.permute.xlu0 6
      %3806 = vperm.xlu0 %3805, %v895
      %v3807 = vpop.permute.xlu0 %3806
      %3809 = vset.pattern.permute.xlu0 6
      %3810 = vperm.xlu0 %3809, %v896
      %v3811 = vpop.permute.xlu0 %3810
      %3813 = vset.pattern.permute.xlu0 6
      %3814 = vperm.xlu0 %3813, %v897
      %v3815 = vpop.permute.xlu0 %3814
      %3817 = vset.pattern.permute.xlu0 6
      %3818 = vperm.xlu0 %3817, %v898
      %v3819 = vpop.permute.xlu0 %3818
      %3821 = vset.pattern.permute.xlu0 6
      %3822 = vperm.xlu0 %3821, %v899
      %v3823 = vpop.permute.xlu0 %3822
      %3825 = vset.pattern.permute.xlu0 6
      %3826 = vperm.xlu0 %3825, %v900
      %v3827 = vpop.permute.xlu0 %3826
      %3829 = vset.pattern.permute.xlu0 6
      %3830 = vperm.xlu0 %3829, %v901
      %v3831 = vpop.permute.xlu0 %3830
      %3833 = vset.pattern.permute.xlu0 6
      %3834 = vperm.xlu0 %3833, %v902
      %v3835 = vpop.permute.xlu0 %3834
      %v3837 = vmul.f32 %v3775, %v919
      %v3838 = vmul.f32 %v3779, %v920
      %v3839 = vmul.f32 %v3783, %v921
      %v3840 = vmul.f32 %v3787, %v922
      %v3841 = vmul.f32 %v3791, %v923
      %v3842 = vmul.f32 %v3795, %v924
      %v3843 = vmul.f32 %v3799, %v925
      %v3844 = vmul.f32 %v3803, %v926
      %v3845 = vmul.f32 %v3807, %v927
      %v3846 = vmul.f32 %v3811, %v928
      %v3847 = vmul.f32 %v3815, %v929
      %v3848 = vmul.f32 %v3819, %v930
      %v3849 = vmul.f32 %v3823, %v931
      %v3850 = vmul.f32 %v3827, %v932
      %v3851 = vmul.f32 %v3831, %v933
      %v3852 = vmul.f32 %v3835, %v934
      %v3853 = vsub.f32 %v3757, %v3837
      %v3854 = vsub.f32 %v3758, %v3838
      %v3855 = vsub.f32 %v3759, %v3839
      %v3856 = vsub.f32 %v3760, %v3840
      %v3857 = vsub.f32 %v3761, %v3841
      %v3858 = vsub.f32 %v3762, %v3842
      %v3859 = vsub.f32 %v3763, %v3843
      %v3860 = vsub.f32 %v3764, %v3844
      %v3861 = vsub.f32 %v3765, %v3845
      %v3862 = vsub.f32 %v3766, %v3846
      %v3863 = vsub.f32 %v3767, %v3847
      %v3864 = vsub.f32 %v3768, %v3848
      %v3865 = vsub.f32 %v3769, %v3849
      %v3866 = vsub.f32 %v3770, %v3850
      %v3867 = vsub.f32 %v3771, %v3851
      %v3868 = vsub.f32 %v3772, %v3852
      %v3869 = vpack.c.bf16 %v3854, %v3853
      %v3870 = vpack.c.bf16 %v3856, %v3855
      %v3871 = vpack.c.bf16 %v3858, %v3857
      %v3872 = vpack.c.bf16 %v3860, %v3859
      %v3873 = vpack.c.bf16 %v3862, %v3861
      %v3874 = vpack.c.bf16 %v3864, %v3863
      %v3875 = vpack.c.bf16 %v3866, %v3865
      %v3876 = vpack.c.bf16 %v3868, %v3867
      %v3885 = vunpack.c.l.b16 %v3869
      %v3886 = vunpack.c.h.b16 %v3869
      %v3887 = vunpack.c.l.b16 %v3870
      %v3888 = vunpack.c.h.b16 %v3870
      %v3889 = vunpack.c.l.b16 %v3871
      %v3890 = vunpack.c.h.b16 %v3871
      %v3891 = vunpack.c.l.b16 %v3872
      %v3892 = vunpack.c.h.b16 %v3872
      %v3893 = vunpack.c.l.b16 %v3873
      %v3894 = vunpack.c.h.b16 %v3873
      %v3895 = vunpack.c.l.b16 %v3874
      %v3896 = vunpack.c.h.b16 %v3874
      %v3897 = vunpack.c.l.b16 %v3875
      %v3898 = vunpack.c.h.b16 %v3875
      %v3899 = vunpack.c.l.b16 %v3876
      %v3900 = vunpack.c.h.b16 %v3876
      %v3901 = vpack.c.b16 %v3885, %v3885
      %v3902 = vpack.c.b16 %v3886, %v3886
      %v3903 = vpack.c.b16 %v3887, %v3887
      %v3904 = vpack.c.b16 %v3888, %v3888
      %v3905 = vpack.c.b16 %v3889, %v3889
      %v3906 = vpack.c.b16 %v3890, %v3890
      %v3907 = vpack.c.b16 %v3891, %v3891
      %v3908 = vpack.c.b16 %v3892, %v3892
      %v3909 = vpack.c.b16 %v3893, %v3893
      %v3910 = vpack.c.b16 %v3894, %v3894
      %v3911 = vpack.c.b16 %v3895, %v3895
      %v3912 = vpack.c.b16 %v3896, %v3896
      %v3913 = vpack.c.b16 %v3897, %v3897
      %v3914 = vpack.c.b16 %v3898, %v3898
      %v3915 = vpack.c.b16 %v3899, %v3899
      %v3916 = vpack.c.b16 %v3900, %v3900
      %3917 = vrot.lane.b32.xlu0 %v3901, 96
      %v3918 = vpop.permute.xlu0 %3917
      %3919 = vrot.lane.b32.xlu0 %v3902, 96
      %v3920 = vpop.permute.xlu0 %3919
      %3921 = vrot.lane.b32.xlu0 %v3903, 96
      %v3922 = vpop.permute.xlu0 %3921
      %3923 = vrot.lane.b32.xlu0 %v3904, 96
      %v3924 = vpop.permute.xlu0 %3923
      %3925 = vrot.lane.b32.xlu0 %v3905, 96
      %v3926 = vpop.permute.xlu0 %3925
      %3927 = vrot.lane.b32.xlu0 %v3906, 96
      %v3928 = vpop.permute.xlu0 %3927
      %3929 = vrot.lane.b32.xlu0 %v3907, 96
      %v3930 = vpop.permute.xlu0 %3929
      %3931 = vrot.lane.b32.xlu0 %v3908, 96
      %v3932 = vpop.permute.xlu0 %3931
      %3933 = vrot.lane.b32.xlu0 %v3909, 96
      %v3934 = vpop.permute.xlu0 %3933
      %3935 = vrot.lane.b32.xlu0 %v3910, 96
      %v3936 = vpop.permute.xlu0 %3935
      %3937 = vrot.lane.b32.xlu0 %v3911, 96
      %v3938 = vpop.permute.xlu0 %3937
      %3939 = vrot.lane.b32.xlu0 %v3912, 96
      %v3940 = vpop.permute.xlu0 %3939
      %3941 = vrot.lane.b32.xlu0 %v3913, 96
      %v3942 = vpop.permute.xlu0 %3941
      %3943 = vrot.lane.b32.xlu0 %v3914, 96
      %v3944 = vpop.permute.xlu0 %3943
      %3945 = vrot.lane.b32.xlu0 %v3915, 96
      %v3946 = vpop.permute.xlu0 %3945
      %3947 = vrot.lane.b32.xlu0 %v3916, 96
      %v3948 = vpop.permute.xlu0 %3947
      %vm3965 = vcmask 913152
      %3966 = vst.msk [vmem:[#allocation4] sm:$0xf] %vm3965, %v3918
      %3967 = vst.msk [vmem:[#allocation4 + $0x8] sm:$0xf] %vm3965, %v3920
      %3968 = vst.msk [vmem:[#allocation4 + $0x10] sm:$0xf] %vm3965, %v3922
      %3969 = vst.msk [vmem:[#allocation4 + $0x18] sm:$0xf] %vm3965, %v3924
      %3970 = vst.msk [vmem:[#allocation4 + $0x20] sm:$0xf] %vm3965, %v3926
      %3971 = vst.msk [vmem:[#allocation4 + $0x28] sm:$0xf] %vm3965, %v3928
      %3972 = vst.msk [vmem:[#allocation4 + $0x30] sm:$0xf] %vm3965, %v3930
      %3973 = vst.msk [vmem:[#allocation4 + $0x38] sm:$0xf] %vm3965, %v3932
      %3974 = vst.msk [vmem:[#allocation4 + $0x40] sm:$0xf] %vm3965, %v3934
      %3975 = vst.msk [vmem:[#allocation4 + $0x48] sm:$0xf] %vm3965, %v3936
      %3976 = vst.msk [vmem:[#allocation4 + $0x50] sm:$0xf] %vm3965, %v3938
      %3977 = vst.msk [vmem:[#allocation4 + $0x58] sm:$0xf] %vm3965, %v3940
      %3978 = vst.msk [vmem:[#allocation4 + $0x60] sm:$0xf] %vm3965, %v3942
      %3979 = vst.msk [vmem:[#allocation4 + $0x68] sm:$0xf] %vm3965, %v3944
      %3980 = vst.msk [vmem:[#allocation4 + $0x70] sm:$0xf] %vm3965, %v3946
      %3981 = vst.msk [vmem:[#allocation4 + $0x78] sm:$0xf] %vm3965, %v3948
      %v3982 = vmul.f32 %v3775, %v903
      %v3983 = vmul.f32 %v3779, %v904
      %v3984 = vmul.f32 %v3783, %v905
      %v3985 = vmul.f32 %v3787, %v906
      %v3986 = vmul.f32 %v3791, %v907
      %v3987 = vmul.f32 %v3795, %v908
      %v3988 = vmul.f32 %v3799, %v909
      %v3989 = vmul.f32 %v3803, %v910
      %v3990 = vmul.f32 %v3807, %v911
      %v3991 = vmul.f32 %v3811, %v912
      %v3992 = vmul.f32 %v3815, %v913
      %v3993 = vmul.f32 %v3819, %v914
      %v3994 = vmul.f32 %v3823, %v915
      %v3995 = vmul.f32 %v3827, %v916
      %v3996 = vmul.f32 %v3831, %v917
      %v3997 = vmul.f32 %v3835, %v918
      %v3998 = vmul.f32 %v3695, %v919
      %v3999 = vmul.f32 %v3699, %v920
      %v4000 = vmul.f32 %v3703, %v921
      %v4001 = vmul.f32 %v3707, %v922
      %v4002 = vmul.f32 %v3711, %v923
      %v4003 = vmul.f32 %v3715, %v924
      %v4004 = vmul.f32 %v3719, %v925
      %v4005 = vmul.f32 %v3723, %v926
      %v4006 = vmul.f32 %v3727, %v927
      %v4007 = vmul.f32 %v3731, %v928
      %v4008 = vmul.f32 %v3735, %v929
      %v4009 = vmul.f32 %v3739, %v930
      %v4010 = vmul.f32 %v3743, %v931
      %v4011 = vmul.f32 %v3747, %v932
      %v4012 = vmul.f32 %v3751, %v933
      %v4013 = vmul.f32 %v3755, %v934
      %v4014 = vadd.f32 %v3982, %v3998
      %v4015 = vadd.f32 %v3983, %v3999
      %v4016 = vadd.f32 %v3984, %v4000
      %v4017 = vadd.f32 %v3985, %v4001
      %v4018 = vadd.f32 %v3986, %v4002
      %v4019 = vadd.f32 %v3987, %v4003
      %v4020 = vadd.f32 %v3988, %v4004
      %v4021 = vadd.f32 %v3989, %v4005
      %v4022 = vadd.f32 %v3990, %v4006
      %v4023 = vadd.f32 %v3991, %v4007
      %v4024 = vadd.f32 %v3992, %v4008
      %v4025 = vadd.f32 %v3993, %v4009
      %v4026 = vadd.f32 %v3994, %v4010
      %v4027 = vadd.f32 %v3995, %v4011
      %v4028 = vadd.f32 %v3996, %v4012
      %v4029 = vadd.f32 %v3997, %v4013
      %v4030 = vsub.f32 0.0, %v4014
      %v4031 = vsub.f32 0.0, %v4015
      %v4032 = vsub.f32 0.0, %v4016
      %v4033 = vsub.f32 0.0, %v4017
      %v4034 = vsub.f32 0.0, %v4018
      %v4035 = vsub.f32 0.0, %v4019
      %v4036 = vsub.f32 0.0, %v4020
      %v4037 = vsub.f32 0.0, %v4021
      %v4038 = vsub.f32 0.0, %v4022
      %v4039 = vsub.f32 0.0, %v4023
      %v4040 = vsub.f32 0.0, %v4024
      %v4041 = vsub.f32 0.0, %v4025
      %v4042 = vsub.f32 0.0, %v4026
      %v4043 = vsub.f32 0.0, %v4027
      %v4044 = vsub.f32 0.0, %v4028
      %v4045 = vsub.f32 0.0, %v4029
      %v4046 = vpack.c.bf16 %v4031, %v4030
      %v4047 = vpack.c.bf16 %v4033, %v4032
      %v4048 = vpack.c.bf16 %v4035, %v4034
      %v4049 = vpack.c.bf16 %v4037, %v4036
      %v4050 = vpack.c.bf16 %v4039, %v4038
      %v4051 = vpack.c.bf16 %v4041, %v4040
      %v4052 = vpack.c.bf16 %v4043, %v4042
      %v4053 = vpack.c.bf16 %v4045, %v4044
      %v4062 = vunpack.c.l.b16 %v4046
      %v4063 = vunpack.c.h.b16 %v4046
      %v4064 = vunpack.c.l.b16 %v4047
      %v4065 = vunpack.c.h.b16 %v4047
      %v4066 = vunpack.c.l.b16 %v4048
      %v4067 = vunpack.c.h.b16 %v4048
      %v4068 = vunpack.c.l.b16 %v4049
      %v4069 = vunpack.c.h.b16 %v4049
      %v4070 = vunpack.c.l.b16 %v4050
      %v4071 = vunpack.c.h.b16 %v4050
      %v4072 = vunpack.c.l.b16 %v4051
      %v4073 = vunpack.c.h.b16 %v4051
      %v4074 = vunpack.c.l.b16 %v4052
      %v4075 = vunpack.c.h.b16 %v4052
      %v4076 = vunpack.c.l.b16 %v4053
      %v4077 = vunpack.c.h.b16 %v4053
      %v4078 = vpack.c.b16 %v4062, %v4062
      %v4079 = vpack.c.b16 %v4063, %v4063
      %v4080 = vpack.c.b16 %v4064, %v4064
      %v4081 = vpack.c.b16 %v4065, %v4065
      %v4082 = vpack.c.b16 %v4066, %v4066
      %v4083 = vpack.c.b16 %v4067, %v4067
      %v4084 = vpack.c.b16 %v4068, %v4068
      %v4085 = vpack.c.b16 %v4069, %v4069
      %v4086 = vpack.c.b16 %v4070, %v4070
      %v4087 = vpack.c.b16 %v4071, %v4071
      %v4088 = vpack.c.b16 %v4072, %v4072
      %v4089 = vpack.c.b16 %v4073, %v4073
      %v4090 = vpack.c.b16 %v4074, %v4074
      %v4091 = vpack.c.b16 %v4075, %v4075
      %v4092 = vpack.c.b16 %v4076, %v4076
      %v4093 = vpack.c.b16 %v4077, %v4077
      %4094 = vrot.lane.b32.xlu0 %v4078, 96
      %v4095 = vpop.permute.xlu0 %4094
      %4096 = vrot.lane.b32.xlu0 %v4079, 96
      %v4097 = vpop.permute.xlu0 %4096
      %4098 = vrot.lane.b32.xlu0 %v4080, 96
      %v4099 = vpop.permute.xlu0 %4098
      %4100 = vrot.lane.b32.xlu0 %v4081, 96
      %v4101 = vpop.permute.xlu0 %4100
      %4102 = vrot.lane.b32.xlu0 %v4082, 96
      %v4103 = vpop.permute.xlu0 %4102
      %4104 = vrot.lane.b32.xlu0 %v4083, 96
      %v4105 = vpop.permute.xlu0 %4104
      %4106 = vrot.lane.b32.xlu0 %v4084, 96
      %v4107 = vpop.permute.xlu0 %4106
      %4108 = vrot.lane.b32.xlu0 %v4085, 96
      %v4109 = vpop.permute.xlu0 %4108
      %4110 = vrot.lane.b32.xlu0 %v4086, 96
      %v4111 = vpop.permute.xlu0 %4110
      %4112 = vrot.lane.b32.xlu0 %v4087, 96
      %v4113 = vpop.permute.xlu0 %4112
      %4114 = vrot.lane.b32.xlu0 %v4088, 96
      %v4115 = vpop.permute.xlu0 %4114
      %4116 = vrot.lane.b32.xlu0 %v4089, 96
      %v4117 = vpop.permute.xlu0 %4116
      %4118 = vrot.lane.b32.xlu0 %v4090, 96
      %v4119 = vpop.permute.xlu0 %4118
      %4120 = vrot.lane.b32.xlu0 %v4091, 96
      %v4121 = vpop.permute.xlu0 %4120
      %4122 = vrot.lane.b32.xlu0 %v4092, 96
      %v4123 = vpop.permute.xlu0 %4122
      %4124 = vrot.lane.b32.xlu0 %v4093, 96
      %v4125 = vpop.permute.xlu0 %4124
      %4142 = vst.msk [vmem:[#allocation5] sm:$0xf] %vm3965, %v4095
      %4143 = vst.msk [vmem:[#allocation5 + $0x8] sm:$0xf] %vm3965, %v4097
      %4144 = vst.msk [vmem:[#allocation5 + $0x10] sm:$0xf] %vm3965, %v4099
      %4145 = vst.msk [vmem:[#allocation5 + $0x18] sm:$0xf] %vm3965, %v4101
      %4146 = vst.msk [vmem:[#allocation5 + $0x20] sm:$0xf] %vm3965, %v4103
      %4147 = vst.msk [vmem:[#allocation5 + $0x28] sm:$0xf] %vm3965, %v4105
      %4148 = vst.msk [vmem:[#allocation5 + $0x30] sm:$0xf] %vm3965, %v4107
      %4149 = vst.msk [vmem:[#allocation5 + $0x38] sm:$0xf] %vm3965, %v4109
      %4150 = vst.msk [vmem:[#allocation5 + $0x40] sm:$0xf] %vm3965, %v4111
      %4151 = vst.msk [vmem:[#allocation5 + $0x48] sm:$0xf] %vm3965, %v4113
      %4152 = vst.msk [vmem:[#allocation5 + $0x50] sm:$0xf] %vm3965, %v4115
      %4153 = vst.msk [vmem:[#allocation5 + $0x58] sm:$0xf] %vm3965, %v4117
      %4154 = vst.msk [vmem:[#allocation5 + $0x60] sm:$0xf] %vm3965, %v4119
      %4155 = vst.msk [vmem:[#allocation5 + $0x68] sm:$0xf] %vm3965, %v4121
      %4156 = vst.msk [vmem:[#allocation5 + $0x70] sm:$0xf] %vm3965, %v4123
      %4157 = vst.msk [vmem:[#allocation5 + $0x78] sm:$0xf] %vm3965, %v4125
      %4158 = vset.pattern.permute.xlu0 7
      %4159 = vperm.xlu0 %4158, %v871
      %v4160 = vpop.permute.xlu0 %4159
      %4162 = vset.pattern.permute.xlu0 7
      %4163 = vperm.xlu0 %4162, %v872
      %v4164 = vpop.permute.xlu0 %4163
      %4166 = vset.pattern.permute.xlu0 7
      %4167 = vperm.xlu0 %4166, %v873
      %v4168 = vpop.permute.xlu0 %4167
      %4170 = vset.pattern.permute.xlu0 7
      %4171 = vperm.xlu0 %4170, %v874
      %v4172 = vpop.permute.xlu0 %4171
      %4174 = vset.pattern.permute.xlu0 7
      %4175 = vperm.xlu0 %4174, %v875
      %v4176 = vpop.permute.xlu0 %4175
      %4178 = vset.pattern.permute.xlu0 7
      %4179 = vperm.xlu0 %4178, %v876
      %v4180 = vpop.permute.xlu0 %4179
      %4182 = vset.pattern.permute.xlu0 7
      %4183 = vperm.xlu0 %4182, %v877
      %v4184 = vpop.permute.xlu0 %4183
      %4186 = vset.pattern.permute.xlu0 7
      %4187 = vperm.xlu0 %4186, %v878
      %v4188 = vpop.permute.xlu0 %4187
      %4190 = vset.pattern.permute.xlu0 7
      %4191 = vperm.xlu0 %4190, %v879
      %v4192 = vpop.permute.xlu0 %4191
      %4194 = vset.pattern.permute.xlu0 7
      %4195 = vperm.xlu0 %4194, %v880
      %v4196 = vpop.permute.xlu0 %4195
      %4198 = vset.pattern.permute.xlu0 7
      %4199 = vperm.xlu0 %4198, %v881
      %v4200 = vpop.permute.xlu0 %4199
      %4202 = vset.pattern.permute.xlu0 7
      %4203 = vperm.xlu0 %4202, %v882
      %v4204 = vpop.permute.xlu0 %4203
      %4206 = vset.pattern.permute.xlu0 7
      %4207 = vperm.xlu0 %4206, %v883
      %v4208 = vpop.permute.xlu0 %4207
      %4210 = vset.pattern.permute.xlu0 7
      %4211 = vperm.xlu0 %4210, %v884
      %v4212 = vpop.permute.xlu0 %4211
      %4214 = vset.pattern.permute.xlu0 7
      %4215 = vperm.xlu0 %4214, %v885
      %v4216 = vpop.permute.xlu0 %4215
      %4218 = vset.pattern.permute.xlu0 7
      %4219 = vperm.xlu0 %4218, %v886
      %v4220 = vpop.permute.xlu0 %4219
      %v4222 = vmul.f32 %v4160, %v903
      %v4223 = vmul.f32 %v4164, %v904
      %v4224 = vmul.f32 %v4168, %v905
      %v4225 = vmul.f32 %v4172, %v906
      %v4226 = vmul.f32 %v4176, %v907
      %v4227 = vmul.f32 %v4180, %v908
      %v4228 = vmul.f32 %v4184, %v909
      %v4229 = vmul.f32 %v4188, %v910
      %v4230 = vmul.f32 %v4192, %v911
      %v4231 = vmul.f32 %v4196, %v912
      %v4232 = vmul.f32 %v4200, %v913
      %v4233 = vmul.f32 %v4204, %v914
      %v4234 = vmul.f32 %v4208, %v915
      %v4235 = vmul.f32 %v4212, %v916
      %v4236 = vmul.f32 %v4216, %v917
      %v4237 = vmul.f32 %v4220, %v918
      %4238 = vset.pattern.permute.xlu0 7
      %4239 = vperm.xlu0 %4238, %v887
      %v4240 = vpop.permute.xlu0 %4239
      %4242 = vset.pattern.permute.xlu0 7
      %4243 = vperm.xlu0 %4242, %v888
      %v4244 = vpop.permute.xlu0 %4243
      %4246 = vset.pattern.permute.xlu0 7
      %4247 = vperm.xlu0 %4246, %v889
      %v4248 = vpop.permute.xlu0 %4247
      %4250 = vset.pattern.permute.xlu0 7
      %4251 = vperm.xlu0 %4250, %v890
      %v4252 = vpop.permute.xlu0 %4251
      %4254 = vset.pattern.permute.xlu0 7
      %4255 = vperm.xlu0 %4254, %v891
      %v4256 = vpop.permute.xlu0 %4255
      %4258 = vset.pattern.permute.xlu0 7
      %4259 = vperm.xlu0 %4258, %v892
      %v4260 = vpop.permute.xlu0 %4259
      %4262 = vset.pattern.permute.xlu0 7
      %4263 = vperm.xlu0 %4262, %v893
      %v4264 = vpop.permute.xlu0 %4263
      %4266 = vset.pattern.permute.xlu0 7
      %4267 = vperm.xlu0 %4266, %v894
      %v4268 = vpop.permute.xlu0 %4267
      %4270 = vset.pattern.permute.xlu0 7
      %4271 = vperm.xlu0 %4270, %v895
      %v4272 = vpop.permute.xlu0 %4271
      %4274 = vset.pattern.permute.xlu0 7
      %4275 = vperm.xlu0 %4274, %v896
      %v4276 = vpop.permute.xlu0 %4275
      %4278 = vset.pattern.permute.xlu0 7
      %4279 = vperm.xlu0 %4278, %v897
      %v4280 = vpop.permute.xlu0 %4279
      %4282 = vset.pattern.permute.xlu0 7
      %4283 = vperm.xlu0 %4282, %v898
      %v4284 = vpop.permute.xlu0 %4283
      %4286 = vset.pattern.permute.xlu0 7
      %4287 = vperm.xlu0 %4286, %v899
      %v4288 = vpop.permute.xlu0 %4287
      %4290 = vset.pattern.permute.xlu0 7
      %4291 = vperm.xlu0 %4290, %v900
      %v4292 = vpop.permute.xlu0 %4291
      %4294 = vset.pattern.permute.xlu0 7
      %4295 = vperm.xlu0 %4294, %v901
      %v4296 = vpop.permute.xlu0 %4295
      %4298 = vset.pattern.permute.xlu0 7
      %4299 = vperm.xlu0 %4298, %v902
      %v4300 = vpop.permute.xlu0 %4299
      %v4302 = vmul.f32 %v4240, %v919
      %v4303 = vmul.f32 %v4244, %v920
      %v4304 = vmul.f32 %v4248, %v921
      %v4305 = vmul.f32 %v4252, %v922
      %v4306 = vmul.f32 %v4256, %v923
      %v4307 = vmul.f32 %v4260, %v924
      %v4308 = vmul.f32 %v4264, %v925
      %v4309 = vmul.f32 %v4268, %v926
      %v4310 = vmul.f32 %v4272, %v927
      %v4311 = vmul.f32 %v4276, %v928
      %v4312 = vmul.f32 %v4280, %v929
      %v4313 = vmul.f32 %v4284, %v930
      %v4314 = vmul.f32 %v4288, %v931
      %v4315 = vmul.f32 %v4292, %v932
      %v4316 = vmul.f32 %v4296, %v933
      %v4317 = vmul.f32 %v4300, %v934
      %v4318 = vsub.f32 %v4222, %v4302
      %v4319 = vsub.f32 %v4223, %v4303
      %v4320 = vsub.f32 %v4224, %v4304
      %v4321 = vsub.f32 %v4225, %v4305
      %v4322 = vsub.f32 %v4226, %v4306
      %v4323 = vsub.f32 %v4227, %v4307
      %v4324 = vsub.f32 %v4228, %v4308
      %v4325 = vsub.f32 %v4229, %v4309
      %v4326 = vsub.f32 %v4230, %v4310
      %v4327 = vsub.f32 %v4231, %v4311
      %v4328 = vsub.f32 %v4232, %v4312
      %v4329 = vsub.f32 %v4233, %v4313
      %v4330 = vsub.f32 %v4234, %v4314
      %v4331 = vsub.f32 %v4235, %v4315
      %v4332 = vsub.f32 %v4236, %v4316
      %v4333 = vsub.f32 %v4237, %v4317
      %v4334 = vpack.c.bf16 %v4319, %v4318
      %v4335 = vpack.c.bf16 %v4321, %v4320
      %v4336 = vpack.c.bf16 %v4323, %v4322
      %v4337 = vpack.c.bf16 %v4325, %v4324
      %v4338 = vpack.c.bf16 %v4327, %v4326
      %v4339 = vpack.c.bf16 %v4329, %v4328
      %v4340 = vpack.c.bf16 %v4331, %v4330
      %v4341 = vpack.c.bf16 %v4333, %v4332
      %v4350 = vunpack.c.l.b16 %v4334
      %v4351 = vunpack.c.h.b16 %v4334
      %v4352 = vunpack.c.l.b16 %v4335
      %v4353 = vunpack.c.h.b16 %v4335
      %v4354 = vunpack.c.l.b16 %v4336
      %v4355 = vunpack.c.h.b16 %v4336
      %v4356 = vunpack.c.l.b16 %v4337
      %v4357 = vunpack.c.h.b16 %v4337
      %v4358 = vunpack.c.l.b16 %v4338
      %v4359 = vunpack.c.h.b16 %v4338
      %v4360 = vunpack.c.l.b16 %v4339
      %v4361 = vunpack.c.h.b16 %v4339
      %v4362 = vunpack.c.l.b16 %v4340
      %v4363 = vunpack.c.h.b16 %v4340
      %v4364 = vunpack.c.l.b16 %v4341
      %v4365 = vunpack.c.h.b16 %v4341
      %v4366 = vpack.c.b16 %v4350, %v4350
      %v4367 = vpack.c.b16 %v4351, %v4351
      %v4368 = vpack.c.b16 %v4352, %v4352
      %v4369 = vpack.c.b16 %v4353, %v4353
      %v4370 = vpack.c.b16 %v4354, %v4354
      %v4371 = vpack.c.b16 %v4355, %v4355
      %v4372 = vpack.c.b16 %v4356, %v4356
      %v4373 = vpack.c.b16 %v4357, %v4357
      %v4374 = vpack.c.b16 %v4358, %v4358
      %v4375 = vpack.c.b16 %v4359, %v4359
      %v4376 = vpack.c.b16 %v4360, %v4360
      %v4377 = vpack.c.b16 %v4361, %v4361
      %v4378 = vpack.c.b16 %v4362, %v4362
      %v4379 = vpack.c.b16 %v4363, %v4363
      %v4380 = vpack.c.b16 %v4364, %v4364
      %v4381 = vpack.c.b16 %v4365, %v4365
      %4382 = vrot.lane.b32.xlu0 %v4366, 112
      %v4383 = vpop.permute.xlu0 %4382
      %4384 = vrot.lane.b32.xlu0 %v4367, 112
      %v4385 = vpop.permute.xlu0 %4384
      %4386 = vrot.lane.b32.xlu0 %v4368, 112
      %v4387 = vpop.permute.xlu0 %4386
      %4388 = vrot.lane.b32.xlu0 %v4369, 112
      %v4389 = vpop.permute.xlu0 %4388
      %4390 = vrot.lane.b32.xlu0 %v4370, 112
      %v4391 = vpop.permute.xlu0 %4390
      %4392 = vrot.lane.b32.xlu0 %v4371, 112
      %v4393 = vpop.permute.xlu0 %4392
      %4394 = vrot.lane.b32.xlu0 %v4372, 112
      %v4395 = vpop.permute.xlu0 %4394
      %4396 = vrot.lane.b32.xlu0 %v4373, 112
      %v4397 = vpop.permute.xlu0 %4396
      %4398 = vrot.lane.b32.xlu0 %v4374, 112
      %v4399 = vpop.permute.xlu0 %4398
      %4400 = vrot.lane.b32.xlu0 %v4375, 112
      %v4401 = vpop.permute.xlu0 %4400
      %4402 = vrot.lane.b32.xlu0 %v4376, 112
      %v4403 = vpop.permute.xlu0 %4402
      %4404 = vrot.lane.b32.xlu0 %v4377, 112
      %v4405 = vpop.permute.xlu0 %4404
      %4406 = vrot.lane.b32.xlu0 %v4378, 112
      %v4407 = vpop.permute.xlu0 %4406
      %4408 = vrot.lane.b32.xlu0 %v4379, 112
      %v4409 = vpop.permute.xlu0 %4408
      %4410 = vrot.lane.b32.xlu0 %v4380, 112
      %v4411 = vpop.permute.xlu0 %4410
      %4412 = vrot.lane.b32.xlu0 %v4381, 112
      %v4413 = vpop.permute.xlu0 %4412
      %vm4430 = vcmask 1044352
      %4431 = vst.msk [vmem:[#allocation4] sm:$0xf] %vm4430, %v4383
      %4432 = vst.msk [vmem:[#allocation4 + $0x8] sm:$0xf] %vm4430, %v4385
      %4433 = vst.msk [vmem:[#allocation4 + $0x10] sm:$0xf] %vm4430, %v4387
      %4434 = vst.msk [vmem:[#allocation4 + $0x18] sm:$0xf] %vm4430, %v4389
      %4435 = vst.msk [vmem:[#allocation4 + $0x20] sm:$0xf] %vm4430, %v4391
      %4436 = vst.msk [vmem:[#allocation4 + $0x28] sm:$0xf] %vm4430, %v4393
      %4437 = vst.msk [vmem:[#allocation4 + $0x30] sm:$0xf] %vm4430, %v4395
      %4438 = vst.msk [vmem:[#allocation4 + $0x38] sm:$0xf] %vm4430, %v4397
      %4439 = vst.msk [vmem:[#allocation4 + $0x40] sm:$0xf] %vm4430, %v4399
      %4440 = vst.msk [vmem:[#allocation4 + $0x48] sm:$0xf] %vm4430, %v4401
      %4441 = vst.msk [vmem:[#allocation4 + $0x50] sm:$0xf] %vm4430, %v4403
      %4442 = vst.msk [vmem:[#allocation4 + $0x58] sm:$0xf] %vm4430, %v4405
      %4443 = vst.msk [vmem:[#allocation4 + $0x60] sm:$0xf] %vm4430, %v4407
      %4444 = vst.msk [vmem:[#allocation4 + $0x68] sm:$0xf] %vm4430, %v4409
      %4445 = vst.msk [vmem:[#allocation4 + $0x70] sm:$0xf] %vm4430, %v4411
      %4446 = vst.msk [vmem:[#allocation4 + $0x78] sm:$0xf] %vm4430, %v4413
      %v4447 = vmul.f32 %v4240, %v903
      %v4448 = vmul.f32 %v4244, %v904
      %v4449 = vmul.f32 %v4248, %v905
      %v4450 = vmul.f32 %v4252, %v906
      %v4451 = vmul.f32 %v4256, %v907
      %v4452 = vmul.f32 %v4260, %v908
      %v4453 = vmul.f32 %v4264, %v909
      %v4454 = vmul.f32 %v4268, %v910
      %v4455 = vmul.f32 %v4272, %v911
      %v4456 = vmul.f32 %v4276, %v912
      %v4457 = vmul.f32 %v4280, %v913
      %v4458 = vmul.f32 %v4284, %v914
      %v4459 = vmul.f32 %v4288, %v915
      %v4460 = vmul.f32 %v4292, %v916
      %v4461 = vmul.f32 %v4296, %v917
      %v4462 = vmul.f32 %v4300, %v918
      %v4463 = vmul.f32 %v4160, %v919
      %v4464 = vmul.f32 %v4164, %v920
      %v4465 = vmul.f32 %v4168, %v921
      %v4466 = vmul.f32 %v4172, %v922
      %v4467 = vmul.f32 %v4176, %v923
      %v4468 = vmul.f32 %v4180, %v924
      %v4469 = vmul.f32 %v4184, %v925
      %v4470 = vmul.f32 %v4188, %v926
      %v4471 = vmul.f32 %v4192, %v927
      %v4472 = vmul.f32 %v4196, %v928
      %v4473 = vmul.f32 %v4200, %v929
      %v4474 = vmul.f32 %v4204, %v930
      %v4475 = vmul.f32 %v4208, %v931
      %v4476 = vmul.f32 %v4212, %v932
      %v4477 = vmul.f32 %v4216, %v933
      %v4478 = vmul.f32 %v4220, %v934
      %v4479 = vadd.f32 %v4447, %v4463
      %v4480 = vadd.f32 %v4448, %v4464
      %v4481 = vadd.f32 %v4449, %v4465
      %v4482 = vadd.f32 %v4450, %v4466
      %v4483 = vadd.f32 %v4451, %v4467
      %v4484 = vadd.f32 %v4452, %v4468
      %v4485 = vadd.f32 %v4453, %v4469
      %v4486 = vadd.f32 %v4454, %v4470
      %v4487 = vadd.f32 %v4455, %v4471
      %v4488 = vadd.f32 %v4456, %v4472
      %v4489 = vadd.f32 %v4457, %v4473
      %v4490 = vadd.f32 %v4458, %v4474
      %v4491 = vadd.f32 %v4459, %v4475
      %v4492 = vadd.f32 %v4460, %v4476
      %v4493 = vadd.f32 %v4461, %v4477
      %v4494 = vadd.f32 %v4462, %v4478
      %v4495 = vsub.f32 0.0, %v4479
      %v4496 = vsub.f32 0.0, %v4480
      %v4497 = vsub.f32 0.0, %v4481
      %v4498 = vsub.f32 0.0, %v4482
      %v4499 = vsub.f32 0.0, %v4483
      %v4500 = vsub.f32 0.0, %v4484
      %v4501 = vsub.f32 0.0, %v4485
      %v4502 = vsub.f32 0.0, %v4486
      %v4503 = vsub.f32 0.0, %v4487
      %v4504 = vsub.f32 0.0, %v4488
      %v4505 = vsub.f32 0.0, %v4489
      %v4506 = vsub.f32 0.0, %v4490
      %v4507 = vsub.f32 0.0, %v4491
      %v4508 = vsub.f32 0.0, %v4492
      %v4509 = vsub.f32 0.0, %v4493
      %v4510 = vsub.f32 0.0, %v4494
      %v4511 = vpack.c.bf16 %v4496, %v4495
      %v4512 = vpack.c.bf16 %v4498, %v4497
      %v4513 = vpack.c.bf16 %v4500, %v4499
      %v4514 = vpack.c.bf16 %v4502, %v4501
      %v4515 = vpack.c.bf16 %v4504, %v4503
      %v4516 = vpack.c.bf16 %v4506, %v4505
      %v4517 = vpack.c.bf16 %v4508, %v4507
      %v4518 = vpack.c.bf16 %v4510, %v4509
      %v4527 = vunpack.c.l.b16 %v4511
      %v4528 = vunpack.c.h.b16 %v4511
      %v4529 = vunpack.c.l.b16 %v4512
      %v4530 = vunpack.c.h.b16 %v4512
      %v4531 = vunpack.c.l.b16 %v4513
      %v4532 = vunpack.c.h.b16 %v4513
      %v4533 = vunpack.c.l.b16 %v4514
      %v4534 = vunpack.c.h.b16 %v4514
      %v4535 = vunpack.c.l.b16 %v4515
      %v4536 = vunpack.c.h.b16 %v4515
      %v4537 = vunpack.c.l.b16 %v4516
      %v4538 = vunpack.c.h.b16 %v4516
      %v4539 = vunpack.c.l.b16 %v4517
      %v4540 = vunpack.c.h.b16 %v4517
      %v4541 = vunpack.c.l.b16 %v4518
      %v4542 = vunpack.c.h.b16 %v4518
      %v4543 = vpack.c.b16 %v4527, %v4527
      %v4544 = vpack.c.b16 %v4528, %v4528
      %v4545 = vpack.c.b16 %v4529, %v4529
      %v4546 = vpack.c.b16 %v4530, %v4530
      %v4547 = vpack.c.b16 %v4531, %v4531
      %v4548 = vpack.c.b16 %v4532, %v4532
      %v4549 = vpack.c.b16 %v4533, %v4533
      %v4550 = vpack.c.b16 %v4534, %v4534
      %v4551 = vpack.c.b16 %v4535, %v4535
      %v4552 = vpack.c.b16 %v4536, %v4536
      %v4553 = vpack.c.b16 %v4537, %v4537
      %v4554 = vpack.c.b16 %v4538, %v4538
      %v4555 = vpack.c.b16 %v4539, %v4539
      %v4556 = vpack.c.b16 %v4540, %v4540
      %v4557 = vpack.c.b16 %v4541, %v4541
      %v4558 = vpack.c.b16 %v4542, %v4542
      %4559 = vrot.lane.b32.xlu0 %v4543, 112
      %v4560 = vpop.permute.xlu0 %4559
      %4561 = vrot.lane.b32.xlu0 %v4544, 112
      %v4562 = vpop.permute.xlu0 %4561
      %4563 = vrot.lane.b32.xlu0 %v4545, 112
      %v4564 = vpop.permute.xlu0 %4563
      %4565 = vrot.lane.b32.xlu0 %v4546, 112
      %v4566 = vpop.permute.xlu0 %4565
      %4567 = vrot.lane.b32.xlu0 %v4547, 112
      %v4568 = vpop.permute.xlu0 %4567
      %4569 = vrot.lane.b32.xlu0 %v4548, 112
      %v4570 = vpop.permute.xlu0 %4569
      %4571 = vrot.lane.b32.xlu0 %v4549, 112
      %v4572 = vpop.permute.xlu0 %4571
      %4573 = vrot.lane.b32.xlu0 %v4550, 112
      %v4574 = vpop.permute.xlu0 %4573
      %4575 = vrot.lane.b32.xlu0 %v4551, 112
      %v4576 = vpop.permute.xlu0 %4575
      %4577 = vrot.lane.b32.xlu0 %v4552, 112
      %v4578 = vpop.permute.xlu0 %4577
      %4579 = vrot.lane.b32.xlu0 %v4553, 112
      %v4580 = vpop.permute.xlu0 %4579
      %4581 = vrot.lane.b32.xlu0 %v4554, 112
      %v4582 = vpop.permute.xlu0 %4581
      %4583 = vrot.lane.b32.xlu0 %v4555, 112
      %v4584 = vpop.permute.xlu0 %4583
      %4585 = vrot.lane.b32.xlu0 %v4556, 112
      %v4586 = vpop.permute.xlu0 %4585
      %4587 = vrot.lane.b32.xlu0 %v4557, 112
      %v4588 = vpop.permute.xlu0 %4587
      %4589 = vrot.lane.b32.xlu0 %v4558, 112
      %v4590 = vpop.permute.xlu0 %4589
      %4607 = vst.msk [vmem:[#allocation5] sm:$0xf] %vm4430, %v4560
      %4608 = vst.msk [vmem:[#allocation5 + $0x8] sm:$0xf] %vm4430, %v4562
      %4609 = vst.msk [vmem:[#allocation5 + $0x10] sm:$0xf] %vm4430, %v4564
      %4610 = vst.msk [vmem:[#allocation5 + $0x18] sm:$0xf] %vm4430, %v4566
      %4611 = vst.msk [vmem:[#allocation5 + $0x20] sm:$0xf] %vm4430, %v4568
      %4612 = vst.msk [vmem:[#allocation5 + $0x28] sm:$0xf] %vm4430, %v4570
      %4613 = vst.msk [vmem:[#allocation5 + $0x30] sm:$0xf] %vm4430, %v4572
      %4614 = vst.msk [vmem:[#allocation5 + $0x38] sm:$0xf] %vm4430, %v4574
      %4615 = vst.msk [vmem:[#allocation5 + $0x40] sm:$0xf] %vm4430, %v4576
      %4616 = vst.msk [vmem:[#allocation5 + $0x48] sm:$0xf] %vm4430, %v4578
      %4617 = vst.msk [vmem:[#allocation5 + $0x50] sm:$0xf] %vm4430, %v4580
      %4618 = vst.msk [vmem:[#allocation5 + $0x58] sm:$0xf] %vm4430, %v4582
      %4619 = vst.msk [vmem:[#allocation5 + $0x60] sm:$0xf] %vm4430, %v4584
      %4620 = vst.msk [vmem:[#allocation5 + $0x68] sm:$0xf] %vm4430, %v4586
      %4621 = vst.msk [vmem:[#allocation5 + $0x70] sm:$0xf] %vm4430, %v4588
      %4622 = vst.msk [vmem:[#allocation5 + $0x78] sm:$0xf] %vm4430, %v4590
      %4623 = vset.pattern.permute.xlu0 8
      %4624 = vperm.xlu0 %4623, %v871
      %v4625 = vpop.permute.xlu0 %4624
      %4627 = vset.pattern.permute.xlu0 8
      %4628 = vperm.xlu0 %4627, %v872
      %v4629 = vpop.permute.xlu0 %4628
      %4631 = vset.pattern.permute.xlu0 8
      %4632 = vperm.xlu0 %4631, %v873
      %v4633 = vpop.permute.xlu0 %4632
      %4635 = vset.pattern.permute.xlu0 8
      %4636 = vperm.xlu0 %4635, %v874
      %v4637 = vpop.permute.xlu0 %4636
      %4639 = vset.pattern.permute.xlu0 8
      %4640 = vperm.xlu0 %4639, %v875
      %v4641 = vpop.permute.xlu0 %4640
      %4643 = vset.pattern.permute.xlu0 8
      %4644 = vperm.xlu0 %4643, %v876
      %v4645 = vpop.permute.xlu0 %4644
      %4647 = vset.pattern.permute.xlu0 8
      %4648 = vperm.xlu0 %4647, %v877
      %v4649 = vpop.permute.xlu0 %4648
      %4651 = vset.pattern.permute.xlu0 8
      %4652 = vperm.xlu0 %4651, %v878
      %v4653 = vpop.permute.xlu0 %4652
      %4655 = vset.pattern.permute.xlu0 8
      %4656 = vperm.xlu0 %4655, %v879
      %v4657 = vpop.permute.xlu0 %4656
      %4659 = vset.pattern.permute.xlu0 8
      %4660 = vperm.xlu0 %4659, %v880
      %v4661 = vpop.permute.xlu0 %4660
      %4663 = vset.pattern.permute.xlu0 8
      %4664 = vperm.xlu0 %4663, %v881
      %v4665 = vpop.permute.xlu0 %4664
      %4667 = vset.pattern.permute.xlu0 8
      %4668 = vperm.xlu0 %4667, %v882
      %v4669 = vpop.permute.xlu0 %4668
      %4671 = vset.pattern.permute.xlu0 8
      %4672 = vperm.xlu0 %4671, %v883
      %v4673 = vpop.permute.xlu0 %4672
      %4675 = vset.pattern.permute.xlu0 8
      %4676 = vperm.xlu0 %4675, %v884
      %v4677 = vpop.permute.xlu0 %4676
      %4679 = vset.pattern.permute.xlu0 8
      %4680 = vperm.xlu0 %4679, %v885
      %v4681 = vpop.permute.xlu0 %4680
      %4683 = vset.pattern.permute.xlu0 8
      %4684 = vperm.xlu0 %4683, %v886
      %v4685 = vpop.permute.xlu0 %4684
      %v4687 = vmul.f32 %v4625, %v903
      %v4688 = vmul.f32 %v4629, %v904
      %v4689 = vmul.f32 %v4633, %v905
      %v4690 = vmul.f32 %v4637, %v906
      %v4691 = vmul.f32 %v4641, %v907
      %v4692 = vmul.f32 %v4645, %v908
      %v4693 = vmul.f32 %v4649, %v909
      %v4694 = vmul.f32 %v4653, %v910
      %v4695 = vmul.f32 %v4657, %v911
      %v4696 = vmul.f32 %v4661, %v912
      %v4697 = vmul.f32 %v4665, %v913
      %v4698 = vmul.f32 %v4669, %v914
      %v4699 = vmul.f32 %v4673, %v915
      %v4700 = vmul.f32 %v4677, %v916
      %v4701 = vmul.f32 %v4681, %v917
      %v4702 = vmul.f32 %v4685, %v918
      %4703 = vset.pattern.permute.xlu0 8
      %4704 = vperm.xlu0 %4703, %v887
      %v4705 = vpop.permute.xlu0 %4704
      %4707 = vset.pattern.permute.xlu0 8
      %4708 = vperm.xlu0 %4707, %v888
      %v4709 = vpop.permute.xlu0 %4708
      %4711 = vset.pattern.permute.xlu0 8
      %4712 = vperm.xlu0 %4711, %v889
      %v4713 = vpop.permute.xlu0 %4712
      %4715 = vset.pattern.permute.xlu0 8
      %4716 = vperm.xlu0 %4715, %v890
      %v4717 = vpop.permute.xlu0 %4716
      %4719 = vset.pattern.permute.xlu0 8
      %4720 = vperm.xlu0 %4719, %v891
      %v4721 = vpop.permute.xlu0 %4720
      %4723 = vset.pattern.permute.xlu0 8
      %4724 = vperm.xlu0 %4723, %v892
      %v4725 = vpop.permute.xlu0 %4724
      %4727 = vset.pattern.permute.xlu0 8
      %4728 = vperm.xlu0 %4727, %v893
      %v4729 = vpop.permute.xlu0 %4728
      %4731 = vset.pattern.permute.xlu0 8
      %4732 = vperm.xlu0 %4731, %v894
      %v4733 = vpop.permute.xlu0 %4732
      %4735 = vset.pattern.permute.xlu0 8
      %4736 = vperm.xlu0 %4735, %v895
      %v4737 = vpop.permute.xlu0 %4736
      %4739 = vset.pattern.permute.xlu0 8
      %4740 = vperm.xlu0 %4739, %v896
      %v4741 = vpop.permute.xlu0 %4740
      %4743 = vset.pattern.permute.xlu0 8
      %4744 = vperm.xlu0 %4743, %v897
      %v4745 = vpop.permute.xlu0 %4744
      %4747 = vset.pattern.permute.xlu0 8
      %4748 = vperm.xlu0 %4747, %v898
      %v4749 = vpop.permute.xlu0 %4748
      %4751 = vset.pattern.permute.xlu0 8
      %4752 = vperm.xlu0 %4751, %v899
      %v4753 = vpop.permute.xlu0 %4752
      %4755 = vset.pattern.permute.xlu0 8
      %4756 = vperm.xlu0 %4755, %v900
      %v4757 = vpop.permute.xlu0 %4756
      %4759 = vset.pattern.permute.xlu0 8
      %4760 = vperm.xlu0 %4759, %v901
      %v4761 = vpop.permute.xlu0 %4760
      %4763 = vset.pattern.permute.xlu0 8
      %4764 = vperm.xlu0 %4763, %v902
      %v4765 = vpop.permute.xlu0 %4764
      %v4767 = vmul.f32 %v4705, %v919
      %v4768 = vmul.f32 %v4709, %v920
      %v4769 = vmul.f32 %v4713, %v921
      %v4770 = vmul.f32 %v4717, %v922
      %v4771 = vmul.f32 %v4721, %v923
      %v4772 = vmul.f32 %v4725, %v924
      %v4773 = vmul.f32 %v4729, %v925
      %v4774 = vmul.f32 %v4733, %v926
      %v4775 = vmul.f32 %v4737, %v927
      %v4776 = vmul.f32 %v4741, %v928
      %v4777 = vmul.f32 %v4745, %v929
      %v4778 = vmul.f32 %v4749, %v930
      %v4779 = vmul.f32 %v4753, %v931
      %v4780 = vmul.f32 %v4757, %v932
      %v4781 = vmul.f32 %v4761, %v933
      %v4782 = vmul.f32 %v4765, %v934
      %v4783 = vsub.f32 %v4687, %v4767
      %v4784 = vsub.f32 %v4688, %v4768
      %v4785 = vsub.f32 %v4689, %v4769
      %v4786 = vsub.f32 %v4690, %v4770
      %v4787 = vsub.f32 %v4691, %v4771
      %v4788 = vsub.f32 %v4692, %v4772
      %v4789 = vsub.f32 %v4693, %v4773
      %v4790 = vsub.f32 %v4694, %v4774
      %v4791 = vsub.f32 %v4695, %v4775
      %v4792 = vsub.f32 %v4696, %v4776
      %v4793 = vsub.f32 %v4697, %v4777
      %v4794 = vsub.f32 %v4698, %v4778
      %v4795 = vsub.f32 %v4699, %v4779
      %v4796 = vsub.f32 %v4700, %v4780
      %v4797 = vsub.f32 %v4701, %v4781
      %v4798 = vsub.f32 %v4702, %v4782
      %v4799 = vpack.c.bf16 %v4784, %v4783
      %v4800 = vpack.c.bf16 %v4786, %v4785
      %v4801 = vpack.c.bf16 %v4788, %v4787
      %v4802 = vpack.c.bf16 %v4790, %v4789
      %v4803 = vpack.c.bf16 %v4792, %v4791
      %v4804 = vpack.c.bf16 %v4794, %v4793
      %v4805 = vpack.c.bf16 %v4796, %v4795
      %v4806 = vpack.c.bf16 %v4798, %v4797
      %v4815 = vunpack.c.l.b16 %v4799
      %v4816 = vunpack.c.h.b16 %v4799
      %v4817 = vunpack.c.l.b16 %v4800
      %v4818 = vunpack.c.h.b16 %v4800
      %v4819 = vunpack.c.l.b16 %v4801
      %v4820 = vunpack.c.h.b16 %v4801
      %v4821 = vunpack.c.l.b16 %v4802
      %v4822 = vunpack.c.h.b16 %v4802
      %v4823 = vunpack.c.l.b16 %v4803
      %v4824 = vunpack.c.h.b16 %v4803
      %v4825 = vunpack.c.l.b16 %v4804
      %v4826 = vunpack.c.h.b16 %v4804
      %v4827 = vunpack.c.l.b16 %v4805
      %v4828 = vunpack.c.h.b16 %v4805
      %v4829 = vunpack.c.l.b16 %v4806
      %v4830 = vunpack.c.h.b16 %v4806
      %v4831 = vpack.c.b16 %v4815, %v4815
      %v4832 = vpack.c.b16 %v4816, %v4816
      %v4833 = vpack.c.b16 %v4817, %v4817
      %v4834 = vpack.c.b16 %v4818, %v4818
      %v4835 = vpack.c.b16 %v4819, %v4819
      %v4836 = vpack.c.b16 %v4820, %v4820
      %v4837 = vpack.c.b16 %v4821, %v4821
      %v4838 = vpack.c.b16 %v4822, %v4822
      %v4839 = vpack.c.b16 %v4823, %v4823
      %v4840 = vpack.c.b16 %v4824, %v4824
      %v4841 = vpack.c.b16 %v4825, %v4825
      %v4842 = vpack.c.b16 %v4826, %v4826
      %v4843 = vpack.c.b16 %v4827, %v4827
      %v4844 = vpack.c.b16 %v4828, %v4828
      %v4845 = vpack.c.b16 %v4829, %v4829
      %v4846 = vpack.c.b16 %v4830, %v4830
      %4863 = vst.msk [vmem:[#allocation4 + $0x4] sm:$0xf] %vm1207, %v4831
      %4864 = vst.msk [vmem:[#allocation4 + $0xc] sm:$0xf] %vm1207, %v4832
      %4865 = vst.msk [vmem:[#allocation4 + $0x14] sm:$0xf] %vm1207, %v4833
      %4866 = vst.msk [vmem:[#allocation4 + $0x1c] sm:$0xf] %vm1207, %v4834
      %4867 = vst.msk [vmem:[#allocation4 + $0x24] sm:$0xf] %vm1207, %v4835
      %4868 = vst.msk [vmem:[#allocation4 + $0x2c] sm:$0xf] %vm1207, %v4836
      %4869 = vst.msk [vmem:[#allocation4 + $0x34] sm:$0xf] %vm1207, %v4837
      %4870 = vst.msk [vmem:[#allocation4 + $0x3c] sm:$0xf] %vm1207, %v4838
      %4871 = vst.msk [vmem:[#allocation4 + $0x44] sm:$0xf] %vm1207, %v4839
      %4872 = vst.msk [vmem:[#allocation4 + $0x4c] sm:$0xf] %vm1207, %v4840
      %4873 = vst.msk [vmem:[#allocation4 + $0x54] sm:$0xf] %vm1207, %v4841
      %4874 = vst.msk [vmem:[#allocation4 + $0x5c] sm:$0xf] %vm1207, %v4842
      %4875 = vst.msk [vmem:[#allocation4 + $0x64] sm:$0xf] %vm1207, %v4843
      %4876 = vst.msk [vmem:[#allocation4 + $0x6c] sm:$0xf] %vm1207, %v4844
      %4877 = vst.msk [vmem:[#allocation4 + $0x74] sm:$0xf] %vm1207, %v4845
      %4878 = vst.msk [vmem:[#allocation4 + $0x7c] sm:$0xf] %vm1207, %v4846
      %v4879 = vmul.f32 %v4705, %v903
      %v4880 = vmul.f32 %v4709, %v904
      %v4881 = vmul.f32 %v4713, %v905
      %v4882 = vmul.f32 %v4717, %v906
      %v4883 = vmul.f32 %v4721, %v907
      %v4884 = vmul.f32 %v4725, %v908
      %v4885 = vmul.f32 %v4729, %v909
      %v4886 = vmul.f32 %v4733, %v910
      %v4887 = vmul.f32 %v4737, %v911
      %v4888 = vmul.f32 %v4741, %v912
      %v4889 = vmul.f32 %v4745, %v913
      %v4890 = vmul.f32 %v4749, %v914
      %v4891 = vmul.f32 %v4753, %v915
      %v4892 = vmul.f32 %v4757, %v916
      %v4893 = vmul.f32 %v4761, %v917
      %v4894 = vmul.f32 %v4765, %v918
      %v4895 = vmul.f32 %v4625, %v919
      %v4896 = vmul.f32 %v4629, %v920
      %v4897 = vmul.f32 %v4633, %v921
      %v4898 = vmul.f32 %v4637, %v922
      %v4899 = vmul.f32 %v4641, %v923
      %v4900 = vmul.f32 %v4645, %v924
      %v4901 = vmul.f32 %v4649, %v925
      %v4902 = vmul.f32 %v4653, %v926
      %v4903 = vmul.f32 %v4657, %v927
      %v4904 = vmul.f32 %v4661, %v928
      %v4905 = vmul.f32 %v4665, %v929
      %v4906 = vmul.f32 %v4669, %v930
      %v4907 = vmul.f32 %v4673, %v931
      %v4908 = vmul.f32 %v4677, %v932
      %v4909 = vmul.f32 %v4681, %v933
      %v4910 = vmul.f32 %v4685, %v934
      %v4911 = vadd.f32 %v4879, %v4895
      %v4912 = vadd.f32 %v4880, %v4896
      %v4913 = vadd.f32 %v4881, %v4897
      %v4914 = vadd.f32 %v4882, %v4898
      %v4915 = vadd.f32 %v4883, %v4899
      %v4916 = vadd.f32 %v4884, %v4900
      %v4917 = vadd.f32 %v4885, %v4901
      %v4918 = vadd.f32 %v4886, %v4902
      %v4919 = vadd.f32 %v4887, %v4903
      %v4920 = vadd.f32 %v4888, %v4904
      %v4921 = vadd.f32 %v4889, %v4905
      %v4922 = vadd.f32 %v4890, %v4906
      %v4923 = vadd.f32 %v4891, %v4907
      %v4924 = vadd.f32 %v4892, %v4908
      %v4925 = vadd.f32 %v4893, %v4909
      %v4926 = vadd.f32 %v4894, %v4910
      %v4927 = vsub.f32 0.0, %v4911
      %v4928 = vsub.f32 0.0, %v4912
      %v4929 = vsub.f32 0.0, %v4913
      %v4930 = vsub.f32 0.0, %v4914
      %v4931 = vsub.f32 0.0, %v4915
      %v4932 = vsub.f32 0.0, %v4916
      %v4933 = vsub.f32 0.0, %v4917
      %v4934 = vsub.f32 0.0, %v4918
      %v4935 = vsub.f32 0.0, %v4919
      %v4936 = vsub.f32 0.0, %v4920
      %v4937 = vsub.f32 0.0, %v4921
      %v4938 = vsub.f32 0.0, %v4922
      %v4939 = vsub.f32 0.0, %v4923
      %v4940 = vsub.f32 0.0, %v4924
      %v4941 = vsub.f32 0.0, %v4925
      %v4942 = vsub.f32 0.0, %v4926
      %v4943 = vpack.c.bf16 %v4928, %v4927
      %v4944 = vpack.c.bf16 %v4930, %v4929
      %v4945 = vpack.c.bf16 %v4932, %v4931
      %v4946 = vpack.c.bf16 %v4934, %v4933
      %v4947 = vpack.c.bf16 %v4936, %v4935
      %v4948 = vpack.c.bf16 %v4938, %v4937
      %v4949 = vpack.c.bf16 %v4940, %v4939
      %v4950 = vpack.c.bf16 %v4942, %v4941
      %v4959 = vunpack.c.l.b16 %v4943
      %v4960 = vunpack.c.h.b16 %v4943
      %v4961 = vunpack.c.l.b16 %v4944
      %v4962 = vunpack.c.h.b16 %v4944
      %v4963 = vunpack.c.l.b16 %v4945
      %v4964 = vunpack.c.h.b16 %v4945
      %v4965 = vunpack.c.l.b16 %v4946
      %v4966 = vunpack.c.h.b16 %v4946
      %v4967 = vunpack.c.l.b16 %v4947
      %v4968 = vunpack.c.h.b16 %v4947
      %v4969 = vunpack.c.l.b16 %v4948
      %v4970 = vunpack.c.h.b16 %v4948
      %v4971 = vunpack.c.l.b16 %v4949
      %v4972 = vunpack.c.h.b16 %v4949
      %v4973 = vunpack.c.l.b16 %v4950
      %v4974 = vunpack.c.h.b16 %v4950
      %v4975 = vpack.c.b16 %v4959, %v4959
      %v4976 = vpack.c.b16 %v4960, %v4960
      %v4977 = vpack.c.b16 %v4961, %v4961
      %v4978 = vpack.c.b16 %v4962, %v4962
      %v4979 = vpack.c.b16 %v4963, %v4963
      %v4980 = vpack.c.b16 %v4964, %v4964
      %v4981 = vpack.c.b16 %v4965, %v4965
      %v4982 = vpack.c.b16 %v4966, %v4966
      %v4983 = vpack.c.b16 %v4967, %v4967
      %v4984 = vpack.c.b16 %v4968, %v4968
      %v4985 = vpack.c.b16 %v4969, %v4969
      %v4986 = vpack.c.b16 %v4970, %v4970
      %v4987 = vpack.c.b16 %v4971, %v4971
      %v4988 = vpack.c.b16 %v4972, %v4972
      %v4989 = vpack.c.b16 %v4973, %v4973
      %v4990 = vpack.c.b16 %v4974, %v4974
      %5007 = vst.msk [vmem:[#allocation5 + $0x4] sm:$0xf] %vm1207, %v4975
      %5008 = vst.msk [vmem:[#allocation5 + $0xc] sm:$0xf] %vm1207, %v4976
      %5009 = vst.msk [vmem:[#allocation5 + $0x14] sm:$0xf] %vm1207, %v4977
      %5010 = vst.msk [vmem:[#allocation5 + $0x1c] sm:$0xf] %vm1207, %v4978
      %5011 = vst.msk [vmem:[#allocation5 + $0x24] sm:$0xf] %vm1207, %v4979
      %5012 = vst.msk [vmem:[#allocation5 + $0x2c] sm:$0xf] %vm1207, %v4980
      %5013 = vst.msk [vmem:[#allocation5 + $0x34] sm:$0xf] %vm1207, %v4981
      %5014 = vst.msk [vmem:[#allocation5 + $0x3c] sm:$0xf] %vm1207, %v4982
      %5015 = vst.msk [vmem:[#allocation5 + $0x44] sm:$0xf] %vm1207, %v4983
      %5016 = vst.msk [vmem:[#allocation5 + $0x4c] sm:$0xf] %vm1207, %v4984
      %5017 = vst.msk [vmem:[#allocation5 + $0x54] sm:$0xf] %vm1207, %v4985
      %5018 = vst.msk [vmem:[#allocation5 + $0x5c] sm:$0xf] %vm1207, %v4986
      %5019 = vst.msk [vmem:[#allocation5 + $0x64] sm:$0xf] %vm1207, %v4987
      %5020 = vst.msk [vmem:[#allocation5 + $0x6c] sm:$0xf] %vm1207, %v4988
      %5021 = vst.msk [vmem:[#allocation5 + $0x74] sm:$0xf] %vm1207, %v4989
      %5022 = vst.msk [vmem:[#allocation5 + $0x7c] sm:$0xf] %vm1207, %v4990
      %5023 = vset.pattern.permute.xlu0 9
      %5024 = vperm.xlu0 %5023, %v871
      %v5025 = vpop.permute.xlu0 %5024
      %5027 = vset.pattern.permute.xlu0 9
      %5028 = vperm.xlu0 %5027, %v872
      %v5029 = vpop.permute.xlu0 %5028
      %5031 = vset.pattern.permute.xlu0 9
      %5032 = vperm.xlu0 %5031, %v873
      %v5033 = vpop.permute.xlu0 %5032
      %5035 = vset.pattern.permute.xlu0 9
      %5036 = vperm.xlu0 %5035, %v874
      %v5037 = vpop.permute.xlu0 %5036
      %5039 = vset.pattern.permute.xlu0 9
      %5040 = vperm.xlu0 %5039, %v875
      %v5041 = vpop.permute.xlu0 %5040
      %5043 = vset.pattern.permute.xlu0 9
      %5044 = vperm.xlu0 %5043, %v876
      %v5045 = vpop.permute.xlu0 %5044
      %5047 = vset.pattern.permute.xlu0 9
      %5048 = vperm.xlu0 %5047, %v877
      %v5049 = vpop.permute.xlu0 %5048
      %5051 = vset.pattern.permute.xlu0 9
      %5052 = vperm.xlu0 %5051, %v878
      %v5053 = vpop.permute.xlu0 %5052
      %5055 = vset.pattern.permute.xlu0 9
      %5056 = vperm.xlu0 %5055, %v879
      %v5057 = vpop.permute.xlu0 %5056
      %5059 = vset.pattern.permute.xlu0 9
      %5060 = vperm.xlu0 %5059, %v880
      %v5061 = vpop.permute.xlu0 %5060
      %5063 = vset.pattern.permute.xlu0 9
      %5064 = vperm.xlu0 %5063, %v881
      %v5065 = vpop.permute.xlu0 %5064
      %5067 = vset.pattern.permute.xlu0 9
      %5068 = vperm.xlu0 %5067, %v882
      %v5069 = vpop.permute.xlu0 %5068
      %5071 = vset.pattern.permute.xlu0 9
      %5072 = vperm.xlu0 %5071, %v883
      %v5073 = vpop.permute.xlu0 %5072
      %5075 = vset.pattern.permute.xlu0 9
      %5076 = vperm.xlu0 %5075, %v884
      %v5077 = vpop.permute.xlu0 %5076
      %5079 = vset.pattern.permute.xlu0 9
      %5080 = vperm.xlu0 %5079, %v885
      %v5081 = vpop.permute.xlu0 %5080
      %5083 = vset.pattern.permute.xlu0 9
      %5084 = vperm.xlu0 %5083, %v886
      %v5085 = vpop.permute.xlu0 %5084
      %v5087 = vmul.f32 %v5025, %v903
      %v5088 = vmul.f32 %v5029, %v904
      %v5089 = vmul.f32 %v5033, %v905
      %v5090 = vmul.f32 %v5037, %v906
      %v5091 = vmul.f32 %v5041, %v907
      %v5092 = vmul.f32 %v5045, %v908
      %v5093 = vmul.f32 %v5049, %v909
      %v5094 = vmul.f32 %v5053, %v910
      %v5095 = vmul.f32 %v5057, %v911
      %v5096 = vmul.f32 %v5061, %v912
      %v5097 = vmul.f32 %v5065, %v913
      %v5098 = vmul.f32 %v5069, %v914
      %v5099 = vmul.f32 %v5073, %v915
      %v5100 = vmul.f32 %v5077, %v916
      %v5101 = vmul.f32 %v5081, %v917
      %v5102 = vmul.f32 %v5085, %v918
      %5103 = vset.pattern.permute.xlu0 9
      %5104 = vperm.xlu0 %5103, %v887
      %v5105 = vpop.permute.xlu0 %5104
      %5107 = vset.pattern.permute.xlu0 9
      %5108 = vperm.xlu0 %5107, %v888
      %v5109 = vpop.permute.xlu0 %5108
      %5111 = vset.pattern.permute.xlu0 9
      %5112 = vperm.xlu0 %5111, %v889
      %v5113 = vpop.permute.xlu0 %5112
      %5115 = vset.pattern.permute.xlu0 9
      %5116 = vperm.xlu0 %5115, %v890
      %v5117 = vpop.permute.xlu0 %5116
      %5119 = vset.pattern.permute.xlu0 9
      %5120 = vperm.xlu0 %5119, %v891
      %v5121 = vpop.permute.xlu0 %5120
      %5123 = vset.pattern.permute.xlu0 9
      %5124 = vperm.xlu0 %5123, %v892
      %v5125 = vpop.permute.xlu0 %5124
      %5127 = vset.pattern.permute.xlu0 9
      %5128 = vperm.xlu0 %5127, %v893
      %v5129 = vpop.permute.xlu0 %5128
      %5131 = vset.pattern.permute.xlu0 9
      %5132 = vperm.xlu0 %5131, %v894
      %v5133 = vpop.permute.xlu0 %5132
      %5135 = vset.pattern.permute.xlu0 9
      %5136 = vperm.xlu0 %5135, %v895
      %v5137 = vpop.permute.xlu0 %5136
      %5139 = vset.pattern.permute.xlu0 9
      %5140 = vperm.xlu0 %5139, %v896
      %v5141 = vpop.permute.xlu0 %5140
      %5143 = vset.pattern.permute.xlu0 9
      %5144 = vperm.xlu0 %5143, %v897
      %v5145 = vpop.permute.xlu0 %5144
      %5147 = vset.pattern.permute.xlu0 9
      %5148 = vperm.xlu0 %5147, %v898
      %v5149 = vpop.permute.xlu0 %5148
      %5151 = vset.pattern.permute.xlu0 9
      %5152 = vperm.xlu0 %5151, %v899
      %v5153 = vpop.permute.xlu0 %5152
      %5155 = vset.pattern.permute.xlu0 9
      %5156 = vperm.xlu0 %5155, %v900
      %v5157 = vpop.permute.xlu0 %5156
      %5159 = vset.pattern.permute.xlu0 9
      %5160 = vperm.xlu0 %5159, %v901
      %v5161 = vpop.permute.xlu0 %5160
      %5163 = vset.pattern.permute.xlu0 9
      %5164 = vperm.xlu0 %5163, %v902
      %v5165 = vpop.permute.xlu0 %5164
      %v5167 = vmul.f32 %v5105, %v919
      %v5168 = vmul.f32 %v5109, %v920
      %v5169 = vmul.f32 %v5113, %v921
      %v5170 = vmul.f32 %v5117, %v922
      %v5171 = vmul.f32 %v5121, %v923
      %v5172 = vmul.f32 %v5125, %v924
      %v5173 = vmul.f32 %v5129, %v925
      %v5174 = vmul.f32 %v5133, %v926
      %v5175 = vmul.f32 %v5137, %v927
      %v5176 = vmul.f32 %v5141, %v928
      %v5177 = vmul.f32 %v5145, %v929
      %v5178 = vmul.f32 %v5149, %v930
      %v5179 = vmul.f32 %v5153, %v931
      %v5180 = vmul.f32 %v5157, %v932
      %v5181 = vmul.f32 %v5161, %v933
      %v5182 = vmul.f32 %v5165, %v934
      %v5183 = vsub.f32 %v5087, %v5167
      %v5184 = vsub.f32 %v5088, %v5168
      %v5185 = vsub.f32 %v5089, %v5169
      %v5186 = vsub.f32 %v5090, %v5170
      %v5187 = vsub.f32 %v5091, %v5171
      %v5188 = vsub.f32 %v5092, %v5172
      %v5189 = vsub.f32 %v5093, %v5173
      %v5190 = vsub.f32 %v5094, %v5174
      %v5191 = vsub.f32 %v5095, %v5175
      %v5192 = vsub.f32 %v5096, %v5176
      %v5193 = vsub.f32 %v5097, %v5177
      %v5194 = vsub.f32 %v5098, %v5178
      %v5195 = vsub.f32 %v5099, %v5179
      %v5196 = vsub.f32 %v5100, %v5180
      %v5197 = vsub.f32 %v5101, %v5181
      %v5198 = vsub.f32 %v5102, %v5182
      %v5199 = vpack.c.bf16 %v5184, %v5183
      %v5200 = vpack.c.bf16 %v5186, %v5185
      %v5201 = vpack.c.bf16 %v5188, %v5187
      %v5202 = vpack.c.bf16 %v5190, %v5189
      %v5203 = vpack.c.bf16 %v5192, %v5191
      %v5204 = vpack.c.bf16 %v5194, %v5193
      %v5205 = vpack.c.bf16 %v5196, %v5195
      %v5206 = vpack.c.bf16 %v5198, %v5197
      %v5215 = vunpack.c.l.b16 %v5199
      %v5216 = vunpack.c.h.b16 %v5199
      %v5217 = vunpack.c.l.b16 %v5200
      %v5218 = vunpack.c.h.b16 %v5200
      %v5219 = vunpack.c.l.b16 %v5201
      %v5220 = vunpack.c.h.b16 %v5201
      %v5221 = vunpack.c.l.b16 %v5202
      %v5222 = vunpack.c.h.b16 %v5202
      %v5223 = vunpack.c.l.b16 %v5203
      %v5224 = vunpack.c.h.b16 %v5203
      %v5225 = vunpack.c.l.b16 %v5204
      %v5226 = vunpack.c.h.b16 %v5204
      %v5227 = vunpack.c.l.b16 %v5205
      %v5228 = vunpack.c.h.b16 %v5205
      %v5229 = vunpack.c.l.b16 %v5206
      %v5230 = vunpack.c.h.b16 %v5206
      %v5231 = vpack.c.b16 %v5215, %v5215
      %v5232 = vpack.c.b16 %v5216, %v5216
      %v5233 = vpack.c.b16 %v5217, %v5217
      %v5234 = vpack.c.b16 %v5218, %v5218
      %v5235 = vpack.c.b16 %v5219, %v5219
      %v5236 = vpack.c.b16 %v5220, %v5220
      %v5237 = vpack.c.b16 %v5221, %v5221
      %v5238 = vpack.c.b16 %v5222, %v5222
      %v5239 = vpack.c.b16 %v5223, %v5223
      %v5240 = vpack.c.b16 %v5224, %v5224
      %v5241 = vpack.c.b16 %v5225, %v5225
      %v5242 = vpack.c.b16 %v5226, %v5226
      %v5243 = vpack.c.b16 %v5227, %v5227
      %v5244 = vpack.c.b16 %v5228, %v5228
      %v5245 = vpack.c.b16 %v5229, %v5229
      %v5246 = vpack.c.b16 %v5230, %v5230
      %5247 = vrot.lane.b32.xlu0 %v5231, 16
      %v5248 = vpop.permute.xlu0 %5247
      %5249 = vrot.lane.b32.xlu0 %v5232, 16
      %v5250 = vpop.permute.xlu0 %5249
      %5251 = vrot.lane.b32.xlu0 %v5233, 16
      %v5252 = vpop.permute.xlu0 %5251
      %5253 = vrot.lane.b32.xlu0 %v5234, 16
      %v5254 = vpop.permute.xlu0 %5253
      %5255 = vrot.lane.b32.xlu0 %v5235, 16
      %v5256 = vpop.permute.xlu0 %5255
      %5257 = vrot.lane.b32.xlu0 %v5236, 16
      %v5258 = vpop.permute.xlu0 %5257
      %5259 = vrot.lane.b32.xlu0 %v5237, 16
      %v5260 = vpop.permute.xlu0 %5259
      %5261 = vrot.lane.b32.xlu0 %v5238, 16
      %v5262 = vpop.permute.xlu0 %5261
      %5263 = vrot.lane.b32.xlu0 %v5239, 16
      %v5264 = vpop.permute.xlu0 %5263
      %5265 = vrot.lane.b32.xlu0 %v5240, 16
      %v5266 = vpop.permute.xlu0 %5265
      %5267 = vrot.lane.b32.xlu0 %v5241, 16
      %v5268 = vpop.permute.xlu0 %5267
      %5269 = vrot.lane.b32.xlu0 %v5242, 16
      %v5270 = vpop.permute.xlu0 %5269
      %5271 = vrot.lane.b32.xlu0 %v5243, 16
      %v5272 = vpop.permute.xlu0 %5271
      %5273 = vrot.lane.b32.xlu0 %v5244, 16
      %v5274 = vpop.permute.xlu0 %5273
      %5275 = vrot.lane.b32.xlu0 %v5245, 16
      %v5276 = vpop.permute.xlu0 %5275
      %5277 = vrot.lane.b32.xlu0 %v5246, 16
      %v5278 = vpop.permute.xlu0 %5277
      %5295 = vst.msk [vmem:[#allocation4 + $0x4] sm:$0xf] %vm1640, %v5248
      %5296 = vst.msk [vmem:[#allocation4 + $0xc] sm:$0xf] %vm1640, %v5250
      %5297 = vst.msk [vmem:[#allocation4 + $0x14] sm:$0xf] %vm1640, %v5252
      %5298 = vst.msk [vmem:[#allocation4 + $0x1c] sm:$0xf] %vm1640, %v5254
      %5299 = vst.msk [vmem:[#allocation4 + $0x24] sm:$0xf] %vm1640, %v5256
      %5300 = vst.msk [vmem:[#allocation4 + $0x2c] sm:$0xf] %vm1640, %v5258
      %5301 = vst.msk [vmem:[#allocation4 + $0x34] sm:$0xf] %vm1640, %v5260
      %5302 = vst.msk [vmem:[#allocation4 + $0x3c] sm:$0xf] %vm1640, %v5262
      %5303 = vst.msk [vmem:[#allocation4 + $0x44] sm:$0xf] %vm1640, %v5264
      %5304 = vst.msk [vmem:[#allocation4 + $0x4c] sm:$0xf] %vm1640, %v5266
      %5305 = vst.msk [vmem:[#allocation4 + $0x54] sm:$0xf] %vm1640, %v5268
      %5306 = vst.msk [vmem:[#allocation4 + $0x5c] sm:$0xf] %vm1640, %v5270
      %5307 = vst.msk [vmem:[#allocation4 + $0x64] sm:$0xf] %vm1640, %v5272
      %5308 = vst.msk [vmem:[#allocation4 + $0x6c] sm:$0xf] %vm1640, %v5274
      %5309 = vst.msk [vmem:[#allocation4 + $0x74] sm:$0xf] %vm1640, %v5276
      %5310 = vst.msk [vmem:[#allocation4 + $0x7c] sm:$0xf] %vm1640, %v5278
      %v5311 = vmul.f32 %v5105, %v903
      %v5312 = vmul.f32 %v5109, %v904
      %v5313 = vmul.f32 %v5113, %v905
      %v5314 = vmul.f32 %v5117, %v906
      %v5315 = vmul.f32 %v5121, %v907
      %v5316 = vmul.f32 %v5125, %v908
      %v5317 = vmul.f32 %v5129, %v909
      %v5318 = vmul.f32 %v5133, %v910
      %v5319 = vmul.f32 %v5137, %v911
      %v5320 = vmul.f32 %v5141, %v912
      %v5321 = vmul.f32 %v5145, %v913
      %v5322 = vmul.f32 %v5149, %v914
      %v5323 = vmul.f32 %v5153, %v915
      %v5324 = vmul.f32 %v5157, %v916
      %v5325 = vmul.f32 %v5161, %v917
      %v5326 = vmul.f32 %v5165, %v918
      %v5327 = vmul.f32 %v5025, %v919
      %v5328 = vmul.f32 %v5029, %v920
      %v5329 = vmul.f32 %v5033, %v921
      %v5330 = vmul.f32 %v5037, %v922
      %v5331 = vmul.f32 %v5041, %v923
      %v5332 = vmul.f32 %v5045, %v924
      %v5333 = vmul.f32 %v5049, %v925
      %v5334 = vmul.f32 %v5053, %v926
      %v5335 = vmul.f32 %v5057, %v927
      %v5336 = vmul.f32 %v5061, %v928
      %v5337 = vmul.f32 %v5065, %v929
      %v5338 = vmul.f32 %v5069, %v930
      %v5339 = vmul.f32 %v5073, %v931
      %v5340 = vmul.f32 %v5077, %v932
      %v5341 = vmul.f32 %v5081, %v933
      %v5342 = vmul.f32 %v5085, %v934
      %v5343 = vadd.f32 %v5311, %v5327
      %v5344 = vadd.f32 %v5312, %v5328
      %v5345 = vadd.f32 %v5313, %v5329
      %v5346 = vadd.f32 %v5314, %v5330
      %v5347 = vadd.f32 %v5315, %v5331
      %v5348 = vadd.f32 %v5316, %v5332
      %v5349 = vadd.f32 %v5317, %v5333
      %v5350 = vadd.f32 %v5318, %v5334
      %v5351 = vadd.f32 %v5319, %v5335
      %v5352 = vadd.f32 %v5320, %v5336
      %v5353 = vadd.f32 %v5321, %v5337
      %v5354 = vadd.f32 %v5322, %v5338
      %v5355 = vadd.f32 %v5323, %v5339
      %v5356 = vadd.f32 %v5324, %v5340
      %v5357 = vadd.f32 %v5325, %v5341
      %v5358 = vadd.f32 %v5326, %v5342
      %v5359 = vsub.f32 0.0, %v5343
      %v5360 = vsub.f32 0.0, %v5344
      %v5361 = vsub.f32 0.0, %v5345
      %v5362 = vsub.f32 0.0, %v5346
      %v5363 = vsub.f32 0.0, %v5347
      %v5364 = vsub.f32 0.0, %v5348
      %v5365 = vsub.f32 0.0, %v5349
      %v5366 = vsub.f32 0.0, %v5350
      %v5367 = vsub.f32 0.0, %v5351
      %v5368 = vsub.f32 0.0, %v5352
      %v5369 = vsub.f32 0.0, %v5353
      %v5370 = vsub.f32 0.0, %v5354
      %v5371 = vsub.f32 0.0, %v5355
      %v5372 = vsub.f32 0.0, %v5356
      %v5373 = vsub.f32 0.0, %v5357
      %v5374 = vsub.f32 0.0, %v5358
      %v5375 = vpack.c.bf16 %v5360, %v5359
      %v5376 = vpack.c.bf16 %v5362, %v5361
      %v5377 = vpack.c.bf16 %v5364, %v5363
      %v5378 = vpack.c.bf16 %v5366, %v5365
      %v5379 = vpack.c.bf16 %v5368, %v5367
      %v5380 = vpack.c.bf16 %v5370, %v5369
      %v5381 = vpack.c.bf16 %v5372, %v5371
      %v5382 = vpack.c.bf16 %v5374, %v5373
      %v5391 = vunpack.c.l.b16 %v5375
      %v5392 = vunpack.c.h.b16 %v5375
      %v5393 = vunpack.c.l.b16 %v5376
      %v5394 = vunpack.c.h.b16 %v5376
      %v5395 = vunpack.c.l.b16 %v5377
      %v5396 = vunpack.c.h.b16 %v5377
      %v5397 = vunpack.c.l.b16 %v5378
      %v5398 = vunpack.c.h.b16 %v5378
      %v5399 = vunpack.c.l.b16 %v5379
      %v5400 = vunpack.c.h.b16 %v5379
      %v5401 = vunpack.c.l.b16 %v5380
      %v5402 = vunpack.c.h.b16 %v5380
      %v5403 = vunpack.c.l.b16 %v5381
      %v5404 = vunpack.c.h.b16 %v5381
      %v5405 = vunpack.c.l.b16 %v5382
      %v5406 = vunpack.c.h.b16 %v5382
      %v5407 = vpack.c.b16 %v5391, %v5391
      %v5408 = vpack.c.b16 %v5392, %v5392
      %v5409 = vpack.c.b16 %v5393, %v5393
      %v5410 = vpack.c.b16 %v5394, %v5394
      %v5411 = vpack.c.b16 %v5395, %v5395
      %v5412 = vpack.c.b16 %v5396, %v5396
      %v5413 = vpack.c.b16 %v5397, %v5397
      %v5414 = vpack.c.b16 %v5398, %v5398
      %v5415 = vpack.c.b16 %v5399, %v5399
      %v5416 = vpack.c.b16 %v5400, %v5400
      %v5417 = vpack.c.b16 %v5401, %v5401
      %v5418 = vpack.c.b16 %v5402, %v5402
      %v5419 = vpack.c.b16 %v5403, %v5403
      %v5420 = vpack.c.b16 %v5404, %v5404
      %v5421 = vpack.c.b16 %v5405, %v5405
      %v5422 = vpack.c.b16 %v5406, %v5406
      %5423 = vrot.lane.b32.xlu0 %v5407, 16
      %v5424 = vpop.permute.xlu0 %5423
      %5425 = vrot.lane.b32.xlu0 %v5408, 16
      %v5426 = vpop.permute.xlu0 %5425
      %5427 = vrot.lane.b32.xlu0 %v5409, 16
      %v5428 = vpop.permute.xlu0 %5427
      %5429 = vrot.lane.b32.xlu0 %v5410, 16
      %v5430 = vpop.permute.xlu0 %5429
      %5431 = vrot.lane.b32.xlu0 %v5411, 16
      %v5432 = vpop.permute.xlu0 %5431
      %5433 = vrot.lane.b32.xlu0 %v5412, 16
      %v5434 = vpop.permute.xlu0 %5433
      %5435 = vrot.lane.b32.xlu0 %v5413, 16
      %v5436 = vpop.permute.xlu0 %5435
      %5437 = vrot.lane.b32.xlu0 %v5414, 16
      %v5438 = vpop.permute.xlu0 %5437
      %5439 = vrot.lane.b32.xlu0 %v5415, 16
      %v5440 = vpop.permute.xlu0 %5439
      %5441 = vrot.lane.b32.xlu0 %v5416, 16
      %v5442 = vpop.permute.xlu0 %5441
      %5443 = vrot.lane.b32.xlu0 %v5417, 16
      %v5444 = vpop.permute.xlu0 %5443
      %5445 = vrot.lane.b32.xlu0 %v5418, 16
      %v5446 = vpop.permute.xlu0 %5445
      %5447 = vrot.lane.b32.xlu0 %v5419, 16
      %v5448 = vpop.permute.xlu0 %5447
      %5449 = vrot.lane.b32.xlu0 %v5420, 16
      %v5450 = vpop.permute.xlu0 %5449
      %5451 = vrot.lane.b32.xlu0 %v5421, 16
      %v5452 = vpop.permute.xlu0 %5451
      %5453 = vrot.lane.b32.xlu0 %v5422, 16
      %v5454 = vpop.permute.xlu0 %5453
      %5471 = vst.msk [vmem:[#allocation5 + $0x4] sm:$0xf] %vm1640, %v5424
      %5472 = vst.msk [vmem:[#allocation5 + $0xc] sm:$0xf] %vm1640, %v5426
      %5473 = vst.msk [vmem:[#allocation5 + $0x14] sm:$0xf] %vm1640, %v5428
      %5474 = vst.msk [vmem:[#allocation5 + $0x1c] sm:$0xf] %vm1640, %v5430
      %5475 = vst.msk [vmem:[#allocation5 + $0x24] sm:$0xf] %vm1640, %v5432
      %5476 = vst.msk [vmem:[#allocation5 + $0x2c] sm:$0xf] %vm1640, %v5434
      %5477 = vst.msk [vmem:[#allocation5 + $0x34] sm:$0xf] %vm1640, %v5436
      %5478 = vst.msk [vmem:[#allocation5 + $0x3c] sm:$0xf] %vm1640, %v5438
      %5479 = vst.msk [vmem:[#allocation5 + $0x44] sm:$0xf] %vm1640, %v5440
      %5480 = vst.msk [vmem:[#allocation5 + $0x4c] sm:$0xf] %vm1640, %v5442
      %5481 = vst.msk [vmem:[#allocation5 + $0x54] sm:$0xf] %vm1640, %v5444
      %5482 = vst.msk [vmem:[#allocation5 + $0x5c] sm:$0xf] %vm1640, %v5446
      %5483 = vst.msk [vmem:[#allocation5 + $0x64] sm:$0xf] %vm1640, %v5448
      %5484 = vst.msk [vmem:[#allocation5 + $0x6c] sm:$0xf] %vm1640, %v5450
      %5485 = vst.msk [vmem:[#allocation5 + $0x74] sm:$0xf] %vm1640, %v5452
      %5486 = vst.msk [vmem:[#allocation5 + $0x7c] sm:$0xf] %vm1640, %v5454
      %5487 = vset.pattern.permute.xlu0 10
      %5488 = vperm.xlu0 %5487, %v871
      %v5489 = vpop.permute.xlu0 %5488
      %5491 = vset.pattern.permute.xlu0 10
      %5492 = vperm.xlu0 %5491, %v872
      %v5493 = vpop.permute.xlu0 %5492
      %5495 = vset.pattern.permute.xlu0 10
      %5496 = vperm.xlu0 %5495, %v873
      %v5497 = vpop.permute.xlu0 %5496
      %5499 = vset.pattern.permute.xlu0 10
      %5500 = vperm.xlu0 %5499, %v874
      %v5501 = vpop.permute.xlu0 %5500
      %5503 = vset.pattern.permute.xlu0 10
      %5504 = vperm.xlu0 %5503, %v875
      %v5505 = vpop.permute.xlu0 %5504
      %5507 = vset.pattern.permute.xlu0 10
      %5508 = vperm.xlu0 %5507, %v876
      %v5509 = vpop.permute.xlu0 %5508
      %5511 = vset.pattern.permute.xlu0 10
      %5512 = vperm.xlu0 %5511, %v877
      %v5513 = vpop.permute.xlu0 %5512
      %5515 = vset.pattern.permute.xlu0 10
      %5516 = vperm.xlu0 %5515, %v878
      %v5517 = vpop.permute.xlu0 %5516
      %5519 = vset.pattern.permute.xlu0 10
      %5520 = vperm.xlu0 %5519, %v879
      %v5521 = vpop.permute.xlu0 %5520
      %5523 = vset.pattern.permute.xlu0 10
      %5524 = vperm.xlu0 %5523, %v880
      %v5525 = vpop.permute.xlu0 %5524
      %5527 = vset.pattern.permute.xlu0 10
      %5528 = vperm.xlu0 %5527, %v881
      %v5529 = vpop.permute.xlu0 %5528
      %5531 = vset.pattern.permute.xlu0 10
      %5532 = vperm.xlu0 %5531, %v882
      %v5533 = vpop.permute.xlu0 %5532
      %5535 = vset.pattern.permute.xlu0 10
      %5536 = vperm.xlu0 %5535, %v883
      %v5537 = vpop.permute.xlu0 %5536
      %5539 = vset.pattern.permute.xlu0 10
      %5540 = vperm.xlu0 %5539, %v884
      %v5541 = vpop.permute.xlu0 %5540
      %5543 = vset.pattern.permute.xlu0 10
      %5544 = vperm.xlu0 %5543, %v885
      %v5545 = vpop.permute.xlu0 %5544
      %5547 = vset.pattern.permute.xlu0 10
      %5548 = vperm.xlu0 %5547, %v886
      %v5549 = vpop.permute.xlu0 %5548
      %v5551 = vmul.f32 %v5489, %v903
      %v5552 = vmul.f32 %v5493, %v904
      %v5553 = vmul.f32 %v5497, %v905
      %v5554 = vmul.f32 %v5501, %v906
      %v5555 = vmul.f32 %v5505, %v907
      %v5556 = vmul.f32 %v5509, %v908
      %v5557 = vmul.f32 %v5513, %v909
      %v5558 = vmul.f32 %v5517, %v910
      %v5559 = vmul.f32 %v5521, %v911
      %v5560 = vmul.f32 %v5525, %v912
      %v5561 = vmul.f32 %v5529, %v913
      %v5562 = vmul.f32 %v5533, %v914
      %v5563 = vmul.f32 %v5537, %v915
      %v5564 = vmul.f32 %v5541, %v916
      %v5565 = vmul.f32 %v5545, %v917
      %v5566 = vmul.f32 %v5549, %v918
      %5567 = vset.pattern.permute.xlu0 10
      %5568 = vperm.xlu0 %5567, %v887
      %v5569 = vpop.permute.xlu0 %5568
      %5571 = vset.pattern.permute.xlu0 10
      %5572 = vperm.xlu0 %5571, %v888
      %v5573 = vpop.permute.xlu0 %5572
      %5575 = vset.pattern.permute.xlu0 10
      %5576 = vperm.xlu0 %5575, %v889
      %v5577 = vpop.permute.xlu0 %5576
      %5579 = vset.pattern.permute.xlu0 10
      %5580 = vperm.xlu0 %5579, %v890
      %v5581 = vpop.permute.xlu0 %5580
      %5583 = vset.pattern.permute.xlu0 10
      %5584 = vperm.xlu0 %5583, %v891
      %v5585 = vpop.permute.xlu0 %5584
      %5587 = vset.pattern.permute.xlu0 10
      %5588 = vperm.xlu0 %5587, %v892
      %v5589 = vpop.permute.xlu0 %5588
      %5591 = vset.pattern.permute.xlu0 10
      %5592 = vperm.xlu0 %5591, %v893
      %v5593 = vpop.permute.xlu0 %5592
      %5595 = vset.pattern.permute.xlu0 10
      %5596 = vperm.xlu0 %5595, %v894
      %v5597 = vpop.permute.xlu0 %5596
      %5599 = vset.pattern.permute.xlu0 10
      %5600 = vperm.xlu0 %5599, %v895
      %v5601 = vpop.permute.xlu0 %5600
      %5603 = vset.pattern.permute.xlu0 10
      %5604 = vperm.xlu0 %5603, %v896
      %v5605 = vpop.permute.xlu0 %5604
      %5607 = vset.pattern.permute.xlu0 10
      %5608 = vperm.xlu0 %5607, %v897
      %v5609 = vpop.permute.xlu0 %5608
      %5611 = vset.pattern.permute.xlu0 10
      %5612 = vperm.xlu0 %5611, %v898
      %v5613 = vpop.permute.xlu0 %5612
      %5615 = vset.pattern.permute.xlu0 10
      %5616 = vperm.xlu0 %5615, %v899
      %v5617 = vpop.permute.xlu0 %5616
      %5619 = vset.pattern.permute.xlu0 10
      %5620 = vperm.xlu0 %5619, %v900
      %v5621 = vpop.permute.xlu0 %5620
      %5623 = vset.pattern.permute.xlu0 10
      %5624 = vperm.xlu0 %5623, %v901
      %v5625 = vpop.permute.xlu0 %5624
      %5627 = vset.pattern.permute.xlu0 10
      %5628 = vperm.xlu0 %5627, %v902
      %v5629 = vpop.permute.xlu0 %5628
      %v5631 = vmul.f32 %v5569, %v919
      %v5632 = vmul.f32 %v5573, %v920
      %v5633 = vmul.f32 %v5577, %v921
      %v5634 = vmul.f32 %v5581, %v922
      %v5635 = vmul.f32 %v5585, %v923
      %v5636 = vmul.f32 %v5589, %v924
      %v5637 = vmul.f32 %v5593, %v925
      %v5638 = vmul.f32 %v5597, %v926
      %v5639 = vmul.f32 %v5601, %v927
      %v5640 = vmul.f32 %v5605, %v928
      %v5641 = vmul.f32 %v5609, %v929
      %v5642 = vmul.f32 %v5613, %v930
      %v5643 = vmul.f32 %v5617, %v931
      %v5644 = vmul.f32 %v5621, %v932
      %v5645 = vmul.f32 %v5625, %v933
      %v5646 = vmul.f32 %v5629, %v934
      %v5647 = vsub.f32 %v5551, %v5631
      %v5648 = vsub.f32 %v5552, %v5632
      %v5649 = vsub.f32 %v5553, %v5633
      %v5650 = vsub.f32 %v5554, %v5634
      %v5651 = vsub.f32 %v5555, %v5635
      %v5652 = vsub.f32 %v5556, %v5636
      %v5653 = vsub.f32 %v5557, %v5637
      %v5654 = vsub.f32 %v5558, %v5638
      %v5655 = vsub.f32 %v5559, %v5639
      %v5656 = vsub.f32 %v5560, %v5640
      %v5657 = vsub.f32 %v5561, %v5641
      %v5658 = vsub.f32 %v5562, %v5642
      %v5659 = vsub.f32 %v5563, %v5643
      %v5660 = vsub.f32 %v5564, %v5644
      %v5661 = vsub.f32 %v5565, %v5645
      %v5662 = vsub.f32 %v5566, %v5646
      %v5663 = vpack.c.bf16 %v5648, %v5647
      %v5664 = vpack.c.bf16 %v5650, %v5649
      %v5665 = vpack.c.bf16 %v5652, %v5651
      %v5666 = vpack.c.bf16 %v5654, %v5653
      %v5667 = vpack.c.bf16 %v5656, %v5655
      %v5668 = vpack.c.bf16 %v5658, %v5657
      %v5669 = vpack.c.bf16 %v5660, %v5659
      %v5670 = vpack.c.bf16 %v5662, %v5661
      %v5679 = vunpack.c.l.b16 %v5663
      %v5680 = vunpack.c.h.b16 %v5663
      %v5681 = vunpack.c.l.b16 %v5664
      %v5682 = vunpack.c.h.b16 %v5664
      %v5683 = vunpack.c.l.b16 %v5665
      %v5684 = vunpack.c.h.b16 %v5665
      %v5685 = vunpack.c.l.b16 %v5666
      %v5686 = vunpack.c.h.b16 %v5666
      %v5687 = vunpack.c.l.b16 %v5667
      %v5688 = vunpack.c.h.b16 %v5667
      %v5689 = vunpack.c.l.b16 %v5668
      %v5690 = vunpack.c.h.b16 %v5668
      %v5691 = vunpack.c.l.b16 %v5669
      %v5692 = vunpack.c.h.b16 %v5669
      %v5693 = vunpack.c.l.b16 %v5670
      %v5694 = vunpack.c.h.b16 %v5670
      %v5695 = vpack.c.b16 %v5679, %v5679
      %v5696 = vpack.c.b16 %v5680, %v5680
      %v5697 = vpack.c.b16 %v5681, %v5681
      %v5698 = vpack.c.b16 %v5682, %v5682
      %v5699 = vpack.c.b16 %v5683, %v5683
      %v5700 = vpack.c.b16 %v5684, %v5684
      %v5701 = vpack.c.b16 %v5685, %v5685
      %v5702 = vpack.c.b16 %v5686, %v5686
      %v5703 = vpack.c.b16 %v5687, %v5687
      %v5704 = vpack.c.b16 %v5688, %v5688
      %v5705 = vpack.c.b16 %v5689, %v5689
      %v5706 = vpack.c.b16 %v5690, %v5690
      %v5707 = vpack.c.b16 %v5691, %v5691
      %v5708 = vpack.c.b16 %v5692, %v5692
      %v5709 = vpack.c.b16 %v5693, %v5693
      %v5710 = vpack.c.b16 %v5694, %v5694
      %5711 = vrot.lane.b32.xlu0 %v5695, 32
      %v5712 = vpop.permute.xlu0 %5711
      %5713 = vrot.lane.b32.xlu0 %v5696, 32
      %v5714 = vpop.permute.xlu0 %5713
      %5715 = vrot.lane.b32.xlu0 %v5697, 32
      %v5716 = vpop.permute.xlu0 %5715
      %5717 = vrot.lane.b32.xlu0 %v5698, 32
      %v5718 = vpop.permute.xlu0 %5717
      %5719 = vrot.lane.b32.xlu0 %v5699, 32
      %v5720 = vpop.permute.xlu0 %5719
      %5721 = vrot.lane.b32.xlu0 %v5700, 32
      %v5722 = vpop.permute.xlu0 %5721
      %5723 = vrot.lane.b32.xlu0 %v5701, 32
      %v5724 = vpop.permute.xlu0 %5723
      %5725 = vrot.lane.b32.xlu0 %v5702, 32
      %v5726 = vpop.permute.xlu0 %5725
      %5727 = vrot.lane.b32.xlu0 %v5703, 32
      %v5728 = vpop.permute.xlu0 %5727
      %5729 = vrot.lane.b32.xlu0 %v5704, 32
      %v5730 = vpop.permute.xlu0 %5729
      %5731 = vrot.lane.b32.xlu0 %v5705, 32
      %v5732 = vpop.permute.xlu0 %5731
      %5733 = vrot.lane.b32.xlu0 %v5706, 32
      %v5734 = vpop.permute.xlu0 %5733
      %5735 = vrot.lane.b32.xlu0 %v5707, 32
      %v5736 = vpop.permute.xlu0 %5735
      %5737 = vrot.lane.b32.xlu0 %v5708, 32
      %v5738 = vpop.permute.xlu0 %5737
      %5739 = vrot.lane.b32.xlu0 %v5709, 32
      %v5740 = vpop.permute.xlu0 %5739
      %5741 = vrot.lane.b32.xlu0 %v5710, 32
      %v5742 = vpop.permute.xlu0 %5741
      %5759 = vst.msk [vmem:[#allocation4 + $0x4] sm:$0xf] %vm2105, %v5712
      %5760 = vst.msk [vmem:[#allocation4 + $0xc] sm:$0xf] %vm2105, %v5714
      %5761 = vst.msk [vmem:[#allocation4 + $0x14] sm:$0xf] %vm2105, %v5716
      %5762 = vst.msk [vmem:[#allocation4 + $0x1c] sm:$0xf] %vm2105, %v5718
      %5763 = vst.msk [vmem:[#allocation4 + $0x24] sm:$0xf] %vm2105, %v5720
      %5764 = vst.msk [vmem:[#allocation4 + $0x2c] sm:$0xf] %vm2105, %v5722
      %5765 = vst.msk [vmem:[#allocation4 + $0x34] sm:$0xf] %vm2105, %v5724
      %5766 = vst.msk [vmem:[#allocation4 + $0x3c] sm:$0xf] %vm2105, %v5726
      %5767 = vst.msk [vmem:[#allocation4 + $0x44] sm:$0xf] %vm2105, %v5728
      %5768 = vst.msk [vmem:[#allocation4 + $0x4c] sm:$0xf] %vm2105, %v5730
      %5769 = vst.msk [vmem:[#allocation4 + $0x54] sm:$0xf] %vm2105, %v5732
      %5770 = vst.msk [vmem:[#allocation4 + $0x5c] sm:$0xf] %vm2105, %v5734
      %5771 = vst.msk [vmem:[#allocation4 + $0x64] sm:$0xf] %vm2105, %v5736
      %5772 = vst.msk [vmem:[#allocation4 + $0x6c] sm:$0xf] %vm2105, %v5738
      %5773 = vst.msk [vmem:[#allocation4 + $0x74] sm:$0xf] %vm2105, %v5740
      %5774 = vst.msk [vmem:[#allocation4 + $0x7c] sm:$0xf] %vm2105, %v5742
      %v5775 = vmul.f32 %v5569, %v903
      %v5776 = vmul.f32 %v5573, %v904
      %v5777 = vmul.f32 %v5577, %v905
      %v5778 = vmul.f32 %v5581, %v906
      %v5779 = vmul.f32 %v5585, %v907
      %v5780 = vmul.f32 %v5589, %v908
      %v5781 = vmul.f32 %v5593, %v909
      %v5782 = vmul.f32 %v5597, %v910
      %v5783 = vmul.f32 %v5601, %v911
      %v5784 = vmul.f32 %v5605, %v912
      %v5785 = vmul.f32 %v5609, %v913
      %v5786 = vmul.f32 %v5613, %v914
      %v5787 = vmul.f32 %v5617, %v915
      %v5788 = vmul.f32 %v5621, %v916
      %v5789 = vmul.f32 %v5625, %v917
      %v5790 = vmul.f32 %v5629, %v918
      %v5791 = vmul.f32 %v5489, %v919
      %v5792 = vmul.f32 %v5493, %v920
      %v5793 = vmul.f32 %v5497, %v921
      %v5794 = vmul.f32 %v5501, %v922
      %v5795 = vmul.f32 %v5505, %v923
      %v5796 = vmul.f32 %v5509, %v924
      %v5797 = vmul.f32 %v5513, %v925
      %v5798 = vmul.f32 %v5517, %v926
      %v5799 = vmul.f32 %v5521, %v927
      %v5800 = vmul.f32 %v5525, %v928
      %v5801 = vmul.f32 %v5529, %v929
      %v5802 = vmul.f32 %v5533, %v930
      %v5803 = vmul.f32 %v5537, %v931
      %v5804 = vmul.f32 %v5541, %v932
      %v5805 = vmul.f32 %v5545, %v933
      %v5806 = vmul.f32 %v5549, %v934
      %v5807 = vadd.f32 %v5775, %v5791
      %v5808 = vadd.f32 %v5776, %v5792
      %v5809 = vadd.f32 %v5777, %v5793
      %v5810 = vadd.f32 %v5778, %v5794
      %v5811 = vadd.f32 %v5779, %v5795
      %v5812 = vadd.f32 %v5780, %v5796
      %v5813 = vadd.f32 %v5781, %v5797
      %v5814 = vadd.f32 %v5782, %v5798
      %v5815 = vadd.f32 %v5783, %v5799
      %v5816 = vadd.f32 %v5784, %v5800
      %v5817 = vadd.f32 %v5785, %v5801
      %v5818 = vadd.f32 %v5786, %v5802
      %v5819 = vadd.f32 %v5787, %v5803
      %v5820 = vadd.f32 %v5788, %v5804
      %v5821 = vadd.f32 %v5789, %v5805
      %v5822 = vadd.f32 %v5790, %v5806
      %v5823 = vsub.f32 0.0, %v5807
      %v5824 = vsub.f32 0.0, %v5808
      %v5825 = vsub.f32 0.0, %v5809
      %v5826 = vsub.f32 0.0, %v5810
      %v5827 = vsub.f32 0.0, %v5811
      %v5828 = vsub.f32 0.0, %v5812
      %v5829 = vsub.f32 0.0, %v5813
      %v5830 = vsub.f32 0.0, %v5814
      %v5831 = vsub.f32 0.0, %v5815
      %v5832 = vsub.f32 0.0, %v5816
      %v5833 = vsub.f32 0.0, %v5817
      %v5834 = vsub.f32 0.0, %v5818
      %v5835 = vsub.f32 0.0, %v5819
      %v5836 = vsub.f32 0.0, %v5820
      %v5837 = vsub.f32 0.0, %v5821
      %v5838 = vsub.f32 0.0, %v5822
      %v5839 = vpack.c.bf16 %v5824, %v5823
      %v5840 = vpack.c.bf16 %v5826, %v5825
      %v5841 = vpack.c.bf16 %v5828, %v5827
      %v5842 = vpack.c.bf16 %v5830, %v5829
      %v5843 = vpack.c.bf16 %v5832, %v5831
      %v5844 = vpack.c.bf16 %v5834, %v5833
      %v5845 = vpack.c.bf16 %v5836, %v5835
      %v5846 = vpack.c.bf16 %v5838, %v5837
      %v5855 = vunpack.c.l.b16 %v5839
      %v5856 = vunpack.c.h.b16 %v5839
      %v5857 = vunpack.c.l.b16 %v5840
      %v5858 = vunpack.c.h.b16 %v5840
      %v5859 = vunpack.c.l.b16 %v5841
      %v5860 = vunpack.c.h.b16 %v5841
      %v5861 = vunpack.c.l.b16 %v5842
      %v5862 = vunpack.c.h.b16 %v5842
      %v5863 = vunpack.c.l.b16 %v5843
      %v5864 = vunpack.c.h.b16 %v5843
      %v5865 = vunpack.c.l.b16 %v5844
      %v5866 = vunpack.c.h.b16 %v5844
      %v5867 = vunpack.c.l.b16 %v5845
      %v5868 = vunpack.c.h.b16 %v5845
      %v5869 = vunpack.c.l.b16 %v5846
      %v5870 = vunpack.c.h.b16 %v5846
      %v5871 = vpack.c.b16 %v5855, %v5855
      %v5872 = vpack.c.b16 %v5856, %v5856
      %v5873 = vpack.c.b16 %v5857, %v5857
      %v5874 = vpack.c.b16 %v5858, %v5858
      %v5875 = vpack.c.b16 %v5859, %v5859
      %v5876 = vpack.c.b16 %v5860, %v5860
      %v5877 = vpack.c.b16 %v5861, %v5861
      %v5878 = vpack.c.b16 %v5862, %v5862
      %v5879 = vpack.c.b16 %v5863, %v5863
      %v5880 = vpack.c.b16 %v5864, %v5864
      %v5881 = vpack.c.b16 %v5865, %v5865
      %v5882 = vpack.c.b16 %v5866, %v5866
      %v5883 = vpack.c.b16 %v5867, %v5867
      %v5884 = vpack.c.b16 %v5868, %v5868
      %v5885 = vpack.c.b16 %v5869, %v5869
      %v5886 = vpack.c.b16 %v5870, %v5870
      %5887 = vrot.lane.b32.xlu0 %v5871, 32
      %v5888 = vpop.permute.xlu0 %5887
      %5889 = vrot.lane.b32.xlu0 %v5872, 32
      %v5890 = vpop.permute.xlu0 %5889
      %5891 = vrot.lane.b32.xlu0 %v5873, 32
      %v5892 = vpop.permute.xlu0 %5891
      %5893 = vrot.lane.b32.xlu0 %v5874, 32
      %v5894 = vpop.permute.xlu0 %5893
      %5895 = vrot.lane.b32.xlu0 %v5875, 32
      %v5896 = vpop.permute.xlu0 %5895
      %5897 = vrot.lane.b32.xlu0 %v5876, 32
      %v5898 = vpop.permute.xlu0 %5897
      %5899 = vrot.lane.b32.xlu0 %v5877, 32
      %v5900 = vpop.permute.xlu0 %5899
      %5901 = vrot.lane.b32.xlu0 %v5878, 32
      %v5902 = vpop.permute.xlu0 %5901
      %5903 = vrot.lane.b32.xlu0 %v5879, 32
      %v5904 = vpop.permute.xlu0 %5903
      %5905 = vrot.lane.b32.xlu0 %v5880, 32
      %v5906 = vpop.permute.xlu0 %5905
      %5907 = vrot.lane.b32.xlu0 %v5881, 32
      %v5908 = vpop.permute.xlu0 %5907
      %5909 = vrot.lane.b32.xlu0 %v5882, 32
      %v5910 = vpop.permute.xlu0 %5909
      %5911 = vrot.lane.b32.xlu0 %v5883, 32
      %v5912 = vpop.permute.xlu0 %5911
      %5913 = vrot.lane.b32.xlu0 %v5884, 32
      %v5914 = vpop.permute.xlu0 %5913
      %5915 = vrot.lane.b32.xlu0 %v5885, 32
      %v5916 = vpop.permute.xlu0 %5915
      %5917 = vrot.lane.b32.xlu0 %v5886, 32
      %v5918 = vpop.permute.xlu0 %5917
      %5935 = vst.msk [vmem:[#allocation5 + $0x4] sm:$0xf] %vm2105, %v5888
      %5936 = vst.msk [vmem:[#allocation5 + $0xc] sm:$0xf] %vm2105, %v5890
      %5937 = vst.msk [vmem:[#allocation5 + $0x14] sm:$0xf] %vm2105, %v5892
      %5938 = vst.msk [vmem:[#allocation5 + $0x1c] sm:$0xf] %vm2105, %v5894
      %5939 = vst.msk [vmem:[#allocation5 + $0x24] sm:$0xf] %vm2105, %v5896
      %5940 = vst.msk [vmem:[#allocation5 + $0x2c] sm:$0xf] %vm2105, %v5898
      %5941 = vst.msk [vmem:[#allocation5 + $0x34] sm:$0xf] %vm2105, %v5900
      %5942 = vst.msk [vmem:[#allocation5 + $0x3c] sm:$0xf] %vm2105, %v5902
      %5943 = vst.msk [vmem:[#allocation5 + $0x44] sm:$0xf] %vm2105, %v5904
      %5944 = vst.msk [vmem:[#allocation5 + $0x4c] sm:$0xf] %vm2105, %v5906
      %5945 = vst.msk [vmem:[#allocation5 + $0x54] sm:$0xf] %vm2105, %v5908
      %5946 = vst.msk [vmem:[#allocation5 + $0x5c] sm:$0xf] %vm2105, %v5910
      %5947 = vst.msk [vmem:[#allocation5 + $0x64] sm:$0xf] %vm2105, %v5912
      %5948 = vst.msk [vmem:[#allocation5 + $0x6c] sm:$0xf] %vm2105, %v5914
      %5949 = vst.msk [vmem:[#allocation5 + $0x74] sm:$0xf] %vm2105, %v5916
      %5950 = vst.msk [vmem:[#allocation5 + $0x7c] sm:$0xf] %vm2105, %v5918
      %5951 = vset.pattern.permute.xlu0 11
      %5952 = vperm.xlu0 %5951, %v871
      %v5953 = vpop.permute.xlu0 %5952
      %5955 = vset.pattern.permute.xlu0 11
      %5956 = vperm.xlu0 %5955, %v872
      %v5957 = vpop.permute.xlu0 %5956
      %5959 = vset.pattern.permute.xlu0 11
      %5960 = vperm.xlu0 %5959, %v873
      %v5961 = vpop.permute.xlu0 %5960
      %5963 = vset.pattern.permute.xlu0 11
      %5964 = vperm.xlu0 %5963, %v874
      %v5965 = vpop.permute.xlu0 %5964
      %5967 = vset.pattern.permute.xlu0 11
      %5968 = vperm.xlu0 %5967, %v875
      %v5969 = vpop.permute.xlu0 %5968
      %5971 = vset.pattern.permute.xlu0 11
      %5972 = vperm.xlu0 %5971, %v876
      %v5973 = vpop.permute.xlu0 %5972
      %5975 = vset.pattern.permute.xlu0 11
      %5976 = vperm.xlu0 %5975, %v877
      %v5977 = vpop.permute.xlu0 %5976
      %5979 = vset.pattern.permute.xlu0 11
      %5980 = vperm.xlu0 %5979, %v878
      %v5981 = vpop.permute.xlu0 %5980
      %5983 = vset.pattern.permute.xlu0 11
      %5984 = vperm.xlu0 %5983, %v879
      %v5985 = vpop.permute.xlu0 %5984
      %5987 = vset.pattern.permute.xlu0 11
      %5988 = vperm.xlu0 %5987, %v880
      %v5989 = vpop.permute.xlu0 %5988
      %5991 = vset.pattern.permute.xlu0 11
      %5992 = vperm.xlu0 %5991, %v881
      %v5993 = vpop.permute.xlu0 %5992
      %5995 = vset.pattern.permute.xlu0 11
      %5996 = vperm.xlu0 %5995, %v882
      %v5997 = vpop.permute.xlu0 %5996
      %5999 = vset.pattern.permute.xlu0 11
      %6000 = vperm.xlu0 %5999, %v883
      %v6001 = vpop.permute.xlu0 %6000
      %6003 = vset.pattern.permute.xlu0 11
      %6004 = vperm.xlu0 %6003, %v884
      %v6005 = vpop.permute.xlu0 %6004
      %6007 = vset.pattern.permute.xlu0 11
      %6008 = vperm.xlu0 %6007, %v885
      %v6009 = vpop.permute.xlu0 %6008
      %6011 = vset.pattern.permute.xlu0 11
      %6012 = vperm.xlu0 %6011, %v886
      %v6013 = vpop.permute.xlu0 %6012
      %v6015 = vmul.f32 %v5953, %v903
      %v6016 = vmul.f32 %v5957, %v904
      %v6017 = vmul.f32 %v5961, %v905
      %v6018 = vmul.f32 %v5965, %v906
      %v6019 = vmul.f32 %v5969, %v907
      %v6020 = vmul.f32 %v5973, %v908
      %v6021 = vmul.f32 %v5977, %v909
      %v6022 = vmul.f32 %v5981, %v910
      %v6023 = vmul.f32 %v5985, %v911
      %v6024 = vmul.f32 %v5989, %v912
      %v6025 = vmul.f32 %v5993, %v913
      %v6026 = vmul.f32 %v5997, %v914
      %v6027 = vmul.f32 %v6001, %v915
      %v6028 = vmul.f32 %v6005, %v916
      %v6029 = vmul.f32 %v6009, %v917
      %v6030 = vmul.f32 %v6013, %v918
      %6031 = vset.pattern.permute.xlu0 11
      %6032 = vperm.xlu0 %6031, %v887
      %v6033 = vpop.permute.xlu0 %6032
      %6035 = vset.pattern.permute.xlu0 11
      %6036 = vperm.xlu0 %6035, %v888
      %v6037 = vpop.permute.xlu0 %6036
      %6039 = vset.pattern.permute.xlu0 11
      %6040 = vperm.xlu0 %6039, %v889
      %v6041 = vpop.permute.xlu0 %6040
      %6043 = vset.pattern.permute.xlu0 11
      %6044 = vperm.xlu0 %6043, %v890
      %v6045 = vpop.permute.xlu0 %6044
      %6047 = vset.pattern.permute.xlu0 11
      %6048 = vperm.xlu0 %6047, %v891
      %v6049 = vpop.permute.xlu0 %6048
      %6051 = vset.pattern.permute.xlu0 11
      %6052 = vperm.xlu0 %6051, %v892
      %v6053 = vpop.permute.xlu0 %6052
      %6055 = vset.pattern.permute.xlu0 11
      %6056 = vperm.xlu0 %6055, %v893
      %v6057 = vpop.permute.xlu0 %6056
      %6059 = vset.pattern.permute.xlu0 11
      %6060 = vperm.xlu0 %6059, %v894
      %v6061 = vpop.permute.xlu0 %6060
      %6063 = vset.pattern.permute.xlu0 11
      %6064 = vperm.xlu0 %6063, %v895
      %v6065 = vpop.permute.xlu0 %6064
      %6067 = vset.pattern.permute.xlu0 11
      %6068 = vperm.xlu0 %6067, %v896
      %v6069 = vpop.permute.xlu0 %6068
      %6071 = vset.pattern.permute.xlu0 11
      %6072 = vperm.xlu0 %6071, %v897
      %v6073 = vpop.permute.xlu0 %6072
      %6075 = vset.pattern.permute.xlu0 11
      %6076 = vperm.xlu0 %6075, %v898
      %v6077 = vpop.permute.xlu0 %6076
      %6079 = vset.pattern.permute.xlu0 11
      %6080 = vperm.xlu0 %6079, %v899
      %v6081 = vpop.permute.xlu0 %6080
      %6083 = vset.pattern.permute.xlu0 11
      %6084 = vperm.xlu0 %6083, %v900
      %v6085 = vpop.permute.xlu0 %6084
      %6087 = vset.pattern.permute.xlu0 11
      %6088 = vperm.xlu0 %6087, %v901
      %v6089 = vpop.permute.xlu0 %6088
      %6091 = vset.pattern.permute.xlu0 11
      %6092 = vperm.xlu0 %6091, %v902
      %v6093 = vpop.permute.xlu0 %6092
      %v6095 = vmul.f32 %v6033, %v919
      %v6096 = vmul.f32 %v6037, %v920
      %v6097 = vmul.f32 %v6041, %v921
      %v6098 = vmul.f32 %v6045, %v922
      %v6099 = vmul.f32 %v6049, %v923
      %v6100 = vmul.f32 %v6053, %v924
      %v6101 = vmul.f32 %v6057, %v925
      %v6102 = vmul.f32 %v6061, %v926
      %v6103 = vmul.f32 %v6065, %v927
      %v6104 = vmul.f32 %v6069, %v928
      %v6105 = vmul.f32 %v6073, %v929
      %v6106 = vmul.f32 %v6077, %v930
      %v6107 = vmul.f32 %v6081, %v931
      %v6108 = vmul.f32 %v6085, %v932
      %v6109 = vmul.f32 %v6089, %v933
      %v6110 = vmul.f32 %v6093, %v934
      %v6111 = vsub.f32 %v6015, %v6095
      %v6112 = vsub.f32 %v6016, %v6096
      %v6113 = vsub.f32 %v6017, %v6097
      %v6114 = vsub.f32 %v6018, %v6098
      %v6115 = vsub.f32 %v6019, %v6099
      %v6116 = vsub.f32 %v6020, %v6100
      %v6117 = vsub.f32 %v6021, %v6101
      %v6118 = vsub.f32 %v6022, %v6102
      %v6119 = vsub.f32 %v6023, %v6103
      %v6120 = vsub.f32 %v6024, %v6104
      %v6121 = vsub.f32 %v6025, %v6105
      %v6122 = vsub.f32 %v6026, %v6106
      %v6123 = vsub.f32 %v6027, %v6107
      %v6124 = vsub.f32 %v6028, %v6108
      %v6125 = vsub.f32 %v6029, %v6109
      %v6126 = vsub.f32 %v6030, %v6110
      %v6127 = vpack.c.bf16 %v6112, %v6111
      %v6128 = vpack.c.bf16 %v6114, %v6113
      %v6129 = vpack.c.bf16 %v6116, %v6115
      %v6130 = vpack.c.bf16 %v6118, %v6117
      %v6131 = vpack.c.bf16 %v6120, %v6119
      %v6132 = vpack.c.bf16 %v6122, %v6121
      %v6133 = vpack.c.bf16 %v6124, %v6123
      %v6134 = vpack.c.bf16 %v6126, %v6125
      %v6143 = vunpack.c.l.b16 %v6127
      %v6144 = vunpack.c.h.b16 %v6127
      %v6145 = vunpack.c.l.b16 %v6128
      %v6146 = vunpack.c.h.b16 %v6128
      %v6147 = vunpack.c.l.b16 %v6129
      %v6148 = vunpack.c.h.b16 %v6129
      %v6149 = vunpack.c.l.b16 %v6130
      %v6150 = vunpack.c.h.b16 %v6130
      %v6151 = vunpack.c.l.b16 %v6131
      %v6152 = vunpack.c.h.b16 %v6131
      %v6153 = vunpack.c.l.b16 %v6132
      %v6154 = vunpack.c.h.b16 %v6132
      %v6155 = vunpack.c.l.b16 %v6133
      %v6156 = vunpack.c.h.b16 %v6133
      %v6157 = vunpack.c.l.b16 %v6134
      %v6158 = vunpack.c.h.b16 %v6134
      %v6159 = vpack.c.b16 %v6143, %v6143
      %v6160 = vpack.c.b16 %v6144, %v6144
      %v6161 = vpack.c.b16 %v6145, %v6145
      %v6162 = vpack.c.b16 %v6146, %v6146
      %v6163 = vpack.c.b16 %v6147, %v6147
      %v6164 = vpack.c.b16 %v6148, %v6148
      %v6165 = vpack.c.b16 %v6149, %v6149
      %v6166 = vpack.c.b16 %v6150, %v6150
      %v6167 = vpack.c.b16 %v6151, %v6151
      %v6168 = vpack.c.b16 %v6152, %v6152
      %v6169 = vpack.c.b16 %v6153, %v6153
      %v6170 = vpack.c.b16 %v6154, %v6154
      %v6171 = vpack.c.b16 %v6155, %v6155
      %v6172 = vpack.c.b16 %v6156, %v6156
      %v6173 = vpack.c.b16 %v6157, %v6157
      %v6174 = vpack.c.b16 %v6158, %v6158
      %6175 = vrot.lane.b32.xlu0 %v6159, 48
      %v6176 = vpop.permute.xlu0 %6175
      %6177 = vrot.lane.b32.xlu0 %v6160, 48
      %v6178 = vpop.permute.xlu0 %6177
      %6179 = vrot.lane.b32.xlu0 %v6161, 48
      %v6180 = vpop.permute.xlu0 %6179
      %6181 = vrot.lane.b32.xlu0 %v6162, 48
      %v6182 = vpop.permute.xlu0 %6181
      %6183 = vrot.lane.b32.xlu0 %v6163, 48
      %v6184 = vpop.permute.xlu0 %6183
      %6185 = vrot.lane.b32.xlu0 %v6164, 48
      %v6186 = vpop.permute.xlu0 %6185
      %6187 = vrot.lane.b32.xlu0 %v6165, 48
      %v6188 = vpop.permute.xlu0 %6187
      %6189 = vrot.lane.b32.xlu0 %v6166, 48
      %v6190 = vpop.permute.xlu0 %6189
      %6191 = vrot.lane.b32.xlu0 %v6167, 48
      %v6192 = vpop.permute.xlu0 %6191
      %6193 = vrot.lane.b32.xlu0 %v6168, 48
      %v6194 = vpop.permute.xlu0 %6193
      %6195 = vrot.lane.b32.xlu0 %v6169, 48
      %v6196 = vpop.permute.xlu0 %6195
      %6197 = vrot.lane.b32.xlu0 %v6170, 48
      %v6198 = vpop.permute.xlu0 %6197
      %6199 = vrot.lane.b32.xlu0 %v6171, 48
      %v6200 = vpop.permute.xlu0 %6199
      %6201 = vrot.lane.b32.xlu0 %v6172, 48
      %v6202 = vpop.permute.xlu0 %6201
      %6203 = vrot.lane.b32.xlu0 %v6173, 48
      %v6204 = vpop.permute.xlu0 %6203
      %6205 = vrot.lane.b32.xlu0 %v6174, 48
      %v6206 = vpop.permute.xlu0 %6205
      %6223 = vst.msk [vmem:[#allocation4 + $0x4] sm:$0xf] %vm2570, %v6176
      %6224 = vst.msk [vmem:[#allocation4 + $0xc] sm:$0xf] %vm2570, %v6178
      %6225 = vst.msk [vmem:[#allocation4 + $0x14] sm:$0xf] %vm2570, %v6180
      %6226 = vst.msk [vmem:[#allocation4 + $0x1c] sm:$0xf] %vm2570, %v6182
      %6227 = vst.msk [vmem:[#allocation4 + $0x24] sm:$0xf] %vm2570, %v6184
      %6228 = vst.msk [vmem:[#allocation4 + $0x2c] sm:$0xf] %vm2570, %v6186
      %6229 = vst.msk [vmem:[#allocation4 + $0x34] sm:$0xf] %vm2570, %v6188
      %6230 = vst.msk [vmem:[#allocation4 + $0x3c] sm:$0xf] %vm2570, %v6190
      %6231 = vst.msk [vmem:[#allocation4 + $0x44] sm:$0xf] %vm2570, %v6192
      %6232 = vst.msk [vmem:[#allocation4 + $0x4c] sm:$0xf] %vm2570, %v6194
      %6233 = vst.msk [vmem:[#allocation4 + $0x54] sm:$0xf] %vm2570, %v6196
      %6234 = vst.msk [vmem:[#allocation4 + $0x5c] sm:$0xf] %vm2570, %v6198
      %6235 = vst.msk [vmem:[#allocation4 + $0x64] sm:$0xf] %vm2570, %v6200
      %6236 = vst.msk [vmem:[#allocation4 + $0x6c] sm:$0xf] %vm2570, %v6202
      %6237 = vst.msk [vmem:[#allocation4 + $0x74] sm:$0xf] %vm2570, %v6204
      %6238 = vst.msk [vmem:[#allocation4 + $0x7c] sm:$0xf] %vm2570, %v6206
      %v6239 = vmul.f32 %v6033, %v903
      %v6240 = vmul.f32 %v6037, %v904
      %v6241 = vmul.f32 %v6041, %v905
      %v6242 = vmul.f32 %v6045, %v906
      %v6243 = vmul.f32 %v6049, %v907
      %v6244 = vmul.f32 %v6053, %v908
      %v6245 = vmul.f32 %v6057, %v909
      %v6246 = vmul.f32 %v6061, %v910
      %v6247 = vmul.f32 %v6065, %v911
      %v6248 = vmul.f32 %v6069, %v912
      %v6249 = vmul.f32 %v6073, %v913
      %v6250 = vmul.f32 %v6077, %v914
      %v6251 = vmul.f32 %v6081, %v915
      %v6252 = vmul.f32 %v6085, %v916
      %v6253 = vmul.f32 %v6089, %v917
      %v6254 = vmul.f32 %v6093, %v918
      %v6255 = vmul.f32 %v5953, %v919
      %v6256 = vmul.f32 %v5957, %v920
      %v6257 = vmul.f32 %v5961, %v921
      %v6258 = vmul.f32 %v5965, %v922
      %v6259 = vmul.f32 %v5969, %v923
      %v6260 = vmul.f32 %v5973, %v924
      %v6261 = vmul.f32 %v5977, %v925
      %v6262 = vmul.f32 %v5981, %v926
      %v6263 = vmul.f32 %v5985, %v927
      %v6264 = vmul.f32 %v5989, %v928
      %v6265 = vmul.f32 %v5993, %v929
      %v6266 = vmul.f32 %v5997, %v930
      %v6267 = vmul.f32 %v6001, %v931
      %v6268 = vmul.f32 %v6005, %v932
      %v6269 = vmul.f32 %v6009, %v933
      %v6270 = vmul.f32 %v6013, %v934
      %v6271 = vadd.f32 %v6239, %v6255
      %v6272 = vadd.f32 %v6240, %v6256
      %v6273 = vadd.f32 %v6241, %v6257
      %v6274 = vadd.f32 %v6242, %v6258
      %v6275 = vadd.f32 %v6243, %v6259
      %v6276 = vadd.f32 %v6244, %v6260
      %v6277 = vadd.f32 %v6245, %v6261
      %v6278 = vadd.f32 %v6246, %v6262
      %v6279 = vadd.f32 %v6247, %v6263
      %v6280 = vadd.f32 %v6248, %v6264
      %v6281 = vadd.f32 %v6249, %v6265
      %v6282 = vadd.f32 %v6250, %v6266
      %v6283 = vadd.f32 %v6251, %v6267
      %v6284 = vadd.f32 %v6252, %v6268
      %v6285 = vadd.f32 %v6253, %v6269
      %v6286 = vadd.f32 %v6254, %v6270
      %v6287 = vsub.f32 0.0, %v6271
      %v6288 = vsub.f32 0.0, %v6272
      %v6289 = vsub.f32 0.0, %v6273
      %v6290 = vsub.f32 0.0, %v6274
      %v6291 = vsub.f32 0.0, %v6275
      %v6292 = vsub.f32 0.0, %v6276
      %v6293 = vsub.f32 0.0, %v6277
      %v6294 = vsub.f32 0.0, %v6278
      %v6295 = vsub.f32 0.0, %v6279
      %v6296 = vsub.f32 0.0, %v6280
      %v6297 = vsub.f32 0.0, %v6281
      %v6298 = vsub.f32 0.0, %v6282
      %v6299 = vsub.f32 0.0, %v6283
      %v6300 = vsub.f32 0.0, %v6284
      %v6301 = vsub.f32 0.0, %v6285
      %v6302 = vsub.f32 0.0, %v6286
      %v6303 = vpack.c.bf16 %v6288, %v6287
      %v6304 = vpack.c.bf16 %v6290, %v6289
      %v6305 = vpack.c.bf16 %v6292, %v6291
      %v6306 = vpack.c.bf16 %v6294, %v6293
      %v6307 = vpack.c.bf16 %v6296, %v6295
      %v6308 = vpack.c.bf16 %v6298, %v6297
      %v6309 = vpack.c.bf16 %v6300, %v6299
      %v6310 = vpack.c.bf16 %v6302, %v6301
      %v6319 = vunpack.c.l.b16 %v6303
      %v6320 = vunpack.c.h.b16 %v6303
      %v6321 = vunpack.c.l.b16 %v6304
      %v6322 = vunpack.c.h.b16 %v6304
      %v6323 = vunpack.c.l.b16 %v6305
      %v6324 = vunpack.c.h.b16 %v6305
      %v6325 = vunpack.c.l.b16 %v6306
      %v6326 = vunpack.c.h.b16 %v6306
      %v6327 = vunpack.c.l.b16 %v6307
      %v6328 = vunpack.c.h.b16 %v6307
      %v6329 = vunpack.c.l.b16 %v6308
      %v6330 = vunpack.c.h.b16 %v6308
      %v6331 = vunpack.c.l.b16 %v6309
      %v6332 = vunpack.c.h.b16 %v6309
      %v6333 = vunpack.c.l.b16 %v6310
      %v6334 = vunpack.c.h.b16 %v6310
      %v6335 = vpack.c.b16 %v6319, %v6319
      %v6336 = vpack.c.b16 %v6320, %v6320
      %v6337 = vpack.c.b16 %v6321, %v6321
      %v6338 = vpack.c.b16 %v6322, %v6322
      %v6339 = vpack.c.b16 %v6323, %v6323
      %v6340 = vpack.c.b16 %v6324, %v6324
      %v6341 = vpack.c.b16 %v6325, %v6325
      %v6342 = vpack.c.b16 %v6326, %v6326
      %v6343 = vpack.c.b16 %v6327, %v6327
      %v6344 = vpack.c.b16 %v6328, %v6328
      %v6345 = vpack.c.b16 %v6329, %v6329
      %v6346 = vpack.c.b16 %v6330, %v6330
      %v6347 = vpack.c.b16 %v6331, %v6331
      %v6348 = vpack.c.b16 %v6332, %v6332
      %v6349 = vpack.c.b16 %v6333, %v6333
      %v6350 = vpack.c.b16 %v6334, %v6334
      %6351 = vrot.lane.b32.xlu0 %v6335, 48
      %v6352 = vpop.permute.xlu0 %6351
      %6353 = vrot.lane.b32.xlu0 %v6336, 48
      %v6354 = vpop.permute.xlu0 %6353
      %6355 = vrot.lane.b32.xlu0 %v6337, 48
      %v6356 = vpop.permute.xlu0 %6355
      %6357 = vrot.lane.b32.xlu0 %v6338, 48
      %v6358 = vpop.permute.xlu0 %6357
      %6359 = vrot.lane.b32.xlu0 %v6339, 48
      %v6360 = vpop.permute.xlu0 %6359
      %6361 = vrot.lane.b32.xlu0 %v6340, 48
      %v6362 = vpop.permute.xlu0 %6361
      %6363 = vrot.lane.b32.xlu0 %v6341, 48
      %v6364 = vpop.permute.xlu0 %6363
      %6365 = vrot.lane.b32.xlu0 %v6342, 48
      %v6366 = vpop.permute.xlu0 %6365
      %6367 = vrot.lane.b32.xlu0 %v6343, 48
      %v6368 = vpop.permute.xlu0 %6367
      %6369 = vrot.lane.b32.xlu0 %v6344, 48
      %v6370 = vpop.permute.xlu0 %6369
      %6371 = vrot.lane.b32.xlu0 %v6345, 48
      %v6372 = vpop.permute.xlu0 %6371
      %6373 = vrot.lane.b32.xlu0 %v6346, 48
      %v6374 = vpop.permute.xlu0 %6373
      %6375 = vrot.lane.b32.xlu0 %v6347, 48
      %v6376 = vpop.permute.xlu0 %6375
      %6377 = vrot.lane.b32.xlu0 %v6348, 48
      %v6378 = vpop.permute.xlu0 %6377
      %6379 = vrot.lane.b32.xlu0 %v6349, 48
      %v6380 = vpop.permute.xlu0 %6379
      %6381 = vrot.lane.b32.xlu0 %v6350, 48
      %v6382 = vpop.permute.xlu0 %6381
      %6399 = vst.msk [vmem:[#allocation5 + $0x4] sm:$0xf] %vm2570, %v6352
      %6400 = vst.msk [vmem:[#allocation5 + $0xc] sm:$0xf] %vm2570, %v6354
      %6401 = vst.msk [vmem:[#allocation5 + $0x14] sm:$0xf] %vm2570, %v6356
      %6402 = vst.msk [vmem:[#allocation5 + $0x1c] sm:$0xf] %vm2570, %v6358
      %6403 = vst.msk [vmem:[#allocation5 + $0x24] sm:$0xf] %vm2570, %v6360
      %6404 = vst.msk [vmem:[#allocation5 + $0x2c] sm:$0xf] %vm2570, %v6362
      %6405 = vst.msk [vmem:[#allocation5 + $0x34] sm:$0xf] %vm2570, %v6364
      %6406 = vst.msk [vmem:[#allocation5 + $0x3c] sm:$0xf] %vm2570, %v6366
      %6407 = vst.msk [vmem:[#allocation5 + $0x44] sm:$0xf] %vm2570, %v6368
      %6408 = vst.msk [vmem:[#allocation5 + $0x4c] sm:$0xf] %vm2570, %v6370
      %6409 = vst.msk [vmem:[#allocation5 + $0x54] sm:$0xf] %vm2570, %v6372
      %6410 = vst.msk [vmem:[#allocation5 + $0x5c] sm:$0xf] %vm2570, %v6374
      %6411 = vst.msk [vmem:[#allocation5 + $0x64] sm:$0xf] %vm2570, %v6376
      %6412 = vst.msk [vmem:[#allocation5 + $0x6c] sm:$0xf] %vm2570, %v6378
      %6413 = vst.msk [vmem:[#allocation5 + $0x74] sm:$0xf] %vm2570, %v6380
      %6414 = vst.msk [vmem:[#allocation5 + $0x7c] sm:$0xf] %vm2570, %v6382
      %6415 = vset.pattern.permute.xlu0 12
      %6416 = vperm.xlu0 %6415, %v871
      %v6417 = vpop.permute.xlu0 %6416
      %6419 = vset.pattern.permute.xlu0 12
      %6420 = vperm.xlu0 %6419, %v872
      %v6421 = vpop.permute.xlu0 %6420
      %6423 = vset.pattern.permute.xlu0 12
      %6424 = vperm.xlu0 %6423, %v873
      %v6425 = vpop.permute.xlu0 %6424
      %6427 = vset.pattern.permute.xlu0 12
      %6428 = vperm.xlu0 %6427, %v874
      %v6429 = vpop.permute.xlu0 %6428
      %6431 = vset.pattern.permute.xlu0 12
      %6432 = vperm.xlu0 %6431, %v875
      %v6433 = vpop.permute.xlu0 %6432
      %6435 = vset.pattern.permute.xlu0 12
      %6436 = vperm.xlu0 %6435, %v876
      %v6437 = vpop.permute.xlu0 %6436
      %6439 = vset.pattern.permute.xlu0 12
      %6440 = vperm.xlu0 %6439, %v877
      %v6441 = vpop.permute.xlu0 %6440
      %6443 = vset.pattern.permute.xlu0 12
      %6444 = vperm.xlu0 %6443, %v878
      %v6445 = vpop.permute.xlu0 %6444
      %6447 = vset.pattern.permute.xlu0 12
      %6448 = vperm.xlu0 %6447, %v879
      %v6449 = vpop.permute.xlu0 %6448
      %6451 = vset.pattern.permute.xlu0 12
      %6452 = vperm.xlu0 %6451, %v880
      %v6453 = vpop.permute.xlu0 %6452
      %6455 = vset.pattern.permute.xlu0 12
      %6456 = vperm.xlu0 %6455, %v881
      %v6457 = vpop.permute.xlu0 %6456
      %6459 = vset.pattern.permute.xlu0 12
      %6460 = vperm.xlu0 %6459, %v882
      %v6461 = vpop.permute.xlu0 %6460
      %6463 = vset.pattern.permute.xlu0 12
      %6464 = vperm.xlu0 %6463, %v883
      %v6465 = vpop.permute.xlu0 %6464
      %6467 = vset.pattern.permute.xlu0 12
      %6468 = vperm.xlu0 %6467, %v884
      %v6469 = vpop.permute.xlu0 %6468
      %6471 = vset.pattern.permute.xlu0 12
      %6472 = vperm.xlu0 %6471, %v885
      %v6473 = vpop.permute.xlu0 %6472
      %6475 = vset.pattern.permute.xlu0 12
      %6476 = vperm.xlu0 %6475, %v886
      %v6477 = vpop.permute.xlu0 %6476
      %v6479 = vmul.f32 %v6417, %v903
      %v6480 = vmul.f32 %v6421, %v904
      %v6481 = vmul.f32 %v6425, %v905
      %v6482 = vmul.f32 %v6429, %v906
      %v6483 = vmul.f32 %v6433, %v907
      %v6484 = vmul.f32 %v6437, %v908
      %v6485 = vmul.f32 %v6441, %v909
      %v6486 = vmul.f32 %v6445, %v910
      %v6487 = vmul.f32 %v6449, %v911
      %v6488 = vmul.f32 %v6453, %v912
      %v6489 = vmul.f32 %v6457, %v913
      %v6490 = vmul.f32 %v6461, %v914
      %v6491 = vmul.f32 %v6465, %v915
      %v6492 = vmul.f32 %v6469, %v916
      %v6493 = vmul.f32 %v6473, %v917
      %v6494 = vmul.f32 %v6477, %v918
      %6495 = vset.pattern.permute.xlu0 12
      %6496 = vperm.xlu0 %6495, %v887
      %v6497 = vpop.permute.xlu0 %6496
      %6499 = vset.pattern.permute.xlu0 12
      %6500 = vperm.xlu0 %6499, %v888
      %v6501 = vpop.permute.xlu0 %6500
      %6503 = vset.pattern.permute.xlu0 12
      %6504 = vperm.xlu0 %6503, %v889
      %v6505 = vpop.permute.xlu0 %6504
      %6507 = vset.pattern.permute.xlu0 12
      %6508 = vperm.xlu0 %6507, %v890
      %v6509 = vpop.permute.xlu0 %6508
      %6511 = vset.pattern.permute.xlu0 12
      %6512 = vperm.xlu0 %6511, %v891
      %v6513 = vpop.permute.xlu0 %6512
      %6515 = vset.pattern.permute.xlu0 12
      %6516 = vperm.xlu0 %6515, %v892
      %v6517 = vpop.permute.xlu0 %6516
      %6519 = vset.pattern.permute.xlu0 12
      %6520 = vperm.xlu0 %6519, %v893
      %v6521 = vpop.permute.xlu0 %6520
      %6523 = vset.pattern.permute.xlu0 12
      %6524 = vperm.xlu0 %6523, %v894
      %v6525 = vpop.permute.xlu0 %6524
      %6527 = vset.pattern.permute.xlu0 12
      %6528 = vperm.xlu0 %6527, %v895
      %v6529 = vpop.permute.xlu0 %6528
      %6531 = vset.pattern.permute.xlu0 12
      %6532 = vperm.xlu0 %6531, %v896
      %v6533 = vpop.permute.xlu0 %6532
      %6535 = vset.pattern.permute.xlu0 12
      %6536 = vperm.xlu0 %6535, %v897
      %v6537 = vpop.permute.xlu0 %6536
      %6539 = vset.pattern.permute.xlu0 12
      %6540 = vperm.xlu0 %6539, %v898
      %v6541 = vpop.permute.xlu0 %6540
      %6543 = vset.pattern.permute.xlu0 12
      %6544 = vperm.xlu0 %6543, %v899
      %v6545 = vpop.permute.xlu0 %6544
      %6547 = vset.pattern.permute.xlu0 12
      %6548 = vperm.xlu0 %6547, %v900
      %v6549 = vpop.permute.xlu0 %6548
      %6551 = vset.pattern.permute.xlu0 12
      %6552 = vperm.xlu0 %6551, %v901
      %v6553 = vpop.permute.xlu0 %6552
      %6555 = vset.pattern.permute.xlu0 12
      %6556 = vperm.xlu0 %6555, %v902
      %v6557 = vpop.permute.xlu0 %6556
      %v6559 = vmul.f32 %v6497, %v919
      %v6560 = vmul.f32 %v6501, %v920
      %v6561 = vmul.f32 %v6505, %v921
      %v6562 = vmul.f32 %v6509, %v922
      %v6563 = vmul.f32 %v6513, %v923
      %v6564 = vmul.f32 %v6517, %v924
      %v6565 = vmul.f32 %v6521, %v925
      %v6566 = vmul.f32 %v6525, %v926
      %v6567 = vmul.f32 %v6529, %v927
      %v6568 = vmul.f32 %v6533, %v928
      %v6569 = vmul.f32 %v6537, %v929
      %v6570 = vmul.f32 %v6541, %v930
      %v6571 = vmul.f32 %v6545, %v931
      %v6572 = vmul.f32 %v6549, %v932
      %v6573 = vmul.f32 %v6553, %v933
      %v6574 = vmul.f32 %v6557, %v934
      %v6575 = vsub.f32 %v6479, %v6559
      %v6576 = vsub.f32 %v6480, %v6560
      %v6577 = vsub.f32 %v6481, %v6561
      %v6578 = vsub.f32 %v6482, %v6562
      %v6579 = vsub.f32 %v6483, %v6563
      %v6580 = vsub.f32 %v6484, %v6564
      %v6581 = vsub.f32 %v6485, %v6565
      %v6582 = vsub.f32 %v6486, %v6566
      %v6583 = vsub.f32 %v6487, %v6567
      %v6584 = vsub.f32 %v6488, %v6568
      %v6585 = vsub.f32 %v6489, %v6569
      %v6586 = vsub.f32 %v6490, %v6570
      %v6587 = vsub.f32 %v6491, %v6571
      %v6588 = vsub.f32 %v6492, %v6572
      %v6589 = vsub.f32 %v6493, %v6573
      %v6590 = vsub.f32 %v6494, %v6574
      %v6591 = vpack.c.bf16 %v6576, %v6575
      %v6592 = vpack.c.bf16 %v6578, %v6577
      %v6593 = vpack.c.bf16 %v6580, %v6579
      %v6594 = vpack.c.bf16 %v6582, %v6581
      %v6595 = vpack.c.bf16 %v6584, %v6583
      %v6596 = vpack.c.bf16 %v6586, %v6585
      %v6597 = vpack.c.bf16 %v6588, %v6587
      %v6598 = vpack.c.bf16 %v6590, %v6589
      %v6607 = vunpack.c.l.b16 %v6591
      %v6608 = vunpack.c.h.b16 %v6591
      %v6609 = vunpack.c.l.b16 %v6592
      %v6610 = vunpack.c.h.b16 %v6592
      %v6611 = vunpack.c.l.b16 %v6593
      %v6612 = vunpack.c.h.b16 %v6593
      %v6613 = vunpack.c.l.b16 %v6594
      %v6614 = vunpack.c.h.b16 %v6594
      %v6615 = vunpack.c.l.b16 %v6595
      %v6616 = vunpack.c.h.b16 %v6595
      %v6617 = vunpack.c.l.b16 %v6596
      %v6618 = vunpack.c.h.b16 %v6596
      %v6619 = vunpack.c.l.b16 %v6597
      %v6620 = vunpack.c.h.b16 %v6597
      %v6621 = vunpack.c.l.b16 %v6598
      %v6622 = vunpack.c.h.b16 %v6598
      %v6623 = vpack.c.b16 %v6607, %v6607
      %v6624 = vpack.c.b16 %v6608, %v6608
      %v6625 = vpack.c.b16 %v6609, %v6609
      %v6626 = vpack.c.b16 %v6610, %v6610
      %v6627 = vpack.c.b16 %v6611, %v6611
      %v6628 = vpack.c.b16 %v6612, %v6612
      %v6629 = vpack.c.b16 %v6613, %v6613
      %v6630 = vpack.c.b16 %v6614, %v6614
      %v6631 = vpack.c.b16 %v6615, %v6615
      %v6632 = vpack.c.b16 %v6616, %v6616
      %v6633 = vpack.c.b16 %v6617, %v6617
      %v6634 = vpack.c.b16 %v6618, %v6618
      %v6635 = vpack.c.b16 %v6619, %v6619
      %v6636 = vpack.c.b16 %v6620, %v6620
      %v6637 = vpack.c.b16 %v6621, %v6621
      %v6638 = vpack.c.b16 %v6622, %v6622
      %6639 = vrot.lane.b32.xlu0 %v6623, 64
      %v6640 = vpop.permute.xlu0 %6639
      %6641 = vrot.lane.b32.xlu0 %v6624, 64
      %v6642 = vpop.permute.xlu0 %6641
      %6643 = vrot.lane.b32.xlu0 %v6625, 64
      %v6644 = vpop.permute.xlu0 %6643
      %6645 = vrot.lane.b32.xlu0 %v6626, 64
      %v6646 = vpop.permute.xlu0 %6645
      %6647 = vrot.lane.b32.xlu0 %v6627, 64
      %v6648 = vpop.permute.xlu0 %6647
      %6649 = vrot.lane.b32.xlu0 %v6628, 64
      %v6650 = vpop.permute.xlu0 %6649
      %6651 = vrot.lane.b32.xlu0 %v6629, 64
      %v6652 = vpop.permute.xlu0 %6651
      %6653 = vrot.lane.b32.xlu0 %v6630, 64
      %v6654 = vpop.permute.xlu0 %6653
      %6655 = vrot.lane.b32.xlu0 %v6631, 64
      %v6656 = vpop.permute.xlu0 %6655
      %6657 = vrot.lane.b32.xlu0 %v6632, 64
      %v6658 = vpop.permute.xlu0 %6657
      %6659 = vrot.lane.b32.xlu0 %v6633, 64
      %v6660 = vpop.permute.xlu0 %6659
      %6661 = vrot.lane.b32.xlu0 %v6634, 64
      %v6662 = vpop.permute.xlu0 %6661
      %6663 = vrot.lane.b32.xlu0 %v6635, 64
      %v6664 = vpop.permute.xlu0 %6663
      %6665 = vrot.lane.b32.xlu0 %v6636, 64
      %v6666 = vpop.permute.xlu0 %6665
      %6667 = vrot.lane.b32.xlu0 %v6637, 64
      %v6668 = vpop.permute.xlu0 %6667
      %6669 = vrot.lane.b32.xlu0 %v6638, 64
      %v6670 = vpop.permute.xlu0 %6669
      %6687 = vst.msk [vmem:[#allocation4 + $0x4] sm:$0xf] %vm3035, %v6640
      %6688 = vst.msk [vmem:[#allocation4 + $0xc] sm:$0xf] %vm3035, %v6642
      %6689 = vst.msk [vmem:[#allocation4 + $0x14] sm:$0xf] %vm3035, %v6644
      %6690 = vst.msk [vmem:[#allocation4 + $0x1c] sm:$0xf] %vm3035, %v6646
      %6691 = vst.msk [vmem:[#allocation4 + $0x24] sm:$0xf] %vm3035, %v6648
      %6692 = vst.msk [vmem:[#allocation4 + $0x2c] sm:$0xf] %vm3035, %v6650
      %6693 = vst.msk [vmem:[#allocation4 + $0x34] sm:$0xf] %vm3035, %v6652
      %6694 = vst.msk [vmem:[#allocation4 + $0x3c] sm:$0xf] %vm3035, %v6654
      %6695 = vst.msk [vmem:[#allocation4 + $0x44] sm:$0xf] %vm3035, %v6656
      %6696 = vst.msk [vmem:[#allocation4 + $0x4c] sm:$0xf] %vm3035, %v6658
      %6697 = vst.msk [vmem:[#allocation4 + $0x54] sm:$0xf] %vm3035, %v6660
      %6698 = vst.msk [vmem:[#allocation4 + $0x5c] sm:$0xf] %vm3035, %v6662
      %6699 = vst.msk [vmem:[#allocation4 + $0x64] sm:$0xf] %vm3035, %v6664
      %6700 = vst.msk [vmem:[#allocation4 + $0x6c] sm:$0xf] %vm3035, %v6666
      %6701 = vst.msk [vmem:[#allocation4 + $0x74] sm:$0xf] %vm3035, %v6668
      %6702 = vst.msk [vmem:[#allocation4 + $0x7c] sm:$0xf] %vm3035, %v6670
      %v6703 = vmul.f32 %v6497, %v903
      %v6704 = vmul.f32 %v6501, %v904
      %v6705 = vmul.f32 %v6505, %v905
      %v6706 = vmul.f32 %v6509, %v906
      %v6707 = vmul.f32 %v6513, %v907
      %v6708 = vmul.f32 %v6517, %v908
      %v6709 = vmul.f32 %v6521, %v909
      %v6710 = vmul.f32 %v6525, %v910
      %v6711 = vmul.f32 %v6529, %v911
      %v6712 = vmul.f32 %v6533, %v912
      %v6713 = vmul.f32 %v6537, %v913
      %v6714 = vmul.f32 %v6541, %v914
      %v6715 = vmul.f32 %v6545, %v915
      %v6716 = vmul.f32 %v6549, %v916
      %v6717 = vmul.f32 %v6553, %v917
      %v6718 = vmul.f32 %v6557, %v918
      %v6719 = vmul.f32 %v6417, %v919
      %v6720 = vmul.f32 %v6421, %v920
      %v6721 = vmul.f32 %v6425, %v921
      %v6722 = vmul.f32 %v6429, %v922
      %v6723 = vmul.f32 %v6433, %v923
      %v6724 = vmul.f32 %v6437, %v924
      %v6725 = vmul.f32 %v6441, %v925
      %v6726 = vmul.f32 %v6445, %v926
      %v6727 = vmul.f32 %v6449, %v927
      %v6728 = vmul.f32 %v6453, %v928
      %v6729 = vmul.f32 %v6457, %v929
      %v6730 = vmul.f32 %v6461, %v930
      %v6731 = vmul.f32 %v6465, %v931
      %v6732 = vmul.f32 %v6469, %v932
      %v6733 = vmul.f32 %v6473, %v933
      %v6734 = vmul.f32 %v6477, %v934
      %v6735 = vadd.f32 %v6703, %v6719
      %v6736 = vadd.f32 %v6704, %v6720
      %v6737 = vadd.f32 %v6705, %v6721
      %v6738 = vadd.f32 %v6706, %v6722
      %v6739 = vadd.f32 %v6707, %v6723
      %v6740 = vadd.f32 %v6708, %v6724
      %v6741 = vadd.f32 %v6709, %v6725
      %v6742 = vadd.f32 %v6710, %v6726
      %v6743 = vadd.f32 %v6711, %v6727
      %v6744 = vadd.f32 %v6712, %v6728
      %v6745 = vadd.f32 %v6713, %v6729
      %v6746 = vadd.f32 %v6714, %v6730
      %v6747 = vadd.f32 %v6715, %v6731
      %v6748 = vadd.f32 %v6716, %v6732
      %v6749 = vadd.f32 %v6717, %v6733
      %v6750 = vadd.f32 %v6718, %v6734
      %v6751 = vsub.f32 0.0, %v6735
      %v6752 = vsub.f32 0.0, %v6736
      %v6753 = vsub.f32 0.0, %v6737
      %v6754 = vsub.f32 0.0, %v6738
      %v6755 = vsub.f32 0.0, %v6739
      %v6756 = vsub.f32 0.0, %v6740
      %v6757 = vsub.f32 0.0, %v6741
      %v6758 = vsub.f32 0.0, %v6742
      %v6759 = vsub.f32 0.0, %v6743
      %v6760 = vsub.f32 0.0, %v6744
      %v6761 = vsub.f32 0.0, %v6745
      %v6762 = vsub.f32 0.0, %v6746
      %v6763 = vsub.f32 0.0, %v6747
      %v6764 = vsub.f32 0.0, %v6748
      %v6765 = vsub.f32 0.0, %v6749
      %v6766 = vsub.f32 0.0, %v6750
      %v6767 = vpack.c.bf16 %v6752, %v6751
      %v6768 = vpack.c.bf16 %v6754, %v6753
      %v6769 = vpack.c.bf16 %v6756, %v6755
      %v6770 = vpack.c.bf16 %v6758, %v6757
      %v6771 = vpack.c.bf16 %v6760, %v6759
      %v6772 = vpack.c.bf16 %v6762, %v6761
      %v6773 = vpack.c.bf16 %v6764, %v6763
      %v6774 = vpack.c.bf16 %v6766, %v6765
      %v6783 = vunpack.c.l.b16 %v6767
      %v6784 = vunpack.c.h.b16 %v6767
      %v6785 = vunpack.c.l.b16 %v6768
      %v6786 = vunpack.c.h.b16 %v6768
      %v6787 = vunpack.c.l.b16 %v6769
      %v6788 = vunpack.c.h.b16 %v6769
      %v6789 = vunpack.c.l.b16 %v6770
      %v6790 = vunpack.c.h.b16 %v6770
      %v6791 = vunpack.c.l.b16 %v6771
      %v6792 = vunpack.c.h.b16 %v6771
      %v6793 = vunpack.c.l.b16 %v6772
      %v6794 = vunpack.c.h.b16 %v6772
      %v6795 = vunpack.c.l.b16 %v6773
      %v6796 = vunpack.c.h.b16 %v6773
      %v6797 = vunpack.c.l.b16 %v6774
      %v6798 = vunpack.c.h.b16 %v6774
      %v6799 = vpack.c.b16 %v6783, %v6783
      %v6800 = vpack.c.b16 %v6784, %v6784
      %v6801 = vpack.c.b16 %v6785, %v6785
      %v6802 = vpack.c.b16 %v6786, %v6786
      %v6803 = vpack.c.b16 %v6787, %v6787
      %v6804 = vpack.c.b16 %v6788, %v6788
      %v6805 = vpack.c.b16 %v6789, %v6789
      %v6806 = vpack.c.b16 %v6790, %v6790
      %v6807 = vpack.c.b16 %v6791, %v6791
      %v6808 = vpack.c.b16 %v6792, %v6792
      %v6809 = vpack.c.b16 %v6793, %v6793
      %v6810 = vpack.c.b16 %v6794, %v6794
      %v6811 = vpack.c.b16 %v6795, %v6795
      %v6812 = vpack.c.b16 %v6796, %v6796
      %v6813 = vpack.c.b16 %v6797, %v6797
      %v6814 = vpack.c.b16 %v6798, %v6798
      %6815 = vrot.lane.b32.xlu0 %v6799, 64
      %v6816 = vpop.permute.xlu0 %6815
      %6817 = vrot.lane.b32.xlu0 %v6800, 64
      %v6818 = vpop.permute.xlu0 %6817
      %6819 = vrot.lane.b32.xlu0 %v6801, 64
      %v6820 = vpop.permute.xlu0 %6819
      %6821 = vrot.lane.b32.xlu0 %v6802, 64
      %v6822 = vpop.permute.xlu0 %6821
      %6823 = vrot.lane.b32.xlu0 %v6803, 64
      %v6824 = vpop.permute.xlu0 %6823
      %6825 = vrot.lane.b32.xlu0 %v6804, 64
      %v6826 = vpop.permute.xlu0 %6825
      %6827 = vrot.lane.b32.xlu0 %v6805, 64
      %v6828 = vpop.permute.xlu0 %6827
      %6829 = vrot.lane.b32.xlu0 %v6806, 64
      %v6830 = vpop.permute.xlu0 %6829
      %6831 = vrot.lane.b32.xlu0 %v6807, 64
      %v6832 = vpop.permute.xlu0 %6831
      %6833 = vrot.lane.b32.xlu0 %v6808, 64
      %v6834 = vpop.permute.xlu0 %6833
      %6835 = vrot.lane.b32.xlu0 %v6809, 64
      %v6836 = vpop.permute.xlu0 %6835
      %6837 = vrot.lane.b32.xlu0 %v6810, 64
      %v6838 = vpop.permute.xlu0 %6837
      %6839 = vrot.lane.b32.xlu0 %v6811, 64
      %v6840 = vpop.permute.xlu0 %6839
      %6841 = vrot.lane.b32.xlu0 %v6812, 64
      %v6842 = vpop.permute.xlu0 %6841
      %6843 = vrot.lane.b32.xlu0 %v6813, 64
      %v6844 = vpop.permute.xlu0 %6843
      %6845 = vrot.lane.b32.xlu0 %v6814, 64
      %v6846 = vpop.permute.xlu0 %6845
      %6863 = vst.msk [vmem:[#allocation5 + $0x4] sm:$0xf] %vm3035, %v6816
      %6864 = vst.msk [vmem:[#allocation5 + $0xc] sm:$0xf] %vm3035, %v6818
      %6865 = vst.msk [vmem:[#allocation5 + $0x14] sm:$0xf] %vm3035, %v6820
      %6866 = vst.msk [vmem:[#allocation5 + $0x1c] sm:$0xf] %vm3035, %v6822
      %6867 = vst.msk [vmem:[#allocation5 + $0x24] sm:$0xf] %vm3035, %v6824
      %6868 = vst.msk [vmem:[#allocation5 + $0x2c] sm:$0xf] %vm3035, %v6826
      %6869 = vst.msk [vmem:[#allocation5 + $0x34] sm:$0xf] %vm3035, %v6828
      %6870 = vst.msk [vmem:[#allocation5 + $0x3c] sm:$0xf] %vm3035, %v6830
      %6871 = vst.msk [vmem:[#allocation5 + $0x44] sm:$0xf] %vm3035, %v6832
      %6872 = vst.msk [vmem:[#allocation5 + $0x4c] sm:$0xf] %vm3035, %v6834
      %6873 = vst.msk [vmem:[#allocation5 + $0x54] sm:$0xf] %vm3035, %v6836
      %6874 = vst.msk [vmem:[#allocation5 + $0x5c] sm:$0xf] %vm3035, %v6838
      %6875 = vst.msk [vmem:[#allocation5 + $0x64] sm:$0xf] %vm3035, %v6840
      %6876 = vst.msk [vmem:[#allocation5 + $0x6c] sm:$0xf] %vm3035, %v6842
      %6877 = vst.msk [vmem:[#allocation5 + $0x74] sm:$0xf] %vm3035, %v6844
      %6878 = vst.msk [vmem:[#allocation5 + $0x7c] sm:$0xf] %vm3035, %v6846
      %6879 = vset.pattern.permute.xlu0 13
      %6880 = vperm.xlu0 %6879, %v871
      %v6881 = vpop.permute.xlu0 %6880
      %6883 = vset.pattern.permute.xlu0 13
      %6884 = vperm.xlu0 %6883, %v872
      %v6885 = vpop.permute.xlu0 %6884
      %6887 = vset.pattern.permute.xlu0 13
      %6888 = vperm.xlu0 %6887, %v873
      %v6889 = vpop.permute.xlu0 %6888
      %6891 = vset.pattern.permute.xlu0 13
      %6892 = vperm.xlu0 %6891, %v874
      %v6893 = vpop.permute.xlu0 %6892
      %6895 = vset.pattern.permute.xlu0 13
      %6896 = vperm.xlu0 %6895, %v875
      %v6897 = vpop.permute.xlu0 %6896
      %6899 = vset.pattern.permute.xlu0 13
      %6900 = vperm.xlu0 %6899, %v876
      %v6901 = vpop.permute.xlu0 %6900
      %6903 = vset.pattern.permute.xlu0 13
      %6904 = vperm.xlu0 %6903, %v877
      %v6905 = vpop.permute.xlu0 %6904
      %6907 = vset.pattern.permute.xlu0 13
      %6908 = vperm.xlu0 %6907, %v878
      %v6909 = vpop.permute.xlu0 %6908
      %6911 = vset.pattern.permute.xlu0 13
      %6912 = vperm.xlu0 %6911, %v879
      %v6913 = vpop.permute.xlu0 %6912
      %6915 = vset.pattern.permute.xlu0 13
      %6916 = vperm.xlu0 %6915, %v880
      %v6917 = vpop.permute.xlu0 %6916
      %6919 = vset.pattern.permute.xlu0 13
      %6920 = vperm.xlu0 %6919, %v881
      %v6921 = vpop.permute.xlu0 %6920
      %6923 = vset.pattern.permute.xlu0 13
      %6924 = vperm.xlu0 %6923, %v882
      %v6925 = vpop.permute.xlu0 %6924
      %6927 = vset.pattern.permute.xlu0 13
      %6928 = vperm.xlu0 %6927, %v883
      %v6929 = vpop.permute.xlu0 %6928
      %6931 = vset.pattern.permute.xlu0 13
      %6932 = vperm.xlu0 %6931, %v884
      %v6933 = vpop.permute.xlu0 %6932
      %6935 = vset.pattern.permute.xlu0 13
      %6936 = vperm.xlu0 %6935, %v885
      %v6937 = vpop.permute.xlu0 %6936
      %6939 = vset.pattern.permute.xlu0 13
      %6940 = vperm.xlu0 %6939, %v886
      %v6941 = vpop.permute.xlu0 %6940
      %v6943 = vmul.f32 %v6881, %v903
      %v6944 = vmul.f32 %v6885, %v904
      %v6945 = vmul.f32 %v6889, %v905
      %v6946 = vmul.f32 %v6893, %v906
      %v6947 = vmul.f32 %v6897, %v907
      %v6948 = vmul.f32 %v6901, %v908
      %v6949 = vmul.f32 %v6905, %v909
      %v6950 = vmul.f32 %v6909, %v910
      %v6951 = vmul.f32 %v6913, %v911
      %v6952 = vmul.f32 %v6917, %v912
      %v6953 = vmul.f32 %v6921, %v913
      %v6954 = vmul.f32 %v6925, %v914
      %v6955 = vmul.f32 %v6929, %v915
      %v6956 = vmul.f32 %v6933, %v916
      %v6957 = vmul.f32 %v6937, %v917
      %v6958 = vmul.f32 %v6941, %v918
      %6959 = vset.pattern.permute.xlu0 13
      %6960 = vperm.xlu0 %6959, %v887
      %v6961 = vpop.permute.xlu0 %6960
      %6963 = vset.pattern.permute.xlu0 13
      %6964 = vperm.xlu0 %6963, %v888
      %v6965 = vpop.permute.xlu0 %6964
      %6967 = vset.pattern.permute.xlu0 13
      %6968 = vperm.xlu0 %6967, %v889
      %v6969 = vpop.permute.xlu0 %6968
      %6971 = vset.pattern.permute.xlu0 13
      %6972 = vperm.xlu0 %6971, %v890
      %v6973 = vpop.permute.xlu0 %6972
      %6975 = vset.pattern.permute.xlu0 13
      %6976 = vperm.xlu0 %6975, %v891
      %v6977 = vpop.permute.xlu0 %6976
      %6979 = vset.pattern.permute.xlu0 13
      %6980 = vperm.xlu0 %6979, %v892
      %v6981 = vpop.permute.xlu0 %6980
      %6983 = vset.pattern.permute.xlu0 13
      %6984 = vperm.xlu0 %6983, %v893
      %v6985 = vpop.permute.xlu0 %6984
      %6987 = vset.pattern.permute.xlu0 13
      %6988 = vperm.xlu0 %6987, %v894
      %v6989 = vpop.permute.xlu0 %6988
      %6991 = vset.pattern.permute.xlu0 13
      %6992 = vperm.xlu0 %6991, %v895
      %v6993 = vpop.permute.xlu0 %6992
      %6995 = vset.pattern.permute.xlu0 13
      %6996 = vperm.xlu0 %6995, %v896
      %v6997 = vpop.permute.xlu0 %6996
      %6999 = vset.pattern.permute.xlu0 13
      %7000 = vperm.xlu0 %6999, %v897
      %v7001 = vpop.permute.xlu0 %7000
      %7003 = vset.pattern.permute.xlu0 13
      %7004 = vperm.xlu0 %7003, %v898
      %v7005 = vpop.permute.xlu0 %7004
      %7007 = vset.pattern.permute.xlu0 13
      %7008 = vperm.xlu0 %7007, %v899
      %v7009 = vpop.permute.xlu0 %7008
      %7011 = vset.pattern.permute.xlu0 13
      %7012 = vperm.xlu0 %7011, %v900
      %v7013 = vpop.permute.xlu0 %7012
      %7015 = vset.pattern.permute.xlu0 13
      %7016 = vperm.xlu0 %7015, %v901
      %v7017 = vpop.permute.xlu0 %7016
      %7019 = vset.pattern.permute.xlu0 13
      %7020 = vperm.xlu0 %7019, %v902
      %v7021 = vpop.permute.xlu0 %7020
      %v7023 = vmul.f32 %v6961, %v919
      %v7024 = vmul.f32 %v6965, %v920
      %v7025 = vmul.f32 %v6969, %v921
      %v7026 = vmul.f32 %v6973, %v922
      %v7027 = vmul.f32 %v6977, %v923
      %v7028 = vmul.f32 %v6981, %v924
      %v7029 = vmul.f32 %v6985, %v925
      %v7030 = vmul.f32 %v6989, %v926
      %v7031 = vmul.f32 %v6993, %v927
      %v7032 = vmul.f32 %v6997, %v928
      %v7033 = vmul.f32 %v7001, %v929
      %v7034 = vmul.f32 %v7005, %v930
      %v7035 = vmul.f32 %v7009, %v931
      %v7036 = vmul.f32 %v7013, %v932
      %v7037 = vmul.f32 %v7017, %v933
      %v7038 = vmul.f32 %v7021, %v934
      %v7039 = vsub.f32 %v6943, %v7023
      %v7040 = vsub.f32 %v6944, %v7024
      %v7041 = vsub.f32 %v6945, %v7025
      %v7042 = vsub.f32 %v6946, %v7026
      %v7043 = vsub.f32 %v6947, %v7027
      %v7044 = vsub.f32 %v6948, %v7028
      %v7045 = vsub.f32 %v6949, %v7029
      %v7046 = vsub.f32 %v6950, %v7030
      %v7047 = vsub.f32 %v6951, %v7031
      %v7048 = vsub.f32 %v6952, %v7032
      %v7049 = vsub.f32 %v6953, %v7033
      %v7050 = vsub.f32 %v6954, %v7034
      %v7051 = vsub.f32 %v6955, %v7035
      %v7052 = vsub.f32 %v6956, %v7036
      %v7053 = vsub.f32 %v6957, %v7037
      %v7054 = vsub.f32 %v6958, %v7038
      %v7055 = vpack.c.bf16 %v7040, %v7039
      %v7056 = vpack.c.bf16 %v7042, %v7041
      %v7057 = vpack.c.bf16 %v7044, %v7043
      %v7058 = vpack.c.bf16 %v7046, %v7045
      %v7059 = vpack.c.bf16 %v7048, %v7047
      %v7060 = vpack.c.bf16 %v7050, %v7049
      %v7061 = vpack.c.bf16 %v7052, %v7051
      %v7062 = vpack.c.bf16 %v7054, %v7053
      %v7071 = vunpack.c.l.b16 %v7055
      %v7072 = vunpack.c.h.b16 %v7055
      %v7073 = vunpack.c.l.b16 %v7056
      %v7074 = vunpack.c.h.b16 %v7056
      %v7075 = vunpack.c.l.b16 %v7057
      %v7076 = vunpack.c.h.b16 %v7057
      %v7077 = vunpack.c.l.b16 %v7058
      %v7078 = vunpack.c.h.b16 %v7058
      %v7079 = vunpack.c.l.b16 %v7059
      %v7080 = vunpack.c.h.b16 %v7059
      %v7081 = vunpack.c.l.b16 %v7060
      %v7082 = vunpack.c.h.b16 %v7060
      %v7083 = vunpack.c.l.b16 %v7061
      %v7084 = vunpack.c.h.b16 %v7061
      %v7085 = vunpack.c.l.b16 %v7062
      %v7086 = vunpack.c.h.b16 %v7062
      %v7087 = vpack.c.b16 %v7071, %v7071
      %v7088 = vpack.c.b16 %v7072, %v7072
      %v7089 = vpack.c.b16 %v7073, %v7073
      %v7090 = vpack.c.b16 %v7074, %v7074
      %v7091 = vpack.c.b16 %v7075, %v7075
      %v7092 = vpack.c.b16 %v7076, %v7076
      %v7093 = vpack.c.b16 %v7077, %v7077
      %v7094 = vpack.c.b16 %v7078, %v7078
      %v7095 = vpack.c.b16 %v7079, %v7079
      %v7096 = vpack.c.b16 %v7080, %v7080
      %v7097 = vpack.c.b16 %v7081, %v7081
      %v7098 = vpack.c.b16 %v7082, %v7082
      %v7099 = vpack.c.b16 %v7083, %v7083
      %v7100 = vpack.c.b16 %v7084, %v7084
      %v7101 = vpack.c.b16 %v7085, %v7085
      %v7102 = vpack.c.b16 %v7086, %v7086
      %7103 = vrot.lane.b32.xlu0 %v7087, 80
      %v7104 = vpop.permute.xlu0 %7103
      %7105 = vrot.lane.b32.xlu0 %v7088, 80
      %v7106 = vpop.permute.xlu0 %7105
      %7107 = vrot.lane.b32.xlu0 %v7089, 80
      %v7108 = vpop.permute.xlu0 %7107
      %7109 = vrot.lane.b32.xlu0 %v7090, 80
      %v7110 = vpop.permute.xlu0 %7109
      %7111 = vrot.lane.b32.xlu0 %v7091, 80
      %v7112 = vpop.permute.xlu0 %7111
      %7113 = vrot.lane.b32.xlu0 %v7092, 80
      %v7114 = vpop.permute.xlu0 %7113
      %7115 = vrot.lane.b32.xlu0 %v7093, 80
      %v7116 = vpop.permute.xlu0 %7115
      %7117 = vrot.lane.b32.xlu0 %v7094, 80
      %v7118 = vpop.permute.xlu0 %7117
      %7119 = vrot.lane.b32.xlu0 %v7095, 80
      %v7120 = vpop.permute.xlu0 %7119
      %7121 = vrot.lane.b32.xlu0 %v7096, 80
      %v7122 = vpop.permute.xlu0 %7121
      %7123 = vrot.lane.b32.xlu0 %v7097, 80
      %v7124 = vpop.permute.xlu0 %7123
      %7125 = vrot.lane.b32.xlu0 %v7098, 80
      %v7126 = vpop.permute.xlu0 %7125
      %7127 = vrot.lane.b32.xlu0 %v7099, 80
      %v7128 = vpop.permute.xlu0 %7127
      %7129 = vrot.lane.b32.xlu0 %v7100, 80
      %v7130 = vpop.permute.xlu0 %7129
      %7131 = vrot.lane.b32.xlu0 %v7101, 80
      %v7132 = vpop.permute.xlu0 %7131
      %7133 = vrot.lane.b32.xlu0 %v7102, 80
      %v7134 = vpop.permute.xlu0 %7133
      %7151 = vst.msk [vmem:[#allocation4 + $0x4] sm:$0xf] %vm3500, %v7104
      %7152 = vst.msk [vmem:[#allocation4 + $0xc] sm:$0xf] %vm3500, %v7106
      %7153 = vst.msk [vmem:[#allocation4 + $0x14] sm:$0xf] %vm3500, %v7108
      %7154 = vst.msk [vmem:[#allocation4 + $0x1c] sm:$0xf] %vm3500, %v7110
      %7155 = vst.msk [vmem:[#allocation4 + $0x24] sm:$0xf] %vm3500, %v7112
      %7156 = vst.msk [vmem:[#allocation4 + $0x2c] sm:$0xf] %vm3500, %v7114
      %7157 = vst.msk [vmem:[#allocation4 + $0x34] sm:$0xf] %vm3500, %v7116
      %7158 = vst.msk [vmem:[#allocation4 + $0x3c] sm:$0xf] %vm3500, %v7118
      %7159 = vst.msk [vmem:[#allocation4 + $0x44] sm:$0xf] %vm3500, %v7120
      %7160 = vst.msk [vmem:[#allocation4 + $0x4c] sm:$0xf] %vm3500, %v7122
      %7161 = vst.msk [vmem:[#allocation4 + $0x54] sm:$0xf] %vm3500, %v7124
      %7162 = vst.msk [vmem:[#allocation4 + $0x5c] sm:$0xf] %vm3500, %v7126
      %7163 = vst.msk [vmem:[#allocation4 + $0x64] sm:$0xf] %vm3500, %v7128
      %7164 = vst.msk [vmem:[#allocation4 + $0x6c] sm:$0xf] %vm3500, %v7130
      %7165 = vst.msk [vmem:[#allocation4 + $0x74] sm:$0xf] %vm3500, %v7132
      %7166 = vst.msk [vmem:[#allocation4 + $0x7c] sm:$0xf] %vm3500, %v7134
      %v7167 = vmul.f32 %v6961, %v903
      %v7168 = vmul.f32 %v6965, %v904
      %v7169 = vmul.f32 %v6969, %v905
      %v7170 = vmul.f32 %v6973, %v906
      %v7171 = vmul.f32 %v6977, %v907
      %v7172 = vmul.f32 %v6981, %v908
      %v7173 = vmul.f32 %v6985, %v909
      %v7174 = vmul.f32 %v6989, %v910
      %v7175 = vmul.f32 %v6993, %v911
      %v7176 = vmul.f32 %v6997, %v912
      %v7177 = vmul.f32 %v7001, %v913
      %v7178 = vmul.f32 %v7005, %v914
      %v7179 = vmul.f32 %v7009, %v915
      %v7180 = vmul.f32 %v7013, %v916
      %v7181 = vmul.f32 %v7017, %v917
      %v7182 = vmul.f32 %v7021, %v918
      %v7183 = vmul.f32 %v6881, %v919
      %v7184 = vmul.f32 %v6885, %v920
      %v7185 = vmul.f32 %v6889, %v921
      %v7186 = vmul.f32 %v6893, %v922
      %v7187 = vmul.f32 %v6897, %v923
      %v7188 = vmul.f32 %v6901, %v924
      %v7189 = vmul.f32 %v6905, %v925
      %v7190 = vmul.f32 %v6909, %v926
      %v7191 = vmul.f32 %v6913, %v927
      %v7192 = vmul.f32 %v6917, %v928
      %v7193 = vmul.f32 %v6921, %v929
      %v7194 = vmul.f32 %v6925, %v930
      %v7195 = vmul.f32 %v6929, %v931
      %v7196 = vmul.f32 %v6933, %v932
      %v7197 = vmul.f32 %v6937, %v933
      %v7198 = vmul.f32 %v6941, %v934
      %v7199 = vadd.f32 %v7167, %v7183
      %v7200 = vadd.f32 %v7168, %v7184
      %v7201 = vadd.f32 %v7169, %v7185
      %v7202 = vadd.f32 %v7170, %v7186
      %v7203 = vadd.f32 %v7171, %v7187
      %v7204 = vadd.f32 %v7172, %v7188
      %v7205 = vadd.f32 %v7173, %v7189
      %v7206 = vadd.f32 %v7174, %v7190
      %v7207 = vadd.f32 %v7175, %v7191
      %v7208 = vadd.f32 %v7176, %v7192
      %v7209 = vadd.f32 %v7177, %v7193
      %v7210 = vadd.f32 %v7178, %v7194
      %v7211 = vadd.f32 %v7179, %v7195
      %v7212 = vadd.f32 %v7180, %v7196
      %v7213 = vadd.f32 %v7181, %v7197
      %v7214 = vadd.f32 %v7182, %v7198
      %v7215 = vsub.f32 0.0, %v7199
      %v7216 = vsub.f32 0.0, %v7200
      %v7217 = vsub.f32 0.0, %v7201
      %v7218 = vsub.f32 0.0, %v7202
      %v7219 = vsub.f32 0.0, %v7203
      %v7220 = vsub.f32 0.0, %v7204
      %v7221 = vsub.f32 0.0, %v7205
      %v7222 = vsub.f32 0.0, %v7206
      %v7223 = vsub.f32 0.0, %v7207
      %v7224 = vsub.f32 0.0, %v7208
      %v7225 = vsub.f32 0.0, %v7209
      %v7226 = vsub.f32 0.0, %v7210
      %v7227 = vsub.f32 0.0, %v7211
      %v7228 = vsub.f32 0.0, %v7212
      %v7229 = vsub.f32 0.0, %v7213
      %v7230 = vsub.f32 0.0, %v7214
      %v7231 = vpack.c.bf16 %v7216, %v7215
      %v7232 = vpack.c.bf16 %v7218, %v7217
      %v7233 = vpack.c.bf16 %v7220, %v7219
      %v7234 = vpack.c.bf16 %v7222, %v7221
      %v7235 = vpack.c.bf16 %v7224, %v7223
      %v7236 = vpack.c.bf16 %v7226, %v7225
      %v7237 = vpack.c.bf16 %v7228, %v7227
      %v7238 = vpack.c.bf16 %v7230, %v7229
      %v7247 = vunpack.c.l.b16 %v7231
      %v7248 = vunpack.c.h.b16 %v7231
      %v7249 = vunpack.c.l.b16 %v7232
      %v7250 = vunpack.c.h.b16 %v7232
      %v7251 = vunpack.c.l.b16 %v7233
      %v7252 = vunpack.c.h.b16 %v7233
      %v7253 = vunpack.c.l.b16 %v7234
      %v7254 = vunpack.c.h.b16 %v7234
      %v7255 = vunpack.c.l.b16 %v7235
      %v7256 = vunpack.c.h.b16 %v7235
      %v7257 = vunpack.c.l.b16 %v7236
      %v7258 = vunpack.c.h.b16 %v7236
      %v7259 = vunpack.c.l.b16 %v7237
      %v7260 = vunpack.c.h.b16 %v7237
      %v7261 = vunpack.c.l.b16 %v7238
      %v7262 = vunpack.c.h.b16 %v7238
      %v7263 = vpack.c.b16 %v7247, %v7247
      %v7264 = vpack.c.b16 %v7248, %v7248
      %v7265 = vpack.c.b16 %v7249, %v7249
      %v7266 = vpack.c.b16 %v7250, %v7250
      %v7267 = vpack.c.b16 %v7251, %v7251
      %v7268 = vpack.c.b16 %v7252, %v7252
      %v7269 = vpack.c.b16 %v7253, %v7253
      %v7270 = vpack.c.b16 %v7254, %v7254
      %v7271 = vpack.c.b16 %v7255, %v7255
      %v7272 = vpack.c.b16 %v7256, %v7256
      %v7273 = vpack.c.b16 %v7257, %v7257
      %v7274 = vpack.c.b16 %v7258, %v7258
      %v7275 = vpack.c.b16 %v7259, %v7259
      %v7276 = vpack.c.b16 %v7260, %v7260
      %v7277 = vpack.c.b16 %v7261, %v7261
      %v7278 = vpack.c.b16 %v7262, %v7262
      %7279 = vrot.lane.b32.xlu0 %v7263, 80
      %v7280 = vpop.permute.xlu0 %7279
      %7281 = vrot.lane.b32.xlu0 %v7264, 80
      %v7282 = vpop.permute.xlu0 %7281
      %7283 = vrot.lane.b32.xlu0 %v7265, 80
      %v7284 = vpop.permute.xlu0 %7283
      %7285 = vrot.lane.b32.xlu0 %v7266, 80
      %v7286 = vpop.permute.xlu0 %7285
      %7287 = vrot.lane.b32.xlu0 %v7267, 80
      %v7288 = vpop.permute.xlu0 %7287
      %7289 = vrot.lane.b32.xlu0 %v7268, 80
      %v7290 = vpop.permute.xlu0 %7289
      %7291 = vrot.lane.b32.xlu0 %v7269, 80
      %v7292 = vpop.permute.xlu0 %7291
      %7293 = vrot.lane.b32.xlu0 %v7270, 80
      %v7294 = vpop.permute.xlu0 %7293
      %7295 = vrot.lane.b32.xlu0 %v7271, 80
      %v7296 = vpop.permute.xlu0 %7295
      %7297 = vrot.lane.b32.xlu0 %v7272, 80
      %v7298 = vpop.permute.xlu0 %7297
      %7299 = vrot.lane.b32.xlu0 %v7273, 80
      %v7300 = vpop.permute.xlu0 %7299
      %7301 = vrot.lane.b32.xlu0 %v7274, 80
      %v7302 = vpop.permute.xlu0 %7301
      %7303 = vrot.lane.b32.xlu0 %v7275, 80
      %v7304 = vpop.permute.xlu0 %7303
      %7305 = vrot.lane.b32.xlu0 %v7276, 80
      %v7306 = vpop.permute.xlu0 %7305
      %7307 = vrot.lane.b32.xlu0 %v7277, 80
      %v7308 = vpop.permute.xlu0 %7307
      %7309 = vrot.lane.b32.xlu0 %v7278, 80
      %v7310 = vpop.permute.xlu0 %7309
      %7327 = vst.msk [vmem:[#allocation5 + $0x4] sm:$0xf] %vm3500, %v7280
      %7328 = vst.msk [vmem:[#allocation5 + $0xc] sm:$0xf] %vm3500, %v7282
      %7329 = vst.msk [vmem:[#allocation5 + $0x14] sm:$0xf] %vm3500, %v7284
      %7330 = vst.msk [vmem:[#allocation5 + $0x1c] sm:$0xf] %vm3500, %v7286
      %7331 = vst.msk [vmem:[#allocation5 + $0x24] sm:$0xf] %vm3500, %v7288
      %7332 = vst.msk [vmem:[#allocation5 + $0x2c] sm:$0xf] %vm3500, %v7290
      %7333 = vst.msk [vmem:[#allocation5 + $0x34] sm:$0xf] %vm3500, %v7292
      %7334 = vst.msk [vmem:[#allocation5 + $0x3c] sm:$0xf] %vm3500, %v7294
      %7335 = vst.msk [vmem:[#allocation5 + $0x44] sm:$0xf] %vm3500, %v7296
      %7336 = vst.msk [vmem:[#allocation5 + $0x4c] sm:$0xf] %vm3500, %v7298
      %7337 = vst.msk [vmem:[#allocation5 + $0x54] sm:$0xf] %vm3500, %v7300
      %7338 = vst.msk [vmem:[#allocation5 + $0x5c] sm:$0xf] %vm3500, %v7302
      %7339 = vst.msk [vmem:[#allocation5 + $0x64] sm:$0xf] %vm3500, %v7304
      %7340 = vst.msk [vmem:[#allocation5 + $0x6c] sm:$0xf] %vm3500, %v7306
      %7341 = vst.msk [vmem:[#allocation5 + $0x74] sm:$0xf] %vm3500, %v7308
      %7342 = vst.msk [vmem:[#allocation5 + $0x7c] sm:$0xf] %vm3500, %v7310
      %7343 = vset.pattern.permute.xlu0 14
      %7344 = vperm.xlu0 %7343, %v871
      %v7345 = vpop.permute.xlu0 %7344
      %7347 = vset.pattern.permute.xlu0 14
      %7348 = vperm.xlu0 %7347, %v872
      %v7349 = vpop.permute.xlu0 %7348
      %7351 = vset.pattern.permute.xlu0 14
      %7352 = vperm.xlu0 %7351, %v873
      %v7353 = vpop.permute.xlu0 %7352
      %7355 = vset.pattern.permute.xlu0 14
      %7356 = vperm.xlu0 %7355, %v874
      %v7357 = vpop.permute.xlu0 %7356
      %7359 = vset.pattern.permute.xlu0 14
      %7360 = vperm.xlu0 %7359, %v875
      %v7361 = vpop.permute.xlu0 %7360
      %7363 = vset.pattern.permute.xlu0 14
      %7364 = vperm.xlu0 %7363, %v876
      %v7365 = vpop.permute.xlu0 %7364
      %7367 = vset.pattern.permute.xlu0 14
      %7368 = vperm.xlu0 %7367, %v877
      %v7369 = vpop.permute.xlu0 %7368
      %7371 = vset.pattern.permute.xlu0 14
      %7372 = vperm.xlu0 %7371, %v878
      %v7373 = vpop.permute.xlu0 %7372
      %7375 = vset.pattern.permute.xlu0 14
      %7376 = vperm.xlu0 %7375, %v879
      %v7377 = vpop.permute.xlu0 %7376
      %7379 = vset.pattern.permute.xlu0 14
      %7380 = vperm.xlu0 %7379, %v880
      %v7381 = vpop.permute.xlu0 %7380
      %7383 = vset.pattern.permute.xlu0 14
      %7384 = vperm.xlu0 %7383, %v881
      %v7385 = vpop.permute.xlu0 %7384
      %7387 = vset.pattern.permute.xlu0 14
      %7388 = vperm.xlu0 %7387, %v882
      %v7389 = vpop.permute.xlu0 %7388
      %7391 = vset.pattern.permute.xlu0 14
      %7392 = vperm.xlu0 %7391, %v883
      %v7393 = vpop.permute.xlu0 %7392
      %7395 = vset.pattern.permute.xlu0 14
      %7396 = vperm.xlu0 %7395, %v884
      %v7397 = vpop.permute.xlu0 %7396
      %7399 = vset.pattern.permute.xlu0 14
      %7400 = vperm.xlu0 %7399, %v885
      %v7401 = vpop.permute.xlu0 %7400
      %7403 = vset.pattern.permute.xlu0 14
      %7404 = vperm.xlu0 %7403, %v886
      %v7405 = vpop.permute.xlu0 %7404
      %v7407 = vmul.f32 %v7345, %v903
      %v7408 = vmul.f32 %v7349, %v904
      %v7409 = vmul.f32 %v7353, %v905
      %v7410 = vmul.f32 %v7357, %v906
      %v7411 = vmul.f32 %v7361, %v907
      %v7412 = vmul.f32 %v7365, %v908
      %v7413 = vmul.f32 %v7369, %v909
      %v7414 = vmul.f32 %v7373, %v910
      %v7415 = vmul.f32 %v7377, %v911
      %v7416 = vmul.f32 %v7381, %v912
      %v7417 = vmul.f32 %v7385, %v913
      %v7418 = vmul.f32 %v7389, %v914
      %v7419 = vmul.f32 %v7393, %v915
      %v7420 = vmul.f32 %v7397, %v916
      %v7421 = vmul.f32 %v7401, %v917
      %v7422 = vmul.f32 %v7405, %v918
      %7423 = vset.pattern.permute.xlu0 14
      %7424 = vperm.xlu0 %7423, %v887
      %v7425 = vpop.permute.xlu0 %7424
      %7427 = vset.pattern.permute.xlu0 14
      %7428 = vperm.xlu0 %7427, %v888
      %v7429 = vpop.permute.xlu0 %7428
      %7431 = vset.pattern.permute.xlu0 14
      %7432 = vperm.xlu0 %7431, %v889
      %v7433 = vpop.permute.xlu0 %7432
      %7435 = vset.pattern.permute.xlu0 14
      %7436 = vperm.xlu0 %7435, %v890
      %v7437 = vpop.permute.xlu0 %7436
      %7439 = vset.pattern.permute.xlu0 14
      %7440 = vperm.xlu0 %7439, %v891
      %v7441 = vpop.permute.xlu0 %7440
      %7443 = vset.pattern.permute.xlu0 14
      %7444 = vperm.xlu0 %7443, %v892
      %v7445 = vpop.permute.xlu0 %7444
      %7447 = vset.pattern.permute.xlu0 14
      %7448 = vperm.xlu0 %7447, %v893
      %v7449 = vpop.permute.xlu0 %7448
      %7451 = vset.pattern.permute.xlu0 14
      %7452 = vperm.xlu0 %7451, %v894
      %v7453 = vpop.permute.xlu0 %7452
      %7455 = vset.pattern.permute.xlu0 14
      %7456 = vperm.xlu0 %7455, %v895
      %v7457 = vpop.permute.xlu0 %7456
      %7459 = vset.pattern.permute.xlu0 14
      %7460 = vperm.xlu0 %7459, %v896
      %v7461 = vpop.permute.xlu0 %7460
      %7463 = vset.pattern.permute.xlu0 14
      %7464 = vperm.xlu0 %7463, %v897
      %v7465 = vpop.permute.xlu0 %7464
      %7467 = vset.pattern.permute.xlu0 14
      %7468 = vperm.xlu0 %7467, %v898
      %v7469 = vpop.permute.xlu0 %7468
      %7471 = vset.pattern.permute.xlu0 14
      %7472 = vperm.xlu0 %7471, %v899
      %v7473 = vpop.permute.xlu0 %7472
      %7475 = vset.pattern.permute.xlu0 14
      %7476 = vperm.xlu0 %7475, %v900
      %v7477 = vpop.permute.xlu0 %7476
      %7479 = vset.pattern.permute.xlu0 14
      %7480 = vperm.xlu0 %7479, %v901
      %v7481 = vpop.permute.xlu0 %7480
      %7483 = vset.pattern.permute.xlu0 14
      %7484 = vperm.xlu0 %7483, %v902
      %v7485 = vpop.permute.xlu0 %7484
      %v7487 = vmul.f32 %v7425, %v919
      %v7488 = vmul.f32 %v7429, %v920
      %v7489 = vmul.f32 %v7433, %v921
      %v7490 = vmul.f32 %v7437, %v922
      %v7491 = vmul.f32 %v7441, %v923
      %v7492 = vmul.f32 %v7445, %v924
      %v7493 = vmul.f32 %v7449, %v925
      %v7494 = vmul.f32 %v7453, %v926
      %v7495 = vmul.f32 %v7457, %v927
      %v7496 = vmul.f32 %v7461, %v928
      %v7497 = vmul.f32 %v7465, %v929
      %v7498 = vmul.f32 %v7469, %v930
      %v7499 = vmul.f32 %v7473, %v931
      %v7500 = vmul.f32 %v7477, %v932
      %v7501 = vmul.f32 %v7481, %v933
      %v7502 = vmul.f32 %v7485, %v934
      %v7503 = vsub.f32 %v7407, %v7487
      %v7504 = vsub.f32 %v7408, %v7488
      %v7505 = vsub.f32 %v7409, %v7489
      %v7506 = vsub.f32 %v7410, %v7490
      %v7507 = vsub.f32 %v7411, %v7491
      %v7508 = vsub.f32 %v7412, %v7492
      %v7509 = vsub.f32 %v7413, %v7493
      %v7510 = vsub.f32 %v7414, %v7494
      %v7511 = vsub.f32 %v7415, %v7495
      %v7512 = vsub.f32 %v7416, %v7496
      %v7513 = vsub.f32 %v7417, %v7497
      %v7514 = vsub.f32 %v7418, %v7498
      %v7515 = vsub.f32 %v7419, %v7499
      %v7516 = vsub.f32 %v7420, %v7500
      %v7517 = vsub.f32 %v7421, %v7501
      %v7518 = vsub.f32 %v7422, %v7502
      %v7519 = vpack.c.bf16 %v7504, %v7503
      %v7520 = vpack.c.bf16 %v7506, %v7505
      %v7521 = vpack.c.bf16 %v7508, %v7507
      %v7522 = vpack.c.bf16 %v7510, %v7509
      %v7523 = vpack.c.bf16 %v7512, %v7511
      %v7524 = vpack.c.bf16 %v7514, %v7513
      %v7525 = vpack.c.bf16 %v7516, %v7515
      %v7526 = vpack.c.bf16 %v7518, %v7517
      %v7535 = vunpack.c.l.b16 %v7519
      %v7536 = vunpack.c.h.b16 %v7519
      %v7537 = vunpack.c.l.b16 %v7520
      %v7538 = vunpack.c.h.b16 %v7520
      %v7539 = vunpack.c.l.b16 %v7521
      %v7540 = vunpack.c.h.b16 %v7521
      %v7541 = vunpack.c.l.b16 %v7522
      %v7542 = vunpack.c.h.b16 %v7522
      %v7543 = vunpack.c.l.b16 %v7523
      %v7544 = vunpack.c.h.b16 %v7523
      %v7545 = vunpack.c.l.b16 %v7524
      %v7546 = vunpack.c.h.b16 %v7524
      %v7547 = vunpack.c.l.b16 %v7525
      %v7548 = vunpack.c.h.b16 %v7525
      %v7549 = vunpack.c.l.b16 %v7526
      %v7550 = vunpack.c.h.b16 %v7526
      %v7551 = vpack.c.b16 %v7535, %v7535
      %v7552 = vpack.c.b16 %v7536, %v7536
      %v7553 = vpack.c.b16 %v7537, %v7537
      %v7554 = vpack.c.b16 %v7538, %v7538
      %v7555 = vpack.c.b16 %v7539, %v7539
      %v7556 = vpack.c.b16 %v7540, %v7540
      %v7557 = vpack.c.b16 %v7541, %v7541
      %v7558 = vpack.c.b16 %v7542, %v7542
      %v7559 = vpack.c.b16 %v7543, %v7543
      %v7560 = vpack.c.b16 %v7544, %v7544
      %v7561 = vpack.c.b16 %v7545, %v7545
      %v7562 = vpack.c.b16 %v7546, %v7546
      %v7563 = vpack.c.b16 %v7547, %v7547
      %v7564 = vpack.c.b16 %v7548, %v7548
      %v7565 = vpack.c.b16 %v7549, %v7549
      %v7566 = vpack.c.b16 %v7550, %v7550
      %7567 = vrot.lane.b32.xlu0 %v7551, 96
      %v7568 = vpop.permute.xlu0 %7567
      %7569 = vrot.lane.b32.xlu0 %v7552, 96
      %v7570 = vpop.permute.xlu0 %7569
      %7571 = vrot.lane.b32.xlu0 %v7553, 96
      %v7572 = vpop.permute.xlu0 %7571
      %7573 = vrot.lane.b32.xlu0 %v7554, 96
      %v7574 = vpop.permute.xlu0 %7573
      %7575 = vrot.lane.b32.xlu0 %v7555, 96
      %v7576 = vpop.permute.xlu0 %7575
      %7577 = vrot.lane.b32.xlu0 %v7556, 96
      %v7578 = vpop.permute.xlu0 %7577
      %7579 = vrot.lane.b32.xlu0 %v7557, 96
      %v7580 = vpop.permute.xlu0 %7579
      %7581 = vrot.lane.b32.xlu0 %v7558, 96
      %v7582 = vpop.permute.xlu0 %7581
      %7583 = vrot.lane.b32.xlu0 %v7559, 96
      %v7584 = vpop.permute.xlu0 %7583
      %7585 = vrot.lane.b32.xlu0 %v7560, 96
      %v7586 = vpop.permute.xlu0 %7585
      %7587 = vrot.lane.b32.xlu0 %v7561, 96
      %v7588 = vpop.permute.xlu0 %7587
      %7589 = vrot.lane.b32.xlu0 %v7562, 96
      %v7590 = vpop.permute.xlu0 %7589
      %7591 = vrot.lane.b32.xlu0 %v7563, 96
      %v7592 = vpop.permute.xlu0 %7591
      %7593 = vrot.lane.b32.xlu0 %v7564, 96
      %v7594 = vpop.permute.xlu0 %7593
      %7595 = vrot.lane.b32.xlu0 %v7565, 96
      %v7596 = vpop.permute.xlu0 %7595
      %7597 = vrot.lane.b32.xlu0 %v7566, 96
      %v7598 = vpop.permute.xlu0 %7597
      %7615 = vst.msk [vmem:[#allocation4 + $0x4] sm:$0xf] %vm3965, %v7568
      %7616 = vst.msk [vmem:[#allocation4 + $0xc] sm:$0xf] %vm3965, %v7570
      %7617 = vst.msk [vmem:[#allocation4 + $0x14] sm:$0xf] %vm3965, %v7572
      %7618 = vst.msk [vmem:[#allocation4 + $0x1c] sm:$0xf] %vm3965, %v7574
      %7619 = vst.msk [vmem:[#allocation4 + $0x24] sm:$0xf] %vm3965, %v7576
      %7620 = vst.msk [vmem:[#allocation4 + $0x2c] sm:$0xf] %vm3965, %v7578
      %7621 = vst.msk [vmem:[#allocation4 + $0x34] sm:$0xf] %vm3965, %v7580
      %7622 = vst.msk [vmem:[#allocation4 + $0x3c] sm:$0xf] %vm3965, %v7582
      %7623 = vst.msk [vmem:[#allocation4 + $0x44] sm:$0xf] %vm3965, %v7584
      %7624 = vst.msk [vmem:[#allocation4 + $0x4c] sm:$0xf] %vm3965, %v7586
      %7625 = vst.msk [vmem:[#allocation4 + $0x54] sm:$0xf] %vm3965, %v7588
      %7626 = vst.msk [vmem:[#allocation4 + $0x5c] sm:$0xf] %vm3965, %v7590
      %7627 = vst.msk [vmem:[#allocation4 + $0x64] sm:$0xf] %vm3965, %v7592
      %7628 = vst.msk [vmem:[#allocation4 + $0x6c] sm:$0xf] %vm3965, %v7594
      %7629 = vst.msk [vmem:[#allocation4 + $0x74] sm:$0xf] %vm3965, %v7596
      %7630 = vst.msk [vmem:[#allocation4 + $0x7c] sm:$0xf] %vm3965, %v7598
      %v7631 = vmul.f32 %v7425, %v903
      %v7632 = vmul.f32 %v7429, %v904
      %v7633 = vmul.f32 %v7433, %v905
      %v7634 = vmul.f32 %v7437, %v906
      %v7635 = vmul.f32 %v7441, %v907
      %v7636 = vmul.f32 %v7445, %v908
      %v7637 = vmul.f32 %v7449, %v909
      %v7638 = vmul.f32 %v7453, %v910
      %v7639 = vmul.f32 %v7457, %v911
      %v7640 = vmul.f32 %v7461, %v912
      %v7641 = vmul.f32 %v7465, %v913
      %v7642 = vmul.f32 %v7469, %v914
      %v7643 = vmul.f32 %v7473, %v915
      %v7644 = vmul.f32 %v7477, %v916
      %v7645 = vmul.f32 %v7481, %v917
      %v7646 = vmul.f32 %v7485, %v918
      %v7647 = vmul.f32 %v7345, %v919
      %v7648 = vmul.f32 %v7349, %v920
      %v7649 = vmul.f32 %v7353, %v921
      %v7650 = vmul.f32 %v7357, %v922
      %v7651 = vmul.f32 %v7361, %v923
      %v7652 = vmul.f32 %v7365, %v924
      %v7653 = vmul.f32 %v7369, %v925
      %v7654 = vmul.f32 %v7373, %v926
      %v7655 = vmul.f32 %v7377, %v927
      %v7656 = vmul.f32 %v7381, %v928
      %v7657 = vmul.f32 %v7385, %v929
      %v7658 = vmul.f32 %v7389, %v930
      %v7659 = vmul.f32 %v7393, %v931
      %v7660 = vmul.f32 %v7397, %v932
      %v7661 = vmul.f32 %v7401, %v933
      %v7662 = vmul.f32 %v7405, %v934
      %v7663 = vadd.f32 %v7631, %v7647
      %v7664 = vadd.f32 %v7632, %v7648
      %v7665 = vadd.f32 %v7633, %v7649
      %v7666 = vadd.f32 %v7634, %v7650
      %v7667 = vadd.f32 %v7635, %v7651
      %v7668 = vadd.f32 %v7636, %v7652
      %v7669 = vadd.f32 %v7637, %v7653
      %v7670 = vadd.f32 %v7638, %v7654
      %v7671 = vadd.f32 %v7639, %v7655
      %v7672 = vadd.f32 %v7640, %v7656
      %v7673 = vadd.f32 %v7641, %v7657
      %v7674 = vadd.f32 %v7642, %v7658
      %v7675 = vadd.f32 %v7643, %v7659
      %v7676 = vadd.f32 %v7644, %v7660
      %v7677 = vadd.f32 %v7645, %v7661
      %v7678 = vadd.f32 %v7646, %v7662
      %v7679 = vsub.f32 0.0, %v7663
      %v7680 = vsub.f32 0.0, %v7664
      %v7681 = vsub.f32 0.0, %v7665
      %v7682 = vsub.f32 0.0, %v7666
      %v7683 = vsub.f32 0.0, %v7667
      %v7684 = vsub.f32 0.0, %v7668
      %v7685 = vsub.f32 0.0, %v7669
      %v7686 = vsub.f32 0.0, %v7670
      %v7687 = vsub.f32 0.0, %v7671
      %v7688 = vsub.f32 0.0, %v7672
      %v7689 = vsub.f32 0.0, %v7673
      %v7690 = vsub.f32 0.0, %v7674
      %v7691 = vsub.f32 0.0, %v7675
      %v7692 = vsub.f32 0.0, %v7676
      %v7693 = vsub.f32 0.0, %v7677
      %v7694 = vsub.f32 0.0, %v7678
      %v7695 = vpack.c.bf16 %v7680, %v7679
      %v7696 = vpack.c.bf16 %v7682, %v7681
      %v7697 = vpack.c.bf16 %v7684, %v7683
      %v7698 = vpack.c.bf16 %v7686, %v7685
      %v7699 = vpack.c.bf16 %v7688, %v7687
      %v7700 = vpack.c.bf16 %v7690, %v7689
      %v7701 = vpack.c.bf16 %v7692, %v7691
      %v7702 = vpack.c.bf16 %v7694, %v7693
      %v7711 = vunpack.c.l.b16 %v7695
      %v7712 = vunpack.c.h.b16 %v7695
      %v7713 = vunpack.c.l.b16 %v7696
      %v7714 = vunpack.c.h.b16 %v7696
      %v7715 = vunpack.c.l.b16 %v7697
      %v7716 = vunpack.c.h.b16 %v7697
      %v7717 = vunpack.c.l.b16 %v7698
      %v7718 = vunpack.c.h.b16 %v7698
      %v7719 = vunpack.c.l.b16 %v7699
      %v7720 = vunpack.c.h.b16 %v7699
      %v7721 = vunpack.c.l.b16 %v7700
      %v7722 = vunpack.c.h.b16 %v7700
      %v7723 = vunpack.c.l.b16 %v7701
      %v7724 = vunpack.c.h.b16 %v7701
      %v7725 = vunpack.c.l.b16 %v7702
      %v7726 = vunpack.c.h.b16 %v7702
      %v7727 = vpack.c.b16 %v7711, %v7711
      %v7728 = vpack.c.b16 %v7712, %v7712
      %v7729 = vpack.c.b16 %v7713, %v7713
      %v7730 = vpack.c.b16 %v7714, %v7714
      %v7731 = vpack.c.b16 %v7715, %v7715
      %v7732 = vpack.c.b16 %v7716, %v7716
      %v7733 = vpack.c.b16 %v7717, %v7717
      %v7734 = vpack.c.b16 %v7718, %v7718
      %v7735 = vpack.c.b16 %v7719, %v7719
      %v7736 = vpack.c.b16 %v7720, %v7720
      %v7737 = vpack.c.b16 %v7721, %v7721
      %v7738 = vpack.c.b16 %v7722, %v7722
      %v7739 = vpack.c.b16 %v7723, %v7723
      %v7740 = vpack.c.b16 %v7724, %v7724
      %v7741 = vpack.c.b16 %v7725, %v7725
      %v7742 = vpack.c.b16 %v7726, %v7726
      %7743 = vrot.lane.b32.xlu0 %v7727, 96
      %v7744 = vpop.permute.xlu0 %7743
      %7745 = vrot.lane.b32.xlu0 %v7728, 96
      %v7746 = vpop.permute.xlu0 %7745
      %7747 = vrot.lane.b32.xlu0 %v7729, 96
      %v7748 = vpop.permute.xlu0 %7747
      %7749 = vrot.lane.b32.xlu0 %v7730, 96
      %v7750 = vpop.permute.xlu0 %7749
      %7751 = vrot.lane.b32.xlu0 %v7731, 96
      %v7752 = vpop.permute.xlu0 %7751
      %7753 = vrot.lane.b32.xlu0 %v7732, 96
      %v7754 = vpop.permute.xlu0 %7753
      %7755 = vrot.lane.b32.xlu0 %v7733, 96
      %v7756 = vpop.permute.xlu0 %7755
      %7757 = vrot.lane.b32.xlu0 %v7734, 96
      %v7758 = vpop.permute.xlu0 %7757
      %7759 = vrot.lane.b32.xlu0 %v7735, 96
      %v7760 = vpop.permute.xlu0 %7759
      %7761 = vrot.lane.b32.xlu0 %v7736, 96
      %v7762 = vpop.permute.xlu0 %7761
      %7763 = vrot.lane.b32.xlu0 %v7737, 96
      %v7764 = vpop.permute.xlu0 %7763
      %7765 = vrot.lane.b32.xlu0 %v7738, 96
      %v7766 = vpop.permute.xlu0 %7765
      %7767 = vrot.lane.b32.xlu0 %v7739, 96
      %v7768 = vpop.permute.xlu0 %7767
      %7769 = vrot.lane.b32.xlu0 %v7740, 96
      %v7770 = vpop.permute.xlu0 %7769
      %7771 = vrot.lane.b32.xlu0 %v7741, 96
      %v7772 = vpop.permute.xlu0 %7771
      %7773 = vrot.lane.b32.xlu0 %v7742, 96
      %v7774 = vpop.permute.xlu0 %7773
      %7791 = vst.msk [vmem:[#allocation5 + $0x4] sm:$0xf] %vm3965, %v7744
      %7792 = vst.msk [vmem:[#allocation5 + $0xc] sm:$0xf] %vm3965, %v7746
      %7793 = vst.msk [vmem:[#allocation5 + $0x14] sm:$0xf] %vm3965, %v7748
      %7794 = vst.msk [vmem:[#allocation5 + $0x1c] sm:$0xf] %vm3965, %v7750
      %7795 = vst.msk [vmem:[#allocation5 + $0x24] sm:$0xf] %vm3965, %v7752
      %7796 = vst.msk [vmem:[#allocation5 + $0x2c] sm:$0xf] %vm3965, %v7754
      %7797 = vst.msk [vmem:[#allocation5 + $0x34] sm:$0xf] %vm3965, %v7756
      %7798 = vst.msk [vmem:[#allocation5 + $0x3c] sm:$0xf] %vm3965, %v7758
      %7799 = vst.msk [vmem:[#allocation5 + $0x44] sm:$0xf] %vm3965, %v7760
      %7800 = vst.msk [vmem:[#allocation5 + $0x4c] sm:$0xf] %vm3965, %v7762
      %7801 = vst.msk [vmem:[#allocation5 + $0x54] sm:$0xf] %vm3965, %v7764
      %7802 = vst.msk [vmem:[#allocation5 + $0x5c] sm:$0xf] %vm3965, %v7766
      %7803 = vst.msk [vmem:[#allocation5 + $0x64] sm:$0xf] %vm3965, %v7768
      %7804 = vst.msk [vmem:[#allocation5 + $0x6c] sm:$0xf] %vm3965, %v7770
      %7805 = vst.msk [vmem:[#allocation5 + $0x74] sm:$0xf] %vm3965, %v7772
      %7806 = vst.msk [vmem:[#allocation5 + $0x7c] sm:$0xf] %vm3965, %v7774
      %7807 = vset.pattern.permute.xlu0 15
      %7808 = vperm.xlu0 %7807, %v871
      %v7809 = vpop.permute.xlu0 %7808
      %7811 = vset.pattern.permute.xlu0 15
      %7812 = vperm.xlu0 %7811, %v872
      %v7813 = vpop.permute.xlu0 %7812
      %7815 = vset.pattern.permute.xlu0 15
      %7816 = vperm.xlu0 %7815, %v873
      %v7817 = vpop.permute.xlu0 %7816
      %7819 = vset.pattern.permute.xlu0 15
      %7820 = vperm.xlu0 %7819, %v874
      %v7821 = vpop.permute.xlu0 %7820
      %7823 = vset.pattern.permute.xlu0 15
      %7824 = vperm.xlu0 %7823, %v875
      %v7825 = vpop.permute.xlu0 %7824
      %7827 = vset.pattern.permute.xlu0 15
      %7828 = vperm.xlu0 %7827, %v876
      %v7829 = vpop.permute.xlu0 %7828
      %7831 = vset.pattern.permute.xlu0 15
      %7832 = vperm.xlu0 %7831, %v877
      %v7833 = vpop.permute.xlu0 %7832
      %7835 = vset.pattern.permute.xlu0 15
      %7836 = vperm.xlu0 %7835, %v878
      %v7837 = vpop.permute.xlu0 %7836
      %7839 = vset.pattern.permute.xlu0 15
      %7840 = vperm.xlu0 %7839, %v879
      %v7841 = vpop.permute.xlu0 %7840
      %7843 = vset.pattern.permute.xlu0 15
      %7844 = vperm.xlu0 %7843, %v880
      %v7845 = vpop.permute.xlu0 %7844
      %7847 = vset.pattern.permute.xlu0 15
      %7848 = vperm.xlu0 %7847, %v881
      %v7849 = vpop.permute.xlu0 %7848
      %7851 = vset.pattern.permute.xlu0 15
      %7852 = vperm.xlu0 %7851, %v882
      %v7853 = vpop.permute.xlu0 %7852
      %7855 = vset.pattern.permute.xlu0 15
      %7856 = vperm.xlu0 %7855, %v883
      %v7857 = vpop.permute.xlu0 %7856
      %7859 = vset.pattern.permute.xlu0 15
      %7860 = vperm.xlu0 %7859, %v884
      %v7861 = vpop.permute.xlu0 %7860
      %7863 = vset.pattern.permute.xlu0 15
      %7864 = vperm.xlu0 %7863, %v885
      %v7865 = vpop.permute.xlu0 %7864
      %7867 = vset.pattern.permute.xlu0 15
      %7868 = vperm.xlu0 %7867, %v886
      %v7869 = vpop.permute.xlu0 %7868
      %v7871 = vmul.f32 %v7809, %v903
      %v7872 = vmul.f32 %v7813, %v904
      %v7873 = vmul.f32 %v7817, %v905
      %v7874 = vmul.f32 %v7821, %v906
      %v7875 = vmul.f32 %v7825, %v907
      %v7876 = vmul.f32 %v7829, %v908
      %v7877 = vmul.f32 %v7833, %v909
      %v7878 = vmul.f32 %v7837, %v910
      %v7879 = vmul.f32 %v7841, %v911
      %v7880 = vmul.f32 %v7845, %v912
      %v7881 = vmul.f32 %v7849, %v913
      %v7882 = vmul.f32 %v7853, %v914
      %v7883 = vmul.f32 %v7857, %v915
      %v7884 = vmul.f32 %v7861, %v916
      %v7885 = vmul.f32 %v7865, %v917
      %v7886 = vmul.f32 %v7869, %v918
      %7887 = vset.pattern.permute.xlu0 15
      %7888 = vperm.xlu0 %7887, %v887
      %v7889 = vpop.permute.xlu0 %7888
      %7891 = vset.pattern.permute.xlu0 15
      %7892 = vperm.xlu0 %7891, %v888
      %v7893 = vpop.permute.xlu0 %7892
      %7895 = vset.pattern.permute.xlu0 15
      %7896 = vperm.xlu0 %7895, %v889
      %v7897 = vpop.permute.xlu0 %7896
      %7899 = vset.pattern.permute.xlu0 15
      %7900 = vperm.xlu0 %7899, %v890
      %v7901 = vpop.permute.xlu0 %7900
      %7903 = vset.pattern.permute.xlu0 15
      %7904 = vperm.xlu0 %7903, %v891
      %v7905 = vpop.permute.xlu0 %7904
      %7907 = vset.pattern.permute.xlu0 15
      %7908 = vperm.xlu0 %7907, %v892
      %v7909 = vpop.permute.xlu0 %7908
      %7911 = vset.pattern.permute.xlu0 15
      %7912 = vperm.xlu0 %7911, %v893
      %v7913 = vpop.permute.xlu0 %7912
      %7915 = vset.pattern.permute.xlu0 15
      %7916 = vperm.xlu0 %7915, %v894
      %v7917 = vpop.permute.xlu0 %7916
      %7919 = vset.pattern.permute.xlu0 15
      %7920 = vperm.xlu0 %7919, %v895
      %v7921 = vpop.permute.xlu0 %7920
      %7923 = vset.pattern.permute.xlu0 15
      %7924 = vperm.xlu0 %7923, %v896
      %v7925 = vpop.permute.xlu0 %7924
      %7927 = vset.pattern.permute.xlu0 15
      %7928 = vperm.xlu0 %7927, %v897
      %v7929 = vpop.permute.xlu0 %7928
      %7931 = vset.pattern.permute.xlu0 15
      %7932 = vperm.xlu0 %7931, %v898
      %v7933 = vpop.permute.xlu0 %7932
      %7935 = vset.pattern.permute.xlu0 15
      %7936 = vperm.xlu0 %7935, %v899
      %v7937 = vpop.permute.xlu0 %7936
      %7939 = vset.pattern.permute.xlu0 15
      %7940 = vperm.xlu0 %7939, %v900
      %v7941 = vpop.permute.xlu0 %7940
      %7943 = vset.pattern.permute.xlu0 15
      %7944 = vperm.xlu0 %7943, %v901
      %v7945 = vpop.permute.xlu0 %7944
      %7947 = vset.pattern.permute.xlu0 15
      %7948 = vperm.xlu0 %7947, %v902
      %v7949 = vpop.permute.xlu0 %7948
      %v7951 = vmul.f32 %v7889, %v919
      %v7952 = vmul.f32 %v7893, %v920
      %v7953 = vmul.f32 %v7897, %v921
      %v7954 = vmul.f32 %v7901, %v922
      %v7955 = vmul.f32 %v7905, %v923
      %v7956 = vmul.f32 %v7909, %v924
      %v7957 = vmul.f32 %v7913, %v925
      %v7958 = vmul.f32 %v7917, %v926
      %v7959 = vmul.f32 %v7921, %v927
      %v7960 = vmul.f32 %v7925, %v928
      %v7961 = vmul.f32 %v7929, %v929
      %v7962 = vmul.f32 %v7933, %v930
      %v7963 = vmul.f32 %v7937, %v931
      %v7964 = vmul.f32 %v7941, %v932
      %v7965 = vmul.f32 %v7945, %v933
      %v7966 = vmul.f32 %v7949, %v934
      %v7967 = vsub.f32 %v7871, %v7951
      %v7968 = vsub.f32 %v7872, %v7952
      %v7969 = vsub.f32 %v7873, %v7953
      %v7970 = vsub.f32 %v7874, %v7954
      %v7971 = vsub.f32 %v7875, %v7955
      %v7972 = vsub.f32 %v7876, %v7956
      %v7973 = vsub.f32 %v7877, %v7957
      %v7974 = vsub.f32 %v7878, %v7958
      %v7975 = vsub.f32 %v7879, %v7959
      %v7976 = vsub.f32 %v7880, %v7960
      %v7977 = vsub.f32 %v7881, %v7961
      %v7978 = vsub.f32 %v7882, %v7962
      %v7979 = vsub.f32 %v7883, %v7963
      %v7980 = vsub.f32 %v7884, %v7964
      %v7981 = vsub.f32 %v7885, %v7965
      %v7982 = vsub.f32 %v7886, %v7966
      %v7983 = vpack.c.bf16 %v7968, %v7967
      %v7984 = vpack.c.bf16 %v7970, %v7969
      %v7985 = vpack.c.bf16 %v7972, %v7971
      %v7986 = vpack.c.bf16 %v7974, %v7973
      %v7987 = vpack.c.bf16 %v7976, %v7975
      %v7988 = vpack.c.bf16 %v7978, %v7977
      %v7989 = vpack.c.bf16 %v7980, %v7979
      %v7990 = vpack.c.bf16 %v7982, %v7981
      %v7999 = vunpack.c.l.b16 %v7983
      %v8000 = vunpack.c.h.b16 %v7983
      %v8001 = vunpack.c.l.b16 %v7984
      %v8002 = vunpack.c.h.b16 %v7984
      %v8003 = vunpack.c.l.b16 %v7985
      %v8004 = vunpack.c.h.b16 %v7985
      %v8005 = vunpack.c.l.b16 %v7986
      %v8006 = vunpack.c.h.b16 %v7986
      %v8007 = vunpack.c.l.b16 %v7987
      %v8008 = vunpack.c.h.b16 %v7987
      %v8009 = vunpack.c.l.b16 %v7988
      %v8010 = vunpack.c.h.b16 %v7988
      %v8011 = vunpack.c.l.b16 %v7989
      %v8012 = vunpack.c.h.b16 %v7989
      %v8013 = vunpack.c.l.b16 %v7990
      %v8014 = vunpack.c.h.b16 %v7990
      %v8015 = vpack.c.b16 %v7999, %v7999
      %v8016 = vpack.c.b16 %v8000, %v8000
      %v8017 = vpack.c.b16 %v8001, %v8001
      %v8018 = vpack.c.b16 %v8002, %v8002
      %v8019 = vpack.c.b16 %v8003, %v8003
      %v8020 = vpack.c.b16 %v8004, %v8004
      %v8021 = vpack.c.b16 %v8005, %v8005
      %v8022 = vpack.c.b16 %v8006, %v8006
      %v8023 = vpack.c.b16 %v8007, %v8007
      %v8024 = vpack.c.b16 %v8008, %v8008
      %v8025 = vpack.c.b16 %v8009, %v8009
      %v8026 = vpack.c.b16 %v8010, %v8010
      %v8027 = vpack.c.b16 %v8011, %v8011
      %v8028 = vpack.c.b16 %v8012, %v8012
      %v8029 = vpack.c.b16 %v8013, %v8013
      %v8030 = vpack.c.b16 %v8014, %v8014
      %8031 = vrot.lane.b32.xlu0 %v8015, 112
      %v8032 = vpop.permute.xlu0 %8031
      %8033 = vrot.lane.b32.xlu0 %v8016, 112
      %v8034 = vpop.permute.xlu0 %8033
      %8035 = vrot.lane.b32.xlu0 %v8017, 112
      %v8036 = vpop.permute.xlu0 %8035
      %8037 = vrot.lane.b32.xlu0 %v8018, 112
      %v8038 = vpop.permute.xlu0 %8037
      %8039 = vrot.lane.b32.xlu0 %v8019, 112
      %v8040 = vpop.permute.xlu0 %8039
      %8041 = vrot.lane.b32.xlu0 %v8020, 112
      %v8042 = vpop.permute.xlu0 %8041
      %8043 = vrot.lane.b32.xlu0 %v8021, 112
      %v8044 = vpop.permute.xlu0 %8043
      %8045 = vrot.lane.b32.xlu0 %v8022, 112
      %v8046 = vpop.permute.xlu0 %8045
      %8047 = vrot.lane.b32.xlu0 %v8023, 112
      %v8048 = vpop.permute.xlu0 %8047
      %8049 = vrot.lane.b32.xlu0 %v8024, 112
      %v8050 = vpop.permute.xlu0 %8049
      %8051 = vrot.lane.b32.xlu0 %v8025, 112
      %v8052 = vpop.permute.xlu0 %8051
      %8053 = vrot.lane.b32.xlu0 %v8026, 112
      %v8054 = vpop.permute.xlu0 %8053
      %8055 = vrot.lane.b32.xlu0 %v8027, 112
      %v8056 = vpop.permute.xlu0 %8055
      %8057 = vrot.lane.b32.xlu0 %v8028, 112
      %v8058 = vpop.permute.xlu0 %8057
      %8059 = vrot.lane.b32.xlu0 %v8029, 112
      %v8060 = vpop.permute.xlu0 %8059
      %8061 = vrot.lane.b32.xlu0 %v8030, 112
      %v8062 = vpop.permute.xlu0 %8061
      %8079 = vst.msk [vmem:[#allocation4 + $0x4] sm:$0xf] %vm4430, %v8032
      %8080 = vst.msk [vmem:[#allocation4 + $0xc] sm:$0xf] %vm4430, %v8034
      %8081 = vst.msk [vmem:[#allocation4 + $0x14] sm:$0xf] %vm4430, %v8036
      %8082 = vst.msk [vmem:[#allocation4 + $0x1c] sm:$0xf] %vm4430, %v8038
      %8083 = vst.msk [vmem:[#allocation4 + $0x24] sm:$0xf] %vm4430, %v8040
      %8084 = vst.msk [vmem:[#allocation4 + $0x2c] sm:$0xf] %vm4430, %v8042
      %8085 = vst.msk [vmem:[#allocation4 + $0x34] sm:$0xf] %vm4430, %v8044
      %8086 = vst.msk [vmem:[#allocation4 + $0x3c] sm:$0xf] %vm4430, %v8046
      %8087 = vst.msk [vmem:[#allocation4 + $0x44] sm:$0xf] %vm4430, %v8048
      %8088 = vst.msk [vmem:[#allocation4 + $0x4c] sm:$0xf] %vm4430, %v8050
      %8089 = vst.msk [vmem:[#allocation4 + $0x54] sm:$0xf] %vm4430, %v8052
      %8090 = vst.msk [vmem:[#allocation4 + $0x5c] sm:$0xf] %vm4430, %v8054
      %8091 = vst.msk [vmem:[#allocation4 + $0x64] sm:$0xf] %vm4430, %v8056
      %8092 = vst.msk [vmem:[#allocation4 + $0x6c] sm:$0xf] %vm4430, %v8058
      %8093 = vst.msk [vmem:[#allocation4 + $0x74] sm:$0xf] %vm4430, %v8060
      %8094 = vst.msk [vmem:[#allocation4 + $0x7c] sm:$0xf] %vm4430, %v8062
      %v8095 = vmul.f32 %v7889, %v903
      %v8096 = vmul.f32 %v7893, %v904
      %v8097 = vmul.f32 %v7897, %v905
      %v8098 = vmul.f32 %v7901, %v906
      %v8099 = vmul.f32 %v7905, %v907
      %v8100 = vmul.f32 %v7909, %v908
      %v8101 = vmul.f32 %v7913, %v909
      %v8102 = vmul.f32 %v7917, %v910
      %v8103 = vmul.f32 %v7921, %v911
      %v8104 = vmul.f32 %v7925, %v912
      %v8105 = vmul.f32 %v7929, %v913
      %v8106 = vmul.f32 %v7933, %v914
      %v8107 = vmul.f32 %v7937, %v915
      %v8108 = vmul.f32 %v7941, %v916
      %v8109 = vmul.f32 %v7945, %v917
      %v8110 = vmul.f32 %v7949, %v918
      %v8111 = vmul.f32 %v7809, %v919
      %v8112 = vmul.f32 %v7813, %v920
      %v8113 = vmul.f32 %v7817, %v921
      %v8114 = vmul.f32 %v7821, %v922
      %v8115 = vmul.f32 %v7825, %v923
      %v8116 = vmul.f32 %v7829, %v924
      %v8117 = vmul.f32 %v7833, %v925
      %v8118 = vmul.f32 %v7837, %v926
      %v8119 = vmul.f32 %v7841, %v927
      %v8120 = vmul.f32 %v7845, %v928
      %v8121 = vmul.f32 %v7849, %v929
      %v8122 = vmul.f32 %v7853, %v930
      %v8123 = vmul.f32 %v7857, %v931
      %v8124 = vmul.f32 %v7861, %v932
      %v8125 = vmul.f32 %v7865, %v933
      %v8126 = vmul.f32 %v7869, %v934
      %v8127 = vadd.f32 %v8095, %v8111
      %v8128 = vadd.f32 %v8096, %v8112
      %v8129 = vadd.f32 %v8097, %v8113
      %v8130 = vadd.f32 %v8098, %v8114
      %v8131 = vadd.f32 %v8099, %v8115
      %v8132 = vadd.f32 %v8100, %v8116
      %v8133 = vadd.f32 %v8101, %v8117
      %v8134 = vadd.f32 %v8102, %v8118
      %v8135 = vadd.f32 %v8103, %v8119
      %v8136 = vadd.f32 %v8104, %v8120
      %v8137 = vadd.f32 %v8105, %v8121
      %v8138 = vadd.f32 %v8106, %v8122
      %v8139 = vadd.f32 %v8107, %v8123
      %v8140 = vadd.f32 %v8108, %v8124
      %v8141 = vadd.f32 %v8109, %v8125
      %v8142 = vadd.f32 %v8110, %v8126
      %v8143 = vsub.f32 0.0, %v8127
      %v8144 = vsub.f32 0.0, %v8128
      %v8145 = vsub.f32 0.0, %v8129
      %v8146 = vsub.f32 0.0, %v8130
      %v8147 = vsub.f32 0.0, %v8131
      %v8148 = vsub.f32 0.0, %v8132
      %v8149 = vsub.f32 0.0, %v8133
      %v8150 = vsub.f32 0.0, %v8134
      %v8151 = vsub.f32 0.0, %v8135
      %v8152 = vsub.f32 0.0, %v8136
      %v8153 = vsub.f32 0.0, %v8137
      %v8154 = vsub.f32 0.0, %v8138
      %v8155 = vsub.f32 0.0, %v8139
      %v8156 = vsub.f32 0.0, %v8140
      %v8157 = vsub.f32 0.0, %v8141
      %v8158 = vsub.f32 0.0, %v8142
      %v8159 = vpack.c.bf16 %v8144, %v8143
      %v8160 = vpack.c.bf16 %v8146, %v8145
      %v8161 = vpack.c.bf16 %v8148, %v8147
      %v8162 = vpack.c.bf16 %v8150, %v8149
      %v8163 = vpack.c.bf16 %v8152, %v8151
      %v8164 = vpack.c.bf16 %v8154, %v8153
      %v8165 = vpack.c.bf16 %v8156, %v8155
      %v8166 = vpack.c.bf16 %v8158, %v8157
      %v8175 = vunpack.c.l.b16 %v8159
      %v8176 = vunpack.c.h.b16 %v8159
      %v8177 = vunpack.c.l.b16 %v8160
      %v8178 = vunpack.c.h.b16 %v8160
      %v8179 = vunpack.c.l.b16 %v8161
      %v8180 = vunpack.c.h.b16 %v8161
      %v8181 = vunpack.c.l.b16 %v8162
      %v8182 = vunpack.c.h.b16 %v8162
      %v8183 = vunpack.c.l.b16 %v8163
      %v8184 = vunpack.c.h.b16 %v8163
      %v8185 = vunpack.c.l.b16 %v8164
      %v8186 = vunpack.c.h.b16 %v8164
      %v8187 = vunpack.c.l.b16 %v8165
      %v8188 = vunpack.c.h.b16 %v8165
      %v8189 = vunpack.c.l.b16 %v8166
      %v8190 = vunpack.c.h.b16 %v8166
      %v8191 = vpack.c.b16 %v8175, %v8175
      %v8192 = vpack.c.b16 %v8176, %v8176
      %v8193 = vpack.c.b16 %v8177, %v8177
      %v8194 = vpack.c.b16 %v8178, %v8178
      %v8195 = vpack.c.b16 %v8179, %v8179
      %v8196 = vpack.c.b16 %v8180, %v8180
      %v8197 = vpack.c.b16 %v8181, %v8181
      %v8198 = vpack.c.b16 %v8182, %v8182
      %v8199 = vpack.c.b16 %v8183, %v8183
      %v8200 = vpack.c.b16 %v8184, %v8184
      %v8201 = vpack.c.b16 %v8185, %v8185
      %v8202 = vpack.c.b16 %v8186, %v8186
      %v8203 = vpack.c.b16 %v8187, %v8187
      %v8204 = vpack.c.b16 %v8188, %v8188
      %v8205 = vpack.c.b16 %v8189, %v8189
      %v8206 = vpack.c.b16 %v8190, %v8190
      %8207 = vrot.lane.b32.xlu0 %v8191, 112
      %v8208 = vpop.permute.xlu0 %8207
      %8209 = vrot.lane.b32.xlu0 %v8192, 112
      %v8210 = vpop.permute.xlu0 %8209
      %8211 = vrot.lane.b32.xlu0 %v8193, 112
      %v8212 = vpop.permute.xlu0 %8211
      %8213 = vrot.lane.b32.xlu0 %v8194, 112
      %v8214 = vpop.permute.xlu0 %8213
      %8215 = vrot.lane.b32.xlu0 %v8195, 112
      %v8216 = vpop.permute.xlu0 %8215
      %8217 = vrot.lane.b32.xlu0 %v8196, 112
      %v8218 = vpop.permute.xlu0 %8217
      %8219 = vrot.lane.b32.xlu0 %v8197, 112
      %v8220 = vpop.permute.xlu0 %8219
      %8221 = vrot.lane.b32.xlu0 %v8198, 112
      %v8222 = vpop.permute.xlu0 %8221
      %8223 = vrot.lane.b32.xlu0 %v8199, 112
      %v8224 = vpop.permute.xlu0 %8223
      %8225 = vrot.lane.b32.xlu0 %v8200, 112
      %v8226 = vpop.permute.xlu0 %8225
      %8227 = vrot.lane.b32.xlu0 %v8201, 112
      %v8228 = vpop.permute.xlu0 %8227
      %8229 = vrot.lane.b32.xlu0 %v8202, 112
      %v8230 = vpop.permute.xlu0 %8229
      %8231 = vrot.lane.b32.xlu0 %v8203, 112
      %v8232 = vpop.permute.xlu0 %8231
      %8233 = vrot.lane.b32.xlu0 %v8204, 112
      %v8234 = vpop.permute.xlu0 %8233
      %8235 = vrot.lane.b32.xlu0 %v8205, 112
      %v8236 = vpop.permute.xlu0 %8235
      %8237 = vrot.lane.b32.xlu0 %v8206, 112
      %v8238 = vpop.permute.xlu0 %8237
      %8255 = vst.msk [vmem:[#allocation5 + $0x4] sm:$0xf] %vm4430, %v8208
      %8256 = vst.msk [vmem:[#allocation5 + $0xc] sm:$0xf] %vm4430, %v8210
      %8257 = vst.msk [vmem:[#allocation5 + $0x14] sm:$0xf] %vm4430, %v8212
      %8258 = vst.msk [vmem:[#allocation5 + $0x1c] sm:$0xf] %vm4430, %v8214
      %8259 = vst.msk [vmem:[#allocation5 + $0x24] sm:$0xf] %vm4430, %v8216
      %8260 = vst.msk [vmem:[#allocation5 + $0x2c] sm:$0xf] %vm4430, %v8218
      %8261 = vst.msk [vmem:[#allocation5 + $0x34] sm:$0xf] %vm4430, %v8220
      %8262 = vst.msk [vmem:[#allocation5 + $0x3c] sm:$0xf] %vm4430, %v8222
      %8263 = vst.msk [vmem:[#allocation5 + $0x44] sm:$0xf] %vm4430, %v8224
      %8264 = vst.msk [vmem:[#allocation5 + $0x4c] sm:$0xf] %vm4430, %v8226
      %8265 = vst.msk [vmem:[#allocation5 + $0x54] sm:$0xf] %vm4430, %v8228
      %8266 = vst.msk [vmem:[#allocation5 + $0x5c] sm:$0xf] %vm4430, %v8230
      %8267 = vst.msk [vmem:[#allocation5 + $0x64] sm:$0xf] %vm4430, %v8232
      %8268 = vst.msk [vmem:[#allocation5 + $0x6c] sm:$0xf] %vm4430, %v8234
      %8269 = vst.msk [vmem:[#allocation5 + $0x74] sm:$0xf] %vm4430, %v8236
      %8270 = vst.msk [vmem:[#allocation5 + $0x7c] sm:$0xf] %vm4430, %v8238
      %v8271 = vld [vmem:[#allocation4] sm:$0xff]
      %v8272 = vld [vmem:[#allocation4 + $0x8] sm:$0xff]
      %v8273 = vld [vmem:[#allocation4 + $0x10] sm:$0xff]
      %v8274 = vld [vmem:[#allocation4 + $0x18] sm:$0xff]
      %v8275 = vld [vmem:[#allocation4 + $0x20] sm:$0xff]
      %v8276 = vld [vmem:[#allocation4 + $0x28] sm:$0xff]
      %v8277 = vld [vmem:[#allocation4 + $0x30] sm:$0xff]
      %v8278 = vld [vmem:[#allocation4 + $0x38] sm:$0xff]
      %v8279 = vld [vmem:[#allocation4 + $0x40] sm:$0xff]
      %v8280 = vld [vmem:[#allocation4 + $0x48] sm:$0xff]
      %v8281 = vld [vmem:[#allocation4 + $0x50] sm:$0xff]
      %v8282 = vld [vmem:[#allocation4 + $0x58] sm:$0xff]
      %v8283 = vld [vmem:[#allocation4 + $0x60] sm:$0xff]
      %v8284 = vld [vmem:[#allocation4 + $0x68] sm:$0xff]
      %v8285 = vld [vmem:[#allocation4 + $0x70] sm:$0xff]
      %v8286 = vld [vmem:[#allocation4 + $0x78] sm:$0xff]
      %v8287 = vld [vmem:[#allocation5] sm:$0xff]
      %v8288 = vld [vmem:[#allocation5 + $0x8] sm:$0xff]
      %v8289 = vld [vmem:[#allocation5 + $0x10] sm:$0xff]
      %v8290 = vld [vmem:[#allocation5 + $0x18] sm:$0xff]
      %v8291 = vld [vmem:[#allocation5 + $0x20] sm:$0xff]
      %v8292 = vld [vmem:[#allocation5 + $0x28] sm:$0xff]
      %v8293 = vld [vmem:[#allocation5 + $0x30] sm:$0xff]
      %v8294 = vld [vmem:[#allocation5 + $0x38] sm:$0xff]
      %v8295 = vld [vmem:[#allocation5 + $0x40] sm:$0xff]
      %v8296 = vld [vmem:[#allocation5 + $0x48] sm:$0xff]
      %v8297 = vld [vmem:[#allocation5 + $0x50] sm:$0xff]
      %v8298 = vld [vmem:[#allocation5 + $0x58] sm:$0xff]
      %v8299 = vld [vmem:[#allocation5 + $0x60] sm:$0xff]
      %v8300 = vld [vmem:[#allocation5 + $0x68] sm:$0xff]
      %v8301 = vld [vmem:[#allocation5 + $0x70] sm:$0xff]
      %v8302 = vld [vmem:[#allocation5 + $0x78] sm:$0xff]
      %v8303 = vld [vmem:[#allocation2] sm:$0xf]
      %v8304 = vld [vmem:[#allocation3] sm:$0xf]
      %v8307 = vunpack.c.l.s4 1983009808
      %v8308 = vunpack.c.0.s8 %v8307
      %v8309 = vlaneseq
      %v8310 = vshrl.u32 %v8309, 7
      %v8311 = vsub.s32 %v8308, %v8310
      %v8312 = vrot.slane %v8303, %v8311
      %v8313 = vcombine.high %v8312, %v8312
      %v8332 = vunpack.c.l.b16 %v8271
      %v8333 = vunpack.c.h.b16 %v8271
      %v8334 = vunpack.c.l.b16 %v8272
      %v8335 = vunpack.c.h.b16 %v8272
      %v8336 = vunpack.c.l.b16 %v8273
      %v8337 = vunpack.c.h.b16 %v8273
      %v8338 = vunpack.c.l.b16 %v8274
      %v8339 = vunpack.c.h.b16 %v8274
      %v8340 = vunpack.c.l.b16 %v8275
      %v8341 = vunpack.c.h.b16 %v8275
      %v8342 = vunpack.c.l.b16 %v8276
      %v8343 = vunpack.c.h.b16 %v8276
      %v8344 = vunpack.c.l.b16 %v8277
      %v8345 = vunpack.c.h.b16 %v8277
      %v8346 = vunpack.c.l.b16 %v8278
      %v8347 = vunpack.c.h.b16 %v8278
      %v8348 = vunpack.c.l.b16 %v8279
      %v8349 = vunpack.c.h.b16 %v8279
      %v8350 = vunpack.c.l.b16 %v8280
      %v8351 = vunpack.c.h.b16 %v8280
      %v8352 = vunpack.c.l.b16 %v8281
      %v8353 = vunpack.c.h.b16 %v8281
      %v8354 = vunpack.c.l.b16 %v8282
      %v8355 = vunpack.c.h.b16 %v8282
      %v8356 = vunpack.c.l.b16 %v8283
      %v8357 = vunpack.c.h.b16 %v8283
      %v8358 = vunpack.c.l.b16 %v8284
      %v8359 = vunpack.c.h.b16 %v8284
      %v8360 = vunpack.c.l.b16 %v8285
      %v8361 = vunpack.c.h.b16 %v8285
      %v8362 = vunpack.c.l.b16 %v8286
      %v8363 = vunpack.c.h.b16 %v8286
      %v8364 = vpack.c.b16 %v8334, %v8332
      %v8365 = vpack.c.b16 %v8335, %v8333
      %v8366 = vpack.c.b16 %v8338, %v8336
      %v8367 = vpack.c.b16 %v8339, %v8337
      %v8368 = vpack.c.b16 %v8342, %v8340
      %v8369 = vpack.c.b16 %v8343, %v8341
      %v8370 = vpack.c.b16 %v8346, %v8344
      %v8371 = vpack.c.b16 %v8347, %v8345
      %v8372 = vpack.c.b16 %v8350, %v8348
      %v8373 = vpack.c.b16 %v8351, %v8349
      %v8374 = vpack.c.b16 %v8354, %v8352
      %v8375 = vpack.c.b16 %v8355, %v8353
      %v8376 = vpack.c.b16 %v8358, %v8356
      %v8377 = vpack.c.b16 %v8359, %v8357
      %v8378 = vpack.c.b16 %v8362, %v8360
      %v8379 = vpack.c.b16 %v8363, %v8361
      %8396 = vmatprep.subr.bf16.mxu0 %v8379
      %8397 = vmatpush1.bf16.xpose.msra.mxu0 %v8378
      %8398 = vmatprep.subr.bf16.mxu0 %v8377
      %8399 = vmatpush1.bf16.xpose.msra.mxu0 %v8376
      %8400 = vmatprep.subr.bf16.mxu0 %v8375
      %8401 = vmatpush1.bf16.xpose.msra.mxu0 %v8374
      %8402 = vmatprep.subr.bf16.mxu0 %v8373
      %8403 = vmatpush1.bf16.xpose.msra.mxu0 %v8372
      %8404 = vmatprep.subr.bf16.mxu0 %v8371
      %8405 = vmatpush1.bf16.xpose.msra.mxu0 %v8370
      %8406 = vmatprep.subr.bf16.mxu0 %v8369
      %8407 = vmatpush1.bf16.xpose.msra.mxu0 %v8368
      %8408 = vmatprep.subr.bf16.mxu0 %v8367
      %8409 = vmatpush1.bf16.xpose.msra.mxu0 %v8366
      %8410 = vmatprep.subr.bf16.mxu0 %v8365
      %8411 = vmatpush1.bf16.xpose.msra.mxu0 %v8364
      %8412 = vmatprep.subr.bf16.mxu0 0
      %8413 = vmatpush2.bf16.xpose.msra.mxu0 0
      %8414 = vmatprep.subr.bf16.mxu0 0
      %8415 = vmatpush2.bf16.xpose.msra.mxu0 0
      %8416 = vmatprep.subr.bf16.mxu0 0
      %8417 = vmatpush2.bf16.xpose.msra.mxu0 0
      %8418 = vmatprep.subr.bf16.mxu0 0
      %8419 = vmatpush2.bf16.xpose.msra.mxu0 0
      %8420 = vmatprep.subr.bf16.mxu0 0
      %8421 = vmatpush2.bf16.xpose.msra.mxu0 0
      %8422 = vmatprep.subr.bf16.mxu0 0
      %8423 = vmatpush2.bf16.xpose.msra.mxu0 0
      %8424 = vmatprep.subr.bf16.mxu0 0
      %8425 = vmatpush2.bf16.xpose.msra.mxu0 0
      %8426 = vmatprep.subr.bf16.mxu0 0
      %8427 = vmatpush2.bf16.xpose.msra.mxu0 0
      %8428 = vmatprep.mubr.bf16.mxu0 %v8313
      %8429 = vmatmul.mubr.bf16.gmra.mxu0 %v8312
      %v8430 = vpop.f32.mrf.mxu0
      %v8431 = vadd.f32 0.0, %v8430
      %v8432 = vpop.f32.mrf.mxu0
      %v8433 = vpop.f32.mrf.mxu0
      %v8434 = vpop.f32.mrf.mxu0
      %8435 = vdwg.mxu0
      %v8438 = vunpack.c.l.s4 1983009808
      %v8439 = vunpack.c.0.s8 %v8438
      %v8440 = vlaneseq
      %v8441 = vshrl.u32 %v8440, 7
      %v8442 = vsub.s32 %v8439, %v8441
      %v8443 = vrot.slane %v8304, %v8442
      %v8444 = vcombine.high %v8443, %v8443
      %v8463 = vunpack.c.l.b16 %v8287
      %v8464 = vunpack.c.h.b16 %v8287
      %v8465 = vunpack.c.l.b16 %v8288
      %v8466 = vunpack.c.h.b16 %v8288
      %v8467 = vunpack.c.l.b16 %v8289
      %v8468 = vunpack.c.h.b16 %v8289
      %v8469 = vunpack.c.l.b16 %v8290
      %v8470 = vunpack.c.h.b16 %v8290
      %v8471 = vunpack.c.l.b16 %v8291
      %v8472 = vunpack.c.h.b16 %v8291
      %v8473 = vunpack.c.l.b16 %v8292
      %v8474 = vunpack.c.h.b16 %v8292
      %v8475 = vunpack.c.l.b16 %v8293
      %v8476 = vunpack.c.h.b16 %v8293
      %v8477 = vunpack.c.l.b16 %v8294
      %v8478 = vunpack.c.h.b16 %v8294
      %v8479 = vunpack.c.l.b16 %v8295
      %v8480 = vunpack.c.h.b16 %v8295
      %v8481 = vunpack.c.l.b16 %v8296
      %v8482 = vunpack.c.h.b16 %v8296
      %v8483 = vunpack.c.l.b16 %v8297
      %v8484 = vunpack.c.h.b16 %v8297
      %v8485 = vunpack.c.l.b16 %v8298
      %v8486 = vunpack.c.h.b16 %v8298
      %v8487 = vunpack.c.l.b16 %v8299
      %v8488 = vunpack.c.h.b16 %v8299
      %v8489 = vunpack.c.l.b16 %v8300
      %v8490 = vunpack.c.h.b16 %v8300
      %v8491 = vunpack.c.l.b16 %v8301
      %v8492 = vunpack.c.h.b16 %v8301
      %v8493 = vunpack.c.l.b16 %v8302
      %v8494 = vunpack.c.h.b16 %v8302
      %v8495 = vpack.c.b16 %v8465, %v8463
      %v8496 = vpack.c.b16 %v8466, %v8464
      %v8497 = vpack.c.b16 %v8469, %v8467
      %v8498 = vpack.c.b16 %v8470, %v8468
      %v8499 = vpack.c.b16 %v8473, %v8471
      %v8500 = vpack.c.b16 %v8474, %v8472
      %v8501 = vpack.c.b16 %v8477, %v8475
      %v8502 = vpack.c.b16 %v8478, %v8476
      %v8503 = vpack.c.b16 %v8481, %v8479
      %v8504 = vpack.c.b16 %v8482, %v8480
      %v8505 = vpack.c.b16 %v8485, %v8483
      %v8506 = vpack.c.b16 %v8486, %v8484
      %v8507 = vpack.c.b16 %v8489, %v8487
      %v8508 = vpack.c.b16 %v8490, %v8488
      %v8509 = vpack.c.b16 %v8493, %v8491
      %v8510 = vpack.c.b16 %v8494, %v8492
      %8527 = vmatprep.subr.bf16.mxu0 %v8510
      %8528 = vmatpush1.bf16.xpose.msra.mxu0 %v8509
      %8529 = vmatprep.subr.bf16.mxu0 %v8508
      %8530 = vmatpush1.bf16.xpose.msra.mxu0 %v8507
      %8531 = vmatprep.subr.bf16.mxu0 %v8506
      %8532 = vmatpush1.bf16.xpose.msra.mxu0 %v8505
      %8533 = vmatprep.subr.bf16.mxu0 %v8504
      %8534 = vmatpush1.bf16.xpose.msra.mxu0 %v8503
      %8535 = vmatprep.subr.bf16.mxu0 %v8502
      %8536 = vmatpush1.bf16.xpose.msra.mxu0 %v8501
      %8537 = vmatprep.subr.bf16.mxu0 %v8500
      %8538 = vmatpush1.bf16.xpose.msra.mxu0 %v8499
      %8539 = vmatprep.subr.bf16.mxu0 %v8498
      %8540 = vmatpush1.bf16.xpose.msra.mxu0 %v8497
      %8541 = vmatprep.subr.bf16.mxu0 %v8496
      %8542 = vmatpush1.bf16.xpose.msra.mxu0 %v8495
      %8543 = vmatprep.subr.bf16.mxu0 0
      %8544 = vmatpush2.bf16.xpose.msra.mxu0 0
      %8545 = vmatprep.subr.bf16.mxu0 0
      %8546 = vmatpush2.bf16.xpose.msra.mxu0 0
      %8547 = vmatprep.subr.bf16.mxu0 0
      %8548 = vmatpush2.bf16.xpose.msra.mxu0 0
      %8549 = vmatprep.subr.bf16.mxu0 0
      %8550 = vmatpush2.bf16.xpose.msra.mxu0 0
      %8551 = vmatprep.subr.bf16.mxu0 0
      %8552 = vmatpush2.bf16.xpose.msra.mxu0 0
      %8553 = vmatprep.subr.bf16.mxu0 0
      %8554 = vmatpush2.bf16.xpose.msra.mxu0 0
      %8555 = vmatprep.subr.bf16.mxu0 0
      %8556 = vmatpush2.bf16.xpose.msra.mxu0 0
      %8557 = vmatprep.subr.bf16.mxu0 0
      %8558 = vmatpush2.bf16.xpose.msra.mxu0 0
      %8559 = vmatprep.mubr.bf16.mxu0 %v8444
      %8560 = vmatmul.mubr.bf16.gmra.mxu0 %v8443
      %v8561 = vpop.f32.mrf.mxu0
      %v8562 = vadd.f32 0.0, %v8561
      %v8563 = vpop.f32.mrf.mxu0
      %v8564 = vpop.f32.mrf.mxu0
      %v8565 = vpop.f32.mrf.mxu0
      %8566 = vdwg.mxu0
      %v8567 = vsub.f32 %v8431, %v8562
      %8568 = vmatprep.subr.bf16.mxu0 %v8379
      %8569 = vmatpush1.bf16.xpose.msra.mxu0 %v8378
      %8570 = vmatprep.subr.bf16.mxu0 %v8377
      %8571 = vmatpush1.bf16.xpose.msra.mxu0 %v8376
      %8572 = vmatprep.subr.bf16.mxu0 %v8375
      %8573 = vmatpush1.bf16.xpose.msra.mxu0 %v8374
      %8574 = vmatprep.subr.bf16.mxu0 %v8373
      %8575 = vmatpush1.bf16.xpose.msra.mxu0 %v8372
      %8576 = vmatprep.subr.bf16.mxu0 %v8371
      %8577 = vmatpush1.bf16.xpose.msra.mxu0 %v8370
      %8578 = vmatprep.subr.bf16.mxu0 %v8369
      %8579 = vmatpush1.bf16.xpose.msra.mxu0 %v8368
      %8580 = vmatprep.subr.bf16.mxu0 %v8367
      %8581 = vmatpush1.bf16.xpose.msra.mxu0 %v8366
      %8582 = vmatprep.subr.bf16.mxu0 %v8365
      %8583 = vmatpush1.bf16.xpose.msra.mxu0 %v8364
      %8584 = vmatprep.subr.bf16.mxu0 0
      %8585 = vmatpush2.bf16.xpose.msra.mxu0 0
      %8586 = vmatprep.subr.bf16.mxu0 0
      %8587 = vmatpush2.bf16.xpose.msra.mxu0 0
      %8588 = vmatprep.subr.bf16.mxu0 0
      %8589 = vmatpush2.bf16.xpose.msra.mxu0 0
      %8590 = vmatprep.subr.bf16.mxu0 0
      %8591 = vmatpush2.bf16.xpose.msra.mxu0 0
      %8592 = vmatprep.subr.bf16.mxu0 0
      %8593 = vmatpush2.bf16.xpose.msra.mxu0 0
      %8594 = vmatprep.subr.bf16.mxu0 0
      %8595 = vmatpush2.bf16.xpose.msra.mxu0 0
      %8596 = vmatprep.subr.bf16.mxu0 0
      %8597 = vmatpush2.bf16.xpose.msra.mxu0 0
      %8598 = vmatprep.subr.bf16.mxu0 0
      %8599 = vmatpush2.bf16.xpose.msra.mxu0 0
      %8600 = vmatprep.mubr.bf16.mxu0 %v8444
      %8601 = vmatmul.mubr.bf16.gmra.mxu0 %v8443
      %v8602 = vpop.f32.mrf.mxu0
      %v8603 = vadd.f32 0.0, %v8602
      %v8604 = vpop.f32.mrf.mxu0
      %v8605 = vpop.f32.mrf.mxu0
      %v8606 = vpop.f32.mrf.mxu0
      %8607 = vdwg.mxu0
      %8608 = vmatprep.subr.bf16.mxu0 %v8510
      %8609 = vmatpush1.bf16.xpose.msra.mxu0 %v8509
      %8610 = vmatprep.subr.bf16.mxu0 %v8508
      %8611 = vmatpush1.bf16.xpose.msra.mxu0 %v8507
      %8612 = vmatprep.subr.bf16.mxu0 %v8506
      %8613 = vmatpush1.bf16.xpose.msra.mxu0 %v8505
      %8614 = vmatprep.subr.bf16.mxu0 %v8504
      %8615 = vmatpush1.bf16.xpose.msra.mxu0 %v8503
      %8616 = vmatprep.subr.bf16.mxu0 %v8502
      %8617 = vmatpush1.bf16.xpose.msra.mxu0 %v8501
      %8618 = vmatprep.subr.bf16.mxu0 %v8500
      %8619 = vmatpush1.bf16.xpose.msra.mxu0 %v8499
      %8620 = vmatprep.subr.bf16.mxu0 %v8498
      %8621 = vmatpush1.bf16.xpose.msra.mxu0 %v8497
      %8622 = vmatprep.subr.bf16.mxu0 %v8496
      %8623 = vmatpush1.bf16.xpose.msra.mxu0 %v8495
      %8624 = vmatprep.subr.bf16.mxu0 0
      %8625 = vmatpush2.bf16.xpose.msra.mxu0 0
      %8626 = vmatprep.subr.bf16.mxu0 0
      %8627 = vmatpush2.bf16.xpose.msra.mxu0 0
      %8628 = vmatprep.subr.bf16.mxu0 0
      %8629 = vmatpush2.bf16.xpose.msra.mxu0 0
      %8630 = vmatprep.subr.bf16.mxu0 0
      %8631 = vmatpush2.bf16.xpose.msra.mxu0 0
      %8632 = vmatprep.subr.bf16.mxu0 0
      %8633 = vmatpush2.bf16.xpose.msra.mxu0 0
      %8634 = vmatprep.subr.bf16.mxu0 0
      %8635 = vmatpush2.bf16.xpose.msra.mxu0 0
      %8636 = vmatprep.subr.bf16.mxu0 0
      %8637 = vmatpush2.bf16.xpose.msra.mxu0 0
      %8638 = vmatprep.subr.bf16.mxu0 0
      %8639 = vmatpush2.bf16.xpose.msra.mxu0 0
      %8640 = vmatprep.mubr.bf16.mxu0 %v8313
      %8641 = vmatmul.mubr.bf16.gmra.mxu0 %v8312
      %v8642 = vpop.f32.mrf.mxu0
      %v8643 = vadd.f32 %v8603, %v8642
      %v8644 = vpop.f32.mrf.mxu0
      %v8645 = vpop.f32.mrf.mxu0
      %v8646 = vpop.f32.mrf.mxu0
      %8647 = vdwg.mxu0
      %v8648 = vld [vmem:[%s754] sm:$0x1]
      %v8650 = vlaneseq
      %v8651 = vshrl.u32 %v8650, 7
      %v8652 = vsub.s32 0, %v8651
      %v8653 = vrot.slane %v8648, %v8652
      %v8655 = vmul.f32 %v8567, %v8653
      %v8656 = vld [vmem:[%s763] sm:$0xf]
      %v8657 = vsub.f32 %v8655, %v8656
      %v8658 = vpack.c.bf16 %v8657, %v8657
      %v8659 = vmul.f32 %v8643, %v8653
      %v8660 = vld [vmem:[%s772] sm:$0xf]
      %v8661 = vsub.f32 %v8659, %v8660
      %v8662 = vpack.c.bf16 %v8661, %v8661
      %v8663 = vld [vmem:[#allocation6] sm:$0xff]
      %8664 = vmatprep.subr.bf16.mxu0 %v8510
      %8665 = vmatpush1.bf16.msra.mxu0 %v8509
      %8666 = vmatprep.subr.bf16.mxu0 %v8508
      %8667 = vmatpush1.bf16.msra.mxu0 %v8507
      %8668 = vmatprep.subr.bf16.mxu0 %v8506
      %8669 = vmatpush1.bf16.msra.mxu0 %v8505
      %8670 = vmatprep.subr.bf16.mxu0 %v8504
      %8671 = vmatpush1.bf16.msra.mxu0 %v8503
      %8672 = vmatprep.subr.bf16.mxu0 %v8502
      %8673 = vmatpush1.bf16.msra.mxu0 %v8501
      %8674 = vmatprep.subr.bf16.mxu0 %v8500
      %8675 = vmatpush1.bf16.msra.mxu0 %v8499
      %8676 = vmatprep.subr.bf16.mxu0 %v8498
      %8677 = vmatpush1.bf16.msra.mxu0 %v8497
      %8678 = vmatprep.subr.bf16.mxu0 %v8496
      %8679 = vmatpush1.bf16.msra.mxu0 %v8495
      %8680 = vmatprep.subr.bf16.mxu0 0
      %8681 = vmatpush2.bf16.msra.mxu0 0
      %8682 = vmatprep.subr.bf16.mxu0 0
      %8683 = vmatpush2.bf16.msra.mxu0 0
      %8684 = vmatprep.subr.bf16.mxu0 0
      %8685 = vmatpush2.bf16.msra.mxu0 0
      %8686 = vmatprep.subr.bf16.mxu0 0
      %8687 = vmatpush2.bf16.msra.mxu0 0
      %8688 = vmatprep.subr.bf16.mxu0 0
      %8689 = vmatpush2.bf16.msra.mxu0 0
      %8690 = vmatprep.subr.bf16.mxu0 0
      %8691 = vmatpush2.bf16.msra.mxu0 0
      %8692 = vmatprep.subr.bf16.mxu0 0
      %8693 = vmatpush2.bf16.msra.mxu0 0
      %8694 = vmatprep.subr.bf16.mxu0 0
      %8695 = vmatpush2.bf16.msra.mxu0 0
      %8696 = vmatprep.mubr.bf16.mxu0 0
      %8697 = vmatmul.mubr.bf16.gmra.mxu0 %v8662
      %v8698 = vpop.f32.mrf.mxu0
      %v8699 = vadd.f32 0.0, %v8698
      %v8700 = vpop.f32.mrf.mxu0
      %v8701 = vadd.f32 0.0, %v8700
      %v8702 = vpop.f32.mrf.mxu0
      %v8703 = vpop.f32.mrf.mxu0
      %8704 = vdwg.mxu0
      %8705 = vmatprep.subr.bf16.mxu0 %v8379
      %8706 = vmatpush1.bf16.msra.mxu0 %v8378
      %8707 = vmatprep.subr.bf16.mxu0 %v8377
      %8708 = vmatpush1.bf16.msra.mxu0 %v8376
      %8709 = vmatprep.subr.bf16.mxu0 %v8375
      %8710 = vmatpush1.bf16.msra.mxu0 %v8374
      %8711 = vmatprep.subr.bf16.mxu0 %v8373
      %8712 = vmatpush1.bf16.msra.mxu0 %v8372
      %8713 = vmatprep.subr.bf16.mxu0 %v8371
      %8714 = vmatpush1.bf16.msra.mxu0 %v8370
      %8715 = vmatprep.subr.bf16.mxu0 %v8369
      %8716 = vmatpush1.bf16.msra.mxu0 %v8368
      %8717 = vmatprep.subr.bf16.mxu0 %v8367
      %8718 = vmatpush1.bf16.msra.mxu0 %v8366
      %8719 = vmatprep.subr.bf16.mxu0 %v8365
      %8720 = vmatpush1.bf16.msra.mxu0 %v8364
      %8721 = vmatprep.subr.bf16.mxu0 0
      %8722 = vmatpush2.bf16.msra.mxu0 0
      %8723 = vmatprep.subr.bf16.mxu0 0
      %8724 = vmatpush2.bf16.msra.mxu0 0
      %8725 = vmatprep.subr.bf16.mxu0 0
      %8726 = vmatpush2.bf16.msra.mxu0 0
      %8727 = vmatprep.subr.bf16.mxu0 0
      %8728 = vmatpush2.bf16.msra.mxu0 0
      %8729 = vmatprep.subr.bf16.mxu0 0
      %8730 = vmatpush2.bf16.msra.mxu0 0
      %8731 = vmatprep.subr.bf16.mxu0 0
      %8732 = vmatpush2.bf16.msra.mxu0 0
      %8733 = vmatprep.subr.bf16.mxu0 0
      %8734 = vmatpush2.bf16.msra.mxu0 0
      %8735 = vmatprep.subr.bf16.mxu0 0
      %8736 = vmatpush2.bf16.msra.mxu0 0
      %8737 = vmatprep.mubr.bf16.mxu0 0
      %8738 = vmatmul.mubr.bf16.gmra.mxu0 %v8658
      %v8739 = vpop.f32.mrf.mxu0
      %v8740 = vadd.f32 %v8699, %v8739
      %v8741 = vpop.f32.mrf.mxu0
      %v8742 = vadd.f32 %v8701, %v8741
      %v8743 = vpop.f32.mrf.mxu0
      %v8744 = vpop.f32.mrf.mxu0
      %8745 = vdwg.mxu0
      %v8748 = vcombine.low %v8740, %v8742
      %v8750 = vadd.f32 %v8663, %v8748
      %8751 = vst [vmem:[#allocation6] sm:$0xff] %v8750
      %v8752 = vld [vmem:[#allocation7] sm:$0xff]
      %8753 = vmatprep.subr.bf16.mxu0 %v8379
      %8754 = vmatpush1.bf16.msra.mxu0 %v8378
      %8755 = vmatprep.subr.bf16.mxu0 %v8377
      %8756 = vmatpush1.bf16.msra.mxu0 %v8376
      %8757 = vmatprep.subr.bf16.mxu0 %v8375
      %8758 = vmatpush1.bf16.msra.mxu0 %v8374
      %8759 = vmatprep.subr.bf16.mxu0 %v8373
      %8760 = vmatpush1.bf16.msra.mxu0 %v8372
      %8761 = vmatprep.subr.bf16.mxu0 %v8371
      %8762 = vmatpush1.bf16.msra.mxu0 %v8370
      %8763 = vmatprep.subr.bf16.mxu0 %v8369
      %8764 = vmatpush1.bf16.msra.mxu0 %v8368
      %8765 = vmatprep.subr.bf16.mxu0 %v8367
      %8766 = vmatpush1.bf16.msra.mxu0 %v8366
      %8767 = vmatprep.subr.bf16.mxu0 %v8365
      %8768 = vmatpush1.bf16.msra.mxu0 %v8364
      %8769 = vmatprep.subr.bf16.mxu0 0
      %8770 = vmatpush2.bf16.msra.mxu0 0
      %8771 = vmatprep.subr.bf16.mxu0 0
      %8772 = vmatpush2.bf16.msra.mxu0 0
      %8773 = vmatprep.subr.bf16.mxu0 0
      %8774 = vmatpush2.bf16.msra.mxu0 0
      %8775 = vmatprep.subr.bf16.mxu0 0
      %8776 = vmatpush2.bf16.msra.mxu0 0
      %8777 = vmatprep.subr.bf16.mxu0 0
      %8778 = vmatpush2.bf16.msra.mxu0 0
      %8779 = vmatprep.subr.bf16.mxu0 0
      %8780 = vmatpush2.bf16.msra.mxu0 0
      %8781 = vmatprep.subr.bf16.mxu0 0
      %8782 = vmatpush2.bf16.msra.mxu0 0
      %8783 = vmatprep.subr.bf16.mxu0 0
      %8784 = vmatpush2.bf16.msra.mxu0 0
      %8785 = vmatprep.mubr.bf16.mxu0 0
      %8786 = vmatmul.mubr.bf16.gmra.mxu0 %v8662
      %v8787 = vpop.f32.mrf.mxu0
      %v8788 = vadd.f32 0.0, %v8787
      %v8789 = vpop.f32.mrf.mxu0
      %v8790 = vadd.f32 0.0, %v8789
      %v8791 = vpop.f32.mrf.mxu0
      %v8792 = vpop.f32.mrf.mxu0
      %8793 = vdwg.mxu0
      %8794 = vmatprep.subr.bf16.mxu0 %v8510
      %8795 = vmatpush1.bf16.msra.mxu0 %v8509
      %8796 = vmatprep.subr.bf16.mxu0 %v8508
      %8797 = vmatpush1.bf16.msra.mxu0 %v8507
      %8798 = vmatprep.subr.bf16.mxu0 %v8506
      %8799 = vmatpush1.bf16.msra.mxu0 %v8505
      %8800 = vmatprep.subr.bf16.mxu0 %v8504
      %8801 = vmatpush1.bf16.msra.mxu0 %v8503
      %8802 = vmatprep.subr.bf16.mxu0 %v8502
      %8803 = vmatpush1.bf16.msra.mxu0 %v8501
      %8804 = vmatprep.subr.bf16.mxu0 %v8500
      %8805 = vmatpush1.bf16.msra.mxu0 %v8499
      %8806 = vmatprep.subr.bf16.mxu0 %v8498
      %8807 = vmatpush1.bf16.msra.mxu0 %v8497
      %8808 = vmatprep.subr.bf16.mxu0 %v8496
      %8809 = vmatpush1.bf16.msra.mxu0 %v8495
      %8810 = vmatprep.subr.bf16.mxu0 0
      %8811 = vmatpush2.bf16.msra.mxu0 0
      %8812 = vmatprep.subr.bf16.mxu0 0
      %8813 = vmatpush2.bf16.msra.mxu0 0
      %8814 = vmatprep.subr.bf16.mxu0 0
      %8815 = vmatpush2.bf16.msra.mxu0 0
      %8816 = vmatprep.subr.bf16.mxu0 0
      %8817 = vmatpush2.bf16.msra.mxu0 0
      %8818 = vmatprep.subr.bf16.mxu0 0
      %8819 = vmatpush2.bf16.msra.mxu0 0
      %8820 = vmatprep.subr.bf16.mxu0 0
      %8821 = vmatpush2.bf16.msra.mxu0 0
      %8822 = vmatprep.subr.bf16.mxu0 0
      %8823 = vmatpush2.bf16.msra.mxu0 0
      %8824 = vmatprep.subr.bf16.mxu0 0
      %8825 = vmatpush2.bf16.msra.mxu0 0
      %8826 = vmatprep.mubr.bf16.mxu0 0
      %8827 = vmatmul.mubr.bf16.gmra.mxu0 %v8658
      %v8828 = vpop.f32.mrf.mxu0
      %v8829 = vadd.f32 0.0, %v8828
      %v8830 = vpop.f32.mrf.mxu0
      %v8831 = vadd.f32 0.0, %v8830
      %v8832 = vpop.f32.mrf.mxu0
      %v8833 = vpop.f32.mrf.mxu0
      %8834 = vdwg.mxu0
      %v8835 = vsub.f32 %v8788, %v8829
      %v8836 = vsub.f32 %v8790, %v8831
      %v8839 = vcombine.low %v8835, %v8836
      %v8841 = vadd.f32 %v8752, %v8839
      %8842 = vst [vmem:[#allocation7] sm:$0xff] %v8841
      // Predicated region
      $region69: #{dc_wenqi_forward.1} parent=63 // pred_check
        %p8843 = pneg %p791
      $region70: #{dc_wenqi_forward.1} parent=63 // pred_check_branch
        %8845 = sbr.rel (%p8843) target = $region72
      $region71: #{dc_wenqi_forward.1} parent=63 // pred_region
        %v8846 = vld [vmem:[%s694] sm:$0xf]
        %v8847 = vunpack.c.l.bf16 %v8846
        %v8848 = vld [vmem:[%s699] sm:$0xf]
        %v8849 = vunpack.c.l.bf16 %v8848
        %v8850 = vld [vmem:[#allocation6] sm:$0xff]
        %v8851 = vld [vmem:[#allocation7] sm:$0xff]
        %v8852 = vmul.f32 %v8847, %v8850
        %v8853 = vmul.f32 %v8849, %v8851
        %v8854 = vadd.f32 %v8852, %v8853
        %v8856 = vcombine.high %v8854, %v8854
        %vm8858 = vcmask 1043456
        %v8859 = vsel %vm8858, %v8854, 0.0
        %v8860 = vrot.slane %v8859, 4
        %v8861 = vadd.f32 %v8859, %v8860
        %v8862 = vrot.slane %v8861, 2
        %v8863 = vadd.f32 %v8861, %v8862
        %v8864 = vrot.slane %v8863, 1
        %v8865 = vadd.f32 %v8863, %v8864
        %v8866 = vsel %vm8858, %v8856, 0.0
        %v8867 = vrot.slane %v8866, 4
        %v8868 = vadd.f32 %v8866, %v8867
        %v8869 = vrot.slane %v8868, 2
        %v8870 = vadd.f32 %v8868, %v8869
        %v8871 = vrot.slane %v8870, 1
        %v8872 = vadd.f32 %v8870, %v8871
        %v8875 = vcombine.low %v8865, %v8872
        %v8877 = vunpack.c.l.s4 1966171168
        %v8878 = vunpack.c.0.s8 %v8877
        %v8879 = vlaneseq
        %v8880 = vshrl.u32 %v8879, 7
        %v8881 = vsub.s32 %v8878, %v8880
        %v8882 = vrot.slane %v8875, %v8881
        %v8884 = vunpack.c.l.s4 1966171168
        %v8885 = vunpack.c.0.s8 %v8884
        %v8886 = vlaneseq
        %v8887 = vshrl.u32 %v8886, 7
        %v8888 = vsub.s32 %v8885, %v8887
        %v8889 = vrot.slane %v8882, %v8888
        %v8891 = vlaneseq
        %vm8892 = vcmp.ge.s32.totalorder %v8891, 0
        %vm8893 = vcmp.lt.s32.totalorder %v8891, 256
        %vm8894 = vmand %vm8892, %vm8893
        %8895 = vst.msk [vmem:[%s781] sm:$0x3] %vm8894, %v8889
        %v8896 = vmul.f32 %v8847, %v8851
        %v8897 = vmul.f32 %v8849, %v8850
        %v8898 = vsub.f32 %v8896, %v8897
        %v8900 = vcombine.high %v8898, %v8898
        %v8902 = vsel %vm8858, %v8898, 0.0
        %v8903 = vrot.slane %v8902, 4
        %v8904 = vadd.f32 %v8902, %v8903
        %v8905 = vrot.slane %v8904, 2
        %v8906 = vadd.f32 %v8904, %v8905
        %v8907 = vrot.slane %v8906, 1
        %v8908 = vadd.f32 %v8906, %v8907
        %v8909 = vsel %vm8858, %v8900, 0.0
        %v8910 = vrot.slane %v8909, 4
        %v8911 = vadd.f32 %v8909, %v8910
        %v8912 = vrot.slane %v8911, 2
        %v8913 = vadd.f32 %v8911, %v8912
        %v8914 = vrot.slane %v8913, 1
        %v8915 = vadd.f32 %v8913, %v8914
        %v8918 = vcombine.low %v8908, %v8915
        %v8920 = vunpack.c.l.s4 1966171168
        %v8921 = vunpack.c.0.s8 %v8920
        %v8922 = vlaneseq
        %v8923 = vshrl.u32 %v8922, 7
        %v8924 = vsub.s32 %v8921, %v8923
        %v8925 = vrot.slane %v8918, %v8924
        %v8927 = vunpack.c.l.s4 1966171168
        %v8928 = vunpack.c.0.s8 %v8927
        %v8929 = vlaneseq
        %v8930 = vshrl.u32 %v8929, 7
        %v8931 = vsub.s32 %v8928, %v8930
        %v8932 = vrot.slane %v8925, %v8931
        %8934 = vst.msk [vmem:[%s789] sm:$0x3] %vm8894, %v8932
      $region72: #{dc_wenqi_forward.1} parent=63 // pred_fallthru
        _
      %p8935 = scmp.lt.s32.totalorder %s30, 0
      %s8936 = scalar_select %p8935, %s30, 0
      %p8937 = scmp.lt.s32.totalorder %s29, 1
      %s8938 = scalar_select %p8937, %s29, 1
      %s8939 = smul.addr %s8938, 2
      %s8940 = smul.addr %s8936, 4
      %s8941 = sadd.s32 %s8939, %s8940
      %s8942 = scalar_lea.vmem %s11, %s8941
      %p8943 = scmp.lt.s32.totalorder %s30, 0
      %s8944 = scalar_select %p8943, %s30, 0
      %p8945 = scmp.lt.s32.totalorder %s29, 1
      %s8946 = scalar_select %p8945, %s29, 1
      %s8947 = smul.addr %s8946, 2
      %s8948 = smul.addr %s8944, 4
      %s8949 = sadd.s32 %s8947, %s8948
      %s8950 = scalar_lea.vmem %s12, %s8949
      // Predicated region
      $region73: #{dc_wenqi_forward.1} parent=63 // pred_check
        %p8951 = pneg %p377
      $region74: #{dc_wenqi_forward.1} parent=63 // pred_check_branch
        %8953 = sbr.rel (%p8951) target = $region76
      $region75: #{dc_wenqi_forward.1} parent=63 // pred_region
        _
      $region76: #{dc_wenqi_forward.1} parent=63 // pred_fallthru
        _
      // Predicated region
      $region77: #{dc_wenqi_forward.1} parent=63 // pred_check
        %p8954 = pneg %p405
      $region78: #{dc_wenqi_forward.1} parent=63 // pred_check_branch
        %8956 = sbr.rel (%p8954) target = $region80
      $region79: #{dc_wenqi_forward.1} parent=63 // pred_region
        _
      $region80: #{dc_wenqi_forward.1} parent=63 // pred_fallthru
        _
    $region64: #{dc_wenqi_forward.1} parent=5 // pred_fallthru
      _
    %p8957 = scmp.le.s32.totalorder 2, %s19
    // Predicated region
    $region81: #{dc_wenqi_forward.1} parent=5 // pred_check
      %p8958 = pneg %p8957
    $region82: #{dc_wenqi_forward.1} parent=5 // pred_check_branch
      %8960 = sbr.rel (%p8958) target = $region84
    $region83: #{dc_wenqi_forward.1} parent=5 // pred_region
      %s8961 = ssub.s32 %s19, 2
      // Predicated region
      $region85: #{dc_wenqi_forward.1} parent=83 // pred_check
        %p8962 = pneg %p383
      $region86: #{dc_wenqi_forward.1} parent=83 // pred_check_branch
        %8964 = sbr.rel (%p8962) target = $region88
      $region87: #{dc_wenqi_forward.1} parent=83 // pred_region
        %p8965 = scmp.lt.s32.totalorder %s33, 0
        %s8966 = scalar_select %p8965, %s33, 0
        %p8967 = scmp.lt.s32.totalorder %s32, 1
        %s8968 = scalar_select %p8967, %s32, 1
        %s8969 = smul.addr %s8968, 2
        %s8970 = smul.addr %s8966, 4
        %s8971 = sadd.s32 %s8969, %s8970
        %s8972 = scalar_lea.vmem %s11, %s8971
      $region88: #{dc_wenqi_forward.1} parent=83 // pred_fallthru
        _
      // Predicated region
      $region89: #{dc_wenqi_forward.1} parent=83 // pred_check
        %p8973 = pneg %p411
      $region90: #{dc_wenqi_forward.1} parent=83 // pred_check_branch
        %8975 = sbr.rel (%p8973) target = $region92
      $region91: #{dc_wenqi_forward.1} parent=83 // pred_region
        %p8976 = scmp.lt.s32.totalorder %s33, 0
        %s8977 = scalar_select %p8976, %s33, 0
        %p8978 = scmp.lt.s32.totalorder %s32, 1
        %s8979 = scalar_select %p8978, %s32, 1
        %s8980 = smul.addr %s8979, 2
        %s8981 = smul.addr %s8977, 4
        %s8982 = sadd.s32 %s8980, %s8981
        %s8983 = scalar_lea.vmem %s12, %s8982
      $region92: #{dc_wenqi_forward.1} parent=83 // pred_fallthru
        _
    $region84: #{dc_wenqi_forward.1} parent=5 // pred_fallthru
      _
  $region6: #{dc_wenqi_forward.1} parent=0 // loop_footer
    %s23 = sadd.s32 1, %s19
  $region7: #{dc_wenqi_forward.1} parent=0 // loop_footer_branch
    %18 = sbr.rel target = $region3
  $region8: #{dc_wenqi_forward.1} parent=0 // loop_exit
    _

</llo_original>
